<compile_context>
chip_gen: v7x
topology: tpu7x:2x2x1
jax: 0.10.0
libtpu: 0.0.40
codegen_flags: <defaults>
</compile_context>

<pallas_src>
import jax
import jax.numpy as jnp
from jax.experimental import pallas as pl
from jax.experimental.pallas import tpu as pltpu

# ----------------------------- configuration --------------------------------
VOCAB = 50
EMB_DIM = 32
HIDDEN = 32
LAYERS = 2
BATCH = 2
SEQ = 35          # forward hard-codes "35 - num_zeros", so T = 35
OUT_DIM = 4       # nn.Linear(hidden_dim, 4)
OUT_PAD = 128     # lane-dense padded head width


# ------------------------------- kernel --------------------------------------
def make_rnn_kernel(num_layers: int, T: int, Bp: int, H: int):
    """Kernel args:
       x (T*Bp, E) f32, lengths (Bp, 1) i32,
       w_rnn (L, 2, H, H)  [l,0]=w_ih  [l,1]=w_hh,
       b_rnn (L, 1, H),
       w_out (H, OUT_PAD), b_out (1, OUT_PAD),
       out (Bp, OUT_PAD),
       scratch seq (T*Bp, H)
    """

    def kernel(x_ref, len_ref, w_rnn_ref, b_rnn_ref, w_out_ref, b_out_ref,
               out_ref, seq_ref):
        lens = len_ref[...]                              # (Bp, 1) int32, once

        h = jnp.zeros((Bp, H), jnp.float32)
        for l in range(num_layers):
            # Per-layer weights loaded once, kept live across the time loop.
            w_ih = w_rnn_ref[l, 0, :, :]                 # (in, H)
            w_hh = w_rnn_ref[l, 1, :, :]                 # (H, H)
            b = b_rnn_ref[l, :, :]                       # (1, H)

            # One big input projection for all T*Bp rows (bias folded out of
            # the serial loop).  Layer 0 reads the embeddings; deeper layers
            # read the previous layer's per-step outputs from the scratch.
            src = x_ref if l == 0 else seq_ref
            seq_ref[...] = (jnp.dot(src[...], w_ih,
                                    preferred_element_type=jnp.float32) + b)

            h = jnp.zeros((Bp, H), jnp.float32)
            last_layer = (l == num_layers - 1)
            for t in range(T):                           # fully unrolled
                pre_t = seq_ref[t * Bp:(t + 1) * Bp, :]  # static 8-aligned slice
                h_new = jnp.tanh(
                    pre_t + jnp.dot(h, w_hh, preferred_element_type=jnp.float32))
                # packed-sequence semantics: freeze hidden past each length
                h = jnp.where(t < lens, h_new, h)
                if not last_layer:
                    # becomes the next layer's input sequence
                    seq_ref[t * Bp:(t + 1) * Bp, :] = h

        # Final Linear on hidden[-1]; output padded to 128 lanes (unmasked vst)
        out_ref[...] = (jnp.dot(h, w_out_ref[...],
                                preferred_element_type=jnp.float32)
                        + b_out_ref[...])

    return kernel


# ------------------------------ wrapper ---------------------------------------
def sentiment_rnn_forward(tokens, params):
    """tokens: (B, T) int32. Returns (B, OUT_DIM) float32."""
    B, T = tokens.shape
    emb_table = params["embedding"]                      # (VOCAB, E)
    layer_ws = params["rnn_layers"]                      # list of (w_ih, w_hh, b)
    w_out, b_out = params["w_out"], params["b_out"]
    E = emb_table.shape[1]
    H = layer_ws[0][1].shape[0]
    O = w_out.shape[1]
    L = len(layer_ws)
    assert E == H, "kernel stacks w_ih/w_hh; requires embedding_dim == hidden_dim"

    Bp = ((B + 7) // 8) * 8                              # batch -> sublane multiple

    # lengths = 35 - (input == 0).sum(dim=1)
    lengths = T - jnp.sum((tokens == 0).astype(jnp.int32), axis=1)       # (B,)
    lengths_p = jnp.zeros((Bp, 1), jnp.int32).at[:B, 0].set(lengths)

    # Embedding gather (plain-JAX glue) -> time-major, batch-padded, flattened.
    embeds = jnp.take(emb_table, tokens, axis=0).astype(jnp.float32)     # (B,T,E)
    embeds = jnp.transpose(embeds, (1, 0, 2))                            # (T,B,E)
    embeds = jnp.pad(embeds, ((0, 0), (0, Bp - B), (0, 0)))              # (T,Bp,E)
    embeds_flat = embeds.reshape(T * Bp, E)                              # (T*Bp,E)

    # Pack RNN weights into two stacked buffers (fewer, larger DMAs).
    w_rnn = jnp.stack([jnp.stack([w_ih, w_hh]) for (w_ih, w_hh, _) in layer_ws])
    b_rnn = jnp.stack([b for (_, _, b) in layer_ws])                     # (L,1,H)

    # Lane-pad the head so the final store is full-width.
    w_out_p = jnp.zeros((H, OUT_PAD), jnp.float32).at[:, :O].set(w_out)
    b_out_p = jnp.zeros((1, OUT_PAD), jnp.float32).at[:, :O].set(b_out)

    vmem = pl.BlockSpec(memory_space=pltpu.MemorySpace.VMEM)
    out_p = pl.pallas_call(
        make_rnn_kernel(L, T, Bp, H),
        out_shape=jax.ShapeDtypeStruct((Bp, OUT_PAD), jnp.float32),
        in_specs=[vmem] * 6,
        out_specs=vmem,
        scratch_shapes=[pltpu.VMEM((T * Bp, H), jnp.float32)],
    )(embeds_flat, lengths_p, w_rnn, b_rnn, w_out_p, b_out_p)
    return out_p[:B, :O]


# -------------------------- pure-JAX reference --------------------------------
def reference_forward(tokens, params):
    B, T = tokens.shape
    lengths = T - jnp.sum((tokens == 0).astype(jnp.int32), axis=1)
    embeds = jnp.take(params["embedding"], tokens, axis=0)   # (B, T, E)
    mask = (jnp.arange(T)[:, None] < lengths[None, :]).astype(jnp.float32)  # (T,B)

    hs = [jnp.zeros((B, HIDDEN), jnp.float32) for _ in params["rnn_layers"]]
    for t in range(T):
        inp = embeds[:, t, :]
        m = mask[t][:, None]
        for l, (w_ih, w_hh, b) in enumerate(params["rnn_layers"]):
            h_new = jnp.tanh(inp @ w_ih + hs[l] @ w_hh + b)
            hs[l] = m * h_new + (1.0 - m) * hs[l]
            inp = hs[l]
    return hs[-1] @ params["w_out"] + params["b_out"]


# ------------------------------ params / main ---------------------------------
def init_params(key):
    ks = jax.random.split(key, 3 + 3 * LAYERS)
    scale = 1.0 / jnp.sqrt(HIDDEN)
    params = {
        "embedding": jax.random.normal(ks[0], (VOCAB, EMB_DIM), jnp.float32) * 0.1,
        "w_out": jax.random.uniform(ks[1], (HIDDEN, OUT_DIM), jnp.float32,
                                    -scale, scale),
        "b_out": jax.random.uniform(ks[2], (1, OUT_DIM), jnp.float32,
                                    -scale, scale),
        "rnn_layers": [],
    }
    for l in range(LAYERS):
        in_dim = EMB_DIM if l == 0 else HIDDEN
        k_ih, k_hh, k_b = jax.random.split(ks[3 + l], 3)
        w_ih = jax.random.uniform(k_ih, (in_dim, HIDDEN), jnp.float32, -scale, scale)
        w_hh = jax.random.uniform(k_hh, (HIDDEN, HIDDEN), jnp.float32, -scale, scale)
        # b = b_ih + b_hh combined
        b = jax.random.uniform(k_b, (1, HIDDEN), jnp.float32, -scale, scale)
        params["rnn_layers"].append((w_ih, w_hh, b))
    return params


if __name__ == "__main__":
    key = jax.random.PRNGKey(0)
    k_par, k_tok = jax.random.split(key)
    params = init_params(k_par)

    # Token ids with end-padding (zeros), mimicking real padded batches.
    tokens = jax.random.randint(k_tok, (BATCH, SEQ), 1, VOCAB, dtype=jnp.int32)
    seq_lengths = jnp.array([SEQ, 20], dtype=jnp.int32)       # per-example lengths
    pad_mask = jnp.arange(SEQ)[None, :] < seq_lengths[:, None]
    tokens = jnp.where(pad_mask, tokens, 0)

    out = sentiment_rnn_forward(tokens, params)
    out = jax.block_until_ready(out)

    ref = reference_forward(tokens, params)
    assert out.shape == (BATCH, OUT_DIM)
    assert jnp.allclose(out, ref, atol=1e-4, rtol=1e-4), (out, ref)

    print("KERNEL_OK")
</pallas_src>

<mosaic_0001>
module attributes {stable_mosaic.version = 11 : i64} {
  func.func @kernel(%arg0: memref<280x32xf32, #tpu.memory_space<vmem>>, %arg1: memref<8x1xi32, #tpu.memory_space<vmem>>, %arg2: memref<2x2x32x32xf32, #tpu.memory_space<vmem>>, %arg3: memref<2x1x32xf32, #tpu.memory_space<vmem>>, %arg4: memref<32x128xf32, #tpu.memory_space<vmem>>, %arg5: memref<1x128xf32, #tpu.memory_space<vmem>>, %arg6: memref<8x128xf32, #tpu.memory_space<vmem>>, %arg7: memref<280x32xf32, #tpu.memory_space<vmem>>) attributes {dimension_semantics = [], scalar_prefetch = 0 : i64, scratch_operands = 1 : i64, tpu.core_type = #tpu.core_type<tc>} {
    %c0 = arith.constant 0 : index
    %c0_0 = arith.constant 0 : index
    %0 = vector.load %arg1[%c0, %c0_0] : memref<8x1xi32, #tpu.memory_space<vmem>>, vector<8x1xi32>
    %c0_1 = arith.constant 0 : index
    %c0_2 = arith.constant 0 : index
    %c0_3 = arith.constant 0 : index
    %c0_4 = arith.constant 0 : index
    %1 = vector.load %arg2[%c0_1, %c0_2, %c0_3, %c0_4] : memref<2x2x32x32xf32, #tpu.memory_space<vmem>>, vector<1x1x32x32xf32>
    %2 = vector.shape_cast %1 : vector<1x1x32x32xf32> to vector<32x32xf32>
    %c0_5 = arith.constant 0 : index
    %c1 = arith.constant 1 : index
    %c0_6 = arith.constant 0 : index
    %c0_7 = arith.constant 0 : index
    %3 = vector.load %arg2[%c0_5, %c1, %c0_6, %c0_7] : memref<2x2x32x32xf32, #tpu.memory_space<vmem>>, vector<1x1x32x32xf32>
    %4 = vector.shape_cast %3 : vector<1x1x32x32xf32> to vector<32x32xf32>
    %c0_8 = arith.constant 0 : index
    %c0_9 = arith.constant 0 : index
    %c0_10 = arith.constant 0 : index
    %5 = vector.load %arg3[%c0_8, %c0_9, %c0_10] : memref<2x1x32xf32, #tpu.memory_space<vmem>>, vector<1x1x32xf32>
    %6 = vector.shape_cast %5 : vector<1x1x32xf32> to vector<1x32xf32>
    %c0_11 = arith.constant 0 : index
    %c0_12 = arith.constant 0 : index
    %7 = vector.load %arg0[%c0_11, %c0_12] : memref<280x32xf32, #tpu.memory_space<vmem>>, vector<280x32xf32>
    %cst = arith.constant dense<0.000000e+00> : vector<280x32xf32>
    %8 = tpu.matmul %7, %2, %cst {dimension_numbers = #tpu.dot_dimension_numbers<[1], [0], [0], [1], [0, 0, 1, 1], [], []>} : vector<280x32xf32>, vector<32x32xf32>, vector<280x32xf32> -> vector<280x32xf32>
    %9 = vector.broadcast %6 : vector<1x32xf32> to vector<280x32xf32>
    %10 = arith.addf %8, %9 : vector<280x32xf32>
    %c0_13 = arith.constant 0 : index
    %c0_14 = arith.constant 0 : index
    %11 = vector.load %arg7[%c0_13, %c0_14] : memref<280x32xf32, #tpu.memory_space<vmem>>, vector<280x32xf32>
    tpu.vector_store %arg7[%c0_13, %c0_14], %10 {strides = array<i32>} : memref<280x32xf32, #tpu.memory_space<vmem>>, vector<280x32xf32>,
    %cst_15 = arith.constant 0.000000e+00 : f32
    %12 = vector.broadcast %cst_15 : f32 to vector<8x32xf32>
    %c0_16 = arith.constant 0 : index
    %c0_17 = arith.constant 0 : index
    %13 = vector.load %arg7[%c0_16, %c0_17] : memref<280x32xf32, #tpu.memory_space<vmem>>, vector<8x32xf32>
    %cst_18 = arith.constant dense<0.000000e+00> : vector<8x32xf32>
    %14 = tpu.matmul %12, %4, %cst_18 {dimension_numbers = #tpu.dot_dimension_numbers<[1], [0], [0], [1], [0, 0, 1, 1], [], []>} : vector<8x32xf32>, vector<32x32xf32>, vector<8x32xf32> -> vector<8x32xf32>
    %15 = arith.addf %13, %14 : vector<8x32xf32>
    %16 = math.tanh %15 : vector<8x32xf32>
    %c0_i32 = arith.constant 0 : i32
    %17 = vector.broadcast %c0_i32 : i32 to vector<8x1xi32>
    %18 = arith.cmpi sgt, %0, %17 : vector<8x1xi32>
    %19 = vector.shape_cast %18 : vector<8x1xi1> to vector<8x1xi1>
    %20 = vector.broadcast %19 : vector<8x1xi1> to vector<8x32xi1>
    %21 = arith.select %20, %16, %12 : vector<8x32xi1>, vector<8x32xf32>
    %c0_19 = arith.constant 0 : index
    %c0_20 = arith.constant 0 : index
    %22 = vector.load %arg7[%c0_19, %c0_20] : memref<280x32xf32, #tpu.memory_space<vmem>>, vector<8x32xf32>
    tpu.vector_store %arg7[%c0_19, %c0_20], %21 {strides = array<i32>} : memref<280x32xf32, #tpu.memory_space<vmem>>, vector<8x32xf32>,
    %c8 = arith.constant 8 : index
    %c0_21 = arith.constant 0 : index
    %23 = vector.load %arg7[%c8, %c0_21] : memref<280x32xf32, #tpu.memory_space<vmem>>, vector<8x32xf32>
    %cst_22 = arith.constant dense<0.000000e+00> : vector<8x32xf32>
    %24 = tpu.matmul %21, %4, %cst_22 {dimension_numbers = #tpu.dot_dimension_numbers<[1], [0], [0], [1], [0, 0, 1, 1], [], []>} : vector<8x32xf32>, vector<32x32xf32>, vector<8x32xf32> -> vector<8x32xf32>
    %25 = arith.addf %23, %24 : vector<8x32xf32>
    %26 = math.tanh %25 : vector<8x32xf32>
    %c1_i32 = arith.constant 1 : i32
    %27 = vector.broadcast %c1_i32 : i32 to vector<8x1xi32>
    %28 = arith.cmpi sgt, %0, %27 : vector<8x1xi32>
    %29 = vector.shape_cast %28 : vector<8x1xi1> to vector<8x1xi1>
    %30 = vector.broadcast %29 : vector<8x1xi1> to vector<8x32xi1>
    %31 = arith.select %30, %26, %21 : vector<8x32xi1>, vector<8x32xf32>
    %c8_23 = arith.constant 8 : index
    %c0_24 = arith.constant 0 : index
    %32 = vector.load %arg7[%c8_23, %c0_24] : memref<280x32xf32, #tpu.memory_space<vmem>>, vector<8x32xf32>
    tpu.vector_store %arg7[%c8_23, %c0_24], %31 {strides = array<i32>} : memref<280x32xf32, #tpu.memory_space<vmem>>, vector<8x32xf32>,
    %c16 = arith.constant 16 : index
    %c0_25 = arith.constant 0 : index
    %33 = vector.load %arg7[%c16, %c0_25] : memref<280x32xf32, #tpu.memory_space<vmem>>, vector<8x32xf32>
    %cst_26 = arith.constant dense<0.000000e+00> : vector<8x32xf32>
    %34 = tpu.matmul %31, %4, %cst_26 {dimension_numbers = #tpu.dot_dimension_numbers<[1], [0], [0], [1], [0, 0, 1, 1], [], []>} : vector<8x32xf32>, vector<32x32xf32>, vector<8x32xf32> -> vector<8x32xf32>
    %35 = arith.addf %33, %34 : vector<8x32xf32>
    %36 = math.tanh %35 : vector<8x32xf32>
    %c2_i32 = arith.constant 2 : i32
    %37 = vector.broadcast %c2_i32 : i32 to vector<8x1xi32>
    %38 = arith.cmpi sgt, %0, %37 : vector<8x1xi32>
    %39 = vector.shape_cast %38 : vector<8x1xi1> to vector<8x1xi1>
    %40 = vector.broadcast %39 : vector<8x1xi1> to vector<8x32xi1>
    %41 = arith.select %40, %36, %31 : vector<8x32xi1>, vector<8x32xf32>
    %c16_27 = arith.constant 16 : index
    %c0_28 = arith.constant 0 : index
    %42 = vector.load %arg7[%c16_27, %c0_28] : memref<280x32xf32, #tpu.memory_space<vmem>>, vector<8x32xf32>
    tpu.vector_store %arg7[%c16_27, %c0_28], %41 {strides = array<i32>} : memref<280x32xf32, #tpu.memory_space<vmem>>, vector<8x32xf32>,
    %c24 = arith.constant 24 : index
    %c0_29 = arith.constant 0 : index
    %43 = vector.load %arg7[%c24, %c0_29] : memref<280x32xf32, #tpu.memory_space<vmem>>, vector<8x32xf32>
    %cst_30 = arith.constant dense<0.000000e+00> : vector<8x32xf32>
    %44 = tpu.matmul %41, %4, %cst_30 {dimension_numbers = #tpu.dot_dimension_numbers<[1], [0], [0], [1], [0, 0, 1, 1], [], []>} : vector<8x32xf32>, vector<32x32xf32>, vector<8x32xf32> -> vector<8x32xf32>
    %45 = arith.addf %43, %44 : vector<8x32xf32>
    %46 = math.tanh %45 : vector<8x32xf32>
    %c3_i32 = arith.constant 3 : i32
    %47 = vector.broadcast %c3_i32 : i32 to vector<8x1xi32>
    %48 = arith.cmpi sgt, %0, %47 : vector<8x1xi32>
    %49 = vector.shape_cast %48 : vector<8x1xi1> to vector<8x1xi1>
    %50 = vector.broadcast %49 : vector<8x1xi1> to vector<8x32xi1>
    %51 = arith.select %50, %46, %41 : vector<8x32xi1>, vector<8x32xf32>
    %c24_31 = arith.constant 24 : index
    %c0_32 = arith.constant 0 : index
    %52 = vector.load %arg7[%c24_31, %c0_32] : memref<280x32xf32, #tpu.memory_space<vmem>>, vector<8x32xf32>
    tpu.vector_store %arg7[%c24_31, %c0_32], %51 {strides = array<i32>} : memref<280x32xf32, #tpu.memory_space<vmem>>, vector<8x32xf32>,
    %c32 = arith.constant 32 : index
    %c0_33 = arith.constant 0 : index
    %53 = vector.load %arg7[%c32, %c0_33] : memref<280x32xf32, #tpu.memory_space<vmem>>, vector<8x32xf32>
    %cst_34 = arith.constant dense<0.000000e+00> : vector<8x32xf32>
    %54 = tpu.matmul %51, %4, %cst_34 {dimension_numbers = #tpu.dot_dimension_numbers<[1], [0], [0], [1], [0, 0, 1, 1], [], []>} : vector<8x32xf32>, vector<32x32xf32>, vector<8x32xf32> -> vector<8x32xf32>
    %55 = arith.addf %53, %54 : vector<8x32xf32>
    %56 = math.tanh %55 : vector<8x32xf32>
    %c4_i32 = arith.constant 4 : i32
    %57 = vector.broadcast %c4_i32 : i32 to vector<8x1xi32>
    %58 = arith.cmpi sgt, %0, %57 : vector<8x1xi32>
    %59 = vector.shape_cast %58 : vector<8x1xi1> to vector<8x1xi1>
    %60 = vector.broadcast %59 : vector<8x1xi1> to vector<8x32xi1>
    %61 = arith.select %60, %56, %51 : vector<8x32xi1>, vector<8x32xf32>
    %c32_35 = arith.constant 32 : index
    %c0_36 = arith.constant 0 : index
    %62 = vector.load %arg7[%c32_35, %c0_36] : memref<280x32xf32, #tpu.memory_space<vmem>>, vector<8x32xf32>
    tpu.vector_store %arg7[%c32_35, %c0_36], %61 {strides = array<i32>} : memref<280x32xf32, #tpu.memory_space<vmem>>, vector<8x32xf32>,
    %c40 = arith.constant 40 : index
    %c0_37 = arith.constant 0 : index
    %63 = vector.load %arg7[%c40, %c0_37] : memref<280x32xf32, #tpu.memory_space<vmem>>, vector<8x32xf32>
    %cst_38 = arith.constant dense<0.000000e+00> : vector<8x32xf32>
    %64 = tpu.matmul %61, %4, %cst_38 {dimension_numbers = #tpu.dot_dimension_numbers<[1], [0], [0], [1], [0, 0, 1, 1], [], []>} : vector<8x32xf32>, vector<32x32xf32>, vector<8x32xf32> -> vector<8x32xf32>
    %65 = arith.addf %63, %64 : vector<8x32xf32>
    %66 = math.tanh %65 : vector<8x32xf32>
    %c5_i32 = arith.constant 5 : i32
    %67 = vector.broadcast %c5_i32 : i32 to vector<8x1xi32>
    %68 = arith.cmpi sgt, %0, %67 : vector<8x1xi32>
    %69 = vector.shape_cast %68 : vector<8x1xi1> to vector<8x1xi1>
    %70 = vector.broadcast %69 : vector<8x1xi1> to vector<8x32xi1>
    %71 = arith.select %70, %66, %61 : vector<8x32xi1>, vector<8x32xf32>
    %c40_39 = arith.constant 40 : index
    %c0_40 = arith.constant 0 : index
    %72 = vector.load %arg7[%c40_39, %c0_40] : memref<280x32xf32, #tpu.memory_space<vmem>>, vector<8x32xf32>
    tpu.vector_store %arg7[%c40_39, %c0_40], %71 {strides = array<i32>} : memref<280x32xf32, #tpu.memory_space<vmem>>, vector<8x32xf32>,
    %c48 = arith.constant 48 : index
    %c0_41 = arith.constant 0 : index
    %73 = vector.load %arg7[%c48, %c0_41] : memref<280x32xf32, #tpu.memory_space<vmem>>, vector<8x32xf32>
    %cst_42 = arith.constant dense<0.000000e+00> : vector<8x32xf32>
    %74 = tpu.matmul %71, %4, %cst_42 {dimension_numbers = #tpu.dot_dimension_numbers<[1], [0], [0], [1], [0, 0, 1, 1], [], []>} : vector<8x32xf32>, vector<32x32xf32>, vector<8x32xf32> -> vector<8x32xf32>
    %75 = arith.addf %73, %74 : vector<8x32xf32>
    %76 = math.tanh %75 : vector<8x32xf32>
    %c6_i32 = arith.constant 6 : i32
    %77 = vector.broadcast %c6_i32 : i32 to vector<8x1xi32>
    %78 = arith.cmpi sgt, %0, %77 : vector<8x1xi32>
    %79 = vector.shape_cast %78 : vector<8x1xi1> to vector<8x1xi1>
    %80 = vector.broadcast %79 : vector<8x1xi1> to vector<8x32xi1>
    %81 = arith.select %80, %76, %71 : vector<8x32xi1>, vector<8x32xf32>
    %c48_43 = arith.constant 48 : index
    %c0_44 = arith.constant 0 : index
    %82 = vector.load %arg7[%c48_43, %c0_44] : memref<280x32xf32, #tpu.memory_space<vmem>>, vector<8x32xf32>
    tpu.vector_store %arg7[%c48_43, %c0_44], %81 {strides = array<i32>} : memref<280x32xf32, #tpu.memory_space<vmem>>, vector<8x32xf32>,
    %c56 = arith.constant 56 : index
    %c0_45 = arith.constant 0 : index
    %83 = vector.load %arg7[%c56, %c0_45] : memref<280x32xf32, #tpu.memory_space<vmem>>, vector<8x32xf32>
    %cst_46 = arith.constant dense<0.000000e+00> : vector<8x32xf32>
    %84 = tpu.matmul %81, %4, %cst_46 {dimension_numbers = #tpu.dot_dimension_numbers<[1], [0], [0], [1], [0, 0, 1, 1], [], []>} : vector<8x32xf32>, vector<32x32xf32>, vector<8x32xf32> -> vector<8x32xf32>
    %85 = arith.addf %83, %84 : vector<8x32xf32>
    %86 = math.tanh %85 : vector<8x32xf32>
    %c7_i32 = arith.constant 7 : i32
    %87 = vector.broadcast %c7_i32 : i32 to vector<8x1xi32>
    %88 = arith.cmpi sgt, %0, %87 : vector<8x1xi32>
    %89 = vector.shape_cast %88 : vector<8x1xi1> to vector<8x1xi1>
    %90 = vector.broadcast %89 : vector<8x1xi1> to vector<8x32xi1>
    %91 = arith.select %90, %86, %81 : vector<8x32xi1>, vector<8x32xf32>
    %c56_47 = arith.constant 56 : index
    %c0_48 = arith.constant 0 : index
    %92 = vector.load %arg7[%c56_47, %c0_48] : memref<280x32xf32, #tpu.memory_space<vmem>>, vector<8x32xf32>
    tpu.vector_store %arg7[%c56_47, %c0_48], %91 {strides = array<i32>} : memref<280x32xf32, #tpu.memory_space<vmem>>, vector<8x32xf32>,
    %c64 = arith.constant 64 : index
    %c0_49 = arith.constant 0 : index
    %93 = vector.load %arg7[%c64, %c0_49] : memref<280x32xf32, #tpu.memory_space<vmem>>, vector<8x32xf32>
    %cst_50 = arith.constant dense<0.000000e+00> : vector<8x32xf32>
    %94 = tpu.matmul %91, %4, %cst_50 {dimension_numbers = #tpu.dot_dimension_numbers<[1], [0], [0], [1], [0, 0, 1, 1], [], []>} : vector<8x32xf32>, vector<32x32xf32>, vector<8x32xf32> -> vector<8x32xf32>
    %95 = arith.addf %93, %94 : vector<8x32xf32>
    %96 = math.tanh %95 : vector<8x32xf32>
    %c8_i32 = arith.constant 8 : i32
    %97 = vector.broadcast %c8_i32 : i32 to vector<8x1xi32>
    %98 = arith.cmpi sgt, %0, %97 : vector<8x1xi32>
    %99 = vector.shape_cast %98 : vector<8x1xi1> to vector<8x1xi1>
    %100 = vector.broadcast %99 : vector<8x1xi1> to vector<8x32xi1>
    %101 = arith.select %100, %96, %91 : vector<8x32xi1>, vector<8x32xf32>
    %c64_51 = arith.constant 64 : index
    %c0_52 = arith.constant 0 : index
    %102 = vector.load %arg7[%c64_51, %c0_52] : memref<280x32xf32, #tpu.memory_space<vmem>>, vector<8x32xf32>
    tpu.vector_store %arg7[%c64_51, %c0_52], %101 {strides = array<i32>} : memref<280x32xf32, #tpu.memory_space<vmem>>, vector<8x32xf32>,
    %c72 = arith.constant 72 : index
    %c0_53 = arith.constant 0 : index
    %103 = vector.load %arg7[%c72, %c0_53] : memref<280x32xf32, #tpu.memory_space<vmem>>, vector<8x32xf32>
    %cst_54 = arith.constant dense<0.000000e+00> : vector<8x32xf32>
    %104 = tpu.matmul %101, %4, %cst_54 {dimension_numbers = #tpu.dot_dimension_numbers<[1], [0], [0], [1], [0, 0, 1, 1], [], []>} : vector<8x32xf32>, vector<32x32xf32>, vector<8x32xf32> -> vector<8x32xf32>
    %105 = arith.addf %103, %104 : vector<8x32xf32>
    %106 = math.tanh %105 : vector<8x32xf32>
    %c9_i32 = arith.constant 9 : i32
    %107 = vector.broadcast %c9_i32 : i32 to vector<8x1xi32>
    %108 = arith.cmpi sgt, %0, %107 : vector<8x1xi32>
    %109 = vector.shape_cast %108 : vector<8x1xi1> to vector<8x1xi1>
    %110 = vector.broadcast %109 : vector<8x1xi1> to vector<8x32xi1>
    %111 = arith.select %110, %106, %101 : vector<8x32xi1>, vector<8x32xf32>
    %c72_55 = arith.constant 72 : index
    %c0_56 = arith.constant 0 : index
    %112 = vector.load %arg7[%c72_55, %c0_56] : memref<280x32xf32, #tpu.memory_space<vmem>>, vector<8x32xf32>
    tpu.vector_store %arg7[%c72_55, %c0_56], %111 {strides = array<i32>} : memref<280x32xf32, #tpu.memory_space<vmem>>, vector<8x32xf32>,
    %c80 = arith.constant 80 : index
    %c0_57 = arith.constant 0 : index
    %113 = vector.load %arg7[%c80, %c0_57] : memref<280x32xf32, #tpu.memory_space<vmem>>, vector<8x32xf32>
    %cst_58 = arith.constant dense<0.000000e+00> : vector<8x32xf32>
    %114 = tpu.matmul %111, %4, %cst_58 {dimension_numbers = #tpu.dot_dimension_numbers<[1], [0], [0], [1], [0, 0, 1, 1], [], []>} : vector<8x32xf32>, vector<32x32xf32>, vector<8x32xf32> -> vector<8x32xf32>
    %115 = arith.addf %113, %114 : vector<8x32xf32>
    %116 = math.tanh %115 : vector<8x32xf32>
    %c10_i32 = arith.constant 10 : i32
    %117 = vector.broadcast %c10_i32 : i32 to vector<8x1xi32>
    %118 = arith.cmpi sgt, %0, %117 : vector<8x1xi32>
    %119 = vector.shape_cast %118 : vector<8x1xi1> to vector<8x1xi1>
    %120 = vector.broadcast %119 : vector<8x1xi1> to vector<8x32xi1>
    %121 = arith.select %120, %116, %111 : vector<8x32xi1>, vector<8x32xf32>
    %c80_59 = arith.constant 80 : index
    %c0_60 = arith.constant 0 : index
    %122 = vector.load %arg7[%c80_59, %c0_60] : memref<280x32xf32, #tpu.memory_space<vmem>>, vector<8x32xf32>
    tpu.vector_store %arg7[%c80_59, %c0_60], %121 {strides = array<i32>} : memref<280x32xf32, #tpu.memory_space<vmem>>, vector<8x32xf32>,
    %c88 = arith.constant 88 : index
    %c0_61 = arith.constant 0 : index
    %123 = vector.load %arg7[%c88, %c0_61] : memref<280x32xf32, #tpu.memory_space<vmem>>, vector<8x32xf32>
    %cst_62 = arith.constant dense<0.000000e+00> : vector<8x32xf32>
    %124 = tpu.matmul %121, %4, %cst_62 {dimension_numbers = #tpu.dot_dimension_numbers<[1], [0], [0], [1], [0, 0, 1, 1], [], []>} : vector<8x32xf32>, vector<32x32xf32>, vector<8x32xf32> -> vector<8x32xf32>
    %125 = arith.addf %123, %124 : vector<8x32xf32>
    %126 = math.tanh %125 : vector<8x32xf32>
    %c11_i32 = arith.constant 11 : i32
    %127 = vector.broadcast %c11_i32 : i32 to vector<8x1xi32>
    %128 = arith.cmpi sgt, %0, %127 : vector<8x1xi32>
    %129 = vector.shape_cast %128 : vector<8x1xi1> to vector<8x1xi1>
    %130 = vector.broadcast %129 : vector<8x1xi1> to vector<8x32xi1>
    %131 = arith.select %130, %126, %121 : vector<8x32xi1>, vector<8x32xf32>
    %c88_63 = arith.constant 88 : index
    %c0_64 = arith.constant 0 : index
    %132 = vector.load %arg7[%c88_63, %c0_64] : memref<280x32xf32, #tpu.memory_space<vmem>>, vector<8x32xf32>
    tpu.vector_store %arg7[%c88_63, %c0_64], %131 {strides = array<i32>} : memref<280x32xf32, #tpu.memory_space<vmem>>, vector<8x32xf32>,
    %c96 = arith.constant 96 : index
    %c0_65 = arith.constant 0 : index
    %133 = vector.load %arg7[%c96, %c0_65] : memref<280x32xf32, #tpu.memory_space<vmem>>, vector<8x32xf32>
    %cst_66 = arith.constant dense<0.000000e+00> : vector<8x32xf32>
    %134 = tpu.matmul %131, %4, %cst_66 {dimension_numbers = #tpu.dot_dimension_numbers<[1], [0], [0], [1], [0, 0, 1, 1], [], []>} : vector<8x32xf32>, vector<32x32xf32>, vector<8x32xf32> -> vector<8x32xf32>
    %135 = arith.addf %133, %134 : vector<8x32xf32>
    %136 = math.tanh %135 : vector<8x32xf32>
    %c12_i32 = arith.constant 12 : i32
    %137 = vector.broadcast %c12_i32 : i32 to vector<8x1xi32>
    %138 = arith.cmpi sgt, %0, %137 : vector<8x1xi32>
    %139 = vector.shape_cast %138 : vector<8x1xi1> to vector<8x1xi1>
    %140 = vector.broadcast %139 : vector<8x1xi1> to vector<8x32xi1>
    %141 = arith.select %140, %136, %131 : vector<8x32xi1>, vector<8x32xf32>
    %c96_67 = arith.constant 96 : index
    %c0_68 = arith.constant 0 : index
    %142 = vector.load %arg7[%c96_67, %c0_68] : memref<280x32xf32, #tpu.memory_space<vmem>>, vector<8x32xf32>
    tpu.vector_store %arg7[%c96_67, %c0_68], %141 {strides = array<i32>} : memref<280x32xf32, #tpu.memory_space<vmem>>, vector<8x32xf32>,
    %c104 = arith.constant 104 : index
    %c0_69 = arith.constant 0 : index
    %143 = vector.load %arg7[%c104, %c0_69] : memref<280x32xf32, #tpu.memory_space<vmem>>, vector<8x32xf32>
    %cst_70 = arith.constant dense<0.000000e+00> : vector<8x32xf32>
    %144 = tpu.matmul %141, %4, %cst_70 {dimension_numbers = #tpu.dot_dimension_numbers<[1], [0], [0], [1], [0, 0, 1, 1], [], []>} : vector<8x32xf32>, vector<32x32xf32>, vector<8x32xf32> -> vector<8x32xf32>
    %145 = arith.addf %143, %144 : vector<8x32xf32>
    %146 = math.tanh %145 : vector<8x32xf32>
    %c13_i32 = arith.constant 13 : i32
    %147 = vector.broadcast %c13_i32 : i32 to vector<8x1xi32>
    %148 = arith.cmpi sgt, %0, %147 : vector<8x1xi32>
    %149 = vector.shape_cast %148 : vector<8x1xi1> to vector<8x1xi1>
    %150 = vector.broadcast %149 : vector<8x1xi1> to vector<8x32xi1>
    %151 = arith.select %150, %146, %141 : vector<8x32xi1>, vector<8x32xf32>
    %c104_71 = arith.constant 104 : index
    %c0_72 = arith.constant 0 : index
    %152 = vector.load %arg7[%c104_71, %c0_72] : memref<280x32xf32, #tpu.memory_space<vmem>>, vector<8x32xf32>
    tpu.vector_store %arg7[%c104_71, %c0_72], %151 {strides = array<i32>} : memref<280x32xf32, #tpu.memory_space<vmem>>, vector<8x32xf32>,
    %c112 = arith.constant 112 : index
    %c0_73 = arith.constant 0 : index
    %153 = vector.load %arg7[%c112, %c0_73] : memref<280x32xf32, #tpu.memory_space<vmem>>, vector<8x32xf32>
    %cst_74 = arith.constant dense<0.000000e+00> : vector<8x32xf32>
    %154 = tpu.matmul %151, %4, %cst_74 {dimension_numbers = #tpu.dot_dimension_numbers<[1], [0], [0], [1], [0, 0, 1, 1], [], []>} : vector<8x32xf32>, vector<32x32xf32>, vector<8x32xf32> -> vector<8x32xf32>
    %155 = arith.addf %153, %154 : vector<8x32xf32>
    %156 = math.tanh %155 : vector<8x32xf32>
    %c14_i32 = arith.constant 14 : i32
    %157 = vector.broadcast %c14_i32 : i32 to vector<8x1xi32>
    %158 = arith.cmpi sgt, %0, %157 : vector<8x1xi32>
    %159 = vector.shape_cast %158 : vector<8x1xi1> to vector<8x1xi1>
    %160 = vector.broadcast %159 : vector<8x1xi1> to vector<8x32xi1>
    %161 = arith.select %160, %156, %151 : vector<8x32xi1>, vector<8x32xf32>
    %c112_75 = arith.constant 112 : index
    %c0_76 = arith.constant 0 : index
    %162 = vector.load %arg7[%c112_75, %c0_76] : memref<280x32xf32, #tpu.memory_space<vmem>>, vector<8x32xf32>
    tpu.vector_store %arg7[%c112_75, %c0_76], %161 {strides = array<i32>} : memref<280x32xf32, #tpu.memory_space<vmem>>, vector<8x32xf32>,
    %c120 = arith.constant 120 : index
    %c0_77 = arith.constant 0 : index
    %163 = vector.load %arg7[%c120, %c0_77] : memref<280x32xf32, #tpu.memory_space<vmem>>, vector<8x32xf32>
    %cst_78 = arith.constant dense<0.000000e+00> : vector<8x32xf32>
    %164 = tpu.matmul %161, %4, %cst_78 {dimension_numbers = #tpu.dot_dimension_numbers<[1], [0], [0], [1], [0, 0, 1, 1], [], []>} : vector<8x32xf32>, vector<32x32xf32>, vector<8x32xf32> -> vector<8x32xf32>
    %165 = arith.addf %163, %164 : vector<8x32xf32>
    %166 = math.tanh %165 : vector<8x32xf32>
    %c15_i32 = arith.constant 15 : i32
    %167 = vector.broadcast %c15_i32 : i32 to vector<8x1xi32>
    %168 = arith.cmpi sgt, %0, %167 : vector<8x1xi32>
    %169 = vector.shape_cast %168 : vector<8x1xi1> to vector<8x1xi1>
    %170 = vector.broadcast %169 : vector<8x1xi1> to vector<8x32xi1>
    %171 = arith.select %170, %166, %161 : vector<8x32xi1>, vector<8x32xf32>
    %c120_79 = arith.constant 120 : index
    %c0_80 = arith.constant 0 : index
    %172 = vector.load %arg7[%c120_79, %c0_80] : memref<280x32xf32, #tpu.memory_space<vmem>>, vector<8x32xf32>
    tpu.vector_store %arg7[%c120_79, %c0_80], %171 {strides = array<i32>} : memref<280x32xf32, #tpu.memory_space<vmem>>, vector<8x32xf32>,
    %c128 = arith.constant 128 : index
    %c0_81 = arith.constant 0 : index
    %173 = vector.load %arg7[%c128, %c0_81] : memref<280x32xf32, #tpu.memory_space<vmem>>, vector<8x32xf32>
    %cst_82 = arith.constant dense<0.000000e+00> : vector<8x32xf32>
    %174 = tpu.matmul %171, %4, %cst_82 {dimension_numbers = #tpu.dot_dimension_numbers<[1], [0], [0], [1], [0, 0, 1, 1], [], []>} : vector<8x32xf32>, vector<32x32xf32>, vector<8x32xf32> -> vector<8x32xf32>
    %175 = arith.addf %173, %174 : vector<8x32xf32>
    %176 = math.tanh %175 : vector<8x32xf32>
    %c16_i32 = arith.constant 16 : i32
    %177 = vector.broadcast %c16_i32 : i32 to vector<8x1xi32>
    %178 = arith.cmpi sgt, %0, %177 : vector<8x1xi32>
    %179 = vector.shape_cast %178 : vector<8x1xi1> to vector<8x1xi1>
    %180 = vector.broadcast %179 : vector<8x1xi1> to vector<8x32xi1>
    %181 = arith.select %180, %176, %171 : vector<8x32xi1>, vector<8x32xf32>
    %c128_83 = arith.constant 128 : index
    %c0_84 = arith.constant 0 : index
    %182 = vector.load %arg7[%c128_83, %c0_84] : memref<280x32xf32, #tpu.memory_space<vmem>>, vector<8x32xf32>
    tpu.vector_store %arg7[%c128_83, %c0_84], %181 {strides = array<i32>} : memref<280x32xf32, #tpu.memory_space<vmem>>, vector<8x32xf32>,
    %c136 = arith.constant 136 : index
    %c0_85 = arith.constant 0 : index
    %183 = vector.load %arg7[%c136, %c0_85] : memref<280x32xf32, #tpu.memory_space<vmem>>, vector<8x32xf32>
    %cst_86 = arith.constant dense<0.000000e+00> : vector<8x32xf32>
    %184 = tpu.matmul %181, %4, %cst_86 {dimension_numbers = #tpu.dot_dimension_numbers<[1], [0], [0], [1], [0, 0, 1, 1], [], []>} : vector<8x32xf32>, vector<32x32xf32>, vector<8x32xf32> -> vector<8x32xf32>
    %185 = arith.addf %183, %184 : vector<8x32xf32>
    %186 = math.tanh %185 : vector<8x32xf32>
    %c17_i32 = arith.constant 17 : i32
    %187 = vector.broadcast %c17_i32 : i32 to vector<8x1xi32>
    %188 = arith.cmpi sgt, %0, %187 : vector<8x1xi32>
    %189 = vector.shape_cast %188 : vector<8x1xi1> to vector<8x1xi1>
    %190 = vector.broadcast %189 : vector<8x1xi1> to vector<8x32xi1>
    %191 = arith.select %190, %186, %181 : vector<8x32xi1>, vector<8x32xf32>
    %c136_87 = arith.constant 136 : index
    %c0_88 = arith.constant 0 : index
    %192 = vector.load %arg7[%c136_87, %c0_88] : memref<280x32xf32, #tpu.memory_space<vmem>>, vector<8x32xf32>
    tpu.vector_store %arg7[%c136_87, %c0_88], %191 {strides = array<i32>} : memref<280x32xf32, #tpu.memory_space<vmem>>, vector<8x32xf32>,
    %c144 = arith.constant 144 : index
    %c0_89 = arith.constant 0 : index
    %193 = vector.load %arg7[%c144, %c0_89] : memref<280x32xf32, #tpu.memory_space<vmem>>, vector<8x32xf32>
    %cst_90 = arith.constant dense<0.000000e+00> : vector<8x32xf32>
    %194 = tpu.matmul %191, %4, %cst_90 {dimension_numbers = #tpu.dot_dimension_numbers<[1], [0], [0], [1], [0, 0, 1, 1], [], []>} : vector<8x32xf32>, vector<32x32xf32>, vector<8x32xf32> -> vector<8x32xf32>
    %195 = arith.addf %193, %194 : vector<8x32xf32>
    %196 = math.tanh %195 : vector<8x32xf32>
    %c18_i32 = arith.constant 18 : i32
    %197 = vector.broadcast %c18_i32 : i32 to vector<8x1xi32>
    %198 = arith.cmpi sgt, %0, %197 : vector<8x1xi32>
    %199 = vector.shape_cast %198 : vector<8x1xi1> to vector<8x1xi1>
    %200 = vector.broadcast %199 : vector<8x1xi1> to vector<8x32xi1>
    %201 = arith.select %200, %196, %191 : vector<8x32xi1>, vector<8x32xf32>
    %c144_91 = arith.constant 144 : index
    %c0_92 = arith.constant 0 : index
    %202 = vector.load %arg7[%c144_91, %c0_92] : memref<280x32xf32, #tpu.memory_space<vmem>>, vector<8x32xf32>
    tpu.vector_store %arg7[%c144_91, %c0_92], %201 {strides = array<i32>} : memref<280x32xf32, #tpu.memory_space<vmem>>, vector<8x32xf32>,
    %c152 = arith.constant 152 : index
    %c0_93 = arith.constant 0 : index
    %203 = vector.load %arg7[%c152, %c0_93] : memref<280x32xf32, #tpu.memory_space<vmem>>, vector<8x32xf32>
    %cst_94 = arith.constant dense<0.000000e+00> : vector<8x32xf32>
    %204 = tpu.matmul %201, %4, %cst_94 {dimension_numbers = #tpu.dot_dimension_numbers<[1], [0], [0], [1], [0, 0, 1, 1], [], []>} : vector<8x32xf32>, vector<32x32xf32>, vector<8x32xf32> -> vector<8x32xf32>
    %205 = arith.addf %203, %204 : vector<8x32xf32>
    %206 = math.tanh %205 : vector<8x32xf32>
    %c19_i32 = arith.constant 19 : i32
    %207 = vector.broadcast %c19_i32 : i32 to vector<8x1xi32>
    %208 = arith.cmpi sgt, %0, %207 : vector<8x1xi32>
    %209 = vector.shape_cast %208 : vector<8x1xi1> to vector<8x1xi1>
    %210 = vector.broadcast %209 : vector<8x1xi1> to vector<8x32xi1>
    %211 = arith.select %210, %206, %201 : vector<8x32xi1>, vector<8x32xf32>
    %c152_95 = arith.constant 152 : index
    %c0_96 = arith.constant 0 : index
    %212 = vector.load %arg7[%c152_95, %c0_96] : memref<280x32xf32, #tpu.memory_space<vmem>>, vector<8x32xf32>
    tpu.vector_store %arg7[%c152_95, %c0_96], %211 {strides = array<i32>} : memref<280x32xf32, #tpu.memory_space<vmem>>, vector<8x32xf32>,
    %c160 = arith.constant 160 : index
    %c0_97 = arith.constant 0 : index
    %213 = vector.load %arg7[%c160, %c0_97] : memref<280x32xf32, #tpu.memory_space<vmem>>, vector<8x32xf32>
    %cst_98 = arith.constant dense<0.000000e+00> : vector<8x32xf32>
    %214 = tpu.matmul %211, %4, %cst_98 {dimension_numbers = #tpu.dot_dimension_numbers<[1], [0], [0], [1], [0, 0, 1, 1], [], []>} : vector<8x32xf32>, vector<32x32xf32>, vector<8x32xf32> -> vector<8x32xf32>
    %215 = arith.addf %213, %214 : vector<8x32xf32>
    %216 = math.tanh %215 : vector<8x32xf32>
    %c20_i32 = arith.constant 20 : i32
    %217 = vector.broadcast %c20_i32 : i32 to vector<8x1xi32>
    %218 = arith.cmpi sgt, %0, %217 : vector<8x1xi32>
    %219 = vector.shape_cast %218 : vector<8x1xi1> to vector<8x1xi1>
    %220 = vector.broadcast %219 : vector<8x1xi1> to vector<8x32xi1>
    %221 = arith.select %220, %216, %211 : vector<8x32xi1>, vector<8x32xf32>
    %c160_99 = arith.constant 160 : index
    %c0_100 = arith.constant 0 : index
    %222 = vector.load %arg7[%c160_99, %c0_100] : memref<280x32xf32, #tpu.memory_space<vmem>>, vector<8x32xf32>
    tpu.vector_store %arg7[%c160_99, %c0_100], %221 {strides = array<i32>} : memref<280x32xf32, #tpu.memory_space<vmem>>, vector<8x32xf32>,
    %c168 = arith.constant 168 : index
    %c0_101 = arith.constant 0 : index
    %223 = vector.load %arg7[%c168, %c0_101] : memref<280x32xf32, #tpu.memory_space<vmem>>, vector<8x32xf32>
    %cst_102 = arith.constant dense<0.000000e+00> : vector<8x32xf32>
    %224 = tpu.matmul %221, %4, %cst_102 {dimension_numbers = #tpu.dot_dimension_numbers<[1], [0], [0], [1], [0, 0, 1, 1], [], []>} : vector<8x32xf32>, vector<32x32xf32>, vector<8x32xf32> -> vector<8x32xf32>
    %225 = arith.addf %223, %224 : vector<8x32xf32>
    %226 = math.tanh %225 : vector<8x32xf32>
    %c21_i32 = arith.constant 21 : i32
    %227 = vector.broadcast %c21_i32 : i32 to vector<8x1xi32>
    %228 = arith.cmpi sgt, %0, %227 : vector<8x1xi32>
    %229 = vector.shape_cast %228 : vector<8x1xi1> to vector<8x1xi1>
    %230 = vector.broadcast %229 : vector<8x1xi1> to vector<8x32xi1>
    %231 = arith.select %230, %226, %221 : vector<8x32xi1>, vector<8x32xf32>
    %c168_103 = arith.constant 168 : index
    %c0_104 = arith.constant 0 : index
    %232 = vector.load %arg7[%c168_103, %c0_104] : memref<280x32xf32, #tpu.memory_space<vmem>>, vector<8x32xf32>
    tpu.vector_store %arg7[%c168_103, %c0_104], %231 {strides = array<i32>} : memref<280x32xf32, #tpu.memory_space<vmem>>, vector<8x32xf32>,
    %c176 = arith.constant 176 : index
    %c0_105 = arith.constant 0 : index
    %233 = vector.load %arg7[%c176, %c0_105] : memref<280x32xf32, #tpu.memory_space<vmem>>, vector<8x32xf32>
    %cst_106 = arith.constant dense<0.000000e+00> : vector<8x32xf32>
    %234 = tpu.matmul %231, %4, %cst_106 {dimension_numbers = #tpu.dot_dimension_numbers<[1], [0], [0], [1], [0, 0, 1, 1], [], []>} : vector<8x32xf32>, vector<32x32xf32>, vector<8x32xf32> -> vector<8x32xf32>
    %235 = arith.addf %233, %234 : vector<8x32xf32>
    %236 = math.tanh %235 : vector<8x32xf32>
    %c22_i32 = arith.constant 22 : i32
    %237 = vector.broadcast %c22_i32 : i32 to vector<8x1xi32>
    %238 = arith.cmpi sgt, %0, %237 : vector<8x1xi32>
    %239 = vector.shape_cast %238 : vector<8x1xi1> to vector<8x1xi1>
    %240 = vector.broadcast %239 : vector<8x1xi1> to vector<8x32xi1>
    %241 = arith.select %240, %236, %231 : vector<8x32xi1>, vector<8x32xf32>
    %c176_107 = arith.constant 176 : index
    %c0_108 = arith.constant 0 : index
    %242 = vector.load %arg7[%c176_107, %c0_108] : memref<280x32xf32, #tpu.memory_space<vmem>>, vector<8x32xf32>
    tpu.vector_store %arg7[%c176_107, %c0_108], %241 {strides = array<i32>} : memref<280x32xf32, #tpu.memory_space<vmem>>, vector<8x32xf32>,
    %c184 = arith.constant 184 : index
    %c0_109 = arith.constant 0 : index
    %243 = vector.load %arg7[%c184, %c0_109] : memref<280x32xf32, #tpu.memory_space<vmem>>, vector<8x32xf32>
    %cst_110 = arith.constant dense<0.000000e+00> : vector<8x32xf32>
    %244 = tpu.matmul %241, %4, %cst_110 {dimension_numbers = #tpu.dot_dimension_numbers<[1], [0], [0], [1], [0, 0, 1, 1], [], []>} : vector<8x32xf32>, vector<32x32xf32>, vector<8x32xf32> -> vector<8x32xf32>
    %245 = arith.addf %243, %244 : vector<8x32xf32>
    %246 = math.tanh %245 : vector<8x32xf32>
    %c23_i32 = arith.constant 23 : i32
    %247 = vector.broadcast %c23_i32 : i32 to vector<8x1xi32>
    %248 = arith.cmpi sgt, %0, %247 : vector<8x1xi32>
    %249 = vector.shape_cast %248 : vector<8x1xi1> to vector<8x1xi1>
    %250 = vector.broadcast %249 : vector<8x1xi1> to vector<8x32xi1>
    %251 = arith.select %250, %246, %241 : vector<8x32xi1>, vector<8x32xf32>
    %c184_111 = arith.constant 184 : index
    %c0_112 = arith.constant 0 : index
    %252 = vector.load %arg7[%c184_111, %c0_112] : memref<280x32xf32, #tpu.memory_space<vmem>>, vector<8x32xf32>
    tpu.vector_store %arg7[%c184_111, %c0_112], %251 {strides = array<i32>} : memref<280x32xf32, #tpu.memory_space<vmem>>, vector<8x32xf32>,
    %c192 = arith.constant 192 : index
    %c0_113 = arith.constant 0 : index
    %253 = vector.load %arg7[%c192, %c0_113] : memref<280x32xf32, #tpu.memory_space<vmem>>, vector<8x32xf32>
    %cst_114 = arith.constant dense<0.000000e+00> : vector<8x32xf32>
    %254 = tpu.matmul %251, %4, %cst_114 {dimension_numbers = #tpu.dot_dimension_numbers<[1], [0], [0], [1], [0, 0, 1, 1], [], []>} : vector<8x32xf32>, vector<32x32xf32>, vector<8x32xf32> -> vector<8x32xf32>
    %255 = arith.addf %253, %254 : vector<8x32xf32>
    %256 = math.tanh %255 : vector<8x32xf32>
    %c24_i32 = arith.constant 24 : i32
    %257 = vector.broadcast %c24_i32 : i32 to vector<8x1xi32>
    %258 = arith.cmpi sgt, %0, %257 : vector<8x1xi32>
    %259 = vector.shape_cast %258 : vector<8x1xi1> to vector<8x1xi1>
    %260 = vector.broadcast %259 : vector<8x1xi1> to vector<8x32xi1>
    %261 = arith.select %260, %256, %251 : vector<8x32xi1>, vector<8x32xf32>
    %c192_115 = arith.constant 192 : index
    %c0_116 = arith.constant 0 : index
    %262 = vector.load %arg7[%c192_115, %c0_116] : memref<280x32xf32, #tpu.memory_space<vmem>>, vector<8x32xf32>
    tpu.vector_store %arg7[%c192_115, %c0_116], %261 {strides = array<i32>} : memref<280x32xf32, #tpu.memory_space<vmem>>, vector<8x32xf32>,
    %c200 = arith.constant 200 : index
    %c0_117 = arith.constant 0 : index
    %263 = vector.load %arg7[%c200, %c0_117] : memref<280x32xf32, #tpu.memory_space<vmem>>, vector<8x32xf32>
    %cst_118 = arith.constant dense<0.000000e+00> : vector<8x32xf32>
    %264 = tpu.matmul %261, %4, %cst_118 {dimension_numbers = #tpu.dot_dimension_numbers<[1], [0], [0], [1], [0, 0, 1, 1], [], []>} : vector<8x32xf32>, vector<32x32xf32>, vector<8x32xf32> -> vector<8x32xf32>
    %265 = arith.addf %263, %264 : vector<8x32xf32>
    %266 = math.tanh %265 : vector<8x32xf32>
    %c25_i32 = arith.constant 25 : i32
    %267 = vector.broadcast %c25_i32 : i32 to vector<8x1xi32>
    %268 = arith.cmpi sgt, %0, %267 : vector<8x1xi32>
    %269 = vector.shape_cast %268 : vector<8x1xi1> to vector<8x1xi1>
    %270 = vector.broadcast %269 : vector<8x1xi1> to vector<8x32xi1>
    %271 = arith.select %270, %266, %261 : vector<8x32xi1>, vector<8x32xf32>
    %c200_119 = arith.constant 200 : index
    %c0_120 = arith.constant 0 : index
    %272 = vector.load %arg7[%c200_119, %c0_120] : memref<280x32xf32, #tpu.memory_space<vmem>>, vector<8x32xf32>
    tpu.vector_store %arg7[%c200_119, %c0_120], %271 {strides = array<i32>} : memref<280x32xf32, #tpu.memory_space<vmem>>, vector<8x32xf32>,
    %c208 = arith.constant 208 : index
    %c0_121 = arith.constant 0 : index
    %273 = vector.load %arg7[%c208, %c0_121] : memref<280x32xf32, #tpu.memory_space<vmem>>, vector<8x32xf32>
    %cst_122 = arith.constant dense<0.000000e+00> : vector<8x32xf32>
    %274 = tpu.matmul %271, %4, %cst_122 {dimension_numbers = #tpu.dot_dimension_numbers<[1], [0], [0], [1], [0, 0, 1, 1], [], []>} : vector<8x32xf32>, vector<32x32xf32>, vector<8x32xf32> -> vector<8x32xf32>
    %275 = arith.addf %273, %274 : vector<8x32xf32>
    %276 = math.tanh %275 : vector<8x32xf32>
    %c26_i32 = arith.constant 26 : i32
    %277 = vector.broadcast %c26_i32 : i32 to vector<8x1xi32>
    %278 = arith.cmpi sgt, %0, %277 : vector<8x1xi32>
    %279 = vector.shape_cast %278 : vector<8x1xi1> to vector<8x1xi1>
    %280 = vector.broadcast %279 : vector<8x1xi1> to vector<8x32xi1>
    %281 = arith.select %280, %276, %271 : vector<8x32xi1>, vector<8x32xf32>
    %c208_123 = arith.constant 208 : index
    %c0_124 = arith.constant 0 : index
    %282 = vector.load %arg7[%c208_123, %c0_124] : memref<280x32xf32, #tpu.memory_space<vmem>>, vector<8x32xf32>
    tpu.vector_store %arg7[%c208_123, %c0_124], %281 {strides = array<i32>} : memref<280x32xf32, #tpu.memory_space<vmem>>, vector<8x32xf32>,
    %c216 = arith.constant 216 : index
    %c0_125 = arith.constant 0 : index
    %283 = vector.load %arg7[%c216, %c0_125] : memref<280x32xf32, #tpu.memory_space<vmem>>, vector<8x32xf32>
    %cst_126 = arith.constant dense<0.000000e+00> : vector<8x32xf32>
    %284 = tpu.matmul %281, %4, %cst_126 {dimension_numbers = #tpu.dot_dimension_numbers<[1], [0], [0], [1], [0, 0, 1, 1], [], []>} : vector<8x32xf32>, vector<32x32xf32>, vector<8x32xf32> -> vector<8x32xf32>
    %285 = arith.addf %283, %284 : vector<8x32xf32>
    %286 = math.tanh %285 : vector<8x32xf32>
    %c27_i32 = arith.constant 27 : i32
    %287 = vector.broadcast %c27_i32 : i32 to vector<8x1xi32>
    %288 = arith.cmpi sgt, %0, %287 : vector<8x1xi32>
    %289 = vector.shape_cast %288 : vector<8x1xi1> to vector<8x1xi1>
    %290 = vector.broadcast %289 : vector<8x1xi1> to vector<8x32xi1>
    %291 = arith.select %290, %286, %281 : vector<8x32xi1>, vector<8x32xf32>
    %c216_127 = arith.constant 216 : index
    %c0_128 = arith.constant 0 : index
    %292 = vector.load %arg7[%c216_127, %c0_128] : memref<280x32xf32, #tpu.memory_space<vmem>>, vector<8x32xf32>
    tpu.vector_store %arg7[%c216_127, %c0_128], %291 {strides = array<i32>} : memref<280x32xf32, #tpu.memory_space<vmem>>, vector<8x32xf32>,
    %c224 = arith.constant 224 : index
    %c0_129 = arith.constant 0 : index
    %293 = vector.load %arg7[%c224, %c0_129] : memref<280x32xf32, #tpu.memory_space<vmem>>, vector<8x32xf32>
    %cst_130 = arith.constant dense<0.000000e+00> : vector<8x32xf32>
    %294 = tpu.matmul %291, %4, %cst_130 {dimension_numbers = #tpu.dot_dimension_numbers<[1], [0], [0], [1], [0, 0, 1, 1], [], []>} : vector<8x32xf32>, vector<32x32xf32>, vector<8x32xf32> -> vector<8x32xf32>
    %295 = arith.addf %293, %294 : vector<8x32xf32>
    %296 = math.tanh %295 : vector<8x32xf32>
    %c28_i32 = arith.constant 28 : i32
    %297 = vector.broadcast %c28_i32 : i32 to vector<8x1xi32>
    %298 = arith.cmpi sgt, %0, %297 : vector<8x1xi32>
    %299 = vector.shape_cast %298 : vector<8x1xi1> to vector<8x1xi1>
    %300 = vector.broadcast %299 : vector<8x1xi1> to vector<8x32xi1>
    %301 = arith.select %300, %296, %291 : vector<8x32xi1>, vector<8x32xf32>
    %c224_131 = arith.constant 224 : index
    %c0_132 = arith.constant 0 : index
    %302 = vector.load %arg7[%c224_131, %c0_132] : memref<280x32xf32, #tpu.memory_space<vmem>>, vector<8x32xf32>
    tpu.vector_store %arg7[%c224_131, %c0_132], %301 {strides = array<i32>} : memref<280x32xf32, #tpu.memory_space<vmem>>, vector<8x32xf32>,
    %c232 = arith.constant 232 : index
    %c0_133 = arith.constant 0 : index
    %303 = vector.load %arg7[%c232, %c0_133] : memref<280x32xf32, #tpu.memory_space<vmem>>, vector<8x32xf32>
    %cst_134 = arith.constant dense<0.000000e+00> : vector<8x32xf32>
    %304 = tpu.matmul %301, %4, %cst_134 {dimension_numbers = #tpu.dot_dimension_numbers<[1], [0], [0], [1], [0, 0, 1, 1], [], []>} : vector<8x32xf32>, vector<32x32xf32>, vector<8x32xf32> -> vector<8x32xf32>
    %305 = arith.addf %303, %304 : vector<8x32xf32>
    %306 = math.tanh %305 : vector<8x32xf32>
    %c29_i32 = arith.constant 29 : i32
    %307 = vector.broadcast %c29_i32 : i32 to vector<8x1xi32>
    %308 = arith.cmpi sgt, %0, %307 : vector<8x1xi32>
    %309 = vector.shape_cast %308 : vector<8x1xi1> to vector<8x1xi1>
    %310 = vector.broadcast %309 : vector<8x1xi1> to vector<8x32xi1>
    %311 = arith.select %310, %306, %301 : vector<8x32xi1>, vector<8x32xf32>
    %c232_135 = arith.constant 232 : index
    %c0_136 = arith.constant 0 : index
    %312 = vector.load %arg7[%c232_135, %c0_136] : memref<280x32xf32, #tpu.memory_space<vmem>>, vector<8x32xf32>
    tpu.vector_store %arg7[%c232_135, %c0_136], %311 {strides = array<i32>} : memref<280x32xf32, #tpu.memory_space<vmem>>, vector<8x32xf32>,
    %c240 = arith.constant 240 : index
    %c0_137 = arith.constant 0 : index
    %313 = vector.load %arg7[%c240, %c0_137] : memref<280x32xf32, #tpu.memory_space<vmem>>, vector<8x32xf32>
    %cst_138 = arith.constant dense<0.000000e+00> : vector<8x32xf32>
    %314 = tpu.matmul %311, %4, %cst_138 {dimension_numbers = #tpu.dot_dimension_numbers<[1], [0], [0], [1], [0, 0, 1, 1], [], []>} : vector<8x32xf32>, vector<32x32xf32>, vector<8x32xf32> -> vector<8x32xf32>
    %315 = arith.addf %313, %314 : vector<8x32xf32>
    %316 = math.tanh %315 : vector<8x32xf32>
    %c30_i32 = arith.constant 30 : i32
    %317 = vector.broadcast %c30_i32 : i32 to vector<8x1xi32>
    %318 = arith.cmpi sgt, %0, %317 : vector<8x1xi32>
    %319 = vector.shape_cast %318 : vector<8x1xi1> to vector<8x1xi1>
    %320 = vector.broadcast %319 : vector<8x1xi1> to vector<8x32xi1>
    %321 = arith.select %320, %316, %311 : vector<8x32xi1>, vector<8x32xf32>
    %c240_139 = arith.constant 240 : index
    %c0_140 = arith.constant 0 : index
    %322 = vector.load %arg7[%c240_139, %c0_140] : memref<280x32xf32, #tpu.memory_space<vmem>>, vector<8x32xf32>
    tpu.vector_store %arg7[%c240_139, %c0_140], %321 {strides = array<i32>} : memref<280x32xf32, #tpu.memory_space<vmem>>, vector<8x32xf32>,
    %c248 = arith.constant 248 : index
    %c0_141 = arith.constant 0 : index
    %323 = vector.load %arg7[%c248, %c0_141] : memref<280x32xf32, #tpu.memory_space<vmem>>, vector<8x32xf32>
    %cst_142 = arith.constant dense<0.000000e+00> : vector<8x32xf32>
    %324 = tpu.matmul %321, %4, %cst_142 {dimension_numbers = #tpu.dot_dimension_numbers<[1], [0], [0], [1], [0, 0, 1, 1], [], []>} : vector<8x32xf32>, vector<32x32xf32>, vector<8x32xf32> -> vector<8x32xf32>
    %325 = arith.addf %323, %324 : vector<8x32xf32>
    %326 = math.tanh %325 : vector<8x32xf32>
    %c31_i32 = arith.constant 31 : i32
    %327 = vector.broadcast %c31_i32 : i32 to vector<8x1xi32>
    %328 = arith.cmpi sgt, %0, %327 : vector<8x1xi32>
    %329 = vector.shape_cast %328 : vector<8x1xi1> to vector<8x1xi1>
    %330 = vector.broadcast %329 : vector<8x1xi1> to vector<8x32xi1>
    %331 = arith.select %330, %326, %321 : vector<8x32xi1>, vector<8x32xf32>
    %c248_143 = arith.constant 248 : index
    %c0_144 = arith.constant 0 : index
    %332 = vector.load %arg7[%c248_143, %c0_144] : memref<280x32xf32, #tpu.memory_space<vmem>>, vector<8x32xf32>
    tpu.vector_store %arg7[%c248_143, %c0_144], %331 {strides = array<i32>} : memref<280x32xf32, #tpu.memory_space<vmem>>, vector<8x32xf32>,
    %c256 = arith.constant 256 : index
    %c0_145 = arith.constant 0 : index
    %333 = vector.load %arg7[%c256, %c0_145] : memref<280x32xf32, #tpu.memory_space<vmem>>, vector<8x32xf32>
    %cst_146 = arith.constant dense<0.000000e+00> : vector<8x32xf32>
    %334 = tpu.matmul %331, %4, %cst_146 {dimension_numbers = #tpu.dot_dimension_numbers<[1], [0], [0], [1], [0, 0, 1, 1], [], []>} : vector<8x32xf32>, vector<32x32xf32>, vector<8x32xf32> -> vector<8x32xf32>
    %335 = arith.addf %333, %334 : vector<8x32xf32>
    %336 = math.tanh %335 : vector<8x32xf32>
    %c32_i32 = arith.constant 32 : i32
    %337 = vector.broadcast %c32_i32 : i32 to vector<8x1xi32>
    %338 = arith.cmpi sgt, %0, %337 : vector<8x1xi32>
    %339 = vector.shape_cast %338 : vector<8x1xi1> to vector<8x1xi1>
    %340 = vector.broadcast %339 : vector<8x1xi1> to vector<8x32xi1>
    %341 = arith.select %340, %336, %331 : vector<8x32xi1>, vector<8x32xf32>
    %c256_147 = arith.constant 256 : index
    %c0_148 = arith.constant 0 : index
    %342 = vector.load %arg7[%c256_147, %c0_148] : memref<280x32xf32, #tpu.memory_space<vmem>>, vector<8x32xf32>
    tpu.vector_store %arg7[%c256_147, %c0_148], %341 {strides = array<i32>} : memref<280x32xf32, #tpu.memory_space<vmem>>, vector<8x32xf32>,
    %c264 = arith.constant 264 : index
    %c0_149 = arith.constant 0 : index
    %343 = vector.load %arg7[%c264, %c0_149] : memref<280x32xf32, #tpu.memory_space<vmem>>, vector<8x32xf32>
    %cst_150 = arith.constant dense<0.000000e+00> : vector<8x32xf32>
    %344 = tpu.matmul %341, %4, %cst_150 {dimension_numbers = #tpu.dot_dimension_numbers<[1], [0], [0], [1], [0, 0, 1, 1], [], []>} : vector<8x32xf32>, vector<32x32xf32>, vector<8x32xf32> -> vector<8x32xf32>
    %345 = arith.addf %343, %344 : vector<8x32xf32>
    %346 = math.tanh %345 : vector<8x32xf32>
    %c33_i32 = arith.constant 33 : i32
    %347 = vector.broadcast %c33_i32 : i32 to vector<8x1xi32>
    %348 = arith.cmpi sgt, %0, %347 : vector<8x1xi32>
    %349 = vector.shape_cast %348 : vector<8x1xi1> to vector<8x1xi1>
    %350 = vector.broadcast %349 : vector<8x1xi1> to vector<8x32xi1>
    %351 = arith.select %350, %346, %341 : vector<8x32xi1>, vector<8x32xf32>
    %c264_151 = arith.constant 264 : index
    %c0_152 = arith.constant 0 : index
    %352 = vector.load %arg7[%c264_151, %c0_152] : memref<280x32xf32, #tpu.memory_space<vmem>>, vector<8x32xf32>
    tpu.vector_store %arg7[%c264_151, %c0_152], %351 {strides = array<i32>} : memref<280x32xf32, #tpu.memory_space<vmem>>, vector<8x32xf32>,
    %c272 = arith.constant 272 : index
    %c0_153 = arith.constant 0 : index
    %353 = vector.load %arg7[%c272, %c0_153] : memref<280x32xf32, #tpu.memory_space<vmem>>, vector<8x32xf32>
    %cst_154 = arith.constant dense<0.000000e+00> : vector<8x32xf32>
    %354 = tpu.matmul %351, %4, %cst_154 {dimension_numbers = #tpu.dot_dimension_numbers<[1], [0], [0], [1], [0, 0, 1, 1], [], []>} : vector<8x32xf32>, vector<32x32xf32>, vector<8x32xf32> -> vector<8x32xf32>
    %355 = arith.addf %353, %354 : vector<8x32xf32>
    %356 = math.tanh %355 : vector<8x32xf32>
    %c34_i32 = arith.constant 34 : i32
    %357 = vector.broadcast %c34_i32 : i32 to vector<8x1xi32>
    %358 = arith.cmpi sgt, %0, %357 : vector<8x1xi32>
    %359 = vector.shape_cast %358 : vector<8x1xi1> to vector<8x1xi1>
    %360 = vector.broadcast %359 : vector<8x1xi1> to vector<8x32xi1>
    %361 = arith.select %360, %356, %351 : vector<8x32xi1>, vector<8x32xf32>
    %c272_155 = arith.constant 272 : index
    %c0_156 = arith.constant 0 : index
    %362 = vector.load %arg7[%c272_155, %c0_156] : memref<280x32xf32, #tpu.memory_space<vmem>>, vector<8x32xf32>
    tpu.vector_store %arg7[%c272_155, %c0_156], %361 {strides = array<i32>} : memref<280x32xf32, #tpu.memory_space<vmem>>, vector<8x32xf32>,
    %c1_157 = arith.constant 1 : index
    %c0_158 = arith.constant 0 : index
    %c0_159 = arith.constant 0 : index
    %c0_160 = arith.constant 0 : index
    %363 = vector.load %arg2[%c1_157, %c0_158, %c0_159, %c0_160] : memref<2x2x32x32xf32, #tpu.memory_space<vmem>>, vector<1x1x32x32xf32>
    %364 = vector.shape_cast %363 : vector<1x1x32x32xf32> to vector<32x32xf32>
    %c1_161 = arith.constant 1 : index
    %c1_162 = arith.constant 1 : index
    %c0_163 = arith.constant 0 : index
    %c0_164 = arith.constant 0 : index
    %365 = vector.load %arg2[%c1_161, %c1_162, %c0_163, %c0_164] : memref<2x2x32x32xf32, #tpu.memory_space<vmem>>, vector<1x1x32x32xf32>
    %366 = vector.shape_cast %365 : vector<1x1x32x32xf32> to vector<32x32xf32>
    %c1_165 = arith.constant 1 : index
    %c0_166 = arith.constant 0 : index
    %c0_167 = arith.constant 0 : index
    %367 = vector.load %arg3[%c1_165, %c0_166, %c0_167] : memref<2x1x32xf32, #tpu.memory_space<vmem>>, vector<1x1x32xf32>
    %368 = vector.shape_cast %367 : vector<1x1x32xf32> to vector<1x32xf32>
    %c0_168 = arith.constant 0 : index
    %c0_169 = arith.constant 0 : index
    %369 = vector.load %arg7[%c0_168, %c0_169] : memref<280x32xf32, #tpu.memory_space<vmem>>, vector<280x32xf32>
    %cst_170 = arith.constant dense<0.000000e+00> : vector<280x32xf32>
    %370 = tpu.matmul %369, %364, %cst_170 {dimension_numbers = #tpu.dot_dimension_numbers<[1], [0], [0], [1], [0, 0, 1, 1], [], []>} : vector<280x32xf32>, vector<32x32xf32>, vector<280x32xf32> -> vector<280x32xf32>
    %371 = vector.broadcast %368 : vector<1x32xf32> to vector<280x32xf32>
    %372 = arith.addf %370, %371 : vector<280x32xf32>
    %c0_171 = arith.constant 0 : index
    %c0_172 = arith.constant 0 : index
    %373 = vector.load %arg7[%c0_171, %c0_172] : memref<280x32xf32, #tpu.memory_space<vmem>>, vector<280x32xf32>
    tpu.vector_store %arg7[%c0_171, %c0_172], %372 {strides = array<i32>} : memref<280x32xf32, #tpu.memory_space<vmem>>, vector<280x32xf32>,
    %cst_173 = arith.constant 0.000000e+00 : f32
    %374 = vector.broadcast %cst_173 : f32 to vector<8x32xf32>
    %c0_174 = arith.constant 0 : index
    %c0_175 = arith.constant 0 : index
    %375 = vector.load %arg7[%c0_174, %c0_175] : memref<280x32xf32, #tpu.memory_space<vmem>>, vector<8x32xf32>
    %cst_176 = arith.constant dense<0.000000e+00> : vector<8x32xf32>
    %376 = tpu.matmul %374, %366, %cst_176 {dimension_numbers = #tpu.dot_dimension_numbers<[1], [0], [0], [1], [0, 0, 1, 1], [], []>} : vector<8x32xf32>, vector<32x32xf32>, vector<8x32xf32> -> vector<8x32xf32>
    %377 = arith.addf %375, %376 : vector<8x32xf32>
    %378 = math.tanh %377 : vector<8x32xf32>
    %c0_i32_177 = arith.constant 0 : i32
    %379 = vector.broadcast %c0_i32_177 : i32 to vector<8x1xi32>
    %380 = arith.cmpi sgt, %0, %379 : vector<8x1xi32>
    %381 = vector.shape_cast %380 : vector<8x1xi1> to vector<8x1xi1>
    %382 = vector.broadcast %381 : vector<8x1xi1> to vector<8x32xi1>
    %383 = arith.select %382, %378, %374 : vector<8x32xi1>, vector<8x32xf32>
    %c8_178 = arith.constant 8 : index
    %c0_179 = arith.constant 0 : index
    %384 = vector.load %arg7[%c8_178, %c0_179] : memref<280x32xf32, #tpu.memory_space<vmem>>, vector<8x32xf32>
    %cst_180 = arith.constant dense<0.000000e+00> : vector<8x32xf32>
    %385 = tpu.matmul %383, %366, %cst_180 {dimension_numbers = #tpu.dot_dimension_numbers<[1], [0], [0], [1], [0, 0, 1, 1], [], []>} : vector<8x32xf32>, vector<32x32xf32>, vector<8x32xf32> -> vector<8x32xf32>
    %386 = arith.addf %384, %385 : vector<8x32xf32>
    %387 = math.tanh %386 : vector<8x32xf32>
    %c1_i32_181 = arith.constant 1 : i32
    %388 = vector.broadcast %c1_i32_181 : i32 to vector<8x1xi32>
    %389 = arith.cmpi sgt, %0, %388 : vector<8x1xi32>
    %390 = vector.shape_cast %389 : vector<8x1xi1> to vector<8x1xi1>
    %391 = vector.broadcast %390 : vector<8x1xi1> to vector<8x32xi1>
    %392 = arith.select %391, %387, %383 : vector<8x32xi1>, vector<8x32xf32>
    %c16_182 = arith.constant 16 : index
    %c0_183 = arith.constant 0 : index
    %393 = vector.load %arg7[%c16_182, %c0_183] : memref<280x32xf32, #tpu.memory_space<vmem>>, vector<8x32xf32>
    %cst_184 = arith.constant dense<0.000000e+00> : vector<8x32xf32>
    %394 = tpu.matmul %392, %366, %cst_184 {dimension_numbers = #tpu.dot_dimension_numbers<[1], [0], [0], [1], [0, 0, 1, 1], [], []>} : vector<8x32xf32>, vector<32x32xf32>, vector<8x32xf32> -> vector<8x32xf32>
    %395 = arith.addf %393, %394 : vector<8x32xf32>
    %396 = math.tanh %395 : vector<8x32xf32>
    %c2_i32_185 = arith.constant 2 : i32
    %397 = vector.broadcast %c2_i32_185 : i32 to vector<8x1xi32>
    %398 = arith.cmpi sgt, %0, %397 : vector<8x1xi32>
    %399 = vector.shape_cast %398 : vector<8x1xi1> to vector<8x1xi1>
    %400 = vector.broadcast %399 : vector<8x1xi1> to vector<8x32xi1>
    %401 = arith.select %400, %396, %392 : vector<8x32xi1>, vector<8x32xf32>
    %c24_186 = arith.constant 24 : index
    %c0_187 = arith.constant 0 : index
    %402 = vector.load %arg7[%c24_186, %c0_187] : memref<280x32xf32, #tpu.memory_space<vmem>>, vector<8x32xf32>
    %cst_188 = arith.constant dense<0.000000e+00> : vector<8x32xf32>
    %403 = tpu.matmul %401, %366, %cst_188 {dimension_numbers = #tpu.dot_dimension_numbers<[1], [0], [0], [1], [0, 0, 1, 1], [], []>} : vector<8x32xf32>, vector<32x32xf32>, vector<8x32xf32> -> vector<8x32xf32>
    %404 = arith.addf %402, %403 : vector<8x32xf32>
    %405 = math.tanh %404 : vector<8x32xf32>
    %c3_i32_189 = arith.constant 3 : i32
    %406 = vector.broadcast %c3_i32_189 : i32 to vector<8x1xi32>
    %407 = arith.cmpi sgt, %0, %406 : vector<8x1xi32>
    %408 = vector.shape_cast %407 : vector<8x1xi1> to vector<8x1xi1>
    %409 = vector.broadcast %408 : vector<8x1xi1> to vector<8x32xi1>
    %410 = arith.select %409, %405, %401 : vector<8x32xi1>, vector<8x32xf32>
    %c32_190 = arith.constant 32 : index
    %c0_191 = arith.constant 0 : index
    %411 = vector.load %arg7[%c32_190, %c0_191] : memref<280x32xf32, #tpu.memory_space<vmem>>, vector<8x32xf32>
    %cst_192 = arith.constant dense<0.000000e+00> : vector<8x32xf32>
    %412 = tpu.matmul %410, %366, %cst_192 {dimension_numbers = #tpu.dot_dimension_numbers<[1], [0], [0], [1], [0, 0, 1, 1], [], []>} : vector<8x32xf32>, vector<32x32xf32>, vector<8x32xf32> -> vector<8x32xf32>
    %413 = arith.addf %411, %412 : vector<8x32xf32>
    %414 = math.tanh %413 : vector<8x32xf32>
    %c4_i32_193 = arith.constant 4 : i32
    %415 = vector.broadcast %c4_i32_193 : i32 to vector<8x1xi32>
    %416 = arith.cmpi sgt, %0, %415 : vector<8x1xi32>
    %417 = vector.shape_cast %416 : vector<8x1xi1> to vector<8x1xi1>
    %418 = vector.broadcast %417 : vector<8x1xi1> to vector<8x32xi1>
    %419 = arith.select %418, %414, %410 : vector<8x32xi1>, vector<8x32xf32>
    %c40_194 = arith.constant 40 : index
    %c0_195 = arith.constant 0 : index
    %420 = vector.load %arg7[%c40_194, %c0_195] : memref<280x32xf32, #tpu.memory_space<vmem>>, vector<8x32xf32>
    %cst_196 = arith.constant dense<0.000000e+00> : vector<8x32xf32>
    %421 = tpu.matmul %419, %366, %cst_196 {dimension_numbers = #tpu.dot_dimension_numbers<[1], [0], [0], [1], [0, 0, 1, 1], [], []>} : vector<8x32xf32>, vector<32x32xf32>, vector<8x32xf32> -> vector<8x32xf32>
    %422 = arith.addf %420, %421 : vector<8x32xf32>
    %423 = math.tanh %422 : vector<8x32xf32>
    %c5_i32_197 = arith.constant 5 : i32
    %424 = vector.broadcast %c5_i32_197 : i32 to vector<8x1xi32>
    %425 = arith.cmpi sgt, %0, %424 : vector<8x1xi32>
    %426 = vector.shape_cast %425 : vector<8x1xi1> to vector<8x1xi1>
    %427 = vector.broadcast %426 : vector<8x1xi1> to vector<8x32xi1>
    %428 = arith.select %427, %423, %419 : vector<8x32xi1>, vector<8x32xf32>
    %c48_198 = arith.constant 48 : index
    %c0_199 = arith.constant 0 : index
    %429 = vector.load %arg7[%c48_198, %c0_199] : memref<280x32xf32, #tpu.memory_space<vmem>>, vector<8x32xf32>
    %cst_200 = arith.constant dense<0.000000e+00> : vector<8x32xf32>
    %430 = tpu.matmul %428, %366, %cst_200 {dimension_numbers = #tpu.dot_dimension_numbers<[1], [0], [0], [1], [0, 0, 1, 1], [], []>} : vector<8x32xf32>, vector<32x32xf32>, vector<8x32xf32> -> vector<8x32xf32>
    %431 = arith.addf %429, %430 : vector<8x32xf32>
    %432 = math.tanh %431 : vector<8x32xf32>
    %c6_i32_201 = arith.constant 6 : i32
    %433 = vector.broadcast %c6_i32_201 : i32 to vector<8x1xi32>
    %434 = arith.cmpi sgt, %0, %433 : vector<8x1xi32>
    %435 = vector.shape_cast %434 : vector<8x1xi1> to vector<8x1xi1>
    %436 = vector.broadcast %435 : vector<8x1xi1> to vector<8x32xi1>
    %437 = arith.select %436, %432, %428 : vector<8x32xi1>, vector<8x32xf32>
    %c56_202 = arith.constant 56 : index
    %c0_203 = arith.constant 0 : index
    %438 = vector.load %arg7[%c56_202, %c0_203] : memref<280x32xf32, #tpu.memory_space<vmem>>, vector<8x32xf32>
    %cst_204 = arith.constant dense<0.000000e+00> : vector<8x32xf32>
    %439 = tpu.matmul %437, %366, %cst_204 {dimension_numbers = #tpu.dot_dimension_numbers<[1], [0], [0], [1], [0, 0, 1, 1], [], []>} : vector<8x32xf32>, vector<32x32xf32>, vector<8x32xf32> -> vector<8x32xf32>
    %440 = arith.addf %438, %439 : vector<8x32xf32>
    %441 = math.tanh %440 : vector<8x32xf32>
    %c7_i32_205 = arith.constant 7 : i32
    %442 = vector.broadcast %c7_i32_205 : i32 to vector<8x1xi32>
    %443 = arith.cmpi sgt, %0, %442 : vector<8x1xi32>
    %444 = vector.shape_cast %443 : vector<8x1xi1> to vector<8x1xi1>
    %445 = vector.broadcast %444 : vector<8x1xi1> to vector<8x32xi1>
    %446 = arith.select %445, %441, %437 : vector<8x32xi1>, vector<8x32xf32>
    %c64_206 = arith.constant 64 : index
    %c0_207 = arith.constant 0 : index
    %447 = vector.load %arg7[%c64_206, %c0_207] : memref<280x32xf32, #tpu.memory_space<vmem>>, vector<8x32xf32>
    %cst_208 = arith.constant dense<0.000000e+00> : vector<8x32xf32>
    %448 = tpu.matmul %446, %366, %cst_208 {dimension_numbers = #tpu.dot_dimension_numbers<[1], [0], [0], [1], [0, 0, 1, 1], [], []>} : vector<8x32xf32>, vector<32x32xf32>, vector<8x32xf32> -> vector<8x32xf32>
    %449 = arith.addf %447, %448 : vector<8x32xf32>
    %450 = math.tanh %449 : vector<8x32xf32>
    %c8_i32_209 = arith.constant 8 : i32
    %451 = vector.broadcast %c8_i32_209 : i32 to vector<8x1xi32>
    %452 = arith.cmpi sgt, %0, %451 : vector<8x1xi32>
    %453 = vector.shape_cast %452 : vector<8x1xi1> to vector<8x1xi1>
    %454 = vector.broadcast %453 : vector<8x1xi1> to vector<8x32xi1>
    %455 = arith.select %454, %450, %446 : vector<8x32xi1>, vector<8x32xf32>
    %c72_210 = arith.constant 72 : index
    %c0_211 = arith.constant 0 : index
    %456 = vector.load %arg7[%c72_210, %c0_211] : memref<280x32xf32, #tpu.memory_space<vmem>>, vector<8x32xf32>
    %cst_212 = arith.constant dense<0.000000e+00> : vector<8x32xf32>
    %457 = tpu.matmul %455, %366, %cst_212 {dimension_numbers = #tpu.dot_dimension_numbers<[1], [0], [0], [1], [0, 0, 1, 1], [], []>} : vector<8x32xf32>, vector<32x32xf32>, vector<8x32xf32> -> vector<8x32xf32>
    %458 = arith.addf %456, %457 : vector<8x32xf32>
    %459 = math.tanh %458 : vector<8x32xf32>
    %c9_i32_213 = arith.constant 9 : i32
    %460 = vector.broadcast %c9_i32_213 : i32 to vector<8x1xi32>
    %461 = arith.cmpi sgt, %0, %460 : vector<8x1xi32>
    %462 = vector.shape_cast %461 : vector<8x1xi1> to vector<8x1xi1>
    %463 = vector.broadcast %462 : vector<8x1xi1> to vector<8x32xi1>
    %464 = arith.select %463, %459, %455 : vector<8x32xi1>, vector<8x32xf32>
    %c80_214 = arith.constant 80 : index
    %c0_215 = arith.constant 0 : index
    %465 = vector.load %arg7[%c80_214, %c0_215] : memref<280x32xf32, #tpu.memory_space<vmem>>, vector<8x32xf32>
    %cst_216 = arith.constant dense<0.000000e+00> : vector<8x32xf32>
    %466 = tpu.matmul %464, %366, %cst_216 {dimension_numbers = #tpu.dot_dimension_numbers<[1], [0], [0], [1], [0, 0, 1, 1], [], []>} : vector<8x32xf32>, vector<32x32xf32>, vector<8x32xf32> -> vector<8x32xf32>
    %467 = arith.addf %465, %466 : vector<8x32xf32>
    %468 = math.tanh %467 : vector<8x32xf32>
    %c10_i32_217 = arith.constant 10 : i32
    %469 = vector.broadcast %c10_i32_217 : i32 to vector<8x1xi32>
    %470 = arith.cmpi sgt, %0, %469 : vector<8x1xi32>
    %471 = vector.shape_cast %470 : vector<8x1xi1> to vector<8x1xi1>
    %472 = vector.broadcast %471 : vector<8x1xi1> to vector<8x32xi1>
    %473 = arith.select %472, %468, %464 : vector<8x32xi1>, vector<8x32xf32>
    %c88_218 = arith.constant 88 : index
    %c0_219 = arith.constant 0 : index
    %474 = vector.load %arg7[%c88_218, %c0_219] : memref<280x32xf32, #tpu.memory_space<vmem>>, vector<8x32xf32>
    %cst_220 = arith.constant dense<0.000000e+00> : vector<8x32xf32>
    %475 = tpu.matmul %473, %366, %cst_220 {dimension_numbers = #tpu.dot_dimension_numbers<[1], [0], [0], [1], [0, 0, 1, 1], [], []>} : vector<8x32xf32>, vector<32x32xf32>, vector<8x32xf32> -> vector<8x32xf32>
    %476 = arith.addf %474, %475 : vector<8x32xf32>
    %477 = math.tanh %476 : vector<8x32xf32>
    %c11_i32_221 = arith.constant 11 : i32
    %478 = vector.broadcast %c11_i32_221 : i32 to vector<8x1xi32>
    %479 = arith.cmpi sgt, %0, %478 : vector<8x1xi32>
    %480 = vector.shape_cast %479 : vector<8x1xi1> to vector<8x1xi1>
    %481 = vector.broadcast %480 : vector<8x1xi1> to vector<8x32xi1>
    %482 = arith.select %481, %477, %473 : vector<8x32xi1>, vector<8x32xf32>
    %c96_222 = arith.constant 96 : index
    %c0_223 = arith.constant 0 : index
    %483 = vector.load %arg7[%c96_222, %c0_223] : memref<280x32xf32, #tpu.memory_space<vmem>>, vector<8x32xf32>
    %cst_224 = arith.constant dense<0.000000e+00> : vector<8x32xf32>
    %484 = tpu.matmul %482, %366, %cst_224 {dimension_numbers = #tpu.dot_dimension_numbers<[1], [0], [0], [1], [0, 0, 1, 1], [], []>} : vector<8x32xf32>, vector<32x32xf32>, vector<8x32xf32> -> vector<8x32xf32>
    %485 = arith.addf %483, %484 : vector<8x32xf32>
    %486 = math.tanh %485 : vector<8x32xf32>
    %c12_i32_225 = arith.constant 12 : i32
    %487 = vector.broadcast %c12_i32_225 : i32 to vector<8x1xi32>
    %488 = arith.cmpi sgt, %0, %487 : vector<8x1xi32>
    %489 = vector.shape_cast %488 : vector<8x1xi1> to vector<8x1xi1>
    %490 = vector.broadcast %489 : vector<8x1xi1> to vector<8x32xi1>
    %491 = arith.select %490, %486, %482 : vector<8x32xi1>, vector<8x32xf32>
    %c104_226 = arith.constant 104 : index
    %c0_227 = arith.constant 0 : index
    %492 = vector.load %arg7[%c104_226, %c0_227] : memref<280x32xf32, #tpu.memory_space<vmem>>, vector<8x32xf32>
    %cst_228 = arith.constant dense<0.000000e+00> : vector<8x32xf32>
    %493 = tpu.matmul %491, %366, %cst_228 {dimension_numbers = #tpu.dot_dimension_numbers<[1], [0], [0], [1], [0, 0, 1, 1], [], []>} : vector<8x32xf32>, vector<32x32xf32>, vector<8x32xf32> -> vector<8x32xf32>
    %494 = arith.addf %492, %493 : vector<8x32xf32>
    %495 = math.tanh %494 : vector<8x32xf32>
    %c13_i32_229 = arith.constant 13 : i32
    %496 = vector.broadcast %c13_i32_229 : i32 to vector<8x1xi32>
    %497 = arith.cmpi sgt, %0, %496 : vector<8x1xi32>
    %498 = vector.shape_cast %497 : vector<8x1xi1> to vector<8x1xi1>
    %499 = vector.broadcast %498 : vector<8x1xi1> to vector<8x32xi1>
    %500 = arith.select %499, %495, %491 : vector<8x32xi1>, vector<8x32xf32>
    %c112_230 = arith.constant 112 : index
    %c0_231 = arith.constant 0 : index
    %501 = vector.load %arg7[%c112_230, %c0_231] : memref<280x32xf32, #tpu.memory_space<vmem>>, vector<8x32xf32>
    %cst_232 = arith.constant dense<0.000000e+00> : vector<8x32xf32>
    %502 = tpu.matmul %500, %366, %cst_232 {dimension_numbers = #tpu.dot_dimension_numbers<[1], [0], [0], [1], [0, 0, 1, 1], [], []>} : vector<8x32xf32>, vector<32x32xf32>, vector<8x32xf32> -> vector<8x32xf32>
    %503 = arith.addf %501, %502 : vector<8x32xf32>
    %504 = math.tanh %503 : vector<8x32xf32>
    %c14_i32_233 = arith.constant 14 : i32
    %505 = vector.broadcast %c14_i32_233 : i32 to vector<8x1xi32>
    %506 = arith.cmpi sgt, %0, %505 : vector<8x1xi32>
    %507 = vector.shape_cast %506 : vector<8x1xi1> to vector<8x1xi1>
    %508 = vector.broadcast %507 : vector<8x1xi1> to vector<8x32xi1>
    %509 = arith.select %508, %504, %500 : vector<8x32xi1>, vector<8x32xf32>
    %c120_234 = arith.constant 120 : index
    %c0_235 = arith.constant 0 : index
    %510 = vector.load %arg7[%c120_234, %c0_235] : memref<280x32xf32, #tpu.memory_space<vmem>>, vector<8x32xf32>
    %cst_236 = arith.constant dense<0.000000e+00> : vector<8x32xf32>
    %511 = tpu.matmul %509, %366, %cst_236 {dimension_numbers = #tpu.dot_dimension_numbers<[1], [0], [0], [1], [0, 0, 1, 1], [], []>} : vector<8x32xf32>, vector<32x32xf32>, vector<8x32xf32> -> vector<8x32xf32>
    %512 = arith.addf %510, %511 : vector<8x32xf32>
    %513 = math.tanh %512 : vector<8x32xf32>
    %c15_i32_237 = arith.constant 15 : i32
    %514 = vector.broadcast %c15_i32_237 : i32 to vector<8x1xi32>
    %515 = arith.cmpi sgt, %0, %514 : vector<8x1xi32>
    %516 = vector.shape_cast %515 : vector<8x1xi1> to vector<8x1xi1>
    %517 = vector.broadcast %516 : vector<8x1xi1> to vector<8x32xi1>
    %518 = arith.select %517, %513, %509 : vector<8x32xi1>, vector<8x32xf32>
    %c128_238 = arith.constant 128 : index
    %c0_239 = arith.constant 0 : index
    %519 = vector.load %arg7[%c128_238, %c0_239] : memref<280x32xf32, #tpu.memory_space<vmem>>, vector<8x32xf32>
    %cst_240 = arith.constant dense<0.000000e+00> : vector<8x32xf32>
    %520 = tpu.matmul %518, %366, %cst_240 {dimension_numbers = #tpu.dot_dimension_numbers<[1], [0], [0], [1], [0, 0, 1, 1], [], []>} : vector<8x32xf32>, vector<32x32xf32>, vector<8x32xf32> -> vector<8x32xf32>
    %521 = arith.addf %519, %520 : vector<8x32xf32>
    %522 = math.tanh %521 : vector<8x32xf32>
    %c16_i32_241 = arith.constant 16 : i32
    %523 = vector.broadcast %c16_i32_241 : i32 to vector<8x1xi32>
    %524 = arith.cmpi sgt, %0, %523 : vector<8x1xi32>
    %525 = vector.shape_cast %524 : vector<8x1xi1> to vector<8x1xi1>
    %526 = vector.broadcast %525 : vector<8x1xi1> to vector<8x32xi1>
    %527 = arith.select %526, %522, %518 : vector<8x32xi1>, vector<8x32xf32>
    %c136_242 = arith.constant 136 : index
    %c0_243 = arith.constant 0 : index
    %528 = vector.load %arg7[%c136_242, %c0_243] : memref<280x32xf32, #tpu.memory_space<vmem>>, vector<8x32xf32>
    %cst_244 = arith.constant dense<0.000000e+00> : vector<8x32xf32>
    %529 = tpu.matmul %527, %366, %cst_244 {dimension_numbers = #tpu.dot_dimension_numbers<[1], [0], [0], [1], [0, 0, 1, 1], [], []>} : vector<8x32xf32>, vector<32x32xf32>, vector<8x32xf32> -> vector<8x32xf32>
    %530 = arith.addf %528, %529 : vector<8x32xf32>
    %531 = math.tanh %530 : vector<8x32xf32>
    %c17_i32_245 = arith.constant 17 : i32
    %532 = vector.broadcast %c17_i32_245 : i32 to vector<8x1xi32>
    %533 = arith.cmpi sgt, %0, %532 : vector<8x1xi32>
    %534 = vector.shape_cast %533 : vector<8x1xi1> to vector<8x1xi1>
    %535 = vector.broadcast %534 : vector<8x1xi1> to vector<8x32xi1>
    %536 = arith.select %535, %531, %527 : vector<8x32xi1>, vector<8x32xf32>
    %c144_246 = arith.constant 144 : index
    %c0_247 = arith.constant 0 : index
    %537 = vector.load %arg7[%c144_246, %c0_247] : memref<280x32xf32, #tpu.memory_space<vmem>>, vector<8x32xf32>
    %cst_248 = arith.constant dense<0.000000e+00> : vector<8x32xf32>
    %538 = tpu.matmul %536, %366, %cst_248 {dimension_numbers = #tpu.dot_dimension_numbers<[1], [0], [0], [1], [0, 0, 1, 1], [], []>} : vector<8x32xf32>, vector<32x32xf32>, vector<8x32xf32> -> vector<8x32xf32>
    %539 = arith.addf %537, %538 : vector<8x32xf32>
    %540 = math.tanh %539 : vector<8x32xf32>
    %c18_i32_249 = arith.constant 18 : i32
    %541 = vector.broadcast %c18_i32_249 : i32 to vector<8x1xi32>
    %542 = arith.cmpi sgt, %0, %541 : vector<8x1xi32>
    %543 = vector.shape_cast %542 : vector<8x1xi1> to vector<8x1xi1>
    %544 = vector.broadcast %543 : vector<8x1xi1> to vector<8x32xi1>
    %545 = arith.select %544, %540, %536 : vector<8x32xi1>, vector<8x32xf32>
    %c152_250 = arith.constant 152 : index
    %c0_251 = arith.constant 0 : index
    %546 = vector.load %arg7[%c152_250, %c0_251] : memref<280x32xf32, #tpu.memory_space<vmem>>, vector<8x32xf32>
    %cst_252 = arith.constant dense<0.000000e+00> : vector<8x32xf32>
    %547 = tpu.matmul %545, %366, %cst_252 {dimension_numbers = #tpu.dot_dimension_numbers<[1], [0], [0], [1], [0, 0, 1, 1], [], []>} : vector<8x32xf32>, vector<32x32xf32>, vector<8x32xf32> -> vector<8x32xf32>
    %548 = arith.addf %546, %547 : vector<8x32xf32>
    %549 = math.tanh %548 : vector<8x32xf32>
    %c19_i32_253 = arith.constant 19 : i32
    %550 = vector.broadcast %c19_i32_253 : i32 to vector<8x1xi32>
    %551 = arith.cmpi sgt, %0, %550 : vector<8x1xi32>
    %552 = vector.shape_cast %551 : vector<8x1xi1> to vector<8x1xi1>
    %553 = vector.broadcast %552 : vector<8x1xi1> to vector<8x32xi1>
    %554 = arith.select %553, %549, %545 : vector<8x32xi1>, vector<8x32xf32>
    %c160_254 = arith.constant 160 : index
    %c0_255 = arith.constant 0 : index
    %555 = vector.load %arg7[%c160_254, %c0_255] : memref<280x32xf32, #tpu.memory_space<vmem>>, vector<8x32xf32>
    %cst_256 = arith.constant dense<0.000000e+00> : vector<8x32xf32>
    %556 = tpu.matmul %554, %366, %cst_256 {dimension_numbers = #tpu.dot_dimension_numbers<[1], [0], [0], [1], [0, 0, 1, 1], [], []>} : vector<8x32xf32>, vector<32x32xf32>, vector<8x32xf32> -> vector<8x32xf32>
    %557 = arith.addf %555, %556 : vector<8x32xf32>
    %558 = math.tanh %557 : vector<8x32xf32>
    %c20_i32_257 = arith.constant 20 : i32
    %559 = vector.broadcast %c20_i32_257 : i32 to vector<8x1xi32>
    %560 = arith.cmpi sgt, %0, %559 : vector<8x1xi32>
    %561 = vector.shape_cast %560 : vector<8x1xi1> to vector<8x1xi1>
    %562 = vector.broadcast %561 : vector<8x1xi1> to vector<8x32xi1>
    %563 = arith.select %562, %558, %554 : vector<8x32xi1>, vector<8x32xf32>
    %c168_258 = arith.constant 168 : index
    %c0_259 = arith.constant 0 : index
    %564 = vector.load %arg7[%c168_258, %c0_259] : memref<280x32xf32, #tpu.memory_space<vmem>>, vector<8x32xf32>
    %cst_260 = arith.constant dense<0.000000e+00> : vector<8x32xf32>
    %565 = tpu.matmul %563, %366, %cst_260 {dimension_numbers = #tpu.dot_dimension_numbers<[1], [0], [0], [1], [0, 0, 1, 1], [], []>} : vector<8x32xf32>, vector<32x32xf32>, vector<8x32xf32> -> vector<8x32xf32>
    %566 = arith.addf %564, %565 : vector<8x32xf32>
    %567 = math.tanh %566 : vector<8x32xf32>
    %c21_i32_261 = arith.constant 21 : i32
    %568 = vector.broadcast %c21_i32_261 : i32 to vector<8x1xi32>
    %569 = arith.cmpi sgt, %0, %568 : vector<8x1xi32>
    %570 = vector.shape_cast %569 : vector<8x1xi1> to vector<8x1xi1>
    %571 = vector.broadcast %570 : vector<8x1xi1> to vector<8x32xi1>
    %572 = arith.select %571, %567, %563 : vector<8x32xi1>, vector<8x32xf32>
    %c176_262 = arith.constant 176 : index
    %c0_263 = arith.constant 0 : index
    %573 = vector.load %arg7[%c176_262, %c0_263] : memref<280x32xf32, #tpu.memory_space<vmem>>, vector<8x32xf32>
    %cst_264 = arith.constant dense<0.000000e+00> : vector<8x32xf32>
    %574 = tpu.matmul %572, %366, %cst_264 {dimension_numbers = #tpu.dot_dimension_numbers<[1], [0], [0], [1], [0, 0, 1, 1], [], []>} : vector<8x32xf32>, vector<32x32xf32>, vector<8x32xf32> -> vector<8x32xf32>
    %575 = arith.addf %573, %574 : vector<8x32xf32>
    %576 = math.tanh %575 : vector<8x32xf32>
    %c22_i32_265 = arith.constant 22 : i32
    %577 = vector.broadcast %c22_i32_265 : i32 to vector<8x1xi32>
    %578 = arith.cmpi sgt, %0, %577 : vector<8x1xi32>
    %579 = vector.shape_cast %578 : vector<8x1xi1> to vector<8x1xi1>
    %580 = vector.broadcast %579 : vector<8x1xi1> to vector<8x32xi1>
    %581 = arith.select %580, %576, %572 : vector<8x32xi1>, vector<8x32xf32>
    %c184_266 = arith.constant 184 : index
    %c0_267 = arith.constant 0 : index
    %582 = vector.load %arg7[%c184_266, %c0_267] : memref<280x32xf32, #tpu.memory_space<vmem>>, vector<8x32xf32>
    %cst_268 = arith.constant dense<0.000000e+00> : vector<8x32xf32>
    %583 = tpu.matmul %581, %366, %cst_268 {dimension_numbers = #tpu.dot_dimension_numbers<[1], [0], [0], [1], [0, 0, 1, 1], [], []>} : vector<8x32xf32>, vector<32x32xf32>, vector<8x32xf32> -> vector<8x32xf32>
    %584 = arith.addf %582, %583 : vector<8x32xf32>
    %585 = math.tanh %584 : vector<8x32xf32>
    %c23_i32_269 = arith.constant 23 : i32
    %586 = vector.broadcast %c23_i32_269 : i32 to vector<8x1xi32>
    %587 = arith.cmpi sgt, %0, %586 : vector<8x1xi32>
    %588 = vector.shape_cast %587 : vector<8x1xi1> to vector<8x1xi1>
    %589 = vector.broadcast %588 : vector<8x1xi1> to vector<8x32xi1>
    %590 = arith.select %589, %585, %581 : vector<8x32xi1>, vector<8x32xf32>
    %c192_270 = arith.constant 192 : index
    %c0_271 = arith.constant 0 : index
    %591 = vector.load %arg7[%c192_270, %c0_271] : memref<280x32xf32, #tpu.memory_space<vmem>>, vector<8x32xf32>
    %cst_272 = arith.constant dense<0.000000e+00> : vector<8x32xf32>
    %592 = tpu.matmul %590, %366, %cst_272 {dimension_numbers = #tpu.dot_dimension_numbers<[1], [0], [0], [1], [0, 0, 1, 1], [], []>} : vector<8x32xf32>, vector<32x32xf32>, vector<8x32xf32> -> vector<8x32xf32>
    %593 = arith.addf %591, %592 : vector<8x32xf32>
    %594 = math.tanh %593 : vector<8x32xf32>
    %c24_i32_273 = arith.constant 24 : i32
    %595 = vector.broadcast %c24_i32_273 : i32 to vector<8x1xi32>
    %596 = arith.cmpi sgt, %0, %595 : vector<8x1xi32>
    %597 = vector.shape_cast %596 : vector<8x1xi1> to vector<8x1xi1>
    %598 = vector.broadcast %597 : vector<8x1xi1> to vector<8x32xi1>
    %599 = arith.select %598, %594, %590 : vector<8x32xi1>, vector<8x32xf32>
    %c200_274 = arith.constant 200 : index
    %c0_275 = arith.constant 0 : index
    %600 = vector.load %arg7[%c200_274, %c0_275] : memref<280x32xf32, #tpu.memory_space<vmem>>, vector<8x32xf32>
    %cst_276 = arith.constant dense<0.000000e+00> : vector<8x32xf32>
    %601 = tpu.matmul %599, %366, %cst_276 {dimension_numbers = #tpu.dot_dimension_numbers<[1], [0], [0], [1], [0, 0, 1, 1], [], []>} : vector<8x32xf32>, vector<32x32xf32>, vector<8x32xf32> -> vector<8x32xf32>
    %602 = arith.addf %600, %601 : vector<8x32xf32>
    %603 = math.tanh %602 : vector<8x32xf32>
    %c25_i32_277 = arith.constant 25 : i32
    %604 = vector.broadcast %c25_i32_277 : i32 to vector<8x1xi32>
    %605 = arith.cmpi sgt, %0, %604 : vector<8x1xi32>
    %606 = vector.shape_cast %605 : vector<8x1xi1> to vector<8x1xi1>
    %607 = vector.broadcast %606 : vector<8x1xi1> to vector<8x32xi1>
    %608 = arith.select %607, %603, %599 : vector<8x32xi1>, vector<8x32xf32>
    %c208_278 = arith.constant 208 : index
    %c0_279 = arith.constant 0 : index
    %609 = vector.load %arg7[%c208_278, %c0_279] : memref<280x32xf32, #tpu.memory_space<vmem>>, vector<8x32xf32>
    %cst_280 = arith.constant dense<0.000000e+00> : vector<8x32xf32>
    %610 = tpu.matmul %608, %366, %cst_280 {dimension_numbers = #tpu.dot_dimension_numbers<[1], [0], [0], [1], [0, 0, 1, 1], [], []>} : vector<8x32xf32>, vector<32x32xf32>, vector<8x32xf32> -> vector<8x32xf32>
    %611 = arith.addf %609, %610 : vector<8x32xf32>
    %612 = math.tanh %611 : vector<8x32xf32>
    %c26_i32_281 = arith.constant 26 : i32
    %613 = vector.broadcast %c26_i32_281 : i32 to vector<8x1xi32>
    %614 = arith.cmpi sgt, %0, %613 : vector<8x1xi32>
    %615 = vector.shape_cast %614 : vector<8x1xi1> to vector<8x1xi1>
    %616 = vector.broadcast %615 : vector<8x1xi1> to vector<8x32xi1>
    %617 = arith.select %616, %612, %608 : vector<8x32xi1>, vector<8x32xf32>
    %c216_282 = arith.constant 216 : index
    %c0_283 = arith.constant 0 : index
    %618 = vector.load %arg7[%c216_282, %c0_283] : memref<280x32xf32, #tpu.memory_space<vmem>>, vector<8x32xf32>
    %cst_284 = arith.constant dense<0.000000e+00> : vector<8x32xf32>
    %619 = tpu.matmul %617, %366, %cst_284 {dimension_numbers = #tpu.dot_dimension_numbers<[1], [0], [0], [1], [0, 0, 1, 1], [], []>} : vector<8x32xf32>, vector<32x32xf32>, vector<8x32xf32> -> vector<8x32xf32>
    %620 = arith.addf %618, %619 : vector<8x32xf32>
    %621 = math.tanh %620 : vector<8x32xf32>
    %c27_i32_285 = arith.constant 27 : i32
    %622 = vector.broadcast %c27_i32_285 : i32 to vector<8x1xi32>
    %623 = arith.cmpi sgt, %0, %622 : vector<8x1xi32>
    %624 = vector.shape_cast %623 : vector<8x1xi1> to vector<8x1xi1>
    %625 = vector.broadcast %624 : vector<8x1xi1> to vector<8x32xi1>
    %626 = arith.select %625, %621, %617 : vector<8x32xi1>, vector<8x32xf32>
    %c224_286 = arith.constant 224 : index
    %c0_287 = arith.constant 0 : index
    %627 = vector.load %arg7[%c224_286, %c0_287] : memref<280x32xf32, #tpu.memory_space<vmem>>, vector<8x32xf32>
    %cst_288 = arith.constant dense<0.000000e+00> : vector<8x32xf32>
    %628 = tpu.matmul %626, %366, %cst_288 {dimension_numbers = #tpu.dot_dimension_numbers<[1], [0], [0], [1], [0, 0, 1, 1], [], []>} : vector<8x32xf32>, vector<32x32xf32>, vector<8x32xf32> -> vector<8x32xf32>
    %629 = arith.addf %627, %628 : vector<8x32xf32>
    %630 = math.tanh %629 : vector<8x32xf32>
    %c28_i32_289 = arith.constant 28 : i32
    %631 = vector.broadcast %c28_i32_289 : i32 to vector<8x1xi32>
    %632 = arith.cmpi sgt, %0, %631 : vector<8x1xi32>
    %633 = vector.shape_cast %632 : vector<8x1xi1> to vector<8x1xi1>
    %634 = vector.broadcast %633 : vector<8x1xi1> to vector<8x32xi1>
    %635 = arith.select %634, %630, %626 : vector<8x32xi1>, vector<8x32xf32>
    %c232_290 = arith.constant 232 : index
    %c0_291 = arith.constant 0 : index
    %636 = vector.load %arg7[%c232_290, %c0_291] : memref<280x32xf32, #tpu.memory_space<vmem>>, vector<8x32xf32>
    %cst_292 = arith.constant dense<0.000000e+00> : vector<8x32xf32>
    %637 = tpu.matmul %635, %366, %cst_292 {dimension_numbers = #tpu.dot_dimension_numbers<[1], [0], [0], [1], [0, 0, 1, 1], [], []>} : vector<8x32xf32>, vector<32x32xf32>, vector<8x32xf32> -> vector<8x32xf32>
    %638 = arith.addf %636, %637 : vector<8x32xf32>
    %639 = math.tanh %638 : vector<8x32xf32>
    %c29_i32_293 = arith.constant 29 : i32
    %640 = vector.broadcast %c29_i32_293 : i32 to vector<8x1xi32>
    %641 = arith.cmpi sgt, %0, %640 : vector<8x1xi32>
    %642 = vector.shape_cast %641 : vector<8x1xi1> to vector<8x1xi1>
    %643 = vector.broadcast %642 : vector<8x1xi1> to vector<8x32xi1>
    %644 = arith.select %643, %639, %635 : vector<8x32xi1>, vector<8x32xf32>
    %c240_294 = arith.constant 240 : index
    %c0_295 = arith.constant 0 : index
    %645 = vector.load %arg7[%c240_294, %c0_295] : memref<280x32xf32, #tpu.memory_space<vmem>>, vector<8x32xf32>
    %cst_296 = arith.constant dense<0.000000e+00> : vector<8x32xf32>
    %646 = tpu.matmul %644, %366, %cst_296 {dimension_numbers = #tpu.dot_dimension_numbers<[1], [0], [0], [1], [0, 0, 1, 1], [], []>} : vector<8x32xf32>, vector<32x32xf32>, vector<8x32xf32> -> vector<8x32xf32>
    %647 = arith.addf %645, %646 : vector<8x32xf32>
    %648 = math.tanh %647 : vector<8x32xf32>
    %c30_i32_297 = arith.constant 30 : i32
    %649 = vector.broadcast %c30_i32_297 : i32 to vector<8x1xi32>
    %650 = arith.cmpi sgt, %0, %649 : vector<8x1xi32>
    %651 = vector.shape_cast %650 : vector<8x1xi1> to vector<8x1xi1>
    %652 = vector.broadcast %651 : vector<8x1xi1> to vector<8x32xi1>
    %653 = arith.select %652, %648, %644 : vector<8x32xi1>, vector<8x32xf32>
    %c248_298 = arith.constant 248 : index
    %c0_299 = arith.constant 0 : index
    %654 = vector.load %arg7[%c248_298, %c0_299] : memref<280x32xf32, #tpu.memory_space<vmem>>, vector<8x32xf32>
    %cst_300 = arith.constant dense<0.000000e+00> : vector<8x32xf32>
    %655 = tpu.matmul %653, %366, %cst_300 {dimension_numbers = #tpu.dot_dimension_numbers<[1], [0], [0], [1], [0, 0, 1, 1], [], []>} : vector<8x32xf32>, vector<32x32xf32>, vector<8x32xf32> -> vector<8x32xf32>
    %656 = arith.addf %654, %655 : vector<8x32xf32>
    %657 = math.tanh %656 : vector<8x32xf32>
    %c31_i32_301 = arith.constant 31 : i32
    %658 = vector.broadcast %c31_i32_301 : i32 to vector<8x1xi32>
    %659 = arith.cmpi sgt, %0, %658 : vector<8x1xi32>
    %660 = vector.shape_cast %659 : vector<8x1xi1> to vector<8x1xi1>
    %661 = vector.broadcast %660 : vector<8x1xi1> to vector<8x32xi1>
    %662 = arith.select %661, %657, %653 : vector<8x32xi1>, vector<8x32xf32>
    %c256_302 = arith.constant 256 : index
    %c0_303 = arith.constant 0 : index
    %663 = vector.load %arg7[%c256_302, %c0_303] : memref<280x32xf32, #tpu.memory_space<vmem>>, vector<8x32xf32>
    %cst_304 = arith.constant dense<0.000000e+00> : vector<8x32xf32>
    %664 = tpu.matmul %662, %366, %cst_304 {dimension_numbers = #tpu.dot_dimension_numbers<[1], [0], [0], [1], [0, 0, 1, 1], [], []>} : vector<8x32xf32>, vector<32x32xf32>, vector<8x32xf32> -> vector<8x32xf32>
    %665 = arith.addf %663, %664 : vector<8x32xf32>
    %666 = math.tanh %665 : vector<8x32xf32>
    %c32_i32_305 = arith.constant 32 : i32
    %667 = vector.broadcast %c32_i32_305 : i32 to vector<8x1xi32>
    %668 = arith.cmpi sgt, %0, %667 : vector<8x1xi32>
    %669 = vector.shape_cast %668 : vector<8x1xi1> to vector<8x1xi1>
    %670 = vector.broadcast %669 : vector<8x1xi1> to vector<8x32xi1>
    %671 = arith.select %670, %666, %662 : vector<8x32xi1>, vector<8x32xf32>
    %c264_306 = arith.constant 264 : index
    %c0_307 = arith.constant 0 : index
    %672 = vector.load %arg7[%c264_306, %c0_307] : memref<280x32xf32, #tpu.memory_space<vmem>>, vector<8x32xf32>
    %cst_308 = arith.constant dense<0.000000e+00> : vector<8x32xf32>
    %673 = tpu.matmul %671, %366, %cst_308 {dimension_numbers = #tpu.dot_dimension_numbers<[1], [0], [0], [1], [0, 0, 1, 1], [], []>} : vector<8x32xf32>, vector<32x32xf32>, vector<8x32xf32> -> vector<8x32xf32>
    %674 = arith.addf %672, %673 : vector<8x32xf32>
    %675 = math.tanh %674 : vector<8x32xf32>
    %c33_i32_309 = arith.constant 33 : i32
    %676 = vector.broadcast %c33_i32_309 : i32 to vector<8x1xi32>
    %677 = arith.cmpi sgt, %0, %676 : vector<8x1xi32>
    %678 = vector.shape_cast %677 : vector<8x1xi1> to vector<8x1xi1>
    %679 = vector.broadcast %678 : vector<8x1xi1> to vector<8x32xi1>
    %680 = arith.select %679, %675, %671 : vector<8x32xi1>, vector<8x32xf32>
    %c272_310 = arith.constant 272 : index
    %c0_311 = arith.constant 0 : index
    %681 = vector.load %arg7[%c272_310, %c0_311] : memref<280x32xf32, #tpu.memory_space<vmem>>, vector<8x32xf32>
    %cst_312 = arith.constant dense<0.000000e+00> : vector<8x32xf32>
    %682 = tpu.matmul %680, %366, %cst_312 {dimension_numbers = #tpu.dot_dimension_numbers<[1], [0], [0], [1], [0, 0, 1, 1], [], []>} : vector<8x32xf32>, vector<32x32xf32>, vector<8x32xf32> -> vector<8x32xf32>
    %683 = arith.addf %681, %682 : vector<8x32xf32>
    %684 = math.tanh %683 : vector<8x32xf32>
    %c34_i32_313 = arith.constant 34 : i32
    %685 = vector.broadcast %c34_i32_313 : i32 to vector<8x1xi32>
    %686 = arith.cmpi sgt, %0, %685 : vector<8x1xi32>
    %687 = vector.shape_cast %686 : vector<8x1xi1> to vector<8x1xi1>
    %688 = vector.broadcast %687 : vector<8x1xi1> to vector<8x32xi1>
    %689 = arith.select %688, %684, %680 : vector<8x32xi1>, vector<8x32xf32>
    %c0_314 = arith.constant 0 : index
    %c0_315 = arith.constant 0 : index
    %690 = vector.load %arg4[%c0_314, %c0_315] : memref<32x128xf32, #tpu.memory_space<vmem>>, vector<32x128xf32>
    %cst_316 = arith.constant dense<0.000000e+00> : vector<8x128xf32>
    %691 = tpu.matmul %689, %690, %cst_316 {dimension_numbers = #tpu.dot_dimension_numbers<[1], [0], [0], [1], [0, 0, 1, 1], [], []>} : vector<8x32xf32>, vector<32x128xf32>, vector<8x128xf32> -> vector<8x128xf32>
    %c0_317 = arith.constant 0 : index
    %c0_318 = arith.constant 0 : index
    %692 = vector.load %arg5[%c0_317, %c0_318] : memref<1x128xf32, #tpu.memory_space<vmem>>, vector<1x128xf32>
    %693 = vector.broadcast %692 : vector<1x128xf32> to vector<8x128xf32>
    %694 = arith.addf %691, %693 : vector<8x128xf32>
    %c0_319 = arith.constant 0 : index
    %c0_320 = arith.constant 0 : index
    %695 = vector.load %arg6[%c0_319, %c0_320] : memref<8x128xf32, #tpu.memory_space<vmem>>, vector<8x128xf32>
    tpu.vector_store %arg6[%c0_319, %c0_320], %694 {strides = array<i32>} : memref<8x128xf32, #tpu.memory_space<vmem>>, vector<8x128xf32>,
    return
  }
}

</mosaic_0001>

<llo_original>
// kernel: tpu_custom_call.1
$region0: #{tpu_custom_call.1}
  #allocation0 [shape = 'u32[]', space=smem, size = 0x4, offset = 0x4, fixed_abs, tag = 'smem constant byte address 0x4 - core index']
  #allocation1 [shape = 'u32[144,128]{1,0:T(1,128)}', space=vmem, size = 0x12000, scoped, tag = 'internal scratch']
  #allocation2 [shape = 'f32[280,32]{1,0:T(8,128)}', space=vmem, size = 0x23000, scoped, tag = 'scratch operand']
  %s0 = inlined_call_operand.vmem [shape: f32[280,32], index: 0, kind: input, shape index: {}]
  %s1 = inlined_call_operand.vmem [shape: s32[8,1], index: 1, kind: input, shape index: {}]
  %s2 = inlined_call_operand.vmem [shape: f32[2,2,32,32], index: 2, kind: input, shape index: {}]
  %s3 = inlined_call_operand.vmem [shape: f32[2,1,32], index: 3, kind: input, shape index: {}]
  %s4 = inlined_call_operand.vmem [shape: f32[32,128], index: 4, kind: input, shape index: {}]
  %s5 = inlined_call_operand.vmem [shape: f32[1,128], index: 5, kind: input, shape index: {}]
  %s6 = inlined_call_operand.hbm [shape: f32[8,128], index: 6, kind: output, shape index: {}]
  %s7 = sld [smem:[#allocation0]]
  $region34: #{tpu_custom_call.1} parent=0
    _
  %s9 = ssub.s32 1, %s7
  %s10 = scalar_select 0, %s9, %s7
  $region1: #{tpu_custom_call.1} parent=0
    #allocation3 [shape = 'u8[4096]{0}', space=vmem, size = 0x1000, scoped, tag = 'output window, operand 0, single buffered']
    #allocation4 [shape = 's32[1]{0}', space=sflag, size = 0x4, scoped, tag = 'scoped memory for tpu_custom_call.1']
    %11 = vsyncpa [#allocation4], 0
    // Predicated region
    $region2: #{tpu_custom_call.1} parent=1 // pred_check
      _
    $region3: #{tpu_custom_call.1} parent=1 // pred_check_branch
      %13 = sbr.rel (0) target = $region5
    $region4: #{tpu_custom_call.1} parent=1 // pred_region
      _
    $region5: #{tpu_custom_call.1} parent=1 // pred_fallthru
      _
    // Predicated region
    $region6: #{tpu_custom_call.1} parent=1 // pred_check
      _
    $region7: #{tpu_custom_call.1} parent=1 // pred_check_branch
      %15 = sbr.rel (0) target = $region9
    $region8: #{tpu_custom_call.1} parent=1 // pred_region
      _
    $region9: #{tpu_custom_call.1} parent=1 // pred_fallthru
      _
    // Predicated region
    $region10: #{tpu_custom_call.1} parent=1 // pred_check
      _
    $region11: #{tpu_custom_call.1} parent=1 // pred_check_branch
      %17 = sbr.rel (0) target = $region13
    $region12: #{tpu_custom_call.1} parent=1 // pred_region
      _
    $region13: #{tpu_custom_call.1} parent=1 // pred_fallthru
      _
    // Predicated region
    $region14: #{tpu_custom_call.1} parent=1 // pred_check
      _
    $region15: #{tpu_custom_call.1} parent=1 // pred_check_branch
      %19 = sbr.rel (0) target = $region17
    $region16: #{tpu_custom_call.1} parent=1 // pred_region
      _
    $region17: #{tpu_custom_call.1} parent=1 // pred_fallthru
      _
    // Predicated region
    $region18: #{tpu_custom_call.1} parent=1 // pred_check
      _
    $region19: #{tpu_custom_call.1} parent=1 // pred_check_branch
      %21 = sbr.rel (0) target = $region21
    $region20: #{tpu_custom_call.1} parent=1 // pred_region
      _
    $region21: #{tpu_custom_call.1} parent=1 // pred_fallthru
      _
    // Predicated region
    $region22: #{tpu_custom_call.1} parent=1 // pred_check
      _
    $region23: #{tpu_custom_call.1} parent=1 // pred_check_branch
      %23 = sbr.rel (0) target = $region25
    $region24: #{tpu_custom_call.1} parent=1 // pred_region
      _
    $region25: #{tpu_custom_call.1} parent=1 // pred_fallthru
      _
    %v24 = vld [vmem:[%s1] sm:$0xff]
    %v25 = vld [vmem:[%s2] sm:$0xff]
    %v26 = vld [vmem:[%s2 + $0x8] sm:$0xff]
    %v27 = vld [vmem:[%s2 + $0x10] sm:$0xff]
    %v28 = vld [vmem:[%s2 + $0x18] sm:$0xff]
    %s29 = scalar_lea.vmem %s2, 32
    %v30 = vld [vmem:[%s29] sm:$0xff]
    %v31 = vld [vmem:[%s29 + $0x8] sm:$0xff]
    %v32 = vld [vmem:[%s29 + $0x10] sm:$0xff]
    %v33 = vld [vmem:[%s29 + $0x18] sm:$0xff]
    %v34 = vld [vmem:[%s3] sm:$0x1]
    %v35 = vld [vmem:[%s0] sm:$0xff]
    %v36 = vld [vmem:[%s0 + $0x8] sm:$0xff]
    %v37 = vld [vmem:[%s0 + $0x10] sm:$0xff]
    %v38 = vld [vmem:[%s0 + $0x18] sm:$0xff]
    %v39 = vld [vmem:[%s0 + $0x20] sm:$0xff]
    %v40 = vld [vmem:[%s0 + $0x28] sm:$0xff]
    %v41 = vld [vmem:[%s0 + $0x30] sm:$0xff]
    %v42 = vld [vmem:[%s0 + $0x38] sm:$0xff]
    %v43 = vld [vmem:[%s0 + $0x40] sm:$0xff]
    %v44 = vld [vmem:[%s0 + $0x48] sm:$0xff]
    %v45 = vld [vmem:[%s0 + $0x50] sm:$0xff]
    %v46 = vld [vmem:[%s0 + $0x58] sm:$0xff]
    %v47 = vld [vmem:[%s0 + $0x60] sm:$0xff]
    %v48 = vld [vmem:[%s0 + $0x68] sm:$0xff]
    %v49 = vld [vmem:[%s0 + $0x70] sm:$0xff]
    %v50 = vld [vmem:[%s0 + $0x78] sm:$0xff]
    %v51 = vld [vmem:[%s0 + $0x80] sm:$0xff]
    %v52 = vld [vmem:[%s0 + $0x88] sm:$0xff]
    %v53 = vld [vmem:[%s0 + $0x90] sm:$0xff]
    %v54 = vld [vmem:[%s0 + $0x98] sm:$0xff]
    %v55 = vld [vmem:[%s0 + $0xa0] sm:$0xff]
    %v56 = vld [vmem:[%s0 + $0xa8] sm:$0xff]
    %v57 = vld [vmem:[%s0 + $0xb0] sm:$0xff]
    %v58 = vld [vmem:[%s0 + $0xb8] sm:$0xff]
    %v59 = vld [vmem:[%s0 + $0xc0] sm:$0xff]
    %v60 = vld [vmem:[%s0 + $0xc8] sm:$0xff]
    %v61 = vld [vmem:[%s0 + $0xd0] sm:$0xff]
    %v62 = vld [vmem:[%s0 + $0xd8] sm:$0xff]
    %v63 = vld [vmem:[%s0 + $0xe0] sm:$0xff]
    %v64 = vld [vmem:[%s0 + $0xe8] sm:$0xff]
    %v65 = vld [vmem:[%s0 + $0xf0] sm:$0xff]
    %v66 = vld [vmem:[%s0 + $0xf8] sm:$0xff]
    %v67 = vld [vmem:[%s0 + $0x100] sm:$0xff]
    %v68 = vld [vmem:[%s0 + $0x108] sm:$0xff]
    %v69 = vld [vmem:[%s0 + $0x110] sm:$0xff]
    %v71 = vlaneseq
    %v72 = vshrl.u32 %v71, 7
    %v73 = vsub.s32 0, %v72
    %v74 = vrot.slane %v34, %v73
    %vm76 = vcmask 261120
    %v78 = vsel %vm76, %v35, 0
    %v81 = vsel %vm76, %v36, 0
    %v84 = vsel %vm76, %v37, 0
    %v87 = vsel %vm76, %v38, 0
    %v90 = vsel %vm76, %v39, 0
    %v93 = vsel %vm76, %v40, 0
    %v96 = vsel %vm76, %v41, 0
    %v99 = vsel %vm76, %v42, 0
    %v102 = vsel %vm76, %v43, 0
    %v105 = vsel %vm76, %v44, 0
    %v108 = vsel %vm76, %v45, 0
    %v111 = vsel %vm76, %v46, 0
    %v114 = vsel %vm76, %v47, 0
    %v117 = vsel %vm76, %v48, 0
    %v120 = vsel %vm76, %v49, 0
    %v123 = vsel %vm76, %v50, 0
    %v126 = vsel %vm76, %v51, 0
    %v129 = vsel %vm76, %v52, 0
    %v132 = vsel %vm76, %v53, 0
    %v135 = vsel %vm76, %v54, 0
    %v138 = vsel %vm76, %v55, 0
    %v141 = vsel %vm76, %v56, 0
    %v144 = vsel %vm76, %v57, 0
    %v147 = vsel %vm76, %v58, 0
    %v150 = vsel %vm76, %v59, 0
    %v153 = vsel %vm76, %v60, 0
    %v156 = vsel %vm76, %v61, 0
    %v159 = vsel %vm76, %v62, 0
    %v162 = vsel %vm76, %v63, 0
    %v165 = vsel %vm76, %v64, 0
    %v168 = vsel %vm76, %v65, 0
    %v171 = vsel %vm76, %v66, 0
    %v174 = vsel %vm76, %v67, 0
    %v177 = vsel %vm76, %v68, 0
    %v180 = vsel %vm76, %v69, 0
    %182 = vmatprep.subr.mxu0 0.0
    %183 = vmatpush1.msra.mxu0 %v25
    %184 = vmatprep.subr.mxu0 0.0
    %185 = vmatpush1.msra.mxu0 %v26
    %186 = vmatprep.subr.mxu0 0.0
    %187 = vmatpush1.msra.mxu0 %v27
    %188 = vmatprep.subr.mxu0 0.0
    %189 = vmatpush1.msra.mxu0 %v28
    %190 = vmatprep.subr.mxu0 0.0
    %191 = vmatpush1.msra.mxu0 0.0
    %192 = vmatprep.subr.mxu0 0.0
    %193 = vmatpush1.msra.mxu0 0.0
    %194 = vmatprep.subr.mxu0 0.0
    %195 = vmatpush1.msra.mxu0 0.0
    %196 = vmatprep.subr.mxu0 0.0
    %197 = vmatpush1.msra.mxu0 0.0
    %198 = vmatprep.subr.mxu0 0.0
    %199 = vmatpush1.msra.mxu0 0.0
    %200 = vmatprep.subr.mxu0 0.0
    %201 = vmatpush1.msra.mxu0 0.0
    %202 = vmatprep.subr.mxu0 0.0
    %203 = vmatpush1.msra.mxu0 0.0
    %204 = vmatprep.subr.mxu0 0.0
    %205 = vmatpush1.msra.mxu0 0.0
    %206 = vmatprep.subr.mxu0 0.0
    %207 = vmatpush1.msra.mxu0 0.0
    %208 = vmatprep.subr.mxu0 0.0
    %209 = vmatpush1.msra.mxu0 0.0
    %210 = vmatprep.subr.mxu0 0.0
    %211 = vmatpush1.msra.mxu0 0.0
    %212 = vmatprep.subr.mxu0 0.0
    %213 = vmatpush1.msra.mxu0 0.0
    %214 = vmatprep.subr.mxu0 0.0
    %215 = vmatpush1.msra.mxu0 0.0
    %216 = vmatprep.subr.mxu0 0.0
    %217 = vmatpush1.msra.mxu0 0.0
    %218 = vmatprep.subr.mxu0 0.0
    %219 = vmatpush1.msra.mxu0 0.0
    %220 = vmatprep.subr.mxu0 0.0
    %221 = vmatpush1.msra.mxu0 0.0
    %222 = vmatprep.subr.mxu0 0.0
    %223 = vmatpush1.msra.mxu0 0.0
    %224 = vmatprep.subr.mxu0 0.0
    %225 = vmatpush1.msra.mxu0 0.0
    %226 = vmatprep.subr.mxu0 0.0
    %227 = vmatpush1.msra.mxu0 0.0
    %228 = vmatprep.subr.mxu0 0.0
    %229 = vmatpush1.msra.mxu0 0.0
    %230 = vmatprep.subr.mxu0 0.0
    %231 = vmatpush1.msra.mxu0 0.0
    %232 = vmatprep.subr.mxu0 0.0
    %233 = vmatpush1.msra.mxu0 0.0
    %234 = vmatprep.subr.mxu0 0.0
    %235 = vmatpush1.msra.mxu0 0.0
    %236 = vmatprep.subr.mxu0 0.0
    %237 = vmatpush1.msra.mxu0 0.0
    %238 = vmatprep.subr.mxu0 0.0
    %239 = vmatpush1.msra.mxu0 0.0
    %240 = vmatprep.subr.mxu0 0.0
    %241 = vmatpush1.msra.mxu0 0.0
    %242 = vmatprep.subr.mxu0 0.0
    %243 = vmatpush1.msra.mxu0 0.0
    %244 = vmatprep.subr.mxu0 0.0
    %245 = vmatpush1.msra.mxu0 0.0
    %246 = vmatprep.mubr.f32.mxu0 0.0
    %247 = vmatmul.mubr.f32.gmra.mrb[0].mxu0 %v78
    %v248 = vpop.f32.mrb[0].mxu0
    %v249 = vadd.f32 %v74, %v248
    %v250 = vpop.f32.mrb[0].mxu0
    %251 = vmatprep.mubr.f32.mxu0 0.0
    %252 = vmatmul.mubr.f32.gmra.mrb[0].mxu0 %v81
    %v253 = vpop.f32.mrb[0].mxu0
    %v254 = vadd.f32 %v74, %v253
    %v255 = vpop.f32.mrb[0].mxu0
    %256 = vmatprep.mubr.f32.mxu0 0.0
    %257 = vmatmul.mubr.f32.gmra.mrb[0].mxu0 %v84
    %v258 = vpop.f32.mrb[0].mxu0
    %v259 = vadd.f32 %v74, %v258
    %v260 = vpop.f32.mrb[0].mxu0
    %261 = vmatprep.mubr.f32.mxu0 0.0
    %262 = vmatmul.mubr.f32.gmra.mrb[0].mxu0 %v87
    %v263 = vpop.f32.mrb[0].mxu0
    %v264 = vadd.f32 %v74, %v263
    %v265 = vpop.f32.mrb[0].mxu0
    %266 = vmatprep.mubr.f32.mxu0 0.0
    %267 = vmatmul.mubr.f32.gmra.mrb[0].mxu0 %v90
    %v268 = vpop.f32.mrb[0].mxu0
    %v269 = vadd.f32 %v74, %v268
    %v270 = vpop.f32.mrb[0].mxu0
    %271 = vmatprep.mubr.f32.mxu0 0.0
    %272 = vmatmul.mubr.f32.gmra.mrb[0].mxu0 %v93
    %v273 = vpop.f32.mrb[0].mxu0
    %v274 = vadd.f32 %v74, %v273
    %v275 = vpop.f32.mrb[0].mxu0
    %276 = vmatprep.mubr.f32.mxu0 0.0
    %277 = vmatmul.mubr.f32.gmra.mrb[0].mxu0 %v96
    %v278 = vpop.f32.mrb[0].mxu0
    %v279 = vadd.f32 %v74, %v278
    %v280 = vpop.f32.mrb[0].mxu0
    %281 = vmatprep.mubr.f32.mxu0 0.0
    %282 = vmatmul.mubr.f32.gmra.mrb[0].mxu0 %v99
    %v283 = vpop.f32.mrb[0].mxu0
    %v284 = vadd.f32 %v74, %v283
    %v285 = vpop.f32.mrb[0].mxu0
    %286 = vmatprep.mubr.f32.mxu0 0.0
    %287 = vmatmul.mubr.f32.gmra.mrb[0].mxu0 %v102
    %v288 = vpop.f32.mrb[0].mxu0
    %v289 = vadd.f32 %v74, %v288
    %v290 = vpop.f32.mrb[0].mxu0
    %291 = vmatprep.mubr.f32.mxu0 0.0
    %292 = vmatmul.mubr.f32.gmra.mrb[0].mxu0 %v105
    %v293 = vpop.f32.mrb[0].mxu0
    %v294 = vadd.f32 %v74, %v293
    %v295 = vpop.f32.mrb[0].mxu0
    %296 = vmatprep.mubr.f32.mxu0 0.0
    %297 = vmatmul.mubr.f32.gmra.mrb[0].mxu0 %v108
    %v298 = vpop.f32.mrb[0].mxu0
    %v299 = vadd.f32 %v74, %v298
    %v300 = vpop.f32.mrb[0].mxu0
    %301 = vmatprep.mubr.f32.mxu0 0.0
    %302 = vmatmul.mubr.f32.gmra.mrb[0].mxu0 %v111
    %v303 = vpop.f32.mrb[0].mxu0
    %v304 = vadd.f32 %v74, %v303
    %v305 = vpop.f32.mrb[0].mxu0
    %306 = vmatprep.mubr.f32.mxu0 0.0
    %307 = vmatmul.mubr.f32.gmra.mrb[0].mxu0 %v114
    %v308 = vpop.f32.mrb[0].mxu0
    %v309 = vadd.f32 %v74, %v308
    %v310 = vpop.f32.mrb[0].mxu0
    %311 = vmatprep.mubr.f32.mxu0 0.0
    %312 = vmatmul.mubr.f32.gmra.mrb[0].mxu0 %v117
    %v313 = vpop.f32.mrb[0].mxu0
    %v314 = vadd.f32 %v74, %v313
    %v315 = vpop.f32.mrb[0].mxu0
    %316 = vmatprep.mubr.f32.mxu0 0.0
    %317 = vmatmul.mubr.f32.gmra.mrb[0].mxu0 %v120
    %v318 = vpop.f32.mrb[0].mxu0
    %v319 = vadd.f32 %v74, %v318
    %v320 = vpop.f32.mrb[0].mxu0
    %321 = vmatprep.mubr.f32.mxu0 0.0
    %322 = vmatmul.mubr.f32.gmra.mrb[0].mxu0 %v123
    %v323 = vpop.f32.mrb[0].mxu0
    %v324 = vadd.f32 %v74, %v323
    %v325 = vpop.f32.mrb[0].mxu0
    %326 = vmatprep.mubr.f32.mxu0 0.0
    %327 = vmatmul.mubr.f32.gmra.mrb[0].mxu0 %v126
    %v328 = vpop.f32.mrb[0].mxu0
    %v329 = vadd.f32 %v74, %v328
    %v330 = vpop.f32.mrb[0].mxu0
    %331 = vmatprep.mubr.f32.mxu0 0.0
    %332 = vmatmul.mubr.f32.gmra.mrb[0].mxu0 %v129
    %v333 = vpop.f32.mrb[0].mxu0
    %v334 = vadd.f32 %v74, %v333
    %v335 = vpop.f32.mrb[0].mxu0
    %336 = vmatprep.mubr.f32.mxu0 0.0
    %337 = vmatmul.mubr.f32.gmra.mrb[0].mxu0 %v132
    %v338 = vpop.f32.mrb[0].mxu0
    %v339 = vadd.f32 %v74, %v338
    %v340 = vpop.f32.mrb[0].mxu0
    %341 = vmatprep.mubr.f32.mxu0 0.0
    %342 = vmatmul.mubr.f32.gmra.mrb[0].mxu0 %v135
    %v343 = vpop.f32.mrb[0].mxu0
    %v344 = vadd.f32 %v74, %v343
    %v345 = vpop.f32.mrb[0].mxu0
    %346 = vmatprep.mubr.f32.mxu0 0.0
    %347 = vmatmul.mubr.f32.gmra.mrb[0].mxu0 %v138
    %v348 = vpop.f32.mrb[0].mxu0
    %v349 = vadd.f32 %v74, %v348
    %v350 = vpop.f32.mrb[0].mxu0
    %351 = vmatprep.mubr.f32.mxu0 0.0
    %352 = vmatmul.mubr.f32.gmra.mrb[0].mxu0 %v141
    %v353 = vpop.f32.mrb[0].mxu0
    %v354 = vadd.f32 %v74, %v353
    %v355 = vpop.f32.mrb[0].mxu0
    %356 = vmatprep.mubr.f32.mxu0 0.0
    %357 = vmatmul.mubr.f32.gmra.mrb[0].mxu0 %v144
    %v358 = vpop.f32.mrb[0].mxu0
    %v359 = vadd.f32 %v74, %v358
    %v360 = vpop.f32.mrb[0].mxu0
    %361 = vmatprep.mubr.f32.mxu0 0.0
    %362 = vmatmul.mubr.f32.gmra.mrb[0].mxu0 %v147
    %v363 = vpop.f32.mrb[0].mxu0
    %v364 = vadd.f32 %v74, %v363
    %v365 = vpop.f32.mrb[0].mxu0
    %366 = vmatprep.mubr.f32.mxu0 0.0
    %367 = vmatmul.mubr.f32.gmra.mrb[0].mxu0 %v150
    %v368 = vpop.f32.mrb[0].mxu0
    %v369 = vadd.f32 %v74, %v368
    %v370 = vpop.f32.mrb[0].mxu0
    %371 = vmatprep.mubr.f32.mxu0 0.0
    %372 = vmatmul.mubr.f32.gmra.mrb[0].mxu0 %v153
    %v373 = vpop.f32.mrb[0].mxu0
    %v374 = vadd.f32 %v74, %v373
    %v375 = vpop.f32.mrb[0].mxu0
    %376 = vmatprep.mubr.f32.mxu0 0.0
    %377 = vmatmul.mubr.f32.gmra.mrb[0].mxu0 %v156
    %v378 = vpop.f32.mrb[0].mxu0
    %v379 = vadd.f32 %v74, %v378
    %v380 = vpop.f32.mrb[0].mxu0
    %381 = vmatprep.mubr.f32.mxu0 0.0
    %382 = vmatmul.mubr.f32.gmra.mrb[0].mxu0 %v159
    %v383 = vpop.f32.mrb[0].mxu0
    %v384 = vadd.f32 %v74, %v383
    %v385 = vpop.f32.mrb[0].mxu0
    %386 = vmatprep.mubr.f32.mxu0 0.0
    %387 = vmatmul.mubr.f32.gmra.mrb[0].mxu0 %v162
    %v388 = vpop.f32.mrb[0].mxu0
    %v389 = vadd.f32 %v74, %v388
    %v390 = vpop.f32.mrb[0].mxu0
    %391 = vmatprep.mubr.f32.mxu0 0.0
    %392 = vmatmul.mubr.f32.gmra.mrb[0].mxu0 %v165
    %v393 = vpop.f32.mrb[0].mxu0
    %v394 = vadd.f32 %v74, %v393
    %v395 = vpop.f32.mrb[0].mxu0
    %396 = vmatprep.mubr.f32.mxu0 0.0
    %397 = vmatmul.mubr.f32.gmra.mrb[0].mxu0 %v168
    %v398 = vpop.f32.mrb[0].mxu0
    %v399 = vadd.f32 %v74, %v398
    %v400 = vpop.f32.mrb[0].mxu0
    %401 = vmatprep.mubr.f32.mxu0 0.0
    %402 = vmatmul.mubr.f32.gmra.mrb[0].mxu0 %v171
    %v403 = vpop.f32.mrb[0].mxu0
    %v404 = vadd.f32 %v74, %v403
    %v405 = vpop.f32.mrb[0].mxu0
    %406 = vmatprep.mubr.f32.mxu0 0.0
    %407 = vmatmul.mubr.f32.gmra.mrb[0].mxu0 %v174
    %v408 = vpop.f32.mrb[0].mxu0
    %v409 = vadd.f32 %v74, %v408
    %v410 = vpop.f32.mrb[0].mxu0
    %411 = vmatprep.mubr.f32.mxu0 0.0
    %412 = vmatmul.mubr.f32.gmra.mrb[0].mxu0 %v177
    %v413 = vpop.f32.mrb[0].mxu0
    %v414 = vadd.f32 %v74, %v413
    %v415 = vpop.f32.mrb[0].mxu0
    %416 = vmatprep.mubr.f32.mxu0 0.0
    %417 = vmatmul.mubr.f32.gmra.mrb[0].mxu0 %v180
    %v418 = vpop.f32.mrb[0].mxu0
    %v419 = vadd.f32 %v74, %v418
    %v420 = vpop.f32.mrb[0].mxu0
    %421 = vdwg.mxu0
    %422 = vst.msk [vmem:[#allocation2] sm:$0xff] %vm76, %v249
    %423 = vst.msk [vmem:[#allocation2 + $0x8] sm:$0xff] %vm76, %v254
    %424 = vst.msk [vmem:[#allocation2 + $0x10] sm:$0xff] %vm76, %v259
    %425 = vst.msk [vmem:[#allocation2 + $0x18] sm:$0xff] %vm76, %v264
    %426 = vst.msk [vmem:[#allocation2 + $0x20] sm:$0xff] %vm76, %v269
    %427 = vst.msk [vmem:[#allocation2 + $0x28] sm:$0xff] %vm76, %v274
    %428 = vst.msk [vmem:[#allocation2 + $0x30] sm:$0xff] %vm76, %v279
    %429 = vst.msk [vmem:[#allocation2 + $0x38] sm:$0xff] %vm76, %v284
    %430 = vst.msk [vmem:[#allocation2 + $0x40] sm:$0xff] %vm76, %v289
    %431 = vst.msk [vmem:[#allocation2 + $0x48] sm:$0xff] %vm76, %v294
    %432 = vst.msk [vmem:[#allocation2 + $0x50] sm:$0xff] %vm76, %v299
    %433 = vst.msk [vmem:[#allocation2 + $0x58] sm:$0xff] %vm76, %v304
    %434 = vst.msk [vmem:[#allocation2 + $0x60] sm:$0xff] %vm76, %v309
    %435 = vst.msk [vmem:[#allocation2 + $0x68] sm:$0xff] %vm76, %v314
    %436 = vst.msk [vmem:[#allocation2 + $0x70] sm:$0xff] %vm76, %v319
    %437 = vst.msk [vmem:[#allocation2 + $0x78] sm:$0xff] %vm76, %v324
    %438 = vst.msk [vmem:[#allocation2 + $0x80] sm:$0xff] %vm76, %v329
    %439 = vst.msk [vmem:[#allocation2 + $0x88] sm:$0xff] %vm76, %v334
    %440 = vst.msk [vmem:[#allocation2 + $0x90] sm:$0xff] %vm76, %v339
    %441 = vst.msk [vmem:[#allocation2 + $0x98] sm:$0xff] %vm76, %v344
    %442 = vst.msk [vmem:[#allocation2 + $0xa0] sm:$0xff] %vm76, %v349
    %443 = vst.msk [vmem:[#allocation2 + $0xa8] sm:$0xff] %vm76, %v354
    %444 = vst.msk [vmem:[#allocation2 + $0xb0] sm:$0xff] %vm76, %v359
    %445 = vst.msk [vmem:[#allocation2 + $0xb8] sm:$0xff] %vm76, %v364
    %446 = vst.msk [vmem:[#allocation2 + $0xc0] sm:$0xff] %vm76, %v369
    %447 = vst.msk [vmem:[#allocation2 + $0xc8] sm:$0xff] %vm76, %v374
    %448 = vst.msk [vmem:[#allocation2 + $0xd0] sm:$0xff] %vm76, %v379
    %449 = vst.msk [vmem:[#allocation2 + $0xd8] sm:$0xff] %vm76, %v384
    %450 = vst.msk [vmem:[#allocation2 + $0xe0] sm:$0xff] %vm76, %v389
    %451 = vst.msk [vmem:[#allocation2 + $0xe8] sm:$0xff] %vm76, %v394
    %452 = vst.msk [vmem:[#allocation2 + $0xf0] sm:$0xff] %vm76, %v399
    %453 = vst.msk [vmem:[#allocation2 + $0xf8] sm:$0xff] %vm76, %v404
    %454 = vst.msk [vmem:[#allocation2 + $0x100] sm:$0xff] %vm76, %v409
    %455 = vst.msk [vmem:[#allocation2 + $0x108] sm:$0xff] %vm76, %v414
    %456 = vst.msk [vmem:[#allocation2 + $0x110] sm:$0xff] %vm76, %v419
    %v457 = vld [vmem:[#allocation2] sm:$0xff]
    %v459 = vsel %vm76, 0.0, 0
    %461 = vmatprep.subr.mxu0 0.0
    %462 = vmatpush1.msra.mxu0 %v30
    %463 = vmatprep.subr.mxu0 0.0
    %464 = vmatpush1.msra.mxu0 %v31
    %465 = vmatprep.subr.mxu0 0.0
    %466 = vmatpush1.msra.mxu0 %v32
    %467 = vmatprep.subr.mxu0 0.0
    %468 = vmatpush1.msra.mxu0 %v33
    %469 = vmatprep.subr.mxu0 0.0
    %470 = vmatpush1.msra.mxu0 0.0
    %471 = vmatprep.subr.mxu0 0.0
    %472 = vmatpush1.msra.mxu0 0.0
    %473 = vmatprep.subr.mxu0 0.0
    %474 = vmatpush1.msra.mxu0 0.0
    %475 = vmatprep.subr.mxu0 0.0
    %476 = vmatpush1.msra.mxu0 0.0
    %477 = vmatprep.subr.mxu0 0.0
    %478 = vmatpush1.msra.mxu0 0.0
    %479 = vmatprep.subr.mxu0 0.0
    %480 = vmatpush1.msra.mxu0 0.0
    %481 = vmatprep.subr.mxu0 0.0
    %482 = vmatpush1.msra.mxu0 0.0
    %483 = vmatprep.subr.mxu0 0.0
    %484 = vmatpush1.msra.mxu0 0.0
    %485 = vmatprep.subr.mxu0 0.0
    %486 = vmatpush1.msra.mxu0 0.0
    %487 = vmatprep.subr.mxu0 0.0
    %488 = vmatpush1.msra.mxu0 0.0
    %489 = vmatprep.subr.mxu0 0.0
    %490 = vmatpush1.msra.mxu0 0.0
    %491 = vmatprep.subr.mxu0 0.0
    %492 = vmatpush1.msra.mxu0 0.0
    %493 = vmatprep.subr.mxu0 0.0
    %494 = vmatpush1.msra.mxu0 0.0
    %495 = vmatprep.subr.mxu0 0.0
    %496 = vmatpush1.msra.mxu0 0.0
    %497 = vmatprep.subr.mxu0 0.0
    %498 = vmatpush1.msra.mxu0 0.0
    %499 = vmatprep.subr.mxu0 0.0
    %500 = vmatpush1.msra.mxu0 0.0
    %501 = vmatprep.subr.mxu0 0.0
    %502 = vmatpush1.msra.mxu0 0.0
    %503 = vmatprep.subr.mxu0 0.0
    %504 = vmatpush1.msra.mxu0 0.0
    %505 = vmatprep.subr.mxu0 0.0
    %506 = vmatpush1.msra.mxu0 0.0
    %507 = vmatprep.subr.mxu0 0.0
    %508 = vmatpush1.msra.mxu0 0.0
    %509 = vmatprep.subr.mxu0 0.0
    %510 = vmatpush1.msra.mxu0 0.0
    %511 = vmatprep.subr.mxu0 0.0
    %512 = vmatpush1.msra.mxu0 0.0
    %513 = vmatprep.subr.mxu0 0.0
    %514 = vmatpush1.msra.mxu0 0.0
    %515 = vmatprep.subr.mxu0 0.0
    %516 = vmatpush1.msra.mxu0 0.0
    %517 = vmatprep.subr.mxu0 0.0
    %518 = vmatpush1.msra.mxu0 0.0
    %519 = vmatprep.subr.mxu0 0.0
    %520 = vmatpush1.msra.mxu0 0.0
    %521 = vmatprep.subr.mxu0 0.0
    %522 = vmatpush1.msra.mxu0 0.0
    %523 = vmatprep.subr.mxu0 0.0
    %524 = vmatpush1.msra.mxu0 0.0
    %525 = vmatprep.mubr.f32.mxu0 0.0
    %526 = vmatmul.mubr.f32.gmra.mrb[0].mxu0 %v459
    %v527 = vpop.f32.mrb[0].mxu0
    %v528 = vadd.f32 0.0, %v527
    %v529 = vpop.f32.mrb[0].mxu0
    %530 = vdwg.mxu0
    %v531 = vadd.f32 %v457, %v528
    %v532 = vtanh.pop %v531
    %vm533 = vcmp.gt.s32.totalorder %v24, 0
    %v534 = vsel %vm533, 1, 0
    %535 = vset.pattern.permute.xlu0 0
    %536 = vperm.xlu0 %535, %v534
    %v537 = vpop.permute.xlu0 %536
    %vm538 = vcmp.eq.s32.totalorder %v537, 1
    %v539 = vsel %vm538, %v532, 0.0
    %540 = vst.msk [vmem:[#allocation2] sm:$0xff] %vm76, %v539
    %v541 = vld [vmem:[#allocation2 + $0x8] sm:$0xff]
    %v543 = vsel %vm76, %v539, 0
    %545 = vmatprep.subr.mxu0 0.0
    %546 = vmatpush1.msra.mxu0 %v30
    %547 = vmatprep.subr.mxu0 0.0
    %548 = vmatpush1.msra.mxu0 %v31
    %549 = vmatprep.subr.mxu0 0.0
    %550 = vmatpush1.msra.mxu0 %v32
    %551 = vmatprep.subr.mxu0 0.0
    %552 = vmatpush1.msra.mxu0 %v33
    %553 = vmatprep.subr.mxu0 0.0
    %554 = vmatpush1.msra.mxu0 0.0
    %555 = vmatprep.subr.mxu0 0.0
    %556 = vmatpush1.msra.mxu0 0.0
    %557 = vmatprep.subr.mxu0 0.0
    %558 = vmatpush1.msra.mxu0 0.0
    %559 = vmatprep.subr.mxu0 0.0
    %560 = vmatpush1.msra.mxu0 0.0
    %561 = vmatprep.subr.mxu0 0.0
    %562 = vmatpush1.msra.mxu0 0.0
    %563 = vmatprep.subr.mxu0 0.0
    %564 = vmatpush1.msra.mxu0 0.0
    %565 = vmatprep.subr.mxu0 0.0
    %566 = vmatpush1.msra.mxu0 0.0
    %567 = vmatprep.subr.mxu0 0.0
    %568 = vmatpush1.msra.mxu0 0.0
    %569 = vmatprep.subr.mxu0 0.0
    %570 = vmatpush1.msra.mxu0 0.0
    %571 = vmatprep.subr.mxu0 0.0
    %572 = vmatpush1.msra.mxu0 0.0
    %573 = vmatprep.subr.mxu0 0.0
    %574 = vmatpush1.msra.mxu0 0.0
    %575 = vmatprep.subr.mxu0 0.0
    %576 = vmatpush1.msra.mxu0 0.0
    %577 = vmatprep.subr.mxu0 0.0
    %578 = vmatpush1.msra.mxu0 0.0
    %579 = vmatprep.subr.mxu0 0.0
    %580 = vmatpush1.msra.mxu0 0.0
    %581 = vmatprep.subr.mxu0 0.0
    %582 = vmatpush1.msra.mxu0 0.0
    %583 = vmatprep.subr.mxu0 0.0
    %584 = vmatpush1.msra.mxu0 0.0
    %585 = vmatprep.subr.mxu0 0.0
    %586 = vmatpush1.msra.mxu0 0.0
    %587 = vmatprep.subr.mxu0 0.0
    %588 = vmatpush1.msra.mxu0 0.0
    %589 = vmatprep.subr.mxu0 0.0
    %590 = vmatpush1.msra.mxu0 0.0
    %591 = vmatprep.subr.mxu0 0.0
    %592 = vmatpush1.msra.mxu0 0.0
    %593 = vmatprep.subr.mxu0 0.0
    %594 = vmatpush1.msra.mxu0 0.0
    %595 = vmatprep.subr.mxu0 0.0
    %596 = vmatpush1.msra.mxu0 0.0
    %597 = vmatprep.subr.mxu0 0.0
    %598 = vmatpush1.msra.mxu0 0.0
    %599 = vmatprep.subr.mxu0 0.0
    %600 = vmatpush1.msra.mxu0 0.0
    %601 = vmatprep.subr.mxu0 0.0
    %602 = vmatpush1.msra.mxu0 0.0
    %603 = vmatprep.subr.mxu0 0.0
    %604 = vmatpush1.msra.mxu0 0.0
    %605 = vmatprep.subr.mxu0 0.0
    %606 = vmatpush1.msra.mxu0 0.0
    %607 = vmatprep.subr.mxu0 0.0
    %608 = vmatpush1.msra.mxu0 0.0
    %609 = vmatprep.mubr.f32.mxu0 0.0
    %610 = vmatmul.mubr.f32.gmra.mrb[0].mxu0 %v543
    %v611 = vpop.f32.mrb[0].mxu0
    %v612 = vadd.f32 0.0, %v611
    %v613 = vpop.f32.mrb[0].mxu0
    %614 = vdwg.mxu0
    %v615 = vadd.f32 %v541, %v612
    %v616 = vtanh.pop %v615
    %vm617 = vcmp.gt.s32.totalorder %v24, 1
    %v618 = vsel %vm617, 1, 0
    %619 = vset.pattern.permute.xlu0 0
    %620 = vperm.xlu0 %619, %v618
    %v621 = vpop.permute.xlu0 %620
    %vm622 = vcmp.eq.s32.totalorder %v621, 1
    %v623 = vsel %vm622, %v616, %v539
    %624 = vst.msk [vmem:[#allocation2 + $0x8] sm:$0xff] %vm76, %v623
    %v625 = vld [vmem:[#allocation2 + $0x10] sm:$0xff]
    %v627 = vsel %vm76, %v623, 0
    %629 = vmatprep.subr.mxu0 0.0
    %630 = vmatpush1.msra.mxu0 %v30
    %631 = vmatprep.subr.mxu0 0.0
    %632 = vmatpush1.msra.mxu0 %v31
    %633 = vmatprep.subr.mxu0 0.0
    %634 = vmatpush1.msra.mxu0 %v32
    %635 = vmatprep.subr.mxu0 0.0
    %636 = vmatpush1.msra.mxu0 %v33
    %637 = vmatprep.subr.mxu0 0.0
    %638 = vmatpush1.msra.mxu0 0.0
    %639 = vmatprep.subr.mxu0 0.0
    %640 = vmatpush1.msra.mxu0 0.0
    %641 = vmatprep.subr.mxu0 0.0
    %642 = vmatpush1.msra.mxu0 0.0
    %643 = vmatprep.subr.mxu0 0.0
    %644 = vmatpush1.msra.mxu0 0.0
    %645 = vmatprep.subr.mxu0 0.0
    %646 = vmatpush1.msra.mxu0 0.0
    %647 = vmatprep.subr.mxu0 0.0
    %648 = vmatpush1.msra.mxu0 0.0
    %649 = vmatprep.subr.mxu0 0.0
    %650 = vmatpush1.msra.mxu0 0.0
    %651 = vmatprep.subr.mxu0 0.0
    %652 = vmatpush1.msra.mxu0 0.0
    %653 = vmatprep.subr.mxu0 0.0
    %654 = vmatpush1.msra.mxu0 0.0
    %655 = vmatprep.subr.mxu0 0.0
    %656 = vmatpush1.msra.mxu0 0.0
    %657 = vmatprep.subr.mxu0 0.0
    %658 = vmatpush1.msra.mxu0 0.0
    %659 = vmatprep.subr.mxu0 0.0
    %660 = vmatpush1.msra.mxu0 0.0
    %661 = vmatprep.subr.mxu0 0.0
    %662 = vmatpush1.msra.mxu0 0.0
    %663 = vmatprep.subr.mxu0 0.0
    %664 = vmatpush1.msra.mxu0 0.0
    %665 = vmatprep.subr.mxu0 0.0
    %666 = vmatpush1.msra.mxu0 0.0
    %667 = vmatprep.subr.mxu0 0.0
    %668 = vmatpush1.msra.mxu0 0.0
    %669 = vmatprep.subr.mxu0 0.0
    %670 = vmatpush1.msra.mxu0 0.0
    %671 = vmatprep.subr.mxu0 0.0
    %672 = vmatpush1.msra.mxu0 0.0
    %673 = vmatprep.subr.mxu0 0.0
    %674 = vmatpush1.msra.mxu0 0.0
    %675 = vmatprep.subr.mxu0 0.0
    %676 = vmatpush1.msra.mxu0 0.0
    %677 = vmatprep.subr.mxu0 0.0
    %678 = vmatpush1.msra.mxu0 0.0
    %679 = vmatprep.subr.mxu0 0.0
    %680 = vmatpush1.msra.mxu0 0.0
    %681 = vmatprep.subr.mxu0 0.0
    %682 = vmatpush1.msra.mxu0 0.0
    %683 = vmatprep.subr.mxu0 0.0
    %684 = vmatpush1.msra.mxu0 0.0
    %685 = vmatprep.subr.mxu0 0.0
    %686 = vmatpush1.msra.mxu0 0.0
    %687 = vmatprep.subr.mxu0 0.0
    %688 = vmatpush1.msra.mxu0 0.0
    %689 = vmatprep.subr.mxu0 0.0
    %690 = vmatpush1.msra.mxu0 0.0
    %691 = vmatprep.subr.mxu0 0.0
    %692 = vmatpush1.msra.mxu0 0.0
    %693 = vmatprep.mubr.f32.mxu0 0.0
    %694 = vmatmul.mubr.f32.gmra.mrb[0].mxu0 %v627
    %v695 = vpop.f32.mrb[0].mxu0
    %v696 = vadd.f32 0.0, %v695
    %v697 = vpop.f32.mrb[0].mxu0
    %698 = vdwg.mxu0
    %v699 = vadd.f32 %v625, %v696
    %v700 = vtanh.pop %v699
    %vm701 = vcmp.gt.s32.totalorder %v24, 2
    %v702 = vsel %vm701, 1, 0
    %703 = vset.pattern.permute.xlu0 0
    %704 = vperm.xlu0 %703, %v702
    %v705 = vpop.permute.xlu0 %704
    %vm706 = vcmp.eq.s32.totalorder %v705, 1
    %v707 = vsel %vm706, %v700, %v623
    %708 = vst.msk [vmem:[#allocation2 + $0x10] sm:$0xff] %vm76, %v707
    %v709 = vld [vmem:[#allocation2 + $0x18] sm:$0xff]
    %v711 = vsel %vm76, %v707, 0
    %713 = vmatprep.subr.mxu0 0.0
    %714 = vmatpush1.msra.mxu0 %v30
    %715 = vmatprep.subr.mxu0 0.0
    %716 = vmatpush1.msra.mxu0 %v31
    %717 = vmatprep.subr.mxu0 0.0
    %718 = vmatpush1.msra.mxu0 %v32
    %719 = vmatprep.subr.mxu0 0.0
    %720 = vmatpush1.msra.mxu0 %v33
    %721 = vmatprep.subr.mxu0 0.0
    %722 = vmatpush1.msra.mxu0 0.0
    %723 = vmatprep.subr.mxu0 0.0
    %724 = vmatpush1.msra.mxu0 0.0
    %725 = vmatprep.subr.mxu0 0.0
    %726 = vmatpush1.msra.mxu0 0.0
    %727 = vmatprep.subr.mxu0 0.0
    %728 = vmatpush1.msra.mxu0 0.0
    %729 = vmatprep.subr.mxu0 0.0
    %730 = vmatpush1.msra.mxu0 0.0
    %731 = vmatprep.subr.mxu0 0.0
    %732 = vmatpush1.msra.mxu0 0.0
    %733 = vmatprep.subr.mxu0 0.0
    %734 = vmatpush1.msra.mxu0 0.0
    %735 = vmatprep.subr.mxu0 0.0
    %736 = vmatpush1.msra.mxu0 0.0
    %737 = vmatprep.subr.mxu0 0.0
    %738 = vmatpush1.msra.mxu0 0.0
    %739 = vmatprep.subr.mxu0 0.0
    %740 = vmatpush1.msra.mxu0 0.0
    %741 = vmatprep.subr.mxu0 0.0
    %742 = vmatpush1.msra.mxu0 0.0
    %743 = vmatprep.subr.mxu0 0.0
    %744 = vmatpush1.msra.mxu0 0.0
    %745 = vmatprep.subr.mxu0 0.0
    %746 = vmatpush1.msra.mxu0 0.0
    %747 = vmatprep.subr.mxu0 0.0
    %748 = vmatpush1.msra.mxu0 0.0
    %749 = vmatprep.subr.mxu0 0.0
    %750 = vmatpush1.msra.mxu0 0.0
    %751 = vmatprep.subr.mxu0 0.0
    %752 = vmatpush1.msra.mxu0 0.0
    %753 = vmatprep.subr.mxu0 0.0
    %754 = vmatpush1.msra.mxu0 0.0
    %755 = vmatprep.subr.mxu0 0.0
    %756 = vmatpush1.msra.mxu0 0.0
    %757 = vmatprep.subr.mxu0 0.0
    %758 = vmatpush1.msra.mxu0 0.0
    %759 = vmatprep.subr.mxu0 0.0
    %760 = vmatpush1.msra.mxu0 0.0
    %761 = vmatprep.subr.mxu0 0.0
    %762 = vmatpush1.msra.mxu0 0.0
    %763 = vmatprep.subr.mxu0 0.0
    %764 = vmatpush1.msra.mxu0 0.0
    %765 = vmatprep.subr.mxu0 0.0
    %766 = vmatpush1.msra.mxu0 0.0
    %767 = vmatprep.subr.mxu0 0.0
    %768 = vmatpush1.msra.mxu0 0.0
    %769 = vmatprep.subr.mxu0 0.0
    %770 = vmatpush1.msra.mxu0 0.0
    %771 = vmatprep.subr.mxu0 0.0
    %772 = vmatpush1.msra.mxu0 0.0
    %773 = vmatprep.subr.mxu0 0.0
    %774 = vmatpush1.msra.mxu0 0.0
    %775 = vmatprep.subr.mxu0 0.0
    %776 = vmatpush1.msra.mxu0 0.0
    %777 = vmatprep.mubr.f32.mxu0 0.0
    %778 = vmatmul.mubr.f32.gmra.mrb[0].mxu0 %v711
    %v779 = vpop.f32.mrb[0].mxu0
    %v780 = vadd.f32 0.0, %v779
    %v781 = vpop.f32.mrb[0].mxu0
    %782 = vdwg.mxu0
    %v783 = vadd.f32 %v709, %v780
    %v784 = vtanh.pop %v783
    %vm785 = vcmp.gt.s32.totalorder %v24, 3
    %v786 = vsel %vm785, 1, 0
    %787 = vset.pattern.permute.xlu0 0
    %788 = vperm.xlu0 %787, %v786
    %v789 = vpop.permute.xlu0 %788
    %vm790 = vcmp.eq.s32.totalorder %v789, 1
    %v791 = vsel %vm790, %v784, %v707
    %792 = vst.msk [vmem:[#allocation2 + $0x18] sm:$0xff] %vm76, %v791
    %v793 = vld [vmem:[#allocation2 + $0x20] sm:$0xff]
    %v795 = vsel %vm76, %v791, 0
    %797 = vmatprep.subr.mxu0 0.0
    %798 = vmatpush1.msra.mxu0 %v30
    %799 = vmatprep.subr.mxu0 0.0
    %800 = vmatpush1.msra.mxu0 %v31
    %801 = vmatprep.subr.mxu0 0.0
    %802 = vmatpush1.msra.mxu0 %v32
    %803 = vmatprep.subr.mxu0 0.0
    %804 = vmatpush1.msra.mxu0 %v33
    %805 = vmatprep.subr.mxu0 0.0
    %806 = vmatpush1.msra.mxu0 0.0
    %807 = vmatprep.subr.mxu0 0.0
    %808 = vmatpush1.msra.mxu0 0.0
    %809 = vmatprep.subr.mxu0 0.0
    %810 = vmatpush1.msra.mxu0 0.0
    %811 = vmatprep.subr.mxu0 0.0
    %812 = vmatpush1.msra.mxu0 0.0
    %813 = vmatprep.subr.mxu0 0.0
    %814 = vmatpush1.msra.mxu0 0.0
    %815 = vmatprep.subr.mxu0 0.0
    %816 = vmatpush1.msra.mxu0 0.0
    %817 = vmatprep.subr.mxu0 0.0
    %818 = vmatpush1.msra.mxu0 0.0
    %819 = vmatprep.subr.mxu0 0.0
    %820 = vmatpush1.msra.mxu0 0.0
    %821 = vmatprep.subr.mxu0 0.0
    %822 = vmatpush1.msra.mxu0 0.0
    %823 = vmatprep.subr.mxu0 0.0
    %824 = vmatpush1.msra.mxu0 0.0
    %825 = vmatprep.subr.mxu0 0.0
    %826 = vmatpush1.msra.mxu0 0.0
    %827 = vmatprep.subr.mxu0 0.0
    %828 = vmatpush1.msra.mxu0 0.0
    %829 = vmatprep.subr.mxu0 0.0
    %830 = vmatpush1.msra.mxu0 0.0
    %831 = vmatprep.subr.mxu0 0.0
    %832 = vmatpush1.msra.mxu0 0.0
    %833 = vmatprep.subr.mxu0 0.0
    %834 = vmatpush1.msra.mxu0 0.0
    %835 = vmatprep.subr.mxu0 0.0
    %836 = vmatpush1.msra.mxu0 0.0
    %837 = vmatprep.subr.mxu0 0.0
    %838 = vmatpush1.msra.mxu0 0.0
    %839 = vmatprep.subr.mxu0 0.0
    %840 = vmatpush1.msra.mxu0 0.0
    %841 = vmatprep.subr.mxu0 0.0
    %842 = vmatpush1.msra.mxu0 0.0
    %843 = vmatprep.subr.mxu0 0.0
    %844 = vmatpush1.msra.mxu0 0.0
    %845 = vmatprep.subr.mxu0 0.0
    %846 = vmatpush1.msra.mxu0 0.0
    %847 = vmatprep.subr.mxu0 0.0
    %848 = vmatpush1.msra.mxu0 0.0
    %849 = vmatprep.subr.mxu0 0.0
    %850 = vmatpush1.msra.mxu0 0.0
    %851 = vmatprep.subr.mxu0 0.0
    %852 = vmatpush1.msra.mxu0 0.0
    %853 = vmatprep.subr.mxu0 0.0
    %854 = vmatpush1.msra.mxu0 0.0
    %855 = vmatprep.subr.mxu0 0.0
    %856 = vmatpush1.msra.mxu0 0.0
    %857 = vmatprep.subr.mxu0 0.0
    %858 = vmatpush1.msra.mxu0 0.0
    %859 = vmatprep.subr.mxu0 0.0
    %860 = vmatpush1.msra.mxu0 0.0
    %861 = vmatprep.mubr.f32.mxu0 0.0
    %862 = vmatmul.mubr.f32.gmra.mrb[0].mxu0 %v795
    %v863 = vpop.f32.mrb[0].mxu0
    %v864 = vadd.f32 0.0, %v863
    %v865 = vpop.f32.mrb[0].mxu0
    %866 = vdwg.mxu0
    %v867 = vadd.f32 %v793, %v864
    %v868 = vtanh.pop %v867
    %vm869 = vcmp.gt.s32.totalorder %v24, 4
    %v870 = vsel %vm869, 1, 0
    %871 = vset.pattern.permute.xlu0 0
    %872 = vperm.xlu0 %871, %v870
    %v873 = vpop.permute.xlu0 %872
    %vm874 = vcmp.eq.s32.totalorder %v873, 1
    %v875 = vsel %vm874, %v868, %v791
    %876 = vst.msk [vmem:[#allocation2 + $0x20] sm:$0xff] %vm76, %v875
    %v877 = vld [vmem:[#allocation2 + $0x28] sm:$0xff]
    %v879 = vsel %vm76, %v875, 0
    %881 = vmatprep.subr.mxu0 0.0
    %882 = vmatpush1.msra.mxu0 %v30
    %883 = vmatprep.subr.mxu0 0.0
    %884 = vmatpush1.msra.mxu0 %v31
    %885 = vmatprep.subr.mxu0 0.0
    %886 = vmatpush1.msra.mxu0 %v32
    %887 = vmatprep.subr.mxu0 0.0
    %888 = vmatpush1.msra.mxu0 %v33
    %889 = vmatprep.subr.mxu0 0.0
    %890 = vmatpush1.msra.mxu0 0.0
    %891 = vmatprep.subr.mxu0 0.0
    %892 = vmatpush1.msra.mxu0 0.0
    %893 = vmatprep.subr.mxu0 0.0
    %894 = vmatpush1.msra.mxu0 0.0
    %895 = vmatprep.subr.mxu0 0.0
    %896 = vmatpush1.msra.mxu0 0.0
    %897 = vmatprep.subr.mxu0 0.0
    %898 = vmatpush1.msra.mxu0 0.0
    %899 = vmatprep.subr.mxu0 0.0
    %900 = vmatpush1.msra.mxu0 0.0
    %901 = vmatprep.subr.mxu0 0.0
    %902 = vmatpush1.msra.mxu0 0.0
    %903 = vmatprep.subr.mxu0 0.0
    %904 = vmatpush1.msra.mxu0 0.0
    %905 = vmatprep.subr.mxu0 0.0
    %906 = vmatpush1.msra.mxu0 0.0
    %907 = vmatprep.subr.mxu0 0.0
    %908 = vmatpush1.msra.mxu0 0.0
    %909 = vmatprep.subr.mxu0 0.0
    %910 = vmatpush1.msra.mxu0 0.0
    %911 = vmatprep.subr.mxu0 0.0
    %912 = vmatpush1.msra.mxu0 0.0
    %913 = vmatprep.subr.mxu0 0.0
    %914 = vmatpush1.msra.mxu0 0.0
    %915 = vmatprep.subr.mxu0 0.0
    %916 = vmatpush1.msra.mxu0 0.0
    %917 = vmatprep.subr.mxu0 0.0
    %918 = vmatpush1.msra.mxu0 0.0
    %919 = vmatprep.subr.mxu0 0.0
    %920 = vmatpush1.msra.mxu0 0.0
    %921 = vmatprep.subr.mxu0 0.0
    %922 = vmatpush1.msra.mxu0 0.0
    %923 = vmatprep.subr.mxu0 0.0
    %924 = vmatpush1.msra.mxu0 0.0
    %925 = vmatprep.subr.mxu0 0.0
    %926 = vmatpush1.msra.mxu0 0.0
    %927 = vmatprep.subr.mxu0 0.0
    %928 = vmatpush1.msra.mxu0 0.0
    %929 = vmatprep.subr.mxu0 0.0
    %930 = vmatpush1.msra.mxu0 0.0
    %931 = vmatprep.subr.mxu0 0.0
    %932 = vmatpush1.msra.mxu0 0.0
    %933 = vmatprep.subr.mxu0 0.0
    %934 = vmatpush1.msra.mxu0 0.0
    %935 = vmatprep.subr.mxu0 0.0
    %936 = vmatpush1.msra.mxu0 0.0
    %937 = vmatprep.subr.mxu0 0.0
    %938 = vmatpush1.msra.mxu0 0.0
    %939 = vmatprep.subr.mxu0 0.0
    %940 = vmatpush1.msra.mxu0 0.0
    %941 = vmatprep.subr.mxu0 0.0
    %942 = vmatpush1.msra.mxu0 0.0
    %943 = vmatprep.subr.mxu0 0.0
    %944 = vmatpush1.msra.mxu0 0.0
    %945 = vmatprep.mubr.f32.mxu0 0.0
    %946 = vmatmul.mubr.f32.gmra.mrb[0].mxu0 %v879
    %v947 = vpop.f32.mrb[0].mxu0
    %v948 = vadd.f32 0.0, %v947
    %v949 = vpop.f32.mrb[0].mxu0
    %950 = vdwg.mxu0
    %v951 = vadd.f32 %v877, %v948
    %v952 = vtanh.pop %v951
    %vm953 = vcmp.gt.s32.totalorder %v24, 5
    %v954 = vsel %vm953, 1, 0
    %955 = vset.pattern.permute.xlu0 0
    %956 = vperm.xlu0 %955, %v954
    %v957 = vpop.permute.xlu0 %956
    %vm958 = vcmp.eq.s32.totalorder %v957, 1
    %v959 = vsel %vm958, %v952, %v875
    %960 = vst.msk [vmem:[#allocation2 + $0x28] sm:$0xff] %vm76, %v959
    %v961 = vld [vmem:[#allocation2 + $0x30] sm:$0xff]
    %v963 = vsel %vm76, %v959, 0
    %965 = vmatprep.subr.mxu0 0.0
    %966 = vmatpush1.msra.mxu0 %v30
    %967 = vmatprep.subr.mxu0 0.0
    %968 = vmatpush1.msra.mxu0 %v31
    %969 = vmatprep.subr.mxu0 0.0
    %970 = vmatpush1.msra.mxu0 %v32
    %971 = vmatprep.subr.mxu0 0.0
    %972 = vmatpush1.msra.mxu0 %v33
    %973 = vmatprep.subr.mxu0 0.0
    %974 = vmatpush1.msra.mxu0 0.0
    %975 = vmatprep.subr.mxu0 0.0
    %976 = vmatpush1.msra.mxu0 0.0
    %977 = vmatprep.subr.mxu0 0.0
    %978 = vmatpush1.msra.mxu0 0.0
    %979 = vmatprep.subr.mxu0 0.0
    %980 = vmatpush1.msra.mxu0 0.0
    %981 = vmatprep.subr.mxu0 0.0
    %982 = vmatpush1.msra.mxu0 0.0
    %983 = vmatprep.subr.mxu0 0.0
    %984 = vmatpush1.msra.mxu0 0.0
    %985 = vmatprep.subr.mxu0 0.0
    %986 = vmatpush1.msra.mxu0 0.0
    %987 = vmatprep.subr.mxu0 0.0
    %988 = vmatpush1.msra.mxu0 0.0
    %989 = vmatprep.subr.mxu0 0.0
    %990 = vmatpush1.msra.mxu0 0.0
    %991 = vmatprep.subr.mxu0 0.0
    %992 = vmatpush1.msra.mxu0 0.0
    %993 = vmatprep.subr.mxu0 0.0
    %994 = vmatpush1.msra.mxu0 0.0
    %995 = vmatprep.subr.mxu0 0.0
    %996 = vmatpush1.msra.mxu0 0.0
    %997 = vmatprep.subr.mxu0 0.0
    %998 = vmatpush1.msra.mxu0 0.0
    %999 = vmatprep.subr.mxu0 0.0
    %1000 = vmatpush1.msra.mxu0 0.0
    %1001 = vmatprep.subr.mxu0 0.0
    %1002 = vmatpush1.msra.mxu0 0.0
    %1003 = vmatprep.subr.mxu0 0.0
    %1004 = vmatpush1.msra.mxu0 0.0
    %1005 = vmatprep.subr.mxu0 0.0
    %1006 = vmatpush1.msra.mxu0 0.0
    %1007 = vmatprep.subr.mxu0 0.0
    %1008 = vmatpush1.msra.mxu0 0.0
    %1009 = vmatprep.subr.mxu0 0.0
    %1010 = vmatpush1.msra.mxu0 0.0
    %1011 = vmatprep.subr.mxu0 0.0
    %1012 = vmatpush1.msra.mxu0 0.0
    %1013 = vmatprep.subr.mxu0 0.0
    %1014 = vmatpush1.msra.mxu0 0.0
    %1015 = vmatprep.subr.mxu0 0.0
    %1016 = vmatpush1.msra.mxu0 0.0
    %1017 = vmatprep.subr.mxu0 0.0
    %1018 = vmatpush1.msra.mxu0 0.0
    %1019 = vmatprep.subr.mxu0 0.0
    %1020 = vmatpush1.msra.mxu0 0.0
    %1021 = vmatprep.subr.mxu0 0.0
    %1022 = vmatpush1.msra.mxu0 0.0
    %1023 = vmatprep.subr.mxu0 0.0
    %1024 = vmatpush1.msra.mxu0 0.0
    %1025 = vmatprep.subr.mxu0 0.0
    %1026 = vmatpush1.msra.mxu0 0.0
    %1027 = vmatprep.subr.mxu0 0.0
    %1028 = vmatpush1.msra.mxu0 0.0
    %1029 = vmatprep.mubr.f32.mxu0 0.0
    %1030 = vmatmul.mubr.f32.gmra.mrb[0].mxu0 %v963
    %v1031 = vpop.f32.mrb[0].mxu0
    %v1032 = vadd.f32 0.0, %v1031
    %v1033 = vpop.f32.mrb[0].mxu0
    %1034 = vdwg.mxu0
    %v1035 = vadd.f32 %v961, %v1032
    %v1036 = vtanh.pop %v1035
    %vm1037 = vcmp.gt.s32.totalorder %v24, 6
    %v1038 = vsel %vm1037, 1, 0
    %1039 = vset.pattern.permute.xlu0 0
    %1040 = vperm.xlu0 %1039, %v1038
    %v1041 = vpop.permute.xlu0 %1040
    %vm1042 = vcmp.eq.s32.totalorder %v1041, 1
    %v1043 = vsel %vm1042, %v1036, %v959
    %1044 = vst.msk [vmem:[#allocation2 + $0x30] sm:$0xff] %vm76, %v1043
    %v1045 = vld [vmem:[#allocation2 + $0x38] sm:$0xff]
    %v1047 = vsel %vm76, %v1043, 0
    %1049 = vmatprep.subr.mxu0 0.0
    %1050 = vmatpush1.msra.mxu0 %v30
    %1051 = vmatprep.subr.mxu0 0.0
    %1052 = vmatpush1.msra.mxu0 %v31
    %1053 = vmatprep.subr.mxu0 0.0
    %1054 = vmatpush1.msra.mxu0 %v32
    %1055 = vmatprep.subr.mxu0 0.0
    %1056 = vmatpush1.msra.mxu0 %v33
    %1057 = vmatprep.subr.mxu0 0.0
    %1058 = vmatpush1.msra.mxu0 0.0
    %1059 = vmatprep.subr.mxu0 0.0
    %1060 = vmatpush1.msra.mxu0 0.0
    %1061 = vmatprep.subr.mxu0 0.0
    %1062 = vmatpush1.msra.mxu0 0.0
    %1063 = vmatprep.subr.mxu0 0.0
    %1064 = vmatpush1.msra.mxu0 0.0
    %1065 = vmatprep.subr.mxu0 0.0
    %1066 = vmatpush1.msra.mxu0 0.0
    %1067 = vmatprep.subr.mxu0 0.0
    %1068 = vmatpush1.msra.mxu0 0.0
    %1069 = vmatprep.subr.mxu0 0.0
    %1070 = vmatpush1.msra.mxu0 0.0
    %1071 = vmatprep.subr.mxu0 0.0
    %1072 = vmatpush1.msra.mxu0 0.0
    %1073 = vmatprep.subr.mxu0 0.0
    %1074 = vmatpush1.msra.mxu0 0.0
    %1075 = vmatprep.subr.mxu0 0.0
    %1076 = vmatpush1.msra.mxu0 0.0
    %1077 = vmatprep.subr.mxu0 0.0
    %1078 = vmatpush1.msra.mxu0 0.0
    %1079 = vmatprep.subr.mxu0 0.0
    %1080 = vmatpush1.msra.mxu0 0.0
    %1081 = vmatprep.subr.mxu0 0.0
    %1082 = vmatpush1.msra.mxu0 0.0
    %1083 = vmatprep.subr.mxu0 0.0
    %1084 = vmatpush1.msra.mxu0 0.0
    %1085 = vmatprep.subr.mxu0 0.0
    %1086 = vmatpush1.msra.mxu0 0.0
    %1087 = vmatprep.subr.mxu0 0.0
    %1088 = vmatpush1.msra.mxu0 0.0
    %1089 = vmatprep.subr.mxu0 0.0
    %1090 = vmatpush1.msra.mxu0 0.0
    %1091 = vmatprep.subr.mxu0 0.0
    %1092 = vmatpush1.msra.mxu0 0.0
    %1093 = vmatprep.subr.mxu0 0.0
    %1094 = vmatpush1.msra.mxu0 0.0
    %1095 = vmatprep.subr.mxu0 0.0
    %1096 = vmatpush1.msra.mxu0 0.0
    %1097 = vmatprep.subr.mxu0 0.0
    %1098 = vmatpush1.msra.mxu0 0.0
    %1099 = vmatprep.subr.mxu0 0.0
    %1100 = vmatpush1.msra.mxu0 0.0
    %1101 = vmatprep.subr.mxu0 0.0
    %1102 = vmatpush1.msra.mxu0 0.0
    %1103 = vmatprep.subr.mxu0 0.0
    %1104 = vmatpush1.msra.mxu0 0.0
    %1105 = vmatprep.subr.mxu0 0.0
    %1106 = vmatpush1.msra.mxu0 0.0
    %1107 = vmatprep.subr.mxu0 0.0
    %1108 = vmatpush1.msra.mxu0 0.0
    %1109 = vmatprep.subr.mxu0 0.0
    %1110 = vmatpush1.msra.mxu0 0.0
    %1111 = vmatprep.subr.mxu0 0.0
    %1112 = vmatpush1.msra.mxu0 0.0
    %1113 = vmatprep.mubr.f32.mxu0 0.0
    %1114 = vmatmul.mubr.f32.gmra.mrb[0].mxu0 %v1047
    %v1115 = vpop.f32.mrb[0].mxu0
    %v1116 = vadd.f32 0.0, %v1115
    %v1117 = vpop.f32.mrb[0].mxu0
    %1118 = vdwg.mxu0
    %v1119 = vadd.f32 %v1045, %v1116
    %v1120 = vtanh.pop %v1119
    %vm1121 = vcmp.gt.s32.totalorder %v24, 7
    %v1122 = vsel %vm1121, 1, 0
    %1123 = vset.pattern.permute.xlu0 0
    %1124 = vperm.xlu0 %1123, %v1122
    %v1125 = vpop.permute.xlu0 %1124
    %vm1126 = vcmp.eq.s32.totalorder %v1125, 1
    %v1127 = vsel %vm1126, %v1120, %v1043
    %1128 = vst.msk [vmem:[#allocation2 + $0x38] sm:$0xff] %vm76, %v1127
    %v1129 = vld [vmem:[#allocation2 + $0x40] sm:$0xff]
    %v1131 = vsel %vm76, %v1127, 0
    %1133 = vmatprep.subr.mxu0 0.0
    %1134 = vmatpush1.msra.mxu0 %v30
    %1135 = vmatprep.subr.mxu0 0.0
    %1136 = vmatpush1.msra.mxu0 %v31
    %1137 = vmatprep.subr.mxu0 0.0
    %1138 = vmatpush1.msra.mxu0 %v32
    %1139 = vmatprep.subr.mxu0 0.0
    %1140 = vmatpush1.msra.mxu0 %v33
    %1141 = vmatprep.subr.mxu0 0.0
    %1142 = vmatpush1.msra.mxu0 0.0
    %1143 = vmatprep.subr.mxu0 0.0
    %1144 = vmatpush1.msra.mxu0 0.0
    %1145 = vmatprep.subr.mxu0 0.0
    %1146 = vmatpush1.msra.mxu0 0.0
    %1147 = vmatprep.subr.mxu0 0.0
    %1148 = vmatpush1.msra.mxu0 0.0
    %1149 = vmatprep.subr.mxu0 0.0
    %1150 = vmatpush1.msra.mxu0 0.0
    %1151 = vmatprep.subr.mxu0 0.0
    %1152 = vmatpush1.msra.mxu0 0.0
    %1153 = vmatprep.subr.mxu0 0.0
    %1154 = vmatpush1.msra.mxu0 0.0
    %1155 = vmatprep.subr.mxu0 0.0
    %1156 = vmatpush1.msra.mxu0 0.0
    %1157 = vmatprep.subr.mxu0 0.0
    %1158 = vmatpush1.msra.mxu0 0.0
    %1159 = vmatprep.subr.mxu0 0.0
    %1160 = vmatpush1.msra.mxu0 0.0
    %1161 = vmatprep.subr.mxu0 0.0
    %1162 = vmatpush1.msra.mxu0 0.0
    %1163 = vmatprep.subr.mxu0 0.0
    %1164 = vmatpush1.msra.mxu0 0.0
    %1165 = vmatprep.subr.mxu0 0.0
    %1166 = vmatpush1.msra.mxu0 0.0
    %1167 = vmatprep.subr.mxu0 0.0
    %1168 = vmatpush1.msra.mxu0 0.0
    %1169 = vmatprep.subr.mxu0 0.0
    %1170 = vmatpush1.msra.mxu0 0.0
    %1171 = vmatprep.subr.mxu0 0.0
    %1172 = vmatpush1.msra.mxu0 0.0
    %1173 = vmatprep.subr.mxu0 0.0
    %1174 = vmatpush1.msra.mxu0 0.0
    %1175 = vmatprep.subr.mxu0 0.0
    %1176 = vmatpush1.msra.mxu0 0.0
    %1177 = vmatprep.subr.mxu0 0.0
    %1178 = vmatpush1.msra.mxu0 0.0
    %1179 = vmatprep.subr.mxu0 0.0
    %1180 = vmatpush1.msra.mxu0 0.0
    %1181 = vmatprep.subr.mxu0 0.0
    %1182 = vmatpush1.msra.mxu0 0.0
    %1183 = vmatprep.subr.mxu0 0.0
    %1184 = vmatpush1.msra.mxu0 0.0
    %1185 = vmatprep.subr.mxu0 0.0
    %1186 = vmatpush1.msra.mxu0 0.0
    %1187 = vmatprep.subr.mxu0 0.0
    %1188 = vmatpush1.msra.mxu0 0.0
    %1189 = vmatprep.subr.mxu0 0.0
    %1190 = vmatpush1.msra.mxu0 0.0
    %1191 = vmatprep.subr.mxu0 0.0
    %1192 = vmatpush1.msra.mxu0 0.0
    %1193 = vmatprep.subr.mxu0 0.0
    %1194 = vmatpush1.msra.mxu0 0.0
    %1195 = vmatprep.subr.mxu0 0.0
    %1196 = vmatpush1.msra.mxu0 0.0
    %1197 = vmatprep.mubr.f32.mxu0 0.0
    %1198 = vmatmul.mubr.f32.gmra.mrb[0].mxu0 %v1131
    %v1199 = vpop.f32.mrb[0].mxu0
    %v1200 = vadd.f32 0.0, %v1199
    %v1201 = vpop.f32.mrb[0].mxu0
    %1202 = vdwg.mxu0
    %v1203 = vadd.f32 %v1129, %v1200
    %v1204 = vtanh.pop %v1203
    %vm1205 = vcmp.gt.s32.totalorder %v24, 8
    %v1206 = vsel %vm1205, 1, 0
    %1207 = vset.pattern.permute.xlu0 0
    %1208 = vperm.xlu0 %1207, %v1206
    %v1209 = vpop.permute.xlu0 %1208
    %vm1210 = vcmp.eq.s32.totalorder %v1209, 1
    %v1211 = vsel %vm1210, %v1204, %v1127
    %1212 = vst.msk [vmem:[#allocation2 + $0x40] sm:$0xff] %vm76, %v1211
    %v1213 = vld [vmem:[#allocation2 + $0x48] sm:$0xff]
    %v1215 = vsel %vm76, %v1211, 0
    %1217 = vmatprep.subr.mxu0 0.0
    %1218 = vmatpush1.msra.mxu0 %v30
    %1219 = vmatprep.subr.mxu0 0.0
    %1220 = vmatpush1.msra.mxu0 %v31
    %1221 = vmatprep.subr.mxu0 0.0
    %1222 = vmatpush1.msra.mxu0 %v32
    %1223 = vmatprep.subr.mxu0 0.0
    %1224 = vmatpush1.msra.mxu0 %v33
    %1225 = vmatprep.subr.mxu0 0.0
    %1226 = vmatpush1.msra.mxu0 0.0
    %1227 = vmatprep.subr.mxu0 0.0
    %1228 = vmatpush1.msra.mxu0 0.0
    %1229 = vmatprep.subr.mxu0 0.0
    %1230 = vmatpush1.msra.mxu0 0.0
    %1231 = vmatprep.subr.mxu0 0.0
    %1232 = vmatpush1.msra.mxu0 0.0
    %1233 = vmatprep.subr.mxu0 0.0
    %1234 = vmatpush1.msra.mxu0 0.0
    %1235 = vmatprep.subr.mxu0 0.0
    %1236 = vmatpush1.msra.mxu0 0.0
    %1237 = vmatprep.subr.mxu0 0.0
    %1238 = vmatpush1.msra.mxu0 0.0
    %1239 = vmatprep.subr.mxu0 0.0
    %1240 = vmatpush1.msra.mxu0 0.0
    %1241 = vmatprep.subr.mxu0 0.0
    %1242 = vmatpush1.msra.mxu0 0.0
    %1243 = vmatprep.subr.mxu0 0.0
    %1244 = vmatpush1.msra.mxu0 0.0
    %1245 = vmatprep.subr.mxu0 0.0
    %1246 = vmatpush1.msra.mxu0 0.0
    %1247 = vmatprep.subr.mxu0 0.0
    %1248 = vmatpush1.msra.mxu0 0.0
    %1249 = vmatprep.subr.mxu0 0.0
    %1250 = vmatpush1.msra.mxu0 0.0
    %1251 = vmatprep.subr.mxu0 0.0
    %1252 = vmatpush1.msra.mxu0 0.0
    %1253 = vmatprep.subr.mxu0 0.0
    %1254 = vmatpush1.msra.mxu0 0.0
    %1255 = vmatprep.subr.mxu0 0.0
    %1256 = vmatpush1.msra.mxu0 0.0
    %1257 = vmatprep.subr.mxu0 0.0
    %1258 = vmatpush1.msra.mxu0 0.0
    %1259 = vmatprep.subr.mxu0 0.0
    %1260 = vmatpush1.msra.mxu0 0.0
    %1261 = vmatprep.subr.mxu0 0.0
    %1262 = vmatpush1.msra.mxu0 0.0
    %1263 = vmatprep.subr.mxu0 0.0
    %1264 = vmatpush1.msra.mxu0 0.0
    %1265 = vmatprep.subr.mxu0 0.0
    %1266 = vmatpush1.msra.mxu0 0.0
    %1267 = vmatprep.subr.mxu0 0.0
    %1268 = vmatpush1.msra.mxu0 0.0
    %1269 = vmatprep.subr.mxu0 0.0
    %1270 = vmatpush1.msra.mxu0 0.0
    %1271 = vmatprep.subr.mxu0 0.0
    %1272 = vmatpush1.msra.mxu0 0.0
    %1273 = vmatprep.subr.mxu0 0.0
    %1274 = vmatpush1.msra.mxu0 0.0
    %1275 = vmatprep.subr.mxu0 0.0
    %1276 = vmatpush1.msra.mxu0 0.0
    %1277 = vmatprep.subr.mxu0 0.0
    %1278 = vmatpush1.msra.mxu0 0.0
    %1279 = vmatprep.subr.mxu0 0.0
    %1280 = vmatpush1.msra.mxu0 0.0
    %1281 = vmatprep.mubr.f32.mxu0 0.0
    %1282 = vmatmul.mubr.f32.gmra.mrb[0].mxu0 %v1215
    %v1283 = vpop.f32.mrb[0].mxu0
    %v1284 = vadd.f32 0.0, %v1283
    %v1285 = vpop.f32.mrb[0].mxu0
    %1286 = vdwg.mxu0
    %v1287 = vadd.f32 %v1213, %v1284
    %v1288 = vtanh.pop %v1287
    %vm1289 = vcmp.gt.s32.totalorder %v24, 9
    %v1290 = vsel %vm1289, 1, 0
    %1291 = vset.pattern.permute.xlu0 0
    %1292 = vperm.xlu0 %1291, %v1290
    %v1293 = vpop.permute.xlu0 %1292
    %vm1294 = vcmp.eq.s32.totalorder %v1293, 1
    %v1295 = vsel %vm1294, %v1288, %v1211
    %1296 = vst.msk [vmem:[#allocation2 + $0x48] sm:$0xff] %vm76, %v1295
    %v1297 = vld [vmem:[#allocation2 + $0x50] sm:$0xff]
    %v1299 = vsel %vm76, %v1295, 0
    %1301 = vmatprep.subr.mxu0 0.0
    %1302 = vmatpush1.msra.mxu0 %v30
    %1303 = vmatprep.subr.mxu0 0.0
    %1304 = vmatpush1.msra.mxu0 %v31
    %1305 = vmatprep.subr.mxu0 0.0
    %1306 = vmatpush1.msra.mxu0 %v32
    %1307 = vmatprep.subr.mxu0 0.0
    %1308 = vmatpush1.msra.mxu0 %v33
    %1309 = vmatprep.subr.mxu0 0.0
    %1310 = vmatpush1.msra.mxu0 0.0
    %1311 = vmatprep.subr.mxu0 0.0
    %1312 = vmatpush1.msra.mxu0 0.0
    %1313 = vmatprep.subr.mxu0 0.0
    %1314 = vmatpush1.msra.mxu0 0.0
    %1315 = vmatprep.subr.mxu0 0.0
    %1316 = vmatpush1.msra.mxu0 0.0
    %1317 = vmatprep.subr.mxu0 0.0
    %1318 = vmatpush1.msra.mxu0 0.0
    %1319 = vmatprep.subr.mxu0 0.0
    %1320 = vmatpush1.msra.mxu0 0.0
    %1321 = vmatprep.subr.mxu0 0.0
    %1322 = vmatpush1.msra.mxu0 0.0
    %1323 = vmatprep.subr.mxu0 0.0
    %1324 = vmatpush1.msra.mxu0 0.0
    %1325 = vmatprep.subr.mxu0 0.0
    %1326 = vmatpush1.msra.mxu0 0.0
    %1327 = vmatprep.subr.mxu0 0.0
    %1328 = vmatpush1.msra.mxu0 0.0
    %1329 = vmatprep.subr.mxu0 0.0
    %1330 = vmatpush1.msra.mxu0 0.0
    %1331 = vmatprep.subr.mxu0 0.0
    %1332 = vmatpush1.msra.mxu0 0.0
    %1333 = vmatprep.subr.mxu0 0.0
    %1334 = vmatpush1.msra.mxu0 0.0
    %1335 = vmatprep.subr.mxu0 0.0
    %1336 = vmatpush1.msra.mxu0 0.0
    %1337 = vmatprep.subr.mxu0 0.0
    %1338 = vmatpush1.msra.mxu0 0.0
    %1339 = vmatprep.subr.mxu0 0.0
    %1340 = vmatpush1.msra.mxu0 0.0
    %1341 = vmatprep.subr.mxu0 0.0
    %1342 = vmatpush1.msra.mxu0 0.0
    %1343 = vmatprep.subr.mxu0 0.0
    %1344 = vmatpush1.msra.mxu0 0.0
    %1345 = vmatprep.subr.mxu0 0.0
    %1346 = vmatpush1.msra.mxu0 0.0
    %1347 = vmatprep.subr.mxu0 0.0
    %1348 = vmatpush1.msra.mxu0 0.0
    %1349 = vmatprep.subr.mxu0 0.0
    %1350 = vmatpush1.msra.mxu0 0.0
    %1351 = vmatprep.subr.mxu0 0.0
    %1352 = vmatpush1.msra.mxu0 0.0
    %1353 = vmatprep.subr.mxu0 0.0
    %1354 = vmatpush1.msra.mxu0 0.0
    %1355 = vmatprep.subr.mxu0 0.0
    %1356 = vmatpush1.msra.mxu0 0.0
    %1357 = vmatprep.subr.mxu0 0.0
    %1358 = vmatpush1.msra.mxu0 0.0
    %1359 = vmatprep.subr.mxu0 0.0
    %1360 = vmatpush1.msra.mxu0 0.0
    %1361 = vmatprep.subr.mxu0 0.0
    %1362 = vmatpush1.msra.mxu0 0.0
    %1363 = vmatprep.subr.mxu0 0.0
    %1364 = vmatpush1.msra.mxu0 0.0
    %1365 = vmatprep.mubr.f32.mxu0 0.0
    %1366 = vmatmul.mubr.f32.gmra.mrb[0].mxu0 %v1299
    %v1367 = vpop.f32.mrb[0].mxu0
    %v1368 = vadd.f32 0.0, %v1367
    %v1369 = vpop.f32.mrb[0].mxu0
    %1370 = vdwg.mxu0
    %v1371 = vadd.f32 %v1297, %v1368
    %v1372 = vtanh.pop %v1371
    %vm1373 = vcmp.gt.s32.totalorder %v24, 10
    %v1374 = vsel %vm1373, 1, 0
    %1375 = vset.pattern.permute.xlu0 0
    %1376 = vperm.xlu0 %1375, %v1374
    %v1377 = vpop.permute.xlu0 %1376
    %vm1378 = vcmp.eq.s32.totalorder %v1377, 1
    %v1379 = vsel %vm1378, %v1372, %v1295
    %1380 = vst.msk [vmem:[#allocation2 + $0x50] sm:$0xff] %vm76, %v1379
    %v1381 = vld [vmem:[#allocation2 + $0x58] sm:$0xff]
    %v1383 = vsel %vm76, %v1379, 0
    %1385 = vmatprep.subr.mxu0 0.0
    %1386 = vmatpush1.msra.mxu0 %v30
    %1387 = vmatprep.subr.mxu0 0.0
    %1388 = vmatpush1.msra.mxu0 %v31
    %1389 = vmatprep.subr.mxu0 0.0
    %1390 = vmatpush1.msra.mxu0 %v32
    %1391 = vmatprep.subr.mxu0 0.0
    %1392 = vmatpush1.msra.mxu0 %v33
    %1393 = vmatprep.subr.mxu0 0.0
    %1394 = vmatpush1.msra.mxu0 0.0
    %1395 = vmatprep.subr.mxu0 0.0
    %1396 = vmatpush1.msra.mxu0 0.0
    %1397 = vmatprep.subr.mxu0 0.0
    %1398 = vmatpush1.msra.mxu0 0.0
    %1399 = vmatprep.subr.mxu0 0.0
    %1400 = vmatpush1.msra.mxu0 0.0
    %1401 = vmatprep.subr.mxu0 0.0
    %1402 = vmatpush1.msra.mxu0 0.0
    %1403 = vmatprep.subr.mxu0 0.0
    %1404 = vmatpush1.msra.mxu0 0.0
    %1405 = vmatprep.subr.mxu0 0.0
    %1406 = vmatpush1.msra.mxu0 0.0
    %1407 = vmatprep.subr.mxu0 0.0
    %1408 = vmatpush1.msra.mxu0 0.0
    %1409 = vmatprep.subr.mxu0 0.0
    %1410 = vmatpush1.msra.mxu0 0.0
    %1411 = vmatprep.subr.mxu0 0.0
    %1412 = vmatpush1.msra.mxu0 0.0
    %1413 = vmatprep.subr.mxu0 0.0
    %1414 = vmatpush1.msra.mxu0 0.0
    %1415 = vmatprep.subr.mxu0 0.0
    %1416 = vmatpush1.msra.mxu0 0.0
    %1417 = vmatprep.subr.mxu0 0.0
    %1418 = vmatpush1.msra.mxu0 0.0
    %1419 = vmatprep.subr.mxu0 0.0
    %1420 = vmatpush1.msra.mxu0 0.0
    %1421 = vmatprep.subr.mxu0 0.0
    %1422 = vmatpush1.msra.mxu0 0.0
    %1423 = vmatprep.subr.mxu0 0.0
    %1424 = vmatpush1.msra.mxu0 0.0
    %1425 = vmatprep.subr.mxu0 0.0
    %1426 = vmatpush1.msra.mxu0 0.0
    %1427 = vmatprep.subr.mxu0 0.0
    %1428 = vmatpush1.msra.mxu0 0.0
    %1429 = vmatprep.subr.mxu0 0.0
    %1430 = vmatpush1.msra.mxu0 0.0
    %1431 = vmatprep.subr.mxu0 0.0
    %1432 = vmatpush1.msra.mxu0 0.0
    %1433 = vmatprep.subr.mxu0 0.0
    %1434 = vmatpush1.msra.mxu0 0.0
    %1435 = vmatprep.subr.mxu0 0.0
    %1436 = vmatpush1.msra.mxu0 0.0
    %1437 = vmatprep.subr.mxu0 0.0
    %1438 = vmatpush1.msra.mxu0 0.0
    %1439 = vmatprep.subr.mxu0 0.0
    %1440 = vmatpush1.msra.mxu0 0.0
    %1441 = vmatprep.subr.mxu0 0.0
    %1442 = vmatpush1.msra.mxu0 0.0
    %1443 = vmatprep.subr.mxu0 0.0
    %1444 = vmatpush1.msra.mxu0 0.0
    %1445 = vmatprep.subr.mxu0 0.0
    %1446 = vmatpush1.msra.mxu0 0.0
    %1447 = vmatprep.subr.mxu0 0.0
    %1448 = vmatpush1.msra.mxu0 0.0
    %1449 = vmatprep.mubr.f32.mxu0 0.0
    %1450 = vmatmul.mubr.f32.gmra.mrb[0].mxu0 %v1383
    %v1451 = vpop.f32.mrb[0].mxu0
    %v1452 = vadd.f32 0.0, %v1451
    %v1453 = vpop.f32.mrb[0].mxu0
    %1454 = vdwg.mxu0
    %v1455 = vadd.f32 %v1381, %v1452
    %v1456 = vtanh.pop %v1455
    %vm1457 = vcmp.gt.s32.totalorder %v24, 11
    %v1458 = vsel %vm1457, 1, 0
    %1459 = vset.pattern.permute.xlu0 0
    %1460 = vperm.xlu0 %1459, %v1458
    %v1461 = vpop.permute.xlu0 %1460
    %vm1462 = vcmp.eq.s32.totalorder %v1461, 1
    %v1463 = vsel %vm1462, %v1456, %v1379
    %1464 = vst.msk [vmem:[#allocation2 + $0x58] sm:$0xff] %vm76, %v1463
    %v1465 = vld [vmem:[#allocation2 + $0x60] sm:$0xff]
    %v1467 = vsel %vm76, %v1463, 0
    %1469 = vmatprep.subr.mxu0 0.0
    %1470 = vmatpush1.msra.mxu0 %v30
    %1471 = vmatprep.subr.mxu0 0.0
    %1472 = vmatpush1.msra.mxu0 %v31
    %1473 = vmatprep.subr.mxu0 0.0
    %1474 = vmatpush1.msra.mxu0 %v32
    %1475 = vmatprep.subr.mxu0 0.0
    %1476 = vmatpush1.msra.mxu0 %v33
    %1477 = vmatprep.subr.mxu0 0.0
    %1478 = vmatpush1.msra.mxu0 0.0
    %1479 = vmatprep.subr.mxu0 0.0
    %1480 = vmatpush1.msra.mxu0 0.0
    %1481 = vmatprep.subr.mxu0 0.0
    %1482 = vmatpush1.msra.mxu0 0.0
    %1483 = vmatprep.subr.mxu0 0.0
    %1484 = vmatpush1.msra.mxu0 0.0
    %1485 = vmatprep.subr.mxu0 0.0
    %1486 = vmatpush1.msra.mxu0 0.0
    %1487 = vmatprep.subr.mxu0 0.0
    %1488 = vmatpush1.msra.mxu0 0.0
    %1489 = vmatprep.subr.mxu0 0.0
    %1490 = vmatpush1.msra.mxu0 0.0
    %1491 = vmatprep.subr.mxu0 0.0
    %1492 = vmatpush1.msra.mxu0 0.0
    %1493 = vmatprep.subr.mxu0 0.0
    %1494 = vmatpush1.msra.mxu0 0.0
    %1495 = vmatprep.subr.mxu0 0.0
    %1496 = vmatpush1.msra.mxu0 0.0
    %1497 = vmatprep.subr.mxu0 0.0
    %1498 = vmatpush1.msra.mxu0 0.0
    %1499 = vmatprep.subr.mxu0 0.0
    %1500 = vmatpush1.msra.mxu0 0.0
    %1501 = vmatprep.subr.mxu0 0.0
    %1502 = vmatpush1.msra.mxu0 0.0
    %1503 = vmatprep.subr.mxu0 0.0
    %1504 = vmatpush1.msra.mxu0 0.0
    %1505 = vmatprep.subr.mxu0 0.0
    %1506 = vmatpush1.msra.mxu0 0.0
    %1507 = vmatprep.subr.mxu0 0.0
    %1508 = vmatpush1.msra.mxu0 0.0
    %1509 = vmatprep.subr.mxu0 0.0
    %1510 = vmatpush1.msra.mxu0 0.0
    %1511 = vmatprep.subr.mxu0 0.0
    %1512 = vmatpush1.msra.mxu0 0.0
    %1513 = vmatprep.subr.mxu0 0.0
    %1514 = vmatpush1.msra.mxu0 0.0
    %1515 = vmatprep.subr.mxu0 0.0
    %1516 = vmatpush1.msra.mxu0 0.0
    %1517 = vmatprep.subr.mxu0 0.0
    %1518 = vmatpush1.msra.mxu0 0.0
    %1519 = vmatprep.subr.mxu0 0.0
    %1520 = vmatpush1.msra.mxu0 0.0
    %1521 = vmatprep.subr.mxu0 0.0
    %1522 = vmatpush1.msra.mxu0 0.0
    %1523 = vmatprep.subr.mxu0 0.0
    %1524 = vmatpush1.msra.mxu0 0.0
    %1525 = vmatprep.subr.mxu0 0.0
    %1526 = vmatpush1.msra.mxu0 0.0
    %1527 = vmatprep.subr.mxu0 0.0
    %1528 = vmatpush1.msra.mxu0 0.0
    %1529 = vmatprep.subr.mxu0 0.0
    %1530 = vmatpush1.msra.mxu0 0.0
    %1531 = vmatprep.subr.mxu0 0.0
    %1532 = vmatpush1.msra.mxu0 0.0
    %1533 = vmatprep.mubr.f32.mxu0 0.0
    %1534 = vmatmul.mubr.f32.gmra.mrb[0].mxu0 %v1467
    %v1535 = vpop.f32.mrb[0].mxu0
    %v1536 = vadd.f32 0.0, %v1535
    %v1537 = vpop.f32.mrb[0].mxu0
    %1538 = vdwg.mxu0
    %v1539 = vadd.f32 %v1465, %v1536
    %v1540 = vtanh.pop %v1539
    %vm1541 = vcmp.gt.s32.totalorder %v24, 12
    %v1542 = vsel %vm1541, 1, 0
    %1543 = vset.pattern.permute.xlu0 0
    %1544 = vperm.xlu0 %1543, %v1542
    %v1545 = vpop.permute.xlu0 %1544
    %vm1546 = vcmp.eq.s32.totalorder %v1545, 1
    %v1547 = vsel %vm1546, %v1540, %v1463
    %1548 = vst.msk [vmem:[#allocation2 + $0x60] sm:$0xff] %vm76, %v1547
    %v1549 = vld [vmem:[#allocation2 + $0x68] sm:$0xff]
    %v1551 = vsel %vm76, %v1547, 0
    %1553 = vmatprep.subr.mxu0 0.0
    %1554 = vmatpush1.msra.mxu0 %v30
    %1555 = vmatprep.subr.mxu0 0.0
    %1556 = vmatpush1.msra.mxu0 %v31
    %1557 = vmatprep.subr.mxu0 0.0
    %1558 = vmatpush1.msra.mxu0 %v32
    %1559 = vmatprep.subr.mxu0 0.0
    %1560 = vmatpush1.msra.mxu0 %v33
    %1561 = vmatprep.subr.mxu0 0.0
    %1562 = vmatpush1.msra.mxu0 0.0
    %1563 = vmatprep.subr.mxu0 0.0
    %1564 = vmatpush1.msra.mxu0 0.0
    %1565 = vmatprep.subr.mxu0 0.0
    %1566 = vmatpush1.msra.mxu0 0.0
    %1567 = vmatprep.subr.mxu0 0.0
    %1568 = vmatpush1.msra.mxu0 0.0
    %1569 = vmatprep.subr.mxu0 0.0
    %1570 = vmatpush1.msra.mxu0 0.0
    %1571 = vmatprep.subr.mxu0 0.0
    %1572 = vmatpush1.msra.mxu0 0.0
    %1573 = vmatprep.subr.mxu0 0.0
    %1574 = vmatpush1.msra.mxu0 0.0
    %1575 = vmatprep.subr.mxu0 0.0
    %1576 = vmatpush1.msra.mxu0 0.0
    %1577 = vmatprep.subr.mxu0 0.0
    %1578 = vmatpush1.msra.mxu0 0.0
    %1579 = vmatprep.subr.mxu0 0.0
    %1580 = vmatpush1.msra.mxu0 0.0
    %1581 = vmatprep.subr.mxu0 0.0
    %1582 = vmatpush1.msra.mxu0 0.0
    %1583 = vmatprep.subr.mxu0 0.0
    %1584 = vmatpush1.msra.mxu0 0.0
    %1585 = vmatprep.subr.mxu0 0.0
    %1586 = vmatpush1.msra.mxu0 0.0
    %1587 = vmatprep.subr.mxu0 0.0
    %1588 = vmatpush1.msra.mxu0 0.0
    %1589 = vmatprep.subr.mxu0 0.0
    %1590 = vmatpush1.msra.mxu0 0.0
    %1591 = vmatprep.subr.mxu0 0.0
    %1592 = vmatpush1.msra.mxu0 0.0
    %1593 = vmatprep.subr.mxu0 0.0
    %1594 = vmatpush1.msra.mxu0 0.0
    %1595 = vmatprep.subr.mxu0 0.0
    %1596 = vmatpush1.msra.mxu0 0.0
    %1597 = vmatprep.subr.mxu0 0.0
    %1598 = vmatpush1.msra.mxu0 0.0
    %1599 = vmatprep.subr.mxu0 0.0
    %1600 = vmatpush1.msra.mxu0 0.0
    %1601 = vmatprep.subr.mxu0 0.0
    %1602 = vmatpush1.msra.mxu0 0.0
    %1603 = vmatprep.subr.mxu0 0.0
    %1604 = vmatpush1.msra.mxu0 0.0
    %1605 = vmatprep.subr.mxu0 0.0
    %1606 = vmatpush1.msra.mxu0 0.0
    %1607 = vmatprep.subr.mxu0 0.0
    %1608 = vmatpush1.msra.mxu0 0.0
    %1609 = vmatprep.subr.mxu0 0.0
    %1610 = vmatpush1.msra.mxu0 0.0
    %1611 = vmatprep.subr.mxu0 0.0
    %1612 = vmatpush1.msra.mxu0 0.0
    %1613 = vmatprep.subr.mxu0 0.0
    %1614 = vmatpush1.msra.mxu0 0.0
    %1615 = vmatprep.subr.mxu0 0.0
    %1616 = vmatpush1.msra.mxu0 0.0
    %1617 = vmatprep.mubr.f32.mxu0 0.0
    %1618 = vmatmul.mubr.f32.gmra.mrb[0].mxu0 %v1551
    %v1619 = vpop.f32.mrb[0].mxu0
    %v1620 = vadd.f32 0.0, %v1619
    %v1621 = vpop.f32.mrb[0].mxu0
    %1622 = vdwg.mxu0
    %v1623 = vadd.f32 %v1549, %v1620
    %v1624 = vtanh.pop %v1623
    %vm1625 = vcmp.gt.s32.totalorder %v24, 13
    %v1626 = vsel %vm1625, 1, 0
    %1627 = vset.pattern.permute.xlu0 0
    %1628 = vperm.xlu0 %1627, %v1626
    %v1629 = vpop.permute.xlu0 %1628
    %vm1630 = vcmp.eq.s32.totalorder %v1629, 1
    %v1631 = vsel %vm1630, %v1624, %v1547
    %1632 = vst.msk [vmem:[#allocation2 + $0x68] sm:$0xff] %vm76, %v1631
    %v1633 = vld [vmem:[#allocation2 + $0x70] sm:$0xff]
    %v1635 = vsel %vm76, %v1631, 0
    %1637 = vmatprep.subr.mxu0 0.0
    %1638 = vmatpush1.msra.mxu0 %v30
    %1639 = vmatprep.subr.mxu0 0.0
    %1640 = vmatpush1.msra.mxu0 %v31
    %1641 = vmatprep.subr.mxu0 0.0
    %1642 = vmatpush1.msra.mxu0 %v32
    %1643 = vmatprep.subr.mxu0 0.0
    %1644 = vmatpush1.msra.mxu0 %v33
    %1645 = vmatprep.subr.mxu0 0.0
    %1646 = vmatpush1.msra.mxu0 0.0
    %1647 = vmatprep.subr.mxu0 0.0
    %1648 = vmatpush1.msra.mxu0 0.0
    %1649 = vmatprep.subr.mxu0 0.0
    %1650 = vmatpush1.msra.mxu0 0.0
    %1651 = vmatprep.subr.mxu0 0.0
    %1652 = vmatpush1.msra.mxu0 0.0
    %1653 = vmatprep.subr.mxu0 0.0
    %1654 = vmatpush1.msra.mxu0 0.0
    %1655 = vmatprep.subr.mxu0 0.0
    %1656 = vmatpush1.msra.mxu0 0.0
    %1657 = vmatprep.subr.mxu0 0.0
    %1658 = vmatpush1.msra.mxu0 0.0
    %1659 = vmatprep.subr.mxu0 0.0
    %1660 = vmatpush1.msra.mxu0 0.0
    %1661 = vmatprep.subr.mxu0 0.0
    %1662 = vmatpush1.msra.mxu0 0.0
    %1663 = vmatprep.subr.mxu0 0.0
    %1664 = vmatpush1.msra.mxu0 0.0
    %1665 = vmatprep.subr.mxu0 0.0
    %1666 = vmatpush1.msra.mxu0 0.0
    %1667 = vmatprep.subr.mxu0 0.0
    %1668 = vmatpush1.msra.mxu0 0.0
    %1669 = vmatprep.subr.mxu0 0.0
    %1670 = vmatpush1.msra.mxu0 0.0
    %1671 = vmatprep.subr.mxu0 0.0
    %1672 = vmatpush1.msra.mxu0 0.0
    %1673 = vmatprep.subr.mxu0 0.0
    %1674 = vmatpush1.msra.mxu0 0.0
    %1675 = vmatprep.subr.mxu0 0.0
    %1676 = vmatpush1.msra.mxu0 0.0
    %1677 = vmatprep.subr.mxu0 0.0
    %1678 = vmatpush1.msra.mxu0 0.0
    %1679 = vmatprep.subr.mxu0 0.0
    %1680 = vmatpush1.msra.mxu0 0.0
    %1681 = vmatprep.subr.mxu0 0.0
    %1682 = vmatpush1.msra.mxu0 0.0
    %1683 = vmatprep.subr.mxu0 0.0
    %1684 = vmatpush1.msra.mxu0 0.0
    %1685 = vmatprep.subr.mxu0 0.0
    %1686 = vmatpush1.msra.mxu0 0.0
    %1687 = vmatprep.subr.mxu0 0.0
    %1688 = vmatpush1.msra.mxu0 0.0
    %1689 = vmatprep.subr.mxu0 0.0
    %1690 = vmatpush1.msra.mxu0 0.0
    %1691 = vmatprep.subr.mxu0 0.0
    %1692 = vmatpush1.msra.mxu0 0.0
    %1693 = vmatprep.subr.mxu0 0.0
    %1694 = vmatpush1.msra.mxu0 0.0
    %1695 = vmatprep.subr.mxu0 0.0
    %1696 = vmatpush1.msra.mxu0 0.0
    %1697 = vmatprep.subr.mxu0 0.0
    %1698 = vmatpush1.msra.mxu0 0.0
    %1699 = vmatprep.subr.mxu0 0.0
    %1700 = vmatpush1.msra.mxu0 0.0
    %1701 = vmatprep.mubr.f32.mxu0 0.0
    %1702 = vmatmul.mubr.f32.gmra.mrb[0].mxu0 %v1635
    %v1703 = vpop.f32.mrb[0].mxu0
    %v1704 = vadd.f32 0.0, %v1703
    %v1705 = vpop.f32.mrb[0].mxu0
    %1706 = vdwg.mxu0
    %v1707 = vadd.f32 %v1633, %v1704
    %v1708 = vtanh.pop %v1707
    %vm1709 = vcmp.gt.s32.totalorder %v24, 14
    %v1710 = vsel %vm1709, 1, 0
    %1711 = vset.pattern.permute.xlu0 0
    %1712 = vperm.xlu0 %1711, %v1710
    %v1713 = vpop.permute.xlu0 %1712
    %vm1714 = vcmp.eq.s32.totalorder %v1713, 1
    %v1715 = vsel %vm1714, %v1708, %v1631
    %1716 = vst.msk [vmem:[#allocation2 + $0x70] sm:$0xff] %vm76, %v1715
    %v1717 = vld [vmem:[#allocation2 + $0x78] sm:$0xff]
    %v1719 = vsel %vm76, %v1715, 0
    %1721 = vmatprep.subr.mxu0 0.0
    %1722 = vmatpush1.msra.mxu0 %v30
    %1723 = vmatprep.subr.mxu0 0.0
    %1724 = vmatpush1.msra.mxu0 %v31
    %1725 = vmatprep.subr.mxu0 0.0
    %1726 = vmatpush1.msra.mxu0 %v32
    %1727 = vmatprep.subr.mxu0 0.0
    %1728 = vmatpush1.msra.mxu0 %v33
    %1729 = vmatprep.subr.mxu0 0.0
    %1730 = vmatpush1.msra.mxu0 0.0
    %1731 = vmatprep.subr.mxu0 0.0
    %1732 = vmatpush1.msra.mxu0 0.0
    %1733 = vmatprep.subr.mxu0 0.0
    %1734 = vmatpush1.msra.mxu0 0.0
    %1735 = vmatprep.subr.mxu0 0.0
    %1736 = vmatpush1.msra.mxu0 0.0
    %1737 = vmatprep.subr.mxu0 0.0
    %1738 = vmatpush1.msra.mxu0 0.0
    %1739 = vmatprep.subr.mxu0 0.0
    %1740 = vmatpush1.msra.mxu0 0.0
    %1741 = vmatprep.subr.mxu0 0.0
    %1742 = vmatpush1.msra.mxu0 0.0
    %1743 = vmatprep.subr.mxu0 0.0
    %1744 = vmatpush1.msra.mxu0 0.0
    %1745 = vmatprep.subr.mxu0 0.0
    %1746 = vmatpush1.msra.mxu0 0.0
    %1747 = vmatprep.subr.mxu0 0.0
    %1748 = vmatpush1.msra.mxu0 0.0
    %1749 = vmatprep.subr.mxu0 0.0
    %1750 = vmatpush1.msra.mxu0 0.0
    %1751 = vmatprep.subr.mxu0 0.0
    %1752 = vmatpush1.msra.mxu0 0.0
    %1753 = vmatprep.subr.mxu0 0.0
    %1754 = vmatpush1.msra.mxu0 0.0
    %1755 = vmatprep.subr.mxu0 0.0
    %1756 = vmatpush1.msra.mxu0 0.0
    %1757 = vmatprep.subr.mxu0 0.0
    %1758 = vmatpush1.msra.mxu0 0.0
    %1759 = vmatprep.subr.mxu0 0.0
    %1760 = vmatpush1.msra.mxu0 0.0
    %1761 = vmatprep.subr.mxu0 0.0
    %1762 = vmatpush1.msra.mxu0 0.0
    %1763 = vmatprep.subr.mxu0 0.0
    %1764 = vmatpush1.msra.mxu0 0.0
    %1765 = vmatprep.subr.mxu0 0.0
    %1766 = vmatpush1.msra.mxu0 0.0
    %1767 = vmatprep.subr.mxu0 0.0
    %1768 = vmatpush1.msra.mxu0 0.0
    %1769 = vmatprep.subr.mxu0 0.0
    %1770 = vmatpush1.msra.mxu0 0.0
    %1771 = vmatprep.subr.mxu0 0.0
    %1772 = vmatpush1.msra.mxu0 0.0
    %1773 = vmatprep.subr.mxu0 0.0
    %1774 = vmatpush1.msra.mxu0 0.0
    %1775 = vmatprep.subr.mxu0 0.0
    %1776 = vmatpush1.msra.mxu0 0.0
    %1777 = vmatprep.subr.mxu0 0.0
    %1778 = vmatpush1.msra.mxu0 0.0
    %1779 = vmatprep.subr.mxu0 0.0
    %1780 = vmatpush1.msra.mxu0 0.0
    %1781 = vmatprep.subr.mxu0 0.0
    %1782 = vmatpush1.msra.mxu0 0.0
    %1783 = vmatprep.subr.mxu0 0.0
    %1784 = vmatpush1.msra.mxu0 0.0
    %1785 = vmatprep.mubr.f32.mxu0 0.0
    %1786 = vmatmul.mubr.f32.gmra.mrb[0].mxu0 %v1719
    %v1787 = vpop.f32.mrb[0].mxu0
    %v1788 = vadd.f32 0.0, %v1787
    %v1789 = vpop.f32.mrb[0].mxu0
    %1790 = vdwg.mxu0
    %v1791 = vadd.f32 %v1717, %v1788
    %v1792 = vtanh.pop %v1791
    %vm1793 = vcmp.gt.s32.totalorder %v24, 15
    %v1794 = vsel %vm1793, 1, 0
    %1795 = vset.pattern.permute.xlu0 0
    %1796 = vperm.xlu0 %1795, %v1794
    %v1797 = vpop.permute.xlu0 %1796
    %vm1798 = vcmp.eq.s32.totalorder %v1797, 1
    %v1799 = vsel %vm1798, %v1792, %v1715
    %1800 = vst.msk [vmem:[#allocation2 + $0x78] sm:$0xff] %vm76, %v1799
    %v1801 = vld [vmem:[#allocation2 + $0x80] sm:$0xff]
    %v1803 = vsel %vm76, %v1799, 0
    %1805 = vmatprep.subr.mxu0 0.0
    %1806 = vmatpush1.msra.mxu0 %v30
    %1807 = vmatprep.subr.mxu0 0.0
    %1808 = vmatpush1.msra.mxu0 %v31
    %1809 = vmatprep.subr.mxu0 0.0
    %1810 = vmatpush1.msra.mxu0 %v32
    %1811 = vmatprep.subr.mxu0 0.0
    %1812 = vmatpush1.msra.mxu0 %v33
    %1813 = vmatprep.subr.mxu0 0.0
    %1814 = vmatpush1.msra.mxu0 0.0
    %1815 = vmatprep.subr.mxu0 0.0
    %1816 = vmatpush1.msra.mxu0 0.0
    %1817 = vmatprep.subr.mxu0 0.0
    %1818 = vmatpush1.msra.mxu0 0.0
    %1819 = vmatprep.subr.mxu0 0.0
    %1820 = vmatpush1.msra.mxu0 0.0
    %1821 = vmatprep.subr.mxu0 0.0
    %1822 = vmatpush1.msra.mxu0 0.0
    %1823 = vmatprep.subr.mxu0 0.0
    %1824 = vmatpush1.msra.mxu0 0.0
    %1825 = vmatprep.subr.mxu0 0.0
    %1826 = vmatpush1.msra.mxu0 0.0
    %1827 = vmatprep.subr.mxu0 0.0
    %1828 = vmatpush1.msra.mxu0 0.0
    %1829 = vmatprep.subr.mxu0 0.0
    %1830 = vmatpush1.msra.mxu0 0.0
    %1831 = vmatprep.subr.mxu0 0.0
    %1832 = vmatpush1.msra.mxu0 0.0
    %1833 = vmatprep.subr.mxu0 0.0
    %1834 = vmatpush1.msra.mxu0 0.0
    %1835 = vmatprep.subr.mxu0 0.0
    %1836 = vmatpush1.msra.mxu0 0.0
    %1837 = vmatprep.subr.mxu0 0.0
    %1838 = vmatpush1.msra.mxu0 0.0
    %1839 = vmatprep.subr.mxu0 0.0
    %1840 = vmatpush1.msra.mxu0 0.0
    %1841 = vmatprep.subr.mxu0 0.0
    %1842 = vmatpush1.msra.mxu0 0.0
    %1843 = vmatprep.subr.mxu0 0.0
    %1844 = vmatpush1.msra.mxu0 0.0
    %1845 = vmatprep.subr.mxu0 0.0
    %1846 = vmatpush1.msra.mxu0 0.0
    %1847 = vmatprep.subr.mxu0 0.0
    %1848 = vmatpush1.msra.mxu0 0.0
    %1849 = vmatprep.subr.mxu0 0.0
    %1850 = vmatpush1.msra.mxu0 0.0
    %1851 = vmatprep.subr.mxu0 0.0
    %1852 = vmatpush1.msra.mxu0 0.0
    %1853 = vmatprep.subr.mxu0 0.0
    %1854 = vmatpush1.msra.mxu0 0.0
    %1855 = vmatprep.subr.mxu0 0.0
    %1856 = vmatpush1.msra.mxu0 0.0
    %1857 = vmatprep.subr.mxu0 0.0
    %1858 = vmatpush1.msra.mxu0 0.0
    %1859 = vmatprep.subr.mxu0 0.0
    %1860 = vmatpush1.msra.mxu0 0.0
    %1861 = vmatprep.subr.mxu0 0.0
    %1862 = vmatpush1.msra.mxu0 0.0
    %1863 = vmatprep.subr.mxu0 0.0
    %1864 = vmatpush1.msra.mxu0 0.0
    %1865 = vmatprep.subr.mxu0 0.0
    %1866 = vmatpush1.msra.mxu0 0.0
    %1867 = vmatprep.subr.mxu0 0.0
    %1868 = vmatpush1.msra.mxu0 0.0
    %1869 = vmatprep.mubr.f32.mxu0 0.0
    %1870 = vmatmul.mubr.f32.gmra.mrb[0].mxu0 %v1803
    %v1871 = vpop.f32.mrb[0].mxu0
    %v1872 = vadd.f32 0.0, %v1871
    %v1873 = vpop.f32.mrb[0].mxu0
    %1874 = vdwg.mxu0
    %v1875 = vadd.f32 %v1801, %v1872
    %v1876 = vtanh.pop %v1875
    %vm1877 = vcmp.gt.s32.totalorder %v24, 16
    %v1878 = vsel %vm1877, 1, 0
    %1879 = vset.pattern.permute.xlu0 0
    %1880 = vperm.xlu0 %1879, %v1878
    %v1881 = vpop.permute.xlu0 %1880
    %vm1882 = vcmp.eq.s32.totalorder %v1881, 1
    %v1883 = vsel %vm1882, %v1876, %v1799
    %1884 = vst.msk [vmem:[#allocation2 + $0x80] sm:$0xff] %vm76, %v1883
    %v1885 = vld [vmem:[#allocation2 + $0x88] sm:$0xff]
    %v1887 = vsel %vm76, %v1883, 0
    %1889 = vmatprep.subr.mxu0 0.0
    %1890 = vmatpush1.msra.mxu0 %v30
    %1891 = vmatprep.subr.mxu0 0.0
    %1892 = vmatpush1.msra.mxu0 %v31
    %1893 = vmatprep.subr.mxu0 0.0
    %1894 = vmatpush1.msra.mxu0 %v32
    %1895 = vmatprep.subr.mxu0 0.0
    %1896 = vmatpush1.msra.mxu0 %v33
    %1897 = vmatprep.subr.mxu0 0.0
    %1898 = vmatpush1.msra.mxu0 0.0
    %1899 = vmatprep.subr.mxu0 0.0
    %1900 = vmatpush1.msra.mxu0 0.0
    %1901 = vmatprep.subr.mxu0 0.0
    %1902 = vmatpush1.msra.mxu0 0.0
    %1903 = vmatprep.subr.mxu0 0.0
    %1904 = vmatpush1.msra.mxu0 0.0
    %1905 = vmatprep.subr.mxu0 0.0
    %1906 = vmatpush1.msra.mxu0 0.0
    %1907 = vmatprep.subr.mxu0 0.0
    %1908 = vmatpush1.msra.mxu0 0.0
    %1909 = vmatprep.subr.mxu0 0.0
    %1910 = vmatpush1.msra.mxu0 0.0
    %1911 = vmatprep.subr.mxu0 0.0
    %1912 = vmatpush1.msra.mxu0 0.0
    %1913 = vmatprep.subr.mxu0 0.0
    %1914 = vmatpush1.msra.mxu0 0.0
    %1915 = vmatprep.subr.mxu0 0.0
    %1916 = vmatpush1.msra.mxu0 0.0
    %1917 = vmatprep.subr.mxu0 0.0
    %1918 = vmatpush1.msra.mxu0 0.0
    %1919 = vmatprep.subr.mxu0 0.0
    %1920 = vmatpush1.msra.mxu0 0.0
    %1921 = vmatprep.subr.mxu0 0.0
    %1922 = vmatpush1.msra.mxu0 0.0
    %1923 = vmatprep.subr.mxu0 0.0
    %1924 = vmatpush1.msra.mxu0 0.0
    %1925 = vmatprep.subr.mxu0 0.0
    %1926 = vmatpush1.msra.mxu0 0.0
    %1927 = vmatprep.subr.mxu0 0.0
    %1928 = vmatpush1.msra.mxu0 0.0
    %1929 = vmatprep.subr.mxu0 0.0
    %1930 = vmatpush1.msra.mxu0 0.0
    %1931 = vmatprep.subr.mxu0 0.0
    %1932 = vmatpush1.msra.mxu0 0.0
    %1933 = vmatprep.subr.mxu0 0.0
    %1934 = vmatpush1.msra.mxu0 0.0
    %1935 = vmatprep.subr.mxu0 0.0
    %1936 = vmatpush1.msra.mxu0 0.0
    %1937 = vmatprep.subr.mxu0 0.0
    %1938 = vmatpush1.msra.mxu0 0.0
    %1939 = vmatprep.subr.mxu0 0.0
    %1940 = vmatpush1.msra.mxu0 0.0
    %1941 = vmatprep.subr.mxu0 0.0
    %1942 = vmatpush1.msra.mxu0 0.0
    %1943 = vmatprep.subr.mxu0 0.0
    %1944 = vmatpush1.msra.mxu0 0.0
    %1945 = vmatprep.subr.mxu0 0.0
    %1946 = vmatpush1.msra.mxu0 0.0
    %1947 = vmatprep.subr.mxu0 0.0
    %1948 = vmatpush1.msra.mxu0 0.0
    %1949 = vmatprep.subr.mxu0 0.0
    %1950 = vmatpush1.msra.mxu0 0.0
    %1951 = vmatprep.subr.mxu0 0.0
    %1952 = vmatpush1.msra.mxu0 0.0
    %1953 = vmatprep.mubr.f32.mxu0 0.0
    %1954 = vmatmul.mubr.f32.gmra.mrb[0].mxu0 %v1887
    %v1955 = vpop.f32.mrb[0].mxu0
    %v1956 = vadd.f32 0.0, %v1955
    %v1957 = vpop.f32.mrb[0].mxu0
    %1958 = vdwg.mxu0
    %v1959 = vadd.f32 %v1885, %v1956
    %v1960 = vtanh.pop %v1959
    %vm1961 = vcmp.gt.s32.totalorder %v24, 17
    %v1962 = vsel %vm1961, 1, 0
    %1963 = vset.pattern.permute.xlu0 0
    %1964 = vperm.xlu0 %1963, %v1962
    %v1965 = vpop.permute.xlu0 %1964
    %vm1966 = vcmp.eq.s32.totalorder %v1965, 1
    %v1967 = vsel %vm1966, %v1960, %v1883
    %1968 = vst.msk [vmem:[#allocation2 + $0x88] sm:$0xff] %vm76, %v1967
    %v1969 = vld [vmem:[#allocation2 + $0x90] sm:$0xff]
    %v1971 = vsel %vm76, %v1967, 0
    %1973 = vmatprep.subr.mxu0 0.0
    %1974 = vmatpush1.msra.mxu0 %v30
    %1975 = vmatprep.subr.mxu0 0.0
    %1976 = vmatpush1.msra.mxu0 %v31
    %1977 = vmatprep.subr.mxu0 0.0
    %1978 = vmatpush1.msra.mxu0 %v32
    %1979 = vmatprep.subr.mxu0 0.0
    %1980 = vmatpush1.msra.mxu0 %v33
    %1981 = vmatprep.subr.mxu0 0.0
    %1982 = vmatpush1.msra.mxu0 0.0
    %1983 = vmatprep.subr.mxu0 0.0
    %1984 = vmatpush1.msra.mxu0 0.0
    %1985 = vmatprep.subr.mxu0 0.0
    %1986 = vmatpush1.msra.mxu0 0.0
    %1987 = vmatprep.subr.mxu0 0.0
    %1988 = vmatpush1.msra.mxu0 0.0
    %1989 = vmatprep.subr.mxu0 0.0
    %1990 = vmatpush1.msra.mxu0 0.0
    %1991 = vmatprep.subr.mxu0 0.0
    %1992 = vmatpush1.msra.mxu0 0.0
    %1993 = vmatprep.subr.mxu0 0.0
    %1994 = vmatpush1.msra.mxu0 0.0
    %1995 = vmatprep.subr.mxu0 0.0
    %1996 = vmatpush1.msra.mxu0 0.0
    %1997 = vmatprep.subr.mxu0 0.0
    %1998 = vmatpush1.msra.mxu0 0.0
    %1999 = vmatprep.subr.mxu0 0.0
    %2000 = vmatpush1.msra.mxu0 0.0
    %2001 = vmatprep.subr.mxu0 0.0
    %2002 = vmatpush1.msra.mxu0 0.0
    %2003 = vmatprep.subr.mxu0 0.0
    %2004 = vmatpush1.msra.mxu0 0.0
    %2005 = vmatprep.subr.mxu0 0.0
    %2006 = vmatpush1.msra.mxu0 0.0
    %2007 = vmatprep.subr.mxu0 0.0
    %2008 = vmatpush1.msra.mxu0 0.0
    %2009 = vmatprep.subr.mxu0 0.0
    %2010 = vmatpush1.msra.mxu0 0.0
    %2011 = vmatprep.subr.mxu0 0.0
    %2012 = vmatpush1.msra.mxu0 0.0
    %2013 = vmatprep.subr.mxu0 0.0
    %2014 = vmatpush1.msra.mxu0 0.0
    %2015 = vmatprep.subr.mxu0 0.0
    %2016 = vmatpush1.msra.mxu0 0.0
    %2017 = vmatprep.subr.mxu0 0.0
    %2018 = vmatpush1.msra.mxu0 0.0
    %2019 = vmatprep.subr.mxu0 0.0
    %2020 = vmatpush1.msra.mxu0 0.0
    %2021 = vmatprep.subr.mxu0 0.0
    %2022 = vmatpush1.msra.mxu0 0.0
    %2023 = vmatprep.subr.mxu0 0.0
    %2024 = vmatpush1.msra.mxu0 0.0
    %2025 = vmatprep.subr.mxu0 0.0
    %2026 = vmatpush1.msra.mxu0 0.0
    %2027 = vmatprep.subr.mxu0 0.0
    %2028 = vmatpush1.msra.mxu0 0.0
    %2029 = vmatprep.subr.mxu0 0.0
    %2030 = vmatpush1.msra.mxu0 0.0
    %2031 = vmatprep.subr.mxu0 0.0
    %2032 = vmatpush1.msra.mxu0 0.0
    %2033 = vmatprep.subr.mxu0 0.0
    %2034 = vmatpush1.msra.mxu0 0.0
    %2035 = vmatprep.subr.mxu0 0.0
    %2036 = vmatpush1.msra.mxu0 0.0
    %2037 = vmatprep.mubr.f32.mxu0 0.0
    %2038 = vmatmul.mubr.f32.gmra.mrb[0].mxu0 %v1971
    %v2039 = vpop.f32.mrb[0].mxu0
    %v2040 = vadd.f32 0.0, %v2039
    %v2041 = vpop.f32.mrb[0].mxu0
    %2042 = vdwg.mxu0
    %v2043 = vadd.f32 %v1969, %v2040
    %v2044 = vtanh.pop %v2043
    %vm2045 = vcmp.gt.s32.totalorder %v24, 18
    %v2046 = vsel %vm2045, 1, 0
    %2047 = vset.pattern.permute.xlu0 0
    %2048 = vperm.xlu0 %2047, %v2046
    %v2049 = vpop.permute.xlu0 %2048
    %vm2050 = vcmp.eq.s32.totalorder %v2049, 1
    %v2051 = vsel %vm2050, %v2044, %v1967
    %2052 = vst.msk [vmem:[#allocation2 + $0x90] sm:$0xff] %vm76, %v2051
    %v2053 = vld [vmem:[#allocation2 + $0x98] sm:$0xff]
    %v2055 = vsel %vm76, %v2051, 0
    %2057 = vmatprep.subr.mxu0 0.0
    %2058 = vmatpush1.msra.mxu0 %v30
    %2059 = vmatprep.subr.mxu0 0.0
    %2060 = vmatpush1.msra.mxu0 %v31
    %2061 = vmatprep.subr.mxu0 0.0
    %2062 = vmatpush1.msra.mxu0 %v32
    %2063 = vmatprep.subr.mxu0 0.0
    %2064 = vmatpush1.msra.mxu0 %v33
    %2065 = vmatprep.subr.mxu0 0.0
    %2066 = vmatpush1.msra.mxu0 0.0
    %2067 = vmatprep.subr.mxu0 0.0
    %2068 = vmatpush1.msra.mxu0 0.0
    %2069 = vmatprep.subr.mxu0 0.0
    %2070 = vmatpush1.msra.mxu0 0.0
    %2071 = vmatprep.subr.mxu0 0.0
    %2072 = vmatpush1.msra.mxu0 0.0
    %2073 = vmatprep.subr.mxu0 0.0
    %2074 = vmatpush1.msra.mxu0 0.0
    %2075 = vmatprep.subr.mxu0 0.0
    %2076 = vmatpush1.msra.mxu0 0.0
    %2077 = vmatprep.subr.mxu0 0.0
    %2078 = vmatpush1.msra.mxu0 0.0
    %2079 = vmatprep.subr.mxu0 0.0
    %2080 = vmatpush1.msra.mxu0 0.0
    %2081 = vmatprep.subr.mxu0 0.0
    %2082 = vmatpush1.msra.mxu0 0.0
    %2083 = vmatprep.subr.mxu0 0.0
    %2084 = vmatpush1.msra.mxu0 0.0
    %2085 = vmatprep.subr.mxu0 0.0
    %2086 = vmatpush1.msra.mxu0 0.0
    %2087 = vmatprep.subr.mxu0 0.0
    %2088 = vmatpush1.msra.mxu0 0.0
    %2089 = vmatprep.subr.mxu0 0.0
    %2090 = vmatpush1.msra.mxu0 0.0
    %2091 = vmatprep.subr.mxu0 0.0
    %2092 = vmatpush1.msra.mxu0 0.0
    %2093 = vmatprep.subr.mxu0 0.0
    %2094 = vmatpush1.msra.mxu0 0.0
    %2095 = vmatprep.subr.mxu0 0.0
    %2096 = vmatpush1.msra.mxu0 0.0
    %2097 = vmatprep.subr.mxu0 0.0
    %2098 = vmatpush1.msra.mxu0 0.0
    %2099 = vmatprep.subr.mxu0 0.0
    %2100 = vmatpush1.msra.mxu0 0.0
    %2101 = vmatprep.subr.mxu0 0.0
    %2102 = vmatpush1.msra.mxu0 0.0
    %2103 = vmatprep.subr.mxu0 0.0
    %2104 = vmatpush1.msra.mxu0 0.0
    %2105 = vmatprep.subr.mxu0 0.0
    %2106 = vmatpush1.msra.mxu0 0.0
    %2107 = vmatprep.subr.mxu0 0.0
    %2108 = vmatpush1.msra.mxu0 0.0
    %2109 = vmatprep.subr.mxu0 0.0
    %2110 = vmatpush1.msra.mxu0 0.0
    %2111 = vmatprep.subr.mxu0 0.0
    %2112 = vmatpush1.msra.mxu0 0.0
    %2113 = vmatprep.subr.mxu0 0.0
    %2114 = vmatpush1.msra.mxu0 0.0
    %2115 = vmatprep.subr.mxu0 0.0
    %2116 = vmatpush1.msra.mxu0 0.0
    %2117 = vmatprep.subr.mxu0 0.0
    %2118 = vmatpush1.msra.mxu0 0.0
    %2119 = vmatprep.subr.mxu0 0.0
    %2120 = vmatpush1.msra.mxu0 0.0
    %2121 = vmatprep.mubr.f32.mxu0 0.0
    %2122 = vmatmul.mubr.f32.gmra.mrb[0].mxu0 %v2055
    %v2123 = vpop.f32.mrb[0].mxu0
    %v2124 = vadd.f32 0.0, %v2123
    %v2125 = vpop.f32.mrb[0].mxu0
    %2126 = vdwg.mxu0
    %v2127 = vadd.f32 %v2053, %v2124
    %v2128 = vtanh.pop %v2127
    %vm2129 = vcmp.gt.s32.totalorder %v24, 19
    %v2130 = vsel %vm2129, 1, 0
    %2131 = vset.pattern.permute.xlu0 0
    %2132 = vperm.xlu0 %2131, %v2130
    %v2133 = vpop.permute.xlu0 %2132
    %vm2134 = vcmp.eq.s32.totalorder %v2133, 1
    %v2135 = vsel %vm2134, %v2128, %v2051
    %2136 = vst.msk [vmem:[#allocation2 + $0x98] sm:$0xff] %vm76, %v2135
    %v2137 = vld [vmem:[#allocation2 + $0xa0] sm:$0xff]
    %v2139 = vsel %vm76, %v2135, 0
    %2141 = vmatprep.subr.mxu0 0.0
    %2142 = vmatpush1.msra.mxu0 %v30
    %2143 = vmatprep.subr.mxu0 0.0
    %2144 = vmatpush1.msra.mxu0 %v31
    %2145 = vmatprep.subr.mxu0 0.0
    %2146 = vmatpush1.msra.mxu0 %v32
    %2147 = vmatprep.subr.mxu0 0.0
    %2148 = vmatpush1.msra.mxu0 %v33
    %2149 = vmatprep.subr.mxu0 0.0
    %2150 = vmatpush1.msra.mxu0 0.0
    %2151 = vmatprep.subr.mxu0 0.0
    %2152 = vmatpush1.msra.mxu0 0.0
    %2153 = vmatprep.subr.mxu0 0.0
    %2154 = vmatpush1.msra.mxu0 0.0
    %2155 = vmatprep.subr.mxu0 0.0
    %2156 = vmatpush1.msra.mxu0 0.0
    %2157 = vmatprep.subr.mxu0 0.0
    %2158 = vmatpush1.msra.mxu0 0.0
    %2159 = vmatprep.subr.mxu0 0.0
    %2160 = vmatpush1.msra.mxu0 0.0
    %2161 = vmatprep.subr.mxu0 0.0
    %2162 = vmatpush1.msra.mxu0 0.0
    %2163 = vmatprep.subr.mxu0 0.0
    %2164 = vmatpush1.msra.mxu0 0.0
    %2165 = vmatprep.subr.mxu0 0.0
    %2166 = vmatpush1.msra.mxu0 0.0
    %2167 = vmatprep.subr.mxu0 0.0
    %2168 = vmatpush1.msra.mxu0 0.0
    %2169 = vmatprep.subr.mxu0 0.0
    %2170 = vmatpush1.msra.mxu0 0.0
    %2171 = vmatprep.subr.mxu0 0.0
    %2172 = vmatpush1.msra.mxu0 0.0
    %2173 = vmatprep.subr.mxu0 0.0
    %2174 = vmatpush1.msra.mxu0 0.0
    %2175 = vmatprep.subr.mxu0 0.0
    %2176 = vmatpush1.msra.mxu0 0.0
    %2177 = vmatprep.subr.mxu0 0.0
    %2178 = vmatpush1.msra.mxu0 0.0
    %2179 = vmatprep.subr.mxu0 0.0
    %2180 = vmatpush1.msra.mxu0 0.0
    %2181 = vmatprep.subr.mxu0 0.0
    %2182 = vmatpush1.msra.mxu0 0.0
    %2183 = vmatprep.subr.mxu0 0.0
    %2184 = vmatpush1.msra.mxu0 0.0
    %2185 = vmatprep.subr.mxu0 0.0
    %2186 = vmatpush1.msra.mxu0 0.0
    %2187 = vmatprep.subr.mxu0 0.0
    %2188 = vmatpush1.msra.mxu0 0.0
    %2189 = vmatprep.subr.mxu0 0.0
    %2190 = vmatpush1.msra.mxu0 0.0
    %2191 = vmatprep.subr.mxu0 0.0
    %2192 = vmatpush1.msra.mxu0 0.0
    %2193 = vmatprep.subr.mxu0 0.0
    %2194 = vmatpush1.msra.mxu0 0.0
    %2195 = vmatprep.subr.mxu0 0.0
    %2196 = vmatpush1.msra.mxu0 0.0
    %2197 = vmatprep.subr.mxu0 0.0
    %2198 = vmatpush1.msra.mxu0 0.0
    %2199 = vmatprep.subr.mxu0 0.0
    %2200 = vmatpush1.msra.mxu0 0.0
    %2201 = vmatprep.subr.mxu0 0.0
    %2202 = vmatpush1.msra.mxu0 0.0
    %2203 = vmatprep.subr.mxu0 0.0
    %2204 = vmatpush1.msra.mxu0 0.0
    %2205 = vmatprep.mubr.f32.mxu0 0.0
    %2206 = vmatmul.mubr.f32.gmra.mrb[0].mxu0 %v2139
    %v2207 = vpop.f32.mrb[0].mxu0
    %v2208 = vadd.f32 0.0, %v2207
    %v2209 = vpop.f32.mrb[0].mxu0
    %2210 = vdwg.mxu0
    %v2211 = vadd.f32 %v2137, %v2208
    %v2212 = vtanh.pop %v2211
    %vm2213 = vcmp.gt.s32.totalorder %v24, 20
    %v2214 = vsel %vm2213, 1, 0
    %2215 = vset.pattern.permute.xlu0 0
    %2216 = vperm.xlu0 %2215, %v2214
    %v2217 = vpop.permute.xlu0 %2216
    %vm2218 = vcmp.eq.s32.totalorder %v2217, 1
    %v2219 = vsel %vm2218, %v2212, %v2135
    %2220 = vst.msk [vmem:[#allocation2 + $0xa0] sm:$0xff] %vm76, %v2219
    %v2221 = vld [vmem:[#allocation2 + $0xa8] sm:$0xff]
    %v2223 = vsel %vm76, %v2219, 0
    %2225 = vmatprep.subr.mxu0 0.0
    %2226 = vmatpush1.msra.mxu0 %v30
    %2227 = vmatprep.subr.mxu0 0.0
    %2228 = vmatpush1.msra.mxu0 %v31
    %2229 = vmatprep.subr.mxu0 0.0
    %2230 = vmatpush1.msra.mxu0 %v32
    %2231 = vmatprep.subr.mxu0 0.0
    %2232 = vmatpush1.msra.mxu0 %v33
    %2233 = vmatprep.subr.mxu0 0.0
    %2234 = vmatpush1.msra.mxu0 0.0
    %2235 = vmatprep.subr.mxu0 0.0
    %2236 = vmatpush1.msra.mxu0 0.0
    %2237 = vmatprep.subr.mxu0 0.0
    %2238 = vmatpush1.msra.mxu0 0.0
    %2239 = vmatprep.subr.mxu0 0.0
    %2240 = vmatpush1.msra.mxu0 0.0
    %2241 = vmatprep.subr.mxu0 0.0
    %2242 = vmatpush1.msra.mxu0 0.0
    %2243 = vmatprep.subr.mxu0 0.0
    %2244 = vmatpush1.msra.mxu0 0.0
    %2245 = vmatprep.subr.mxu0 0.0
    %2246 = vmatpush1.msra.mxu0 0.0
    %2247 = vmatprep.subr.mxu0 0.0
    %2248 = vmatpush1.msra.mxu0 0.0
    %2249 = vmatprep.subr.mxu0 0.0
    %2250 = vmatpush1.msra.mxu0 0.0
    %2251 = vmatprep.subr.mxu0 0.0
    %2252 = vmatpush1.msra.mxu0 0.0
    %2253 = vmatprep.subr.mxu0 0.0
    %2254 = vmatpush1.msra.mxu0 0.0
    %2255 = vmatprep.subr.mxu0 0.0
    %2256 = vmatpush1.msra.mxu0 0.0
    %2257 = vmatprep.subr.mxu0 0.0
    %2258 = vmatpush1.msra.mxu0 0.0
    %2259 = vmatprep.subr.mxu0 0.0
    %2260 = vmatpush1.msra.mxu0 0.0
    %2261 = vmatprep.subr.mxu0 0.0
    %2262 = vmatpush1.msra.mxu0 0.0
    %2263 = vmatprep.subr.mxu0 0.0
    %2264 = vmatpush1.msra.mxu0 0.0
    %2265 = vmatprep.subr.mxu0 0.0
    %2266 = vmatpush1.msra.mxu0 0.0
    %2267 = vmatprep.subr.mxu0 0.0
    %2268 = vmatpush1.msra.mxu0 0.0
    %2269 = vmatprep.subr.mxu0 0.0
    %2270 = vmatpush1.msra.mxu0 0.0
    %2271 = vmatprep.subr.mxu0 0.0
    %2272 = vmatpush1.msra.mxu0 0.0
    %2273 = vmatprep.subr.mxu0 0.0
    %2274 = vmatpush1.msra.mxu0 0.0
    %2275 = vmatprep.subr.mxu0 0.0
    %2276 = vmatpush1.msra.mxu0 0.0
    %2277 = vmatprep.subr.mxu0 0.0
    %2278 = vmatpush1.msra.mxu0 0.0
    %2279 = vmatprep.subr.mxu0 0.0
    %2280 = vmatpush1.msra.mxu0 0.0
    %2281 = vmatprep.subr.mxu0 0.0
    %2282 = vmatpush1.msra.mxu0 0.0
    %2283 = vmatprep.subr.mxu0 0.0
    %2284 = vmatpush1.msra.mxu0 0.0
    %2285 = vmatprep.subr.mxu0 0.0
    %2286 = vmatpush1.msra.mxu0 0.0
    %2287 = vmatprep.subr.mxu0 0.0
    %2288 = vmatpush1.msra.mxu0 0.0
    %2289 = vmatprep.mubr.f32.mxu0 0.0
    %2290 = vmatmul.mubr.f32.gmra.mrb[0].mxu0 %v2223
    %v2291 = vpop.f32.mrb[0].mxu0
    %v2292 = vadd.f32 0.0, %v2291
    %v2293 = vpop.f32.mrb[0].mxu0
    %2294 = vdwg.mxu0
    %v2295 = vadd.f32 %v2221, %v2292
    %v2296 = vtanh.pop %v2295
    %vm2297 = vcmp.gt.s32.totalorder %v24, 21
    %v2298 = vsel %vm2297, 1, 0
    %2299 = vset.pattern.permute.xlu0 0
    %2300 = vperm.xlu0 %2299, %v2298
    %v2301 = vpop.permute.xlu0 %2300
    %vm2302 = vcmp.eq.s32.totalorder %v2301, 1
    %v2303 = vsel %vm2302, %v2296, %v2219
    %2304 = vst.msk [vmem:[#allocation2 + $0xa8] sm:$0xff] %vm76, %v2303
    %v2305 = vld [vmem:[#allocation2 + $0xb0] sm:$0xff]
    %v2307 = vsel %vm76, %v2303, 0
    %2309 = vmatprep.subr.mxu0 0.0
    %2310 = vmatpush1.msra.mxu0 %v30
    %2311 = vmatprep.subr.mxu0 0.0
    %2312 = vmatpush1.msra.mxu0 %v31
    %2313 = vmatprep.subr.mxu0 0.0
    %2314 = vmatpush1.msra.mxu0 %v32
    %2315 = vmatprep.subr.mxu0 0.0
    %2316 = vmatpush1.msra.mxu0 %v33
    %2317 = vmatprep.subr.mxu0 0.0
    %2318 = vmatpush1.msra.mxu0 0.0
    %2319 = vmatprep.subr.mxu0 0.0
    %2320 = vmatpush1.msra.mxu0 0.0
    %2321 = vmatprep.subr.mxu0 0.0
    %2322 = vmatpush1.msra.mxu0 0.0
    %2323 = vmatprep.subr.mxu0 0.0
    %2324 = vmatpush1.msra.mxu0 0.0
    %2325 = vmatprep.subr.mxu0 0.0
    %2326 = vmatpush1.msra.mxu0 0.0
    %2327 = vmatprep.subr.mxu0 0.0
    %2328 = vmatpush1.msra.mxu0 0.0
    %2329 = vmatprep.subr.mxu0 0.0
    %2330 = vmatpush1.msra.mxu0 0.0
    %2331 = vmatprep.subr.mxu0 0.0
    %2332 = vmatpush1.msra.mxu0 0.0
    %2333 = vmatprep.subr.mxu0 0.0
    %2334 = vmatpush1.msra.mxu0 0.0
    %2335 = vmatprep.subr.mxu0 0.0
    %2336 = vmatpush1.msra.mxu0 0.0
    %2337 = vmatprep.subr.mxu0 0.0
    %2338 = vmatpush1.msra.mxu0 0.0
    %2339 = vmatprep.subr.mxu0 0.0
    %2340 = vmatpush1.msra.mxu0 0.0
    %2341 = vmatprep.subr.mxu0 0.0
    %2342 = vmatpush1.msra.mxu0 0.0
    %2343 = vmatprep.subr.mxu0 0.0
    %2344 = vmatpush1.msra.mxu0 0.0
    %2345 = vmatprep.subr.mxu0 0.0
    %2346 = vmatpush1.msra.mxu0 0.0
    %2347 = vmatprep.subr.mxu0 0.0
    %2348 = vmatpush1.msra.mxu0 0.0
    %2349 = vmatprep.subr.mxu0 0.0
    %2350 = vmatpush1.msra.mxu0 0.0
    %2351 = vmatprep.subr.mxu0 0.0
    %2352 = vmatpush1.msra.mxu0 0.0
    %2353 = vmatprep.subr.mxu0 0.0
    %2354 = vmatpush1.msra.mxu0 0.0
    %2355 = vmatprep.subr.mxu0 0.0
    %2356 = vmatpush1.msra.mxu0 0.0
    %2357 = vmatprep.subr.mxu0 0.0
    %2358 = vmatpush1.msra.mxu0 0.0
    %2359 = vmatprep.subr.mxu0 0.0
    %2360 = vmatpush1.msra.mxu0 0.0
    %2361 = vmatprep.subr.mxu0 0.0
    %2362 = vmatpush1.msra.mxu0 0.0
    %2363 = vmatprep.subr.mxu0 0.0
    %2364 = vmatpush1.msra.mxu0 0.0
    %2365 = vmatprep.subr.mxu0 0.0
    %2366 = vmatpush1.msra.mxu0 0.0
    %2367 = vmatprep.subr.mxu0 0.0
    %2368 = vmatpush1.msra.mxu0 0.0
    %2369 = vmatprep.subr.mxu0 0.0
    %2370 = vmatpush1.msra.mxu0 0.0
    %2371 = vmatprep.subr.mxu0 0.0
    %2372 = vmatpush1.msra.mxu0 0.0
    %2373 = vmatprep.mubr.f32.mxu0 0.0
    %2374 = vmatmul.mubr.f32.gmra.mrb[0].mxu0 %v2307
    %v2375 = vpop.f32.mrb[0].mxu0
    %v2376 = vadd.f32 0.0, %v2375
    %v2377 = vpop.f32.mrb[0].mxu0
    %2378 = vdwg.mxu0
    %v2379 = vadd.f32 %v2305, %v2376
    %v2380 = vtanh.pop %v2379
    %vm2381 = vcmp.gt.s32.totalorder %v24, 22
    %v2382 = vsel %vm2381, 1, 0
    %2383 = vset.pattern.permute.xlu0 0
    %2384 = vperm.xlu0 %2383, %v2382
    %v2385 = vpop.permute.xlu0 %2384
    %vm2386 = vcmp.eq.s32.totalorder %v2385, 1
    %v2387 = vsel %vm2386, %v2380, %v2303
    %2388 = vst.msk [vmem:[#allocation2 + $0xb0] sm:$0xff] %vm76, %v2387
    %v2389 = vld [vmem:[#allocation2 + $0xb8] sm:$0xff]
    %v2391 = vsel %vm76, %v2387, 0
    %2393 = vmatprep.subr.mxu0 0.0
    %2394 = vmatpush1.msra.mxu0 %v30
    %2395 = vmatprep.subr.mxu0 0.0
    %2396 = vmatpush1.msra.mxu0 %v31
    %2397 = vmatprep.subr.mxu0 0.0
    %2398 = vmatpush1.msra.mxu0 %v32
    %2399 = vmatprep.subr.mxu0 0.0
    %2400 = vmatpush1.msra.mxu0 %v33
    %2401 = vmatprep.subr.mxu0 0.0
    %2402 = vmatpush1.msra.mxu0 0.0
    %2403 = vmatprep.subr.mxu0 0.0
    %2404 = vmatpush1.msra.mxu0 0.0
    %2405 = vmatprep.subr.mxu0 0.0
    %2406 = vmatpush1.msra.mxu0 0.0
    %2407 = vmatprep.subr.mxu0 0.0
    %2408 = vmatpush1.msra.mxu0 0.0
    %2409 = vmatprep.subr.mxu0 0.0
    %2410 = vmatpush1.msra.mxu0 0.0
    %2411 = vmatprep.subr.mxu0 0.0
    %2412 = vmatpush1.msra.mxu0 0.0
    %2413 = vmatprep.subr.mxu0 0.0
    %2414 = vmatpush1.msra.mxu0 0.0
    %2415 = vmatprep.subr.mxu0 0.0
    %2416 = vmatpush1.msra.mxu0 0.0
    %2417 = vmatprep.subr.mxu0 0.0
    %2418 = vmatpush1.msra.mxu0 0.0
    %2419 = vmatprep.subr.mxu0 0.0
    %2420 = vmatpush1.msra.mxu0 0.0
    %2421 = vmatprep.subr.mxu0 0.0
    %2422 = vmatpush1.msra.mxu0 0.0
    %2423 = vmatprep.subr.mxu0 0.0
    %2424 = vmatpush1.msra.mxu0 0.0
    %2425 = vmatprep.subr.mxu0 0.0
    %2426 = vmatpush1.msra.mxu0 0.0
    %2427 = vmatprep.subr.mxu0 0.0
    %2428 = vmatpush1.msra.mxu0 0.0
    %2429 = vmatprep.subr.mxu0 0.0
    %2430 = vmatpush1.msra.mxu0 0.0
    %2431 = vmatprep.subr.mxu0 0.0
    %2432 = vmatpush1.msra.mxu0 0.0
    %2433 = vmatprep.subr.mxu0 0.0
    %2434 = vmatpush1.msra.mxu0 0.0
    %2435 = vmatprep.subr.mxu0 0.0
    %2436 = vmatpush1.msra.mxu0 0.0
    %2437 = vmatprep.subr.mxu0 0.0
    %2438 = vmatpush1.msra.mxu0 0.0
    %2439 = vmatprep.subr.mxu0 0.0
    %2440 = vmatpush1.msra.mxu0 0.0
    %2441 = vmatprep.subr.mxu0 0.0
    %2442 = vmatpush1.msra.mxu0 0.0
    %2443 = vmatprep.subr.mxu0 0.0
    %2444 = vmatpush1.msra.mxu0 0.0
    %2445 = vmatprep.subr.mxu0 0.0
    %2446 = vmatpush1.msra.mxu0 0.0
    %2447 = vmatprep.subr.mxu0 0.0
    %2448 = vmatpush1.msra.mxu0 0.0
    %2449 = vmatprep.subr.mxu0 0.0
    %2450 = vmatpush1.msra.mxu0 0.0
    %2451 = vmatprep.subr.mxu0 0.0
    %2452 = vmatpush1.msra.mxu0 0.0
    %2453 = vmatprep.subr.mxu0 0.0
    %2454 = vmatpush1.msra.mxu0 0.0
    %2455 = vmatprep.subr.mxu0 0.0
    %2456 = vmatpush1.msra.mxu0 0.0
    %2457 = vmatprep.mubr.f32.mxu0 0.0
    %2458 = vmatmul.mubr.f32.gmra.mrb[0].mxu0 %v2391
    %v2459 = vpop.f32.mrb[0].mxu0
    %v2460 = vadd.f32 0.0, %v2459
    %v2461 = vpop.f32.mrb[0].mxu0
    %2462 = vdwg.mxu0
    %v2463 = vadd.f32 %v2389, %v2460
    %v2464 = vtanh.pop %v2463
    %vm2465 = vcmp.gt.s32.totalorder %v24, 23
    %v2466 = vsel %vm2465, 1, 0
    %2467 = vset.pattern.permute.xlu0 0
    %2468 = vperm.xlu0 %2467, %v2466
    %v2469 = vpop.permute.xlu0 %2468
    %vm2470 = vcmp.eq.s32.totalorder %v2469, 1
    %v2471 = vsel %vm2470, %v2464, %v2387
    %2472 = vst.msk [vmem:[#allocation2 + $0xb8] sm:$0xff] %vm76, %v2471
    %v2473 = vld [vmem:[#allocation2 + $0xc0] sm:$0xff]
    %v2475 = vsel %vm76, %v2471, 0
    %2477 = vmatprep.subr.mxu0 0.0
    %2478 = vmatpush1.msra.mxu0 %v30
    %2479 = vmatprep.subr.mxu0 0.0
    %2480 = vmatpush1.msra.mxu0 %v31
    %2481 = vmatprep.subr.mxu0 0.0
    %2482 = vmatpush1.msra.mxu0 %v32
    %2483 = vmatprep.subr.mxu0 0.0
    %2484 = vmatpush1.msra.mxu0 %v33
    %2485 = vmatprep.subr.mxu0 0.0
    %2486 = vmatpush1.msra.mxu0 0.0
    %2487 = vmatprep.subr.mxu0 0.0
    %2488 = vmatpush1.msra.mxu0 0.0
    %2489 = vmatprep.subr.mxu0 0.0
    %2490 = vmatpush1.msra.mxu0 0.0
    %2491 = vmatprep.subr.mxu0 0.0
    %2492 = vmatpush1.msra.mxu0 0.0
    %2493 = vmatprep.subr.mxu0 0.0
    %2494 = vmatpush1.msra.mxu0 0.0
    %2495 = vmatprep.subr.mxu0 0.0
    %2496 = vmatpush1.msra.mxu0 0.0
    %2497 = vmatprep.subr.mxu0 0.0
    %2498 = vmatpush1.msra.mxu0 0.0
    %2499 = vmatprep.subr.mxu0 0.0
    %2500 = vmatpush1.msra.mxu0 0.0
    %2501 = vmatprep.subr.mxu0 0.0
    %2502 = vmatpush1.msra.mxu0 0.0
    %2503 = vmatprep.subr.mxu0 0.0
    %2504 = vmatpush1.msra.mxu0 0.0
    %2505 = vmatprep.subr.mxu0 0.0
    %2506 = vmatpush1.msra.mxu0 0.0
    %2507 = vmatprep.subr.mxu0 0.0
    %2508 = vmatpush1.msra.mxu0 0.0
    %2509 = vmatprep.subr.mxu0 0.0
    %2510 = vmatpush1.msra.mxu0 0.0
    %2511 = vmatprep.subr.mxu0 0.0
    %2512 = vmatpush1.msra.mxu0 0.0
    %2513 = vmatprep.subr.mxu0 0.0
    %2514 = vmatpush1.msra.mxu0 0.0
    %2515 = vmatprep.subr.mxu0 0.0
    %2516 = vmatpush1.msra.mxu0 0.0
    %2517 = vmatprep.subr.mxu0 0.0
    %2518 = vmatpush1.msra.mxu0 0.0
    %2519 = vmatprep.subr.mxu0 0.0
    %2520 = vmatpush1.msra.mxu0 0.0
    %2521 = vmatprep.subr.mxu0 0.0
    %2522 = vmatpush1.msra.mxu0 0.0
    %2523 = vmatprep.subr.mxu0 0.0
    %2524 = vmatpush1.msra.mxu0 0.0
    %2525 = vmatprep.subr.mxu0 0.0
    %2526 = vmatpush1.msra.mxu0 0.0
    %2527 = vmatprep.subr.mxu0 0.0
    %2528 = vmatpush1.msra.mxu0 0.0
    %2529 = vmatprep.subr.mxu0 0.0
    %2530 = vmatpush1.msra.mxu0 0.0
    %2531 = vmatprep.subr.mxu0 0.0
    %2532 = vmatpush1.msra.mxu0 0.0
    %2533 = vmatprep.subr.mxu0 0.0
    %2534 = vmatpush1.msra.mxu0 0.0
    %2535 = vmatprep.subr.mxu0 0.0
    %2536 = vmatpush1.msra.mxu0 0.0
    %2537 = vmatprep.subr.mxu0 0.0
    %2538 = vmatpush1.msra.mxu0 0.0
    %2539 = vmatprep.subr.mxu0 0.0
    %2540 = vmatpush1.msra.mxu0 0.0
    %2541 = vmatprep.mubr.f32.mxu0 0.0
    %2542 = vmatmul.mubr.f32.gmra.mrb[0].mxu0 %v2475
    %v2543 = vpop.f32.mrb[0].mxu0
    %v2544 = vadd.f32 0.0, %v2543
    %v2545 = vpop.f32.mrb[0].mxu0
    %2546 = vdwg.mxu0
    %v2547 = vadd.f32 %v2473, %v2544
    %v2548 = vtanh.pop %v2547
    %vm2549 = vcmp.gt.s32.totalorder %v24, 24
    %v2550 = vsel %vm2549, 1, 0
    %2551 = vset.pattern.permute.xlu0 0
    %2552 = vperm.xlu0 %2551, %v2550
    %v2553 = vpop.permute.xlu0 %2552
    %vm2554 = vcmp.eq.s32.totalorder %v2553, 1
    %v2555 = vsel %vm2554, %v2548, %v2471
    %2556 = vst.msk [vmem:[#allocation2 + $0xc0] sm:$0xff] %vm76, %v2555
    %v2557 = vld [vmem:[#allocation2 + $0xc8] sm:$0xff]
    %v2559 = vsel %vm76, %v2555, 0
    %2561 = vmatprep.subr.mxu0 0.0
    %2562 = vmatpush1.msra.mxu0 %v30
    %2563 = vmatprep.subr.mxu0 0.0
    %2564 = vmatpush1.msra.mxu0 %v31
    %2565 = vmatprep.subr.mxu0 0.0
    %2566 = vmatpush1.msra.mxu0 %v32
    %2567 = vmatprep.subr.mxu0 0.0
    %2568 = vmatpush1.msra.mxu0 %v33
    %2569 = vmatprep.subr.mxu0 0.0
    %2570 = vmatpush1.msra.mxu0 0.0
    %2571 = vmatprep.subr.mxu0 0.0
    %2572 = vmatpush1.msra.mxu0 0.0
    %2573 = vmatprep.subr.mxu0 0.0
    %2574 = vmatpush1.msra.mxu0 0.0
    %2575 = vmatprep.subr.mxu0 0.0
    %2576 = vmatpush1.msra.mxu0 0.0
    %2577 = vmatprep.subr.mxu0 0.0
    %2578 = vmatpush1.msra.mxu0 0.0
    %2579 = vmatprep.subr.mxu0 0.0
    %2580 = vmatpush1.msra.mxu0 0.0
    %2581 = vmatprep.subr.mxu0 0.0
    %2582 = vmatpush1.msra.mxu0 0.0
    %2583 = vmatprep.subr.mxu0 0.0
    %2584 = vmatpush1.msra.mxu0 0.0
    %2585 = vmatprep.subr.mxu0 0.0
    %2586 = vmatpush1.msra.mxu0 0.0
    %2587 = vmatprep.subr.mxu0 0.0
    %2588 = vmatpush1.msra.mxu0 0.0
    %2589 = vmatprep.subr.mxu0 0.0
    %2590 = vmatpush1.msra.mxu0 0.0
    %2591 = vmatprep.subr.mxu0 0.0
    %2592 = vmatpush1.msra.mxu0 0.0
    %2593 = vmatprep.subr.mxu0 0.0
    %2594 = vmatpush1.msra.mxu0 0.0
    %2595 = vmatprep.subr.mxu0 0.0
    %2596 = vmatpush1.msra.mxu0 0.0
    %2597 = vmatprep.subr.mxu0 0.0
    %2598 = vmatpush1.msra.mxu0 0.0
    %2599 = vmatprep.subr.mxu0 0.0
    %2600 = vmatpush1.msra.mxu0 0.0
    %2601 = vmatprep.subr.mxu0 0.0
    %2602 = vmatpush1.msra.mxu0 0.0
    %2603 = vmatprep.subr.mxu0 0.0
    %2604 = vmatpush1.msra.mxu0 0.0
    %2605 = vmatprep.subr.mxu0 0.0
    %2606 = vmatpush1.msra.mxu0 0.0
    %2607 = vmatprep.subr.mxu0 0.0
    %2608 = vmatpush1.msra.mxu0 0.0
    %2609 = vmatprep.subr.mxu0 0.0
    %2610 = vmatpush1.msra.mxu0 0.0
    %2611 = vmatprep.subr.mxu0 0.0
    %2612 = vmatpush1.msra.mxu0 0.0
    %2613 = vmatprep.subr.mxu0 0.0
    %2614 = vmatpush1.msra.mxu0 0.0
    %2615 = vmatprep.subr.mxu0 0.0
    %2616 = vmatpush1.msra.mxu0 0.0
    %2617 = vmatprep.subr.mxu0 0.0
    %2618 = vmatpush1.msra.mxu0 0.0
    %2619 = vmatprep.subr.mxu0 0.0
    %2620 = vmatpush1.msra.mxu0 0.0
    %2621 = vmatprep.subr.mxu0 0.0
    %2622 = vmatpush1.msra.mxu0 0.0
    %2623 = vmatprep.subr.mxu0 0.0
    %2624 = vmatpush1.msra.mxu0 0.0
    %2625 = vmatprep.mubr.f32.mxu0 0.0
    %2626 = vmatmul.mubr.f32.gmra.mrb[0].mxu0 %v2559
    %v2627 = vpop.f32.mrb[0].mxu0
    %v2628 = vadd.f32 0.0, %v2627
    %v2629 = vpop.f32.mrb[0].mxu0
    %2630 = vdwg.mxu0
    %v2631 = vadd.f32 %v2557, %v2628
    %v2632 = vtanh.pop %v2631
    %vm2633 = vcmp.gt.s32.totalorder %v24, 25
    %v2634 = vsel %vm2633, 1, 0
    %2635 = vset.pattern.permute.xlu0 0
    %2636 = vperm.xlu0 %2635, %v2634
    %v2637 = vpop.permute.xlu0 %2636
    %vm2638 = vcmp.eq.s32.totalorder %v2637, 1
    %v2639 = vsel %vm2638, %v2632, %v2555
    %2640 = vst.msk [vmem:[#allocation2 + $0xc8] sm:$0xff] %vm76, %v2639
    %v2641 = vld [vmem:[#allocation2 + $0xd0] sm:$0xff]
    %v2643 = vsel %vm76, %v2639, 0
    %2645 = vmatprep.subr.mxu0 0.0
    %2646 = vmatpush1.msra.mxu0 %v30
    %2647 = vmatprep.subr.mxu0 0.0
    %2648 = vmatpush1.msra.mxu0 %v31
    %2649 = vmatprep.subr.mxu0 0.0
    %2650 = vmatpush1.msra.mxu0 %v32
    %2651 = vmatprep.subr.mxu0 0.0
    %2652 = vmatpush1.msra.mxu0 %v33
    %2653 = vmatprep.subr.mxu0 0.0
    %2654 = vmatpush1.msra.mxu0 0.0
    %2655 = vmatprep.subr.mxu0 0.0
    %2656 = vmatpush1.msra.mxu0 0.0
    %2657 = vmatprep.subr.mxu0 0.0
    %2658 = vmatpush1.msra.mxu0 0.0
    %2659 = vmatprep.subr.mxu0 0.0
    %2660 = vmatpush1.msra.mxu0 0.0
    %2661 = vmatprep.subr.mxu0 0.0
    %2662 = vmatpush1.msra.mxu0 0.0
    %2663 = vmatprep.subr.mxu0 0.0
    %2664 = vmatpush1.msra.mxu0 0.0
    %2665 = vmatprep.subr.mxu0 0.0
    %2666 = vmatpush1.msra.mxu0 0.0
    %2667 = vmatprep.subr.mxu0 0.0
    %2668 = vmatpush1.msra.mxu0 0.0
    %2669 = vmatprep.subr.mxu0 0.0
    %2670 = vmatpush1.msra.mxu0 0.0
    %2671 = vmatprep.subr.mxu0 0.0
    %2672 = vmatpush1.msra.mxu0 0.0
    %2673 = vmatprep.subr.mxu0 0.0
    %2674 = vmatpush1.msra.mxu0 0.0
    %2675 = vmatprep.subr.mxu0 0.0
    %2676 = vmatpush1.msra.mxu0 0.0
    %2677 = vmatprep.subr.mxu0 0.0
    %2678 = vmatpush1.msra.mxu0 0.0
    %2679 = vmatprep.subr.mxu0 0.0
    %2680 = vmatpush1.msra.mxu0 0.0
    %2681 = vmatprep.subr.mxu0 0.0
    %2682 = vmatpush1.msra.mxu0 0.0
    %2683 = vmatprep.subr.mxu0 0.0
    %2684 = vmatpush1.msra.mxu0 0.0
    %2685 = vmatprep.subr.mxu0 0.0
    %2686 = vmatpush1.msra.mxu0 0.0
    %2687 = vmatprep.subr.mxu0 0.0
    %2688 = vmatpush1.msra.mxu0 0.0
    %2689 = vmatprep.subr.mxu0 0.0
    %2690 = vmatpush1.msra.mxu0 0.0
    %2691 = vmatprep.subr.mxu0 0.0
    %2692 = vmatpush1.msra.mxu0 0.0
    %2693 = vmatprep.subr.mxu0 0.0
    %2694 = vmatpush1.msra.mxu0 0.0
    %2695 = vmatprep.subr.mxu0 0.0
    %2696 = vmatpush1.msra.mxu0 0.0
    %2697 = vmatprep.subr.mxu0 0.0
    %2698 = vmatpush1.msra.mxu0 0.0
    %2699 = vmatprep.subr.mxu0 0.0
    %2700 = vmatpush1.msra.mxu0 0.0
    %2701 = vmatprep.subr.mxu0 0.0
    %2702 = vmatpush1.msra.mxu0 0.0
    %2703 = vmatprep.subr.mxu0 0.0
    %2704 = vmatpush1.msra.mxu0 0.0
    %2705 = vmatprep.subr.mxu0 0.0
    %2706 = vmatpush1.msra.mxu0 0.0
    %2707 = vmatprep.subr.mxu0 0.0
    %2708 = vmatpush1.msra.mxu0 0.0
    %2709 = vmatprep.mubr.f32.mxu0 0.0
    %2710 = vmatmul.mubr.f32.gmra.mrb[0].mxu0 %v2643
    %v2711 = vpop.f32.mrb[0].mxu0
    %v2712 = vadd.f32 0.0, %v2711
    %v2713 = vpop.f32.mrb[0].mxu0
    %2714 = vdwg.mxu0
    %v2715 = vadd.f32 %v2641, %v2712
    %v2716 = vtanh.pop %v2715
    %vm2717 = vcmp.gt.s32.totalorder %v24, 26
    %v2718 = vsel %vm2717, 1, 0
    %2719 = vset.pattern.permute.xlu0 0
    %2720 = vperm.xlu0 %2719, %v2718
    %v2721 = vpop.permute.xlu0 %2720
    %vm2722 = vcmp.eq.s32.totalorder %v2721, 1
    %v2723 = vsel %vm2722, %v2716, %v2639
    %2724 = vst.msk [vmem:[#allocation2 + $0xd0] sm:$0xff] %vm76, %v2723
    %v2725 = vld [vmem:[#allocation2 + $0xd8] sm:$0xff]
    %v2727 = vsel %vm76, %v2723, 0
    %2729 = vmatprep.subr.mxu0 0.0
    %2730 = vmatpush1.msra.mxu0 %v30
    %2731 = vmatprep.subr.mxu0 0.0
    %2732 = vmatpush1.msra.mxu0 %v31
    %2733 = vmatprep.subr.mxu0 0.0
    %2734 = vmatpush1.msra.mxu0 %v32
    %2735 = vmatprep.subr.mxu0 0.0
    %2736 = vmatpush1.msra.mxu0 %v33
    %2737 = vmatprep.subr.mxu0 0.0
    %2738 = vmatpush1.msra.mxu0 0.0
    %2739 = vmatprep.subr.mxu0 0.0
    %2740 = vmatpush1.msra.mxu0 0.0
    %2741 = vmatprep.subr.mxu0 0.0
    %2742 = vmatpush1.msra.mxu0 0.0
    %2743 = vmatprep.subr.mxu0 0.0
    %2744 = vmatpush1.msra.mxu0 0.0
    %2745 = vmatprep.subr.mxu0 0.0
    %2746 = vmatpush1.msra.mxu0 0.0
    %2747 = vmatprep.subr.mxu0 0.0
    %2748 = vmatpush1.msra.mxu0 0.0
    %2749 = vmatprep.subr.mxu0 0.0
    %2750 = vmatpush1.msra.mxu0 0.0
    %2751 = vmatprep.subr.mxu0 0.0
    %2752 = vmatpush1.msra.mxu0 0.0
    %2753 = vmatprep.subr.mxu0 0.0
    %2754 = vmatpush1.msra.mxu0 0.0
    %2755 = vmatprep.subr.mxu0 0.0
    %2756 = vmatpush1.msra.mxu0 0.0
    %2757 = vmatprep.subr.mxu0 0.0
    %2758 = vmatpush1.msra.mxu0 0.0
    %2759 = vmatprep.subr.mxu0 0.0
    %2760 = vmatpush1.msra.mxu0 0.0
    %2761 = vmatprep.subr.mxu0 0.0
    %2762 = vmatpush1.msra.mxu0 0.0
    %2763 = vmatprep.subr.mxu0 0.0
    %2764 = vmatpush1.msra.mxu0 0.0
    %2765 = vmatprep.subr.mxu0 0.0
    %2766 = vmatpush1.msra.mxu0 0.0
    %2767 = vmatprep.subr.mxu0 0.0
    %2768 = vmatpush1.msra.mxu0 0.0
    %2769 = vmatprep.subr.mxu0 0.0
    %2770 = vmatpush1.msra.mxu0 0.0
    %2771 = vmatprep.subr.mxu0 0.0
    %2772 = vmatpush1.msra.mxu0 0.0
    %2773 = vmatprep.subr.mxu0 0.0
    %2774 = vmatpush1.msra.mxu0 0.0
    %2775 = vmatprep.subr.mxu0 0.0
    %2776 = vmatpush1.msra.mxu0 0.0
    %2777 = vmatprep.subr.mxu0 0.0
    %2778 = vmatpush1.msra.mxu0 0.0
    %2779 = vmatprep.subr.mxu0 0.0
    %2780 = vmatpush1.msra.mxu0 0.0
    %2781 = vmatprep.subr.mxu0 0.0
    %2782 = vmatpush1.msra.mxu0 0.0
    %2783 = vmatprep.subr.mxu0 0.0
    %2784 = vmatpush1.msra.mxu0 0.0
    %2785 = vmatprep.subr.mxu0 0.0
    %2786 = vmatpush1.msra.mxu0 0.0
    %2787 = vmatprep.subr.mxu0 0.0
    %2788 = vmatpush1.msra.mxu0 0.0
    %2789 = vmatprep.subr.mxu0 0.0
    %2790 = vmatpush1.msra.mxu0 0.0
    %2791 = vmatprep.subr.mxu0 0.0
    %2792 = vmatpush1.msra.mxu0 0.0
    %2793 = vmatprep.mubr.f32.mxu0 0.0
    %2794 = vmatmul.mubr.f32.gmra.mrb[0].mxu0 %v2727
    %v2795 = vpop.f32.mrb[0].mxu0
    %v2796 = vadd.f32 0.0, %v2795
    %v2797 = vpop.f32.mrb[0].mxu0
    %2798 = vdwg.mxu0
    %v2799 = vadd.f32 %v2725, %v2796
    %v2800 = vtanh.pop %v2799
    %vm2801 = vcmp.gt.s32.totalorder %v24, 27
    %v2802 = vsel %vm2801, 1, 0
    %2803 = vset.pattern.permute.xlu0 0
    %2804 = vperm.xlu0 %2803, %v2802
    %v2805 = vpop.permute.xlu0 %2804
    %vm2806 = vcmp.eq.s32.totalorder %v2805, 1
    %v2807 = vsel %vm2806, %v2800, %v2723
    %2808 = vst.msk [vmem:[#allocation2 + $0xd8] sm:$0xff] %vm76, %v2807
    %v2809 = vld [vmem:[#allocation2 + $0xe0] sm:$0xff]
    %v2811 = vsel %vm76, %v2807, 0
    %2813 = vmatprep.subr.mxu0 0.0
    %2814 = vmatpush1.msra.mxu0 %v30
    %2815 = vmatprep.subr.mxu0 0.0
    %2816 = vmatpush1.msra.mxu0 %v31
    %2817 = vmatprep.subr.mxu0 0.0
    %2818 = vmatpush1.msra.mxu0 %v32
    %2819 = vmatprep.subr.mxu0 0.0
    %2820 = vmatpush1.msra.mxu0 %v33
    %2821 = vmatprep.subr.mxu0 0.0
    %2822 = vmatpush1.msra.mxu0 0.0
    %2823 = vmatprep.subr.mxu0 0.0
    %2824 = vmatpush1.msra.mxu0 0.0
    %2825 = vmatprep.subr.mxu0 0.0
    %2826 = vmatpush1.msra.mxu0 0.0
    %2827 = vmatprep.subr.mxu0 0.0
    %2828 = vmatpush1.msra.mxu0 0.0
    %2829 = vmatprep.subr.mxu0 0.0
    %2830 = vmatpush1.msra.mxu0 0.0
    %2831 = vmatprep.subr.mxu0 0.0
    %2832 = vmatpush1.msra.mxu0 0.0
    %2833 = vmatprep.subr.mxu0 0.0
    %2834 = vmatpush1.msra.mxu0 0.0
    %2835 = vmatprep.subr.mxu0 0.0
    %2836 = vmatpush1.msra.mxu0 0.0
    %2837 = vmatprep.subr.mxu0 0.0
    %2838 = vmatpush1.msra.mxu0 0.0
    %2839 = vmatprep.subr.mxu0 0.0
    %2840 = vmatpush1.msra.mxu0 0.0
    %2841 = vmatprep.subr.mxu0 0.0
    %2842 = vmatpush1.msra.mxu0 0.0
    %2843 = vmatprep.subr.mxu0 0.0
    %2844 = vmatpush1.msra.mxu0 0.0
    %2845 = vmatprep.subr.mxu0 0.0
    %2846 = vmatpush1.msra.mxu0 0.0
    %2847 = vmatprep.subr.mxu0 0.0
    %2848 = vmatpush1.msra.mxu0 0.0
    %2849 = vmatprep.subr.mxu0 0.0
    %2850 = vmatpush1.msra.mxu0 0.0
    %2851 = vmatprep.subr.mxu0 0.0
    %2852 = vmatpush1.msra.mxu0 0.0
    %2853 = vmatprep.subr.mxu0 0.0
    %2854 = vmatpush1.msra.mxu0 0.0
    %2855 = vmatprep.subr.mxu0 0.0
    %2856 = vmatpush1.msra.mxu0 0.0
    %2857 = vmatprep.subr.mxu0 0.0
    %2858 = vmatpush1.msra.mxu0 0.0
    %2859 = vmatprep.subr.mxu0 0.0
    %2860 = vmatpush1.msra.mxu0 0.0
    %2861 = vmatprep.subr.mxu0 0.0
    %2862 = vmatpush1.msra.mxu0 0.0
    %2863 = vmatprep.subr.mxu0 0.0
    %2864 = vmatpush1.msra.mxu0 0.0
    %2865 = vmatprep.subr.mxu0 0.0
    %2866 = vmatpush1.msra.mxu0 0.0
    %2867 = vmatprep.subr.mxu0 0.0
    %2868 = vmatpush1.msra.mxu0 0.0
    %2869 = vmatprep.subr.mxu0 0.0
    %2870 = vmatpush1.msra.mxu0 0.0
    %2871 = vmatprep.subr.mxu0 0.0
    %2872 = vmatpush1.msra.mxu0 0.0
    %2873 = vmatprep.subr.mxu0 0.0
    %2874 = vmatpush1.msra.mxu0 0.0
    %2875 = vmatprep.subr.mxu0 0.0
    %2876 = vmatpush1.msra.mxu0 0.0
    %2877 = vmatprep.mubr.f32.mxu0 0.0
    %2878 = vmatmul.mubr.f32.gmra.mrb[0].mxu0 %v2811
    %v2879 = vpop.f32.mrb[0].mxu0
    %v2880 = vadd.f32 0.0, %v2879
    %v2881 = vpop.f32.mrb[0].mxu0
    %2882 = vdwg.mxu0
    %v2883 = vadd.f32 %v2809, %v2880
    %v2884 = vtanh.pop %v2883
    %vm2885 = vcmp.gt.s32.totalorder %v24, 28
    %v2886 = vsel %vm2885, 1, 0
    %2887 = vset.pattern.permute.xlu0 0
    %2888 = vperm.xlu0 %2887, %v2886
    %v2889 = vpop.permute.xlu0 %2888
    %vm2890 = vcmp.eq.s32.totalorder %v2889, 1
    %v2891 = vsel %vm2890, %v2884, %v2807
    %2892 = vst.msk [vmem:[#allocation2 + $0xe0] sm:$0xff] %vm76, %v2891
    %v2893 = vld [vmem:[#allocation2 + $0xe8] sm:$0xff]
    %v2895 = vsel %vm76, %v2891, 0
    %2897 = vmatprep.subr.mxu0 0.0
    %2898 = vmatpush1.msra.mxu0 %v30
    %2899 = vmatprep.subr.mxu0 0.0
    %2900 = vmatpush1.msra.mxu0 %v31
    %2901 = vmatprep.subr.mxu0 0.0
    %2902 = vmatpush1.msra.mxu0 %v32
    %2903 = vmatprep.subr.mxu0 0.0
    %2904 = vmatpush1.msra.mxu0 %v33
    %2905 = vmatprep.subr.mxu0 0.0
    %2906 = vmatpush1.msra.mxu0 0.0
    %2907 = vmatprep.subr.mxu0 0.0
    %2908 = vmatpush1.msra.mxu0 0.0
    %2909 = vmatprep.subr.mxu0 0.0
    %2910 = vmatpush1.msra.mxu0 0.0
    %2911 = vmatprep.subr.mxu0 0.0
    %2912 = vmatpush1.msra.mxu0 0.0
    %2913 = vmatprep.subr.mxu0 0.0
    %2914 = vmatpush1.msra.mxu0 0.0
    %2915 = vmatprep.subr.mxu0 0.0
    %2916 = vmatpush1.msra.mxu0 0.0
    %2917 = vmatprep.subr.mxu0 0.0
    %2918 = vmatpush1.msra.mxu0 0.0
    %2919 = vmatprep.subr.mxu0 0.0
    %2920 = vmatpush1.msra.mxu0 0.0
    %2921 = vmatprep.subr.mxu0 0.0
    %2922 = vmatpush1.msra.mxu0 0.0
    %2923 = vmatprep.subr.mxu0 0.0
    %2924 = vmatpush1.msra.mxu0 0.0
    %2925 = vmatprep.subr.mxu0 0.0
    %2926 = vmatpush1.msra.mxu0 0.0
    %2927 = vmatprep.subr.mxu0 0.0
    %2928 = vmatpush1.msra.mxu0 0.0
    %2929 = vmatprep.subr.mxu0 0.0
    %2930 = vmatpush1.msra.mxu0 0.0
    %2931 = vmatprep.subr.mxu0 0.0
    %2932 = vmatpush1.msra.mxu0 0.0
    %2933 = vmatprep.subr.mxu0 0.0
    %2934 = vmatpush1.msra.mxu0 0.0
    %2935 = vmatprep.subr.mxu0 0.0
    %2936 = vmatpush1.msra.mxu0 0.0
    %2937 = vmatprep.subr.mxu0 0.0
    %2938 = vmatpush1.msra.mxu0 0.0
    %2939 = vmatprep.subr.mxu0 0.0
    %2940 = vmatpush1.msra.mxu0 0.0
    %2941 = vmatprep.subr.mxu0 0.0
    %2942 = vmatpush1.msra.mxu0 0.0
    %2943 = vmatprep.subr.mxu0 0.0
    %2944 = vmatpush1.msra.mxu0 0.0
    %2945 = vmatprep.subr.mxu0 0.0
    %2946 = vmatpush1.msra.mxu0 0.0
    %2947 = vmatprep.subr.mxu0 0.0
    %2948 = vmatpush1.msra.mxu0 0.0
    %2949 = vmatprep.subr.mxu0 0.0
    %2950 = vmatpush1.msra.mxu0 0.0
    %2951 = vmatprep.subr.mxu0 0.0
    %2952 = vmatpush1.msra.mxu0 0.0
    %2953 = vmatprep.subr.mxu0 0.0
    %2954 = vmatpush1.msra.mxu0 0.0
    %2955 = vmatprep.subr.mxu0 0.0
    %2956 = vmatpush1.msra.mxu0 0.0
    %2957 = vmatprep.subr.mxu0 0.0
    %2958 = vmatpush1.msra.mxu0 0.0
    %2959 = vmatprep.subr.mxu0 0.0
    %2960 = vmatpush1.msra.mxu0 0.0
    %2961 = vmatprep.mubr.f32.mxu0 0.0
    %2962 = vmatmul.mubr.f32.gmra.mrb[0].mxu0 %v2895
    %v2963 = vpop.f32.mrb[0].mxu0
    %v2964 = vadd.f32 0.0, %v2963
    %v2965 = vpop.f32.mrb[0].mxu0
    %2966 = vdwg.mxu0
    %v2967 = vadd.f32 %v2893, %v2964
    %v2968 = vtanh.pop %v2967
    %vm2969 = vcmp.gt.s32.totalorder %v24, 29
    %v2970 = vsel %vm2969, 1, 0
    %2971 = vset.pattern.permute.xlu0 0
    %2972 = vperm.xlu0 %2971, %v2970
    %v2973 = vpop.permute.xlu0 %2972
    %vm2974 = vcmp.eq.s32.totalorder %v2973, 1
    %v2975 = vsel %vm2974, %v2968, %v2891
    %2976 = vst.msk [vmem:[#allocation2 + $0xe8] sm:$0xff] %vm76, %v2975
    %v2977 = vld [vmem:[#allocation2 + $0xf0] sm:$0xff]
    %v2979 = vsel %vm76, %v2975, 0
    %2981 = vmatprep.subr.mxu0 0.0
    %2982 = vmatpush1.msra.mxu0 %v30
    %2983 = vmatprep.subr.mxu0 0.0
    %2984 = vmatpush1.msra.mxu0 %v31
    %2985 = vmatprep.subr.mxu0 0.0
    %2986 = vmatpush1.msra.mxu0 %v32
    %2987 = vmatprep.subr.mxu0 0.0
    %2988 = vmatpush1.msra.mxu0 %v33
    %2989 = vmatprep.subr.mxu0 0.0
    %2990 = vmatpush1.msra.mxu0 0.0
    %2991 = vmatprep.subr.mxu0 0.0
    %2992 = vmatpush1.msra.mxu0 0.0
    %2993 = vmatprep.subr.mxu0 0.0
    %2994 = vmatpush1.msra.mxu0 0.0
    %2995 = vmatprep.subr.mxu0 0.0
    %2996 = vmatpush1.msra.mxu0 0.0
    %2997 = vmatprep.subr.mxu0 0.0
    %2998 = vmatpush1.msra.mxu0 0.0
    %2999 = vmatprep.subr.mxu0 0.0
    %3000 = vmatpush1.msra.mxu0 0.0
    %3001 = vmatprep.subr.mxu0 0.0
    %3002 = vmatpush1.msra.mxu0 0.0
    %3003 = vmatprep.subr.mxu0 0.0
    %3004 = vmatpush1.msra.mxu0 0.0
    %3005 = vmatprep.subr.mxu0 0.0
    %3006 = vmatpush1.msra.mxu0 0.0
    %3007 = vmatprep.subr.mxu0 0.0
    %3008 = vmatpush1.msra.mxu0 0.0
    %3009 = vmatprep.subr.mxu0 0.0
    %3010 = vmatpush1.msra.mxu0 0.0
    %3011 = vmatprep.subr.mxu0 0.0
    %3012 = vmatpush1.msra.mxu0 0.0
    %3013 = vmatprep.subr.mxu0 0.0
    %3014 = vmatpush1.msra.mxu0 0.0
    %3015 = vmatprep.subr.mxu0 0.0
    %3016 = vmatpush1.msra.mxu0 0.0
    %3017 = vmatprep.subr.mxu0 0.0
    %3018 = vmatpush1.msra.mxu0 0.0
    %3019 = vmatprep.subr.mxu0 0.0
    %3020 = vmatpush1.msra.mxu0 0.0
    %3021 = vmatprep.subr.mxu0 0.0
    %3022 = vmatpush1.msra.mxu0 0.0
    %3023 = vmatprep.subr.mxu0 0.0
    %3024 = vmatpush1.msra.mxu0 0.0
    %3025 = vmatprep.subr.mxu0 0.0
    %3026 = vmatpush1.msra.mxu0 0.0
    %3027 = vmatprep.subr.mxu0 0.0
    %3028 = vmatpush1.msra.mxu0 0.0
    %3029 = vmatprep.subr.mxu0 0.0
    %3030 = vmatpush1.msra.mxu0 0.0
    %3031 = vmatprep.subr.mxu0 0.0
    %3032 = vmatpush1.msra.mxu0 0.0
    %3033 = vmatprep.subr.mxu0 0.0
    %3034 = vmatpush1.msra.mxu0 0.0
    %3035 = vmatprep.subr.mxu0 0.0
    %3036 = vmatpush1.msra.mxu0 0.0
    %3037 = vmatprep.subr.mxu0 0.0
    %3038 = vmatpush1.msra.mxu0 0.0
    %3039 = vmatprep.subr.mxu0 0.0
    %3040 = vmatpush1.msra.mxu0 0.0
    %3041 = vmatprep.subr.mxu0 0.0
    %3042 = vmatpush1.msra.mxu0 0.0
    %3043 = vmatprep.subr.mxu0 0.0
    %3044 = vmatpush1.msra.mxu0 0.0
    %3045 = vmatprep.mubr.f32.mxu0 0.0
    %3046 = vmatmul.mubr.f32.gmra.mrb[0].mxu0 %v2979
    %v3047 = vpop.f32.mrb[0].mxu0
    %v3048 = vadd.f32 0.0, %v3047
    %v3049 = vpop.f32.mrb[0].mxu0
    %3050 = vdwg.mxu0
    %v3051 = vadd.f32 %v2977, %v3048
    %v3052 = vtanh.pop %v3051
    %vm3053 = vcmp.gt.s32.totalorder %v24, 30
    %v3054 = vsel %vm3053, 1, 0
    %3055 = vset.pattern.permute.xlu0 0
    %3056 = vperm.xlu0 %3055, %v3054
    %v3057 = vpop.permute.xlu0 %3056
    %vm3058 = vcmp.eq.s32.totalorder %v3057, 1
    %v3059 = vsel %vm3058, %v3052, %v2975
    %3060 = vst.msk [vmem:[#allocation2 + $0xf0] sm:$0xff] %vm76, %v3059
    %v3061 = vld [vmem:[#allocation2 + $0xf8] sm:$0xff]
    %v3063 = vsel %vm76, %v3059, 0
    %3065 = vmatprep.subr.mxu0 0.0
    %3066 = vmatpush1.msra.mxu0 %v30
    %3067 = vmatprep.subr.mxu0 0.0
    %3068 = vmatpush1.msra.mxu0 %v31
    %3069 = vmatprep.subr.mxu0 0.0
    %3070 = vmatpush1.msra.mxu0 %v32
    %3071 = vmatprep.subr.mxu0 0.0
    %3072 = vmatpush1.msra.mxu0 %v33
    %3073 = vmatprep.subr.mxu0 0.0
    %3074 = vmatpush1.msra.mxu0 0.0
    %3075 = vmatprep.subr.mxu0 0.0
    %3076 = vmatpush1.msra.mxu0 0.0
    %3077 = vmatprep.subr.mxu0 0.0
    %3078 = vmatpush1.msra.mxu0 0.0
    %3079 = vmatprep.subr.mxu0 0.0
    %3080 = vmatpush1.msra.mxu0 0.0
    %3081 = vmatprep.subr.mxu0 0.0
    %3082 = vmatpush1.msra.mxu0 0.0
    %3083 = vmatprep.subr.mxu0 0.0
    %3084 = vmatpush1.msra.mxu0 0.0
    %3085 = vmatprep.subr.mxu0 0.0
    %3086 = vmatpush1.msra.mxu0 0.0
    %3087 = vmatprep.subr.mxu0 0.0
    %3088 = vmatpush1.msra.mxu0 0.0
    %3089 = vmatprep.subr.mxu0 0.0
    %3090 = vmatpush1.msra.mxu0 0.0
    %3091 = vmatprep.subr.mxu0 0.0
    %3092 = vmatpush1.msra.mxu0 0.0
    %3093 = vmatprep.subr.mxu0 0.0
    %3094 = vmatpush1.msra.mxu0 0.0
    %3095 = vmatprep.subr.mxu0 0.0
    %3096 = vmatpush1.msra.mxu0 0.0
    %3097 = vmatprep.subr.mxu0 0.0
    %3098 = vmatpush1.msra.mxu0 0.0
    %3099 = vmatprep.subr.mxu0 0.0
    %3100 = vmatpush1.msra.mxu0 0.0
    %3101 = vmatprep.subr.mxu0 0.0
    %3102 = vmatpush1.msra.mxu0 0.0
    %3103 = vmatprep.subr.mxu0 0.0
    %3104 = vmatpush1.msra.mxu0 0.0
    %3105 = vmatprep.subr.mxu0 0.0
    %3106 = vmatpush1.msra.mxu0 0.0
    %3107 = vmatprep.subr.mxu0 0.0
    %3108 = vmatpush1.msra.mxu0 0.0
    %3109 = vmatprep.subr.mxu0 0.0
    %3110 = vmatpush1.msra.mxu0 0.0
    %3111 = vmatprep.subr.mxu0 0.0
    %3112 = vmatpush1.msra.mxu0 0.0
    %3113 = vmatprep.subr.mxu0 0.0
    %3114 = vmatpush1.msra.mxu0 0.0
    %3115 = vmatprep.subr.mxu0 0.0
    %3116 = vmatpush1.msra.mxu0 0.0
    %3117 = vmatprep.subr.mxu0 0.0
    %3118 = vmatpush1.msra.mxu0 0.0
    %3119 = vmatprep.subr.mxu0 0.0
    %3120 = vmatpush1.msra.mxu0 0.0
    %3121 = vmatprep.subr.mxu0 0.0
    %3122 = vmatpush1.msra.mxu0 0.0
    %3123 = vmatprep.subr.mxu0 0.0
    %3124 = vmatpush1.msra.mxu0 0.0
    %3125 = vmatprep.subr.mxu0 0.0
    %3126 = vmatpush1.msra.mxu0 0.0
    %3127 = vmatprep.subr.mxu0 0.0
    %3128 = vmatpush1.msra.mxu0 0.0
    %3129 = vmatprep.mubr.f32.mxu0 0.0
    %3130 = vmatmul.mubr.f32.gmra.mrb[0].mxu0 %v3063
    %v3131 = vpop.f32.mrb[0].mxu0
    %v3132 = vadd.f32 0.0, %v3131
    %v3133 = vpop.f32.mrb[0].mxu0
    %3134 = vdwg.mxu0
    %v3135 = vadd.f32 %v3061, %v3132
    %v3136 = vtanh.pop %v3135
    %vm3137 = vcmp.gt.s32.totalorder %v24, 31
    %v3138 = vsel %vm3137, 1, 0
    %3139 = vset.pattern.permute.xlu0 0
    %3140 = vperm.xlu0 %3139, %v3138
    %v3141 = vpop.permute.xlu0 %3140
    %vm3142 = vcmp.eq.s32.totalorder %v3141, 1
    %v3143 = vsel %vm3142, %v3136, %v3059
    %3144 = vst.msk [vmem:[#allocation2 + $0xf8] sm:$0xff] %vm76, %v3143
    %v3145 = vld [vmem:[#allocation2 + $0x100] sm:$0xff]
    %v3147 = vsel %vm76, %v3143, 0
    %3149 = vmatprep.subr.mxu0 0.0
    %3150 = vmatpush1.msra.mxu0 %v30
    %3151 = vmatprep.subr.mxu0 0.0
    %3152 = vmatpush1.msra.mxu0 %v31
    %3153 = vmatprep.subr.mxu0 0.0
    %3154 = vmatpush1.msra.mxu0 %v32
    %3155 = vmatprep.subr.mxu0 0.0
    %3156 = vmatpush1.msra.mxu0 %v33
    %3157 = vmatprep.subr.mxu0 0.0
    %3158 = vmatpush1.msra.mxu0 0.0
    %3159 = vmatprep.subr.mxu0 0.0
    %3160 = vmatpush1.msra.mxu0 0.0
    %3161 = vmatprep.subr.mxu0 0.0
    %3162 = vmatpush1.msra.mxu0 0.0
    %3163 = vmatprep.subr.mxu0 0.0
    %3164 = vmatpush1.msra.mxu0 0.0
    %3165 = vmatprep.subr.mxu0 0.0
    %3166 = vmatpush1.msra.mxu0 0.0
    %3167 = vmatprep.subr.mxu0 0.0
    %3168 = vmatpush1.msra.mxu0 0.0
    %3169 = vmatprep.subr.mxu0 0.0
    %3170 = vmatpush1.msra.mxu0 0.0
    %3171 = vmatprep.subr.mxu0 0.0
    %3172 = vmatpush1.msra.mxu0 0.0
    %3173 = vmatprep.subr.mxu0 0.0
    %3174 = vmatpush1.msra.mxu0 0.0
    %3175 = vmatprep.subr.mxu0 0.0
    %3176 = vmatpush1.msra.mxu0 0.0
    %3177 = vmatprep.subr.mxu0 0.0
    %3178 = vmatpush1.msra.mxu0 0.0
    %3179 = vmatprep.subr.mxu0 0.0
    %3180 = vmatpush1.msra.mxu0 0.0
    %3181 = vmatprep.subr.mxu0 0.0
    %3182 = vmatpush1.msra.mxu0 0.0
    %3183 = vmatprep.subr.mxu0 0.0
    %3184 = vmatpush1.msra.mxu0 0.0
    %3185 = vmatprep.subr.mxu0 0.0
    %3186 = vmatpush1.msra.mxu0 0.0
    %3187 = vmatprep.subr.mxu0 0.0
    %3188 = vmatpush1.msra.mxu0 0.0
    %3189 = vmatprep.subr.mxu0 0.0
    %3190 = vmatpush1.msra.mxu0 0.0
    %3191 = vmatprep.subr.mxu0 0.0
    %3192 = vmatpush1.msra.mxu0 0.0
    %3193 = vmatprep.subr.mxu0 0.0
    %3194 = vmatpush1.msra.mxu0 0.0
    %3195 = vmatprep.subr.mxu0 0.0
    %3196 = vmatpush1.msra.mxu0 0.0
    %3197 = vmatprep.subr.mxu0 0.0
    %3198 = vmatpush1.msra.mxu0 0.0
    %3199 = vmatprep.subr.mxu0 0.0
    %3200 = vmatpush1.msra.mxu0 0.0
    %3201 = vmatprep.subr.mxu0 0.0
    %3202 = vmatpush1.msra.mxu0 0.0
    %3203 = vmatprep.subr.mxu0 0.0
    %3204 = vmatpush1.msra.mxu0 0.0
    %3205 = vmatprep.subr.mxu0 0.0
    %3206 = vmatpush1.msra.mxu0 0.0
    %3207 = vmatprep.subr.mxu0 0.0
    %3208 = vmatpush1.msra.mxu0 0.0
    %3209 = vmatprep.subr.mxu0 0.0
    %3210 = vmatpush1.msra.mxu0 0.0
    %3211 = vmatprep.subr.mxu0 0.0
    %3212 = vmatpush1.msra.mxu0 0.0
    %3213 = vmatprep.mubr.f32.mxu0 0.0
    %3214 = vmatmul.mubr.f32.gmra.mrb[0].mxu0 %v3147
    %v3215 = vpop.f32.mrb[0].mxu0
    %v3216 = vadd.f32 0.0, %v3215
    %v3217 = vpop.f32.mrb[0].mxu0
    %3218 = vdwg.mxu0
    %v3219 = vadd.f32 %v3145, %v3216
    %v3220 = vtanh.pop %v3219
    %vm3221 = vcmp.gt.s32.totalorder %v24, 32
    %v3222 = vsel %vm3221, 1, 0
    %3223 = vset.pattern.permute.xlu0 0
    %3224 = vperm.xlu0 %3223, %v3222
    %v3225 = vpop.permute.xlu0 %3224
    %vm3226 = vcmp.eq.s32.totalorder %v3225, 1
    %v3227 = vsel %vm3226, %v3220, %v3143
    %3228 = vst.msk [vmem:[#allocation2 + $0x100] sm:$0xff] %vm76, %v3227
    %v3229 = vld [vmem:[#allocation2 + $0x108] sm:$0xff]
    %v3231 = vsel %vm76, %v3227, 0
    %3233 = vmatprep.subr.mxu0 0.0
    %3234 = vmatpush1.msra.mxu0 %v30
    %3235 = vmatprep.subr.mxu0 0.0
    %3236 = vmatpush1.msra.mxu0 %v31
    %3237 = vmatprep.subr.mxu0 0.0
    %3238 = vmatpush1.msra.mxu0 %v32
    %3239 = vmatprep.subr.mxu0 0.0
    %3240 = vmatpush1.msra.mxu0 %v33
    %3241 = vmatprep.subr.mxu0 0.0
    %3242 = vmatpush1.msra.mxu0 0.0
    %3243 = vmatprep.subr.mxu0 0.0
    %3244 = vmatpush1.msra.mxu0 0.0
    %3245 = vmatprep.subr.mxu0 0.0
    %3246 = vmatpush1.msra.mxu0 0.0
    %3247 = vmatprep.subr.mxu0 0.0
    %3248 = vmatpush1.msra.mxu0 0.0
    %3249 = vmatprep.subr.mxu0 0.0
    %3250 = vmatpush1.msra.mxu0 0.0
    %3251 = vmatprep.subr.mxu0 0.0
    %3252 = vmatpush1.msra.mxu0 0.0
    %3253 = vmatprep.subr.mxu0 0.0
    %3254 = vmatpush1.msra.mxu0 0.0
    %3255 = vmatprep.subr.mxu0 0.0
    %3256 = vmatpush1.msra.mxu0 0.0
    %3257 = vmatprep.subr.mxu0 0.0
    %3258 = vmatpush1.msra.mxu0 0.0
    %3259 = vmatprep.subr.mxu0 0.0
    %3260 = vmatpush1.msra.mxu0 0.0
    %3261 = vmatprep.subr.mxu0 0.0
    %3262 = vmatpush1.msra.mxu0 0.0
    %3263 = vmatprep.subr.mxu0 0.0
    %3264 = vmatpush1.msra.mxu0 0.0
    %3265 = vmatprep.subr.mxu0 0.0
    %3266 = vmatpush1.msra.mxu0 0.0
    %3267 = vmatprep.subr.mxu0 0.0
    %3268 = vmatpush1.msra.mxu0 0.0
    %3269 = vmatprep.subr.mxu0 0.0
    %3270 = vmatpush1.msra.mxu0 0.0
    %3271 = vmatprep.subr.mxu0 0.0
    %3272 = vmatpush1.msra.mxu0 0.0
    %3273 = vmatprep.subr.mxu0 0.0
    %3274 = vmatpush1.msra.mxu0 0.0
    %3275 = vmatprep.subr.mxu0 0.0
    %3276 = vmatpush1.msra.mxu0 0.0
    %3277 = vmatprep.subr.mxu0 0.0
    %3278 = vmatpush1.msra.mxu0 0.0
    %3279 = vmatprep.subr.mxu0 0.0
    %3280 = vmatpush1.msra.mxu0 0.0
    %3281 = vmatprep.subr.mxu0 0.0
    %3282 = vmatpush1.msra.mxu0 0.0
    %3283 = vmatprep.subr.mxu0 0.0
    %3284 = vmatpush1.msra.mxu0 0.0
    %3285 = vmatprep.subr.mxu0 0.0
    %3286 = vmatpush1.msra.mxu0 0.0
    %3287 = vmatprep.subr.mxu0 0.0
    %3288 = vmatpush1.msra.mxu0 0.0
    %3289 = vmatprep.subr.mxu0 0.0
    %3290 = vmatpush1.msra.mxu0 0.0
    %3291 = vmatprep.subr.mxu0 0.0
    %3292 = vmatpush1.msra.mxu0 0.0
    %3293 = vmatprep.subr.mxu0 0.0
    %3294 = vmatpush1.msra.mxu0 0.0
    %3295 = vmatprep.subr.mxu0 0.0
    %3296 = vmatpush1.msra.mxu0 0.0
    %3297 = vmatprep.mubr.f32.mxu0 0.0
    %3298 = vmatmul.mubr.f32.gmra.mrb[0].mxu0 %v3231
    %v3299 = vpop.f32.mrb[0].mxu0
    %v3300 = vadd.f32 0.0, %v3299
    %v3301 = vpop.f32.mrb[0].mxu0
    %3302 = vdwg.mxu0
    %v3303 = vadd.f32 %v3229, %v3300
    %v3304 = vtanh.pop %v3303
    %vm3305 = vcmp.gt.s32.totalorder %v24, 33
    %v3306 = vsel %vm3305, 1, 0
    %3307 = vset.pattern.permute.xlu0 0
    %3308 = vperm.xlu0 %3307, %v3306
    %v3309 = vpop.permute.xlu0 %3308
    %vm3310 = vcmp.eq.s32.totalorder %v3309, 1
    %v3311 = vsel %vm3310, %v3304, %v3227
    %3312 = vst.msk [vmem:[#allocation2 + $0x108] sm:$0xff] %vm76, %v3311
    %v3313 = vld [vmem:[#allocation2 + $0x110] sm:$0xff]
    %v3315 = vsel %vm76, %v3311, 0
    %3317 = vmatprep.subr.mxu0 0.0
    %3318 = vmatpush1.msra.mxu0 %v30
    %3319 = vmatprep.subr.mxu0 0.0
    %3320 = vmatpush1.msra.mxu0 %v31
    %3321 = vmatprep.subr.mxu0 0.0
    %3322 = vmatpush1.msra.mxu0 %v32
    %3323 = vmatprep.subr.mxu0 0.0
    %3324 = vmatpush1.msra.mxu0 %v33
    %3325 = vmatprep.subr.mxu0 0.0
    %3326 = vmatpush1.msra.mxu0 0.0
    %3327 = vmatprep.subr.mxu0 0.0
    %3328 = vmatpush1.msra.mxu0 0.0
    %3329 = vmatprep.subr.mxu0 0.0
    %3330 = vmatpush1.msra.mxu0 0.0
    %3331 = vmatprep.subr.mxu0 0.0
    %3332 = vmatpush1.msra.mxu0 0.0
    %3333 = vmatprep.subr.mxu0 0.0
    %3334 = vmatpush1.msra.mxu0 0.0
    %3335 = vmatprep.subr.mxu0 0.0
    %3336 = vmatpush1.msra.mxu0 0.0
    %3337 = vmatprep.subr.mxu0 0.0
    %3338 = vmatpush1.msra.mxu0 0.0
    %3339 = vmatprep.subr.mxu0 0.0
    %3340 = vmatpush1.msra.mxu0 0.0
    %3341 = vmatprep.subr.mxu0 0.0
    %3342 = vmatpush1.msra.mxu0 0.0
    %3343 = vmatprep.subr.mxu0 0.0
    %3344 = vmatpush1.msra.mxu0 0.0
    %3345 = vmatprep.subr.mxu0 0.0
    %3346 = vmatpush1.msra.mxu0 0.0
    %3347 = vmatprep.subr.mxu0 0.0
    %3348 = vmatpush1.msra.mxu0 0.0
    %3349 = vmatprep.subr.mxu0 0.0
    %3350 = vmatpush1.msra.mxu0 0.0
    %3351 = vmatprep.subr.mxu0 0.0
    %3352 = vmatpush1.msra.mxu0 0.0
    %3353 = vmatprep.subr.mxu0 0.0
    %3354 = vmatpush1.msra.mxu0 0.0
    %3355 = vmatprep.subr.mxu0 0.0
    %3356 = vmatpush1.msra.mxu0 0.0
    %3357 = vmatprep.subr.mxu0 0.0
    %3358 = vmatpush1.msra.mxu0 0.0
    %3359 = vmatprep.subr.mxu0 0.0
    %3360 = vmatpush1.msra.mxu0 0.0
    %3361 = vmatprep.subr.mxu0 0.0
    %3362 = vmatpush1.msra.mxu0 0.0
    %3363 = vmatprep.subr.mxu0 0.0
    %3364 = vmatpush1.msra.mxu0 0.0
    %3365 = vmatprep.subr.mxu0 0.0
    %3366 = vmatpush1.msra.mxu0 0.0
    %3367 = vmatprep.subr.mxu0 0.0
    %3368 = vmatpush1.msra.mxu0 0.0
    %3369 = vmatprep.subr.mxu0 0.0
    %3370 = vmatpush1.msra.mxu0 0.0
    %3371 = vmatprep.subr.mxu0 0.0
    %3372 = vmatpush1.msra.mxu0 0.0
    %3373 = vmatprep.subr.mxu0 0.0
    %3374 = vmatpush1.msra.mxu0 0.0
    %3375 = vmatprep.subr.mxu0 0.0
    %3376 = vmatpush1.msra.mxu0 0.0
    %3377 = vmatprep.subr.mxu0 0.0
    %3378 = vmatpush1.msra.mxu0 0.0
    %3379 = vmatprep.subr.mxu0 0.0
    %3380 = vmatpush1.msra.mxu0 0.0
    %3381 = vmatprep.mubr.f32.mxu0 0.0
    %3382 = vmatmul.mubr.f32.gmra.mrb[0].mxu0 %v3315
    %v3383 = vpop.f32.mrb[0].mxu0
    %v3384 = vadd.f32 0.0, %v3383
    %v3385 = vpop.f32.mrb[0].mxu0
    %3386 = vdwg.mxu0
    %v3387 = vadd.f32 %v3313, %v3384
    %v3388 = vtanh.pop %v3387
    %vm3389 = vcmp.gt.s32.totalorder %v24, 34
    %v3390 = vsel %vm3389, 1, 0
    %3391 = vset.pattern.permute.xlu0 0
    %3392 = vperm.xlu0 %3391, %v3390
    %v3393 = vpop.permute.xlu0 %3392
    %vm3394 = vcmp.eq.s32.totalorder %v3393, 1
    %v3395 = vsel %vm3394, %v3388, %v3311
    %3396 = vst.msk [vmem:[#allocation2 + $0x110] sm:$0xff] %vm76, %v3395
    %s3397 = scalar_lea.vmem %s2, 64
    %v3398 = vld [vmem:[%s3397] sm:$0xff]
    %v3399 = vld [vmem:[%s3397 + $0x8] sm:$0xff]
    %v3400 = vld [vmem:[%s3397 + $0x10] sm:$0xff]
    %v3401 = vld [vmem:[%s3397 + $0x18] sm:$0xff]
    %s3402 = scalar_lea.vmem %s2, 96
    %v3403 = vld [vmem:[%s3402] sm:$0xff]
    %v3404 = vld [vmem:[%s3402 + $0x8] sm:$0xff]
    %v3405 = vld [vmem:[%s3402 + $0x10] sm:$0xff]
    %v3406 = vld [vmem:[%s3402 + $0x18] sm:$0xff]
    %s3407 = scalar_lea.vmem %s3, 1
    %v3408 = vld [vmem:[%s3407] sm:$0x1]
    %v3409 = vld [vmem:[#allocation2] sm:$0xff]
    %v3410 = vld [vmem:[#allocation2 + $0x8] sm:$0xff]
    %v3411 = vld [vmem:[#allocation2 + $0x10] sm:$0xff]
    %v3412 = vld [vmem:[#allocation2 + $0x18] sm:$0xff]
    %v3413 = vld [vmem:[#allocation2 + $0x20] sm:$0xff]
    %v3414 = vld [vmem:[#allocation2 + $0x28] sm:$0xff]
    %v3415 = vld [vmem:[#allocation2 + $0x30] sm:$0xff]
    %v3416 = vld [vmem:[#allocation2 + $0x38] sm:$0xff]
    %v3417 = vld [vmem:[#allocation2 + $0x40] sm:$0xff]
    %v3418 = vld [vmem:[#allocation2 + $0x48] sm:$0xff]
    %v3419 = vld [vmem:[#allocation2 + $0x50] sm:$0xff]
    %v3420 = vld [vmem:[#allocation2 + $0x58] sm:$0xff]
    %v3421 = vld [vmem:[#allocation2 + $0x60] sm:$0xff]
    %v3422 = vld [vmem:[#allocation2 + $0x68] sm:$0xff]
    %v3423 = vld [vmem:[#allocation2 + $0x70] sm:$0xff]
    %v3424 = vld [vmem:[#allocation2 + $0x78] sm:$0xff]
    %v3425 = vld [vmem:[#allocation2 + $0x80] sm:$0xff]
    %v3426 = vld [vmem:[#allocation2 + $0x88] sm:$0xff]
    %v3427 = vld [vmem:[#allocation2 + $0x90] sm:$0xff]
    %v3428 = vld [vmem:[#allocation2 + $0x98] sm:$0xff]
    %v3429 = vld [vmem:[#allocation2 + $0xa0] sm:$0xff]
    %v3430 = vld [vmem:[#allocation2 + $0xa8] sm:$0xff]
    %v3431 = vld [vmem:[#allocation2 + $0xb0] sm:$0xff]
    %v3432 = vld [vmem:[#allocation2 + $0xb8] sm:$0xff]
    %v3433 = vld [vmem:[#allocation2 + $0xc0] sm:$0xff]
    %v3434 = vld [vmem:[#allocation2 + $0xc8] sm:$0xff]
    %v3435 = vld [vmem:[#allocation2 + $0xd0] sm:$0xff]
    %v3436 = vld [vmem:[#allocation2 + $0xd8] sm:$0xff]
    %v3437 = vld [vmem:[#allocation2 + $0xe0] sm:$0xff]
    %v3438 = vld [vmem:[#allocation2 + $0xe8] sm:$0xff]
    %v3439 = vld [vmem:[#allocation2 + $0xf0] sm:$0xff]
    %v3440 = vld [vmem:[#allocation2 + $0xf8] sm:$0xff]
    %v3441 = vld [vmem:[#allocation2 + $0x100] sm:$0xff]
    %v3442 = vld [vmem:[#allocation2 + $0x108] sm:$0xff]
    %v3443 = vld [vmem:[#allocation2 + $0x110] sm:$0xff]
    %v3445 = vlaneseq
    %v3446 = vshrl.u32 %v3445, 7
    %v3447 = vsub.s32 0, %v3446
    %v3448 = vrot.slane %v3408, %v3447
    %v3451 = vsel %vm76, %v3409, 0
    %v3454 = vsel %vm76, %v3410, 0
    %v3457 = vsel %vm76, %v3411, 0
    %v3460 = vsel %vm76, %v3412, 0
    %v3463 = vsel %vm76, %v3413, 0
    %v3466 = vsel %vm76, %v3414, 0
    %v3469 = vsel %vm76, %v3415, 0
    %v3472 = vsel %vm76, %v3416, 0
    %v3475 = vsel %vm76, %v3417, 0
    %v3478 = vsel %vm76, %v3418, 0
    %v3481 = vsel %vm76, %v3419, 0
    %v3484 = vsel %vm76, %v3420, 0
    %v3487 = vsel %vm76, %v3421, 0
    %v3490 = vsel %vm76, %v3422, 0
    %v3493 = vsel %vm76, %v3423, 0
    %v3496 = vsel %vm76, %v3424, 0
    %v3499 = vsel %vm76, %v3425, 0
    %v3502 = vsel %vm76, %v3426, 0
    %v3505 = vsel %vm76, %v3427, 0
    %v3508 = vsel %vm76, %v3428, 0
    %v3511 = vsel %vm76, %v3429, 0
    %v3514 = vsel %vm76, %v3430, 0
    %v3517 = vsel %vm76, %v3431, 0
    %v3520 = vsel %vm76, %v3432, 0
    %v3523 = vsel %vm76, %v3433, 0
    %v3526 = vsel %vm76, %v3434, 0
    %v3529 = vsel %vm76, %v3435, 0
    %v3532 = vsel %vm76, %v3436, 0
    %v3535 = vsel %vm76, %v3437, 0
    %v3538 = vsel %vm76, %v3438, 0
    %v3541 = vsel %vm76, %v3439, 0
    %v3544 = vsel %vm76, %v3440, 0
    %v3547 = vsel %vm76, %v3441, 0
    %v3550 = vsel %vm76, %v3442, 0
    %v3553 = vsel %vm76, %v3443, 0
    %3555 = vmatprep.subr.mxu0 0.0
    %3556 = vmatpush1.msra.mxu0 %v3398
    %3557 = vmatprep.subr.mxu0 0.0
    %3558 = vmatpush1.msra.mxu0 %v3399
    %3559 = vmatprep.subr.mxu0 0.0
    %3560 = vmatpush1.msra.mxu0 %v3400
    %3561 = vmatprep.subr.mxu0 0.0
    %3562 = vmatpush1.msra.mxu0 %v3401
    %3563 = vmatprep.subr.mxu0 0.0
    %3564 = vmatpush1.msra.mxu0 0.0
    %3565 = vmatprep.subr.mxu0 0.0
    %3566 = vmatpush1.msra.mxu0 0.0
    %3567 = vmatprep.subr.mxu0 0.0
    %3568 = vmatpush1.msra.mxu0 0.0
    %3569 = vmatprep.subr.mxu0 0.0
    %3570 = vmatpush1.msra.mxu0 0.0
    %3571 = vmatprep.subr.mxu0 0.0
    %3572 = vmatpush1.msra.mxu0 0.0
    %3573 = vmatprep.subr.mxu0 0.0
    %3574 = vmatpush1.msra.mxu0 0.0
    %3575 = vmatprep.subr.mxu0 0.0
    %3576 = vmatpush1.msra.mxu0 0.0
    %3577 = vmatprep.subr.mxu0 0.0
    %3578 = vmatpush1.msra.mxu0 0.0
    %3579 = vmatprep.subr.mxu0 0.0
    %3580 = vmatpush1.msra.mxu0 0.0
    %3581 = vmatprep.subr.mxu0 0.0
    %3582 = vmatpush1.msra.mxu0 0.0
    %3583 = vmatprep.subr.mxu0 0.0
    %3584 = vmatpush1.msra.mxu0 0.0
    %3585 = vmatprep.subr.mxu0 0.0
    %3586 = vmatpush1.msra.mxu0 0.0
    %3587 = vmatprep.subr.mxu0 0.0
    %3588 = vmatpush1.msra.mxu0 0.0
    %3589 = vmatprep.subr.mxu0 0.0
    %3590 = vmatpush1.msra.mxu0 0.0
    %3591 = vmatprep.subr.mxu0 0.0
    %3592 = vmatpush1.msra.mxu0 0.0
    %3593 = vmatprep.subr.mxu0 0.0
    %3594 = vmatpush1.msra.mxu0 0.0
    %3595 = vmatprep.subr.mxu0 0.0
    %3596 = vmatpush1.msra.mxu0 0.0
    %3597 = vmatprep.subr.mxu0 0.0
    %3598 = vmatpush1.msra.mxu0 0.0
    %3599 = vmatprep.subr.mxu0 0.0
    %3600 = vmatpush1.msra.mxu0 0.0
    %3601 = vmatprep.subr.mxu0 0.0
    %3602 = vmatpush1.msra.mxu0 0.0
    %3603 = vmatprep.subr.mxu0 0.0
    %3604 = vmatpush1.msra.mxu0 0.0
    %3605 = vmatprep.subr.mxu0 0.0
    %3606 = vmatpush1.msra.mxu0 0.0
    %3607 = vmatprep.subr.mxu0 0.0
    %3608 = vmatpush1.msra.mxu0 0.0
    %3609 = vmatprep.subr.mxu0 0.0
    %3610 = vmatpush1.msra.mxu0 0.0
    %3611 = vmatprep.subr.mxu0 0.0
    %3612 = vmatpush1.msra.mxu0 0.0
    %3613 = vmatprep.subr.mxu0 0.0
    %3614 = vmatpush1.msra.mxu0 0.0
    %3615 = vmatprep.subr.mxu0 0.0
    %3616 = vmatpush1.msra.mxu0 0.0
    %3617 = vmatprep.subr.mxu0 0.0
    %3618 = vmatpush1.msra.mxu0 0.0
    %3619 = vmatprep.mubr.f32.mxu0 0.0
    %3620 = vmatmul.mubr.f32.gmra.mrb[0].mxu0 %v3451
    %v3621 = vpop.f32.mrb[0].mxu0
    %v3622 = vadd.f32 %v3448, %v3621
    %v3623 = vpop.f32.mrb[0].mxu0
    %3624 = vmatprep.mubr.f32.mxu0 0.0
    %3625 = vmatmul.mubr.f32.gmra.mrb[0].mxu0 %v3454
    %v3626 = vpop.f32.mrb[0].mxu0
    %v3627 = vadd.f32 %v3448, %v3626
    %v3628 = vpop.f32.mrb[0].mxu0
    %3629 = vmatprep.mubr.f32.mxu0 0.0
    %3630 = vmatmul.mubr.f32.gmra.mrb[0].mxu0 %v3457
    %v3631 = vpop.f32.mrb[0].mxu0
    %v3632 = vadd.f32 %v3448, %v3631
    %v3633 = vpop.f32.mrb[0].mxu0
    %3634 = vmatprep.mubr.f32.mxu0 0.0
    %3635 = vmatmul.mubr.f32.gmra.mrb[0].mxu0 %v3460
    %v3636 = vpop.f32.mrb[0].mxu0
    %v3637 = vadd.f32 %v3448, %v3636
    %v3638 = vpop.f32.mrb[0].mxu0
    %3639 = vmatprep.mubr.f32.mxu0 0.0
    %3640 = vmatmul.mubr.f32.gmra.mrb[0].mxu0 %v3463
    %v3641 = vpop.f32.mrb[0].mxu0
    %v3642 = vadd.f32 %v3448, %v3641
    %v3643 = vpop.f32.mrb[0].mxu0
    %3644 = vmatprep.mubr.f32.mxu0 0.0
    %3645 = vmatmul.mubr.f32.gmra.mrb[0].mxu0 %v3466
    %v3646 = vpop.f32.mrb[0].mxu0
    %v3647 = vadd.f32 %v3448, %v3646
    %v3648 = vpop.f32.mrb[0].mxu0
    %3649 = vmatprep.mubr.f32.mxu0 0.0
    %3650 = vmatmul.mubr.f32.gmra.mrb[0].mxu0 %v3469
    %v3651 = vpop.f32.mrb[0].mxu0
    %v3652 = vadd.f32 %v3448, %v3651
    %v3653 = vpop.f32.mrb[0].mxu0
    %3654 = vmatprep.mubr.f32.mxu0 0.0
    %3655 = vmatmul.mubr.f32.gmra.mrb[0].mxu0 %v3472
    %v3656 = vpop.f32.mrb[0].mxu0
    %v3657 = vadd.f32 %v3448, %v3656
    %v3658 = vpop.f32.mrb[0].mxu0
    %3659 = vmatprep.mubr.f32.mxu0 0.0
    %3660 = vmatmul.mubr.f32.gmra.mrb[0].mxu0 %v3475
    %v3661 = vpop.f32.mrb[0].mxu0
    %v3662 = vadd.f32 %v3448, %v3661
    %v3663 = vpop.f32.mrb[0].mxu0
    %3664 = vmatprep.mubr.f32.mxu0 0.0
    %3665 = vmatmul.mubr.f32.gmra.mrb[0].mxu0 %v3478
    %v3666 = vpop.f32.mrb[0].mxu0
    %v3667 = vadd.f32 %v3448, %v3666
    %v3668 = vpop.f32.mrb[0].mxu0
    %3669 = vmatprep.mubr.f32.mxu0 0.0
    %3670 = vmatmul.mubr.f32.gmra.mrb[0].mxu0 %v3481
    %v3671 = vpop.f32.mrb[0].mxu0
    %v3672 = vadd.f32 %v3448, %v3671
    %v3673 = vpop.f32.mrb[0].mxu0
    %3674 = vmatprep.mubr.f32.mxu0 0.0
    %3675 = vmatmul.mubr.f32.gmra.mrb[0].mxu0 %v3484
    %v3676 = vpop.f32.mrb[0].mxu0
    %v3677 = vadd.f32 %v3448, %v3676
    %v3678 = vpop.f32.mrb[0].mxu0
    %3679 = vmatprep.mubr.f32.mxu0 0.0
    %3680 = vmatmul.mubr.f32.gmra.mrb[0].mxu0 %v3487
    %v3681 = vpop.f32.mrb[0].mxu0
    %v3682 = vadd.f32 %v3448, %v3681
    %v3683 = vpop.f32.mrb[0].mxu0
    %3684 = vmatprep.mubr.f32.mxu0 0.0
    %3685 = vmatmul.mubr.f32.gmra.mrb[0].mxu0 %v3490
    %v3686 = vpop.f32.mrb[0].mxu0
    %v3687 = vadd.f32 %v3448, %v3686
    %v3688 = vpop.f32.mrb[0].mxu0
    %3689 = vmatprep.mubr.f32.mxu0 0.0
    %3690 = vmatmul.mubr.f32.gmra.mrb[0].mxu0 %v3493
    %v3691 = vpop.f32.mrb[0].mxu0
    %v3692 = vadd.f32 %v3448, %v3691
    %v3693 = vpop.f32.mrb[0].mxu0
    %3694 = vmatprep.mubr.f32.mxu0 0.0
    %3695 = vmatmul.mubr.f32.gmra.mrb[0].mxu0 %v3496
    %v3696 = vpop.f32.mrb[0].mxu0
    %v3697 = vadd.f32 %v3448, %v3696
    %v3698 = vpop.f32.mrb[0].mxu0
    %3699 = vmatprep.mubr.f32.mxu0 0.0
    %3700 = vmatmul.mubr.f32.gmra.mrb[0].mxu0 %v3499
    %v3701 = vpop.f32.mrb[0].mxu0
    %v3702 = vadd.f32 %v3448, %v3701
    %v3703 = vpop.f32.mrb[0].mxu0
    %3704 = vmatprep.mubr.f32.mxu0 0.0
    %3705 = vmatmul.mubr.f32.gmra.mrb[0].mxu0 %v3502
    %v3706 = vpop.f32.mrb[0].mxu0
    %v3707 = vadd.f32 %v3448, %v3706
    %v3708 = vpop.f32.mrb[0].mxu0
    %3709 = vmatprep.mubr.f32.mxu0 0.0
    %3710 = vmatmul.mubr.f32.gmra.mrb[0].mxu0 %v3505
    %v3711 = vpop.f32.mrb[0].mxu0
    %v3712 = vadd.f32 %v3448, %v3711
    %v3713 = vpop.f32.mrb[0].mxu0
    %3714 = vmatprep.mubr.f32.mxu0 0.0
    %3715 = vmatmul.mubr.f32.gmra.mrb[0].mxu0 %v3508
    %v3716 = vpop.f32.mrb[0].mxu0
    %v3717 = vadd.f32 %v3448, %v3716
    %v3718 = vpop.f32.mrb[0].mxu0
    %3719 = vmatprep.mubr.f32.mxu0 0.0
    %3720 = vmatmul.mubr.f32.gmra.mrb[0].mxu0 %v3511
    %v3721 = vpop.f32.mrb[0].mxu0
    %v3722 = vadd.f32 %v3448, %v3721
    %v3723 = vpop.f32.mrb[0].mxu0
    %3724 = vmatprep.mubr.f32.mxu0 0.0
    %3725 = vmatmul.mubr.f32.gmra.mrb[0].mxu0 %v3514
    %v3726 = vpop.f32.mrb[0].mxu0
    %v3727 = vadd.f32 %v3448, %v3726
    %v3728 = vpop.f32.mrb[0].mxu0
    %3729 = vmatprep.mubr.f32.mxu0 0.0
    %3730 = vmatmul.mubr.f32.gmra.mrb[0].mxu0 %v3517
    %v3731 = vpop.f32.mrb[0].mxu0
    %v3732 = vadd.f32 %v3448, %v3731
    %v3733 = vpop.f32.mrb[0].mxu0
    %3734 = vmatprep.mubr.f32.mxu0 0.0
    %3735 = vmatmul.mubr.f32.gmra.mrb[0].mxu0 %v3520
    %v3736 = vpop.f32.mrb[0].mxu0
    %v3737 = vadd.f32 %v3448, %v3736
    %v3738 = vpop.f32.mrb[0].mxu0
    %3739 = vmatprep.mubr.f32.mxu0 0.0
    %3740 = vmatmul.mubr.f32.gmra.mrb[0].mxu0 %v3523
    %v3741 = vpop.f32.mrb[0].mxu0
    %v3742 = vadd.f32 %v3448, %v3741
    %v3743 = vpop.f32.mrb[0].mxu0
    %3744 = vmatprep.mubr.f32.mxu0 0.0
    %3745 = vmatmul.mubr.f32.gmra.mrb[0].mxu0 %v3526
    %v3746 = vpop.f32.mrb[0].mxu0
    %v3747 = vadd.f32 %v3448, %v3746
    %v3748 = vpop.f32.mrb[0].mxu0
    %3749 = vmatprep.mubr.f32.mxu0 0.0
    %3750 = vmatmul.mubr.f32.gmra.mrb[0].mxu0 %v3529
    %v3751 = vpop.f32.mrb[0].mxu0
    %v3752 = vadd.f32 %v3448, %v3751
    %v3753 = vpop.f32.mrb[0].mxu0
    %3754 = vmatprep.mubr.f32.mxu0 0.0
    %3755 = vmatmul.mubr.f32.gmra.mrb[0].mxu0 %v3532
    %v3756 = vpop.f32.mrb[0].mxu0
    %v3757 = vadd.f32 %v3448, %v3756
    %v3758 = vpop.f32.mrb[0].mxu0
    %3759 = vmatprep.mubr.f32.mxu0 0.0
    %3760 = vmatmul.mubr.f32.gmra.mrb[0].mxu0 %v3535
    %v3761 = vpop.f32.mrb[0].mxu0
    %v3762 = vadd.f32 %v3448, %v3761
    %v3763 = vpop.f32.mrb[0].mxu0
    %3764 = vmatprep.mubr.f32.mxu0 0.0
    %3765 = vmatmul.mubr.f32.gmra.mrb[0].mxu0 %v3538
    %v3766 = vpop.f32.mrb[0].mxu0
    %v3767 = vadd.f32 %v3448, %v3766
    %v3768 = vpop.f32.mrb[0].mxu0
    %3769 = vmatprep.mubr.f32.mxu0 0.0
    %3770 = vmatmul.mubr.f32.gmra.mrb[0].mxu0 %v3541
    %v3771 = vpop.f32.mrb[0].mxu0
    %v3772 = vadd.f32 %v3448, %v3771
    %v3773 = vpop.f32.mrb[0].mxu0
    %3774 = vmatprep.mubr.f32.mxu0 0.0
    %3775 = vmatmul.mubr.f32.gmra.mrb[0].mxu0 %v3544
    %v3776 = vpop.f32.mrb[0].mxu0
    %v3777 = vadd.f32 %v3448, %v3776
    %v3778 = vpop.f32.mrb[0].mxu0
    %3779 = vmatprep.mubr.f32.mxu0 0.0
    %3780 = vmatmul.mubr.f32.gmra.mrb[0].mxu0 %v3547
    %v3781 = vpop.f32.mrb[0].mxu0
    %v3782 = vadd.f32 %v3448, %v3781
    %v3783 = vpop.f32.mrb[0].mxu0
    %3784 = vmatprep.mubr.f32.mxu0 0.0
    %3785 = vmatmul.mubr.f32.gmra.mrb[0].mxu0 %v3550
    %v3786 = vpop.f32.mrb[0].mxu0
    %v3787 = vadd.f32 %v3448, %v3786
    %v3788 = vpop.f32.mrb[0].mxu0
    %3789 = vmatprep.mubr.f32.mxu0 0.0
    %3790 = vmatmul.mubr.f32.gmra.mrb[0].mxu0 %v3553
    %v3791 = vpop.f32.mrb[0].mxu0
    %v3792 = vadd.f32 %v3448, %v3791
    %v3793 = vpop.f32.mrb[0].mxu0
    %3794 = vdwg.mxu0
    %3795 = vst.msk [vmem:[#allocation2] sm:$0xff] %vm76, %v3622
    %3796 = vst.msk [vmem:[#allocation2 + $0x8] sm:$0xff] %vm76, %v3627
    %3797 = vst.msk [vmem:[#allocation2 + $0x10] sm:$0xff] %vm76, %v3632
    %3798 = vst.msk [vmem:[#allocation2 + $0x18] sm:$0xff] %vm76, %v3637
    %3799 = vst.msk [vmem:[#allocation2 + $0x20] sm:$0xff] %vm76, %v3642
    %3800 = vst.msk [vmem:[#allocation2 + $0x28] sm:$0xff] %vm76, %v3647
    %3801 = vst.msk [vmem:[#allocation2 + $0x30] sm:$0xff] %vm76, %v3652
    %3802 = vst.msk [vmem:[#allocation2 + $0x38] sm:$0xff] %vm76, %v3657
    %3803 = vst.msk [vmem:[#allocation2 + $0x40] sm:$0xff] %vm76, %v3662
    %3804 = vst.msk [vmem:[#allocation2 + $0x48] sm:$0xff] %vm76, %v3667
    %3805 = vst.msk [vmem:[#allocation2 + $0x50] sm:$0xff] %vm76, %v3672
    %3806 = vst.msk [vmem:[#allocation2 + $0x58] sm:$0xff] %vm76, %v3677
    %3807 = vst.msk [vmem:[#allocation2 + $0x60] sm:$0xff] %vm76, %v3682
    %3808 = vst.msk [vmem:[#allocation2 + $0x68] sm:$0xff] %vm76, %v3687
    %3809 = vst.msk [vmem:[#allocation2 + $0x70] sm:$0xff] %vm76, %v3692
    %3810 = vst.msk [vmem:[#allocation2 + $0x78] sm:$0xff] %vm76, %v3697
    %3811 = vst.msk [vmem:[#allocation2 + $0x80] sm:$0xff] %vm76, %v3702
    %3812 = vst.msk [vmem:[#allocation2 + $0x88] sm:$0xff] %vm76, %v3707
    %3813 = vst.msk [vmem:[#allocation2 + $0x90] sm:$0xff] %vm76, %v3712
    %3814 = vst.msk [vmem:[#allocation2 + $0x98] sm:$0xff] %vm76, %v3717
    %3815 = vst.msk [vmem:[#allocation2 + $0xa0] sm:$0xff] %vm76, %v3722
    %3816 = vst.msk [vmem:[#allocation2 + $0xa8] sm:$0xff] %vm76, %v3727
    %3817 = vst.msk [vmem:[#allocation2 + $0xb0] sm:$0xff] %vm76, %v3732
    %3818 = vst.msk [vmem:[#allocation2 + $0xb8] sm:$0xff] %vm76, %v3737
    %3819 = vst.msk [vmem:[#allocation2 + $0xc0] sm:$0xff] %vm76, %v3742
    %3820 = vst.msk [vmem:[#allocation2 + $0xc8] sm:$0xff] %vm76, %v3747
    %3821 = vst.msk [vmem:[#allocation2 + $0xd0] sm:$0xff] %vm76, %v3752
    %3822 = vst.msk [vmem:[#allocation2 + $0xd8] sm:$0xff] %vm76, %v3757
    %3823 = vst.msk [vmem:[#allocation2 + $0xe0] sm:$0xff] %vm76, %v3762
    %3824 = vst.msk [vmem:[#allocation2 + $0xe8] sm:$0xff] %vm76, %v3767
    %3825 = vst.msk [vmem:[#allocation2 + $0xf0] sm:$0xff] %vm76, %v3772
    %3826 = vst.msk [vmem:[#allocation2 + $0xf8] sm:$0xff] %vm76, %v3777
    %3827 = vst.msk [vmem:[#allocation2 + $0x100] sm:$0xff] %vm76, %v3782
    %3828 = vst.msk [vmem:[#allocation2 + $0x108] sm:$0xff] %vm76, %v3787
    %3829 = vst.msk [vmem:[#allocation2 + $0x110] sm:$0xff] %vm76, %v3792
    %v3830 = vld [vmem:[#allocation2] sm:$0xff]
    %3831 = vmatprep.subr.mxu0 0.0
    %3832 = vmatpush1.msra.mxu0 %v3403
    %3833 = vmatprep.subr.mxu0 0.0
    %3834 = vmatpush1.msra.mxu0 %v3404
    %3835 = vmatprep.subr.mxu0 0.0
    %3836 = vmatpush1.msra.mxu0 %v3405
    %3837 = vmatprep.subr.mxu0 0.0
    %3838 = vmatpush1.msra.mxu0 %v3406
    %3839 = vmatprep.subr.mxu0 0.0
    %3840 = vmatpush1.msra.mxu0 0.0
    %3841 = vmatprep.subr.mxu0 0.0
    %3842 = vmatpush1.msra.mxu0 0.0
    %3843 = vmatprep.subr.mxu0 0.0
    %3844 = vmatpush1.msra.mxu0 0.0
    %3845 = vmatprep.subr.mxu0 0.0
    %3846 = vmatpush1.msra.mxu0 0.0
    %3847 = vmatprep.subr.mxu0 0.0
    %3848 = vmatpush1.msra.mxu0 0.0
    %3849 = vmatprep.subr.mxu0 0.0
    %3850 = vmatpush1.msra.mxu0 0.0
    %3851 = vmatprep.subr.mxu0 0.0
    %3852 = vmatpush1.msra.mxu0 0.0
    %3853 = vmatprep.subr.mxu0 0.0
    %3854 = vmatpush1.msra.mxu0 0.0
    %3855 = vmatprep.subr.mxu0 0.0
    %3856 = vmatpush1.msra.mxu0 0.0
    %3857 = vmatprep.subr.mxu0 0.0
    %3858 = vmatpush1.msra.mxu0 0.0
    %3859 = vmatprep.subr.mxu0 0.0
    %3860 = vmatpush1.msra.mxu0 0.0
    %3861 = vmatprep.subr.mxu0 0.0
    %3862 = vmatpush1.msra.mxu0 0.0
    %3863 = vmatprep.subr.mxu0 0.0
    %3864 = vmatpush1.msra.mxu0 0.0
    %3865 = vmatprep.subr.mxu0 0.0
    %3866 = vmatpush1.msra.mxu0 0.0
    %3867 = vmatprep.subr.mxu0 0.0
    %3868 = vmatpush1.msra.mxu0 0.0
    %3869 = vmatprep.subr.mxu0 0.0
    %3870 = vmatpush1.msra.mxu0 0.0
    %3871 = vmatprep.subr.mxu0 0.0
    %3872 = vmatpush1.msra.mxu0 0.0
    %3873 = vmatprep.subr.mxu0 0.0
    %3874 = vmatpush1.msra.mxu0 0.0
    %3875 = vmatprep.subr.mxu0 0.0
    %3876 = vmatpush1.msra.mxu0 0.0
    %3877 = vmatprep.subr.mxu0 0.0
    %3878 = vmatpush1.msra.mxu0 0.0
    %3879 = vmatprep.subr.mxu0 0.0
    %3880 = vmatpush1.msra.mxu0 0.0
    %3881 = vmatprep.subr.mxu0 0.0
    %3882 = vmatpush1.msra.mxu0 0.0
    %3883 = vmatprep.subr.mxu0 0.0
    %3884 = vmatpush1.msra.mxu0 0.0
    %3885 = vmatprep.subr.mxu0 0.0
    %3886 = vmatpush1.msra.mxu0 0.0
    %3887 = vmatprep.subr.mxu0 0.0
    %3888 = vmatpush1.msra.mxu0 0.0
    %3889 = vmatprep.subr.mxu0 0.0
    %3890 = vmatpush1.msra.mxu0 0.0
    %3891 = vmatprep.subr.mxu0 0.0
    %3892 = vmatpush1.msra.mxu0 0.0
    %3893 = vmatprep.subr.mxu0 0.0
    %3894 = vmatpush1.msra.mxu0 0.0
    %3895 = vmatprep.mubr.f32.mxu0 0.0
    %3896 = vmatmul.mubr.f32.gmra.mrb[0].mxu0 %v459
    %v3897 = vpop.f32.mrb[0].mxu0
    %v3898 = vadd.f32 0.0, %v3897
    %v3899 = vpop.f32.mrb[0].mxu0
    %3900 = vdwg.mxu0
    %v3901 = vadd.f32 %v3830, %v3898
    %v3902 = vtanh.pop %v3901
    %v3903 = vsel %vm538, %v3902, 0.0
    %v3904 = vld [vmem:[#allocation2 + $0x8] sm:$0xff]
    %v3906 = vsel %vm76, %v3903, 0
    %3908 = vmatprep.subr.mxu0 0.0
    %3909 = vmatpush1.msra.mxu0 %v3403
    %3910 = vmatprep.subr.mxu0 0.0
    %3911 = vmatpush1.msra.mxu0 %v3404
    %3912 = vmatprep.subr.mxu0 0.0
    %3913 = vmatpush1.msra.mxu0 %v3405
    %3914 = vmatprep.subr.mxu0 0.0
    %3915 = vmatpush1.msra.mxu0 %v3406
    %3916 = vmatprep.subr.mxu0 0.0
    %3917 = vmatpush1.msra.mxu0 0.0
    %3918 = vmatprep.subr.mxu0 0.0
    %3919 = vmatpush1.msra.mxu0 0.0
    %3920 = vmatprep.subr.mxu0 0.0
    %3921 = vmatpush1.msra.mxu0 0.0
    %3922 = vmatprep.subr.mxu0 0.0
    %3923 = vmatpush1.msra.mxu0 0.0
    %3924 = vmatprep.subr.mxu0 0.0
    %3925 = vmatpush1.msra.mxu0 0.0
    %3926 = vmatprep.subr.mxu0 0.0
    %3927 = vmatpush1.msra.mxu0 0.0
    %3928 = vmatprep.subr.mxu0 0.0
    %3929 = vmatpush1.msra.mxu0 0.0
    %3930 = vmatprep.subr.mxu0 0.0
    %3931 = vmatpush1.msra.mxu0 0.0
    %3932 = vmatprep.subr.mxu0 0.0
    %3933 = vmatpush1.msra.mxu0 0.0
    %3934 = vmatprep.subr.mxu0 0.0
    %3935 = vmatpush1.msra.mxu0 0.0
    %3936 = vmatprep.subr.mxu0 0.0
    %3937 = vmatpush1.msra.mxu0 0.0
    %3938 = vmatprep.subr.mxu0 0.0
    %3939 = vmatpush1.msra.mxu0 0.0
    %3940 = vmatprep.subr.mxu0 0.0
    %3941 = vmatpush1.msra.mxu0 0.0
    %3942 = vmatprep.subr.mxu0 0.0
    %3943 = vmatpush1.msra.mxu0 0.0
    %3944 = vmatprep.subr.mxu0 0.0
    %3945 = vmatpush1.msra.mxu0 0.0
    %3946 = vmatprep.subr.mxu0 0.0
    %3947 = vmatpush1.msra.mxu0 0.0
    %3948 = vmatprep.subr.mxu0 0.0
    %3949 = vmatpush1.msra.mxu0 0.0
    %3950 = vmatprep.subr.mxu0 0.0
    %3951 = vmatpush1.msra.mxu0 0.0
    %3952 = vmatprep.subr.mxu0 0.0
    %3953 = vmatpush1.msra.mxu0 0.0
    %3954 = vmatprep.subr.mxu0 0.0
    %3955 = vmatpush1.msra.mxu0 0.0
    %3956 = vmatprep.subr.mxu0 0.0
    %3957 = vmatpush1.msra.mxu0 0.0
    %3958 = vmatprep.subr.mxu0 0.0
    %3959 = vmatpush1.msra.mxu0 0.0
    %3960 = vmatprep.subr.mxu0 0.0
    %3961 = vmatpush1.msra.mxu0 0.0
    %3962 = vmatprep.subr.mxu0 0.0
    %3963 = vmatpush1.msra.mxu0 0.0
    %3964 = vmatprep.subr.mxu0 0.0
    %3965 = vmatpush1.msra.mxu0 0.0
    %3966 = vmatprep.subr.mxu0 0.0
    %3967 = vmatpush1.msra.mxu0 0.0
    %3968 = vmatprep.subr.mxu0 0.0
    %3969 = vmatpush1.msra.mxu0 0.0
    %3970 = vmatprep.subr.mxu0 0.0
    %3971 = vmatpush1.msra.mxu0 0.0
    %3972 = vmatprep.mubr.f32.mxu0 0.0
    %3973 = vmatmul.mubr.f32.gmra.mrb[0].mxu0 %v3906
    %v3974 = vpop.f32.mrb[0].mxu0
    %v3975 = vadd.f32 0.0, %v3974
    %v3976 = vpop.f32.mrb[0].mxu0
    %3977 = vdwg.mxu0
    %v3978 = vadd.f32 %v3904, %v3975
    %v3979 = vtanh.pop %v3978
    %v3980 = vsel %vm622, %v3979, %v3903
    %v3981 = vld [vmem:[#allocation2 + $0x10] sm:$0xff]
    %v3983 = vsel %vm76, %v3980, 0
    %3985 = vmatprep.subr.mxu0 0.0
    %3986 = vmatpush1.msra.mxu0 %v3403
    %3987 = vmatprep.subr.mxu0 0.0
    %3988 = vmatpush1.msra.mxu0 %v3404
    %3989 = vmatprep.subr.mxu0 0.0
    %3990 = vmatpush1.msra.mxu0 %v3405
    %3991 = vmatprep.subr.mxu0 0.0
    %3992 = vmatpush1.msra.mxu0 %v3406
    %3993 = vmatprep.subr.mxu0 0.0
    %3994 = vmatpush1.msra.mxu0 0.0
    %3995 = vmatprep.subr.mxu0 0.0
    %3996 = vmatpush1.msra.mxu0 0.0
    %3997 = vmatprep.subr.mxu0 0.0
    %3998 = vmatpush1.msra.mxu0 0.0
    %3999 = vmatprep.subr.mxu0 0.0
    %4000 = vmatpush1.msra.mxu0 0.0
    %4001 = vmatprep.subr.mxu0 0.0
    %4002 = vmatpush1.msra.mxu0 0.0
    %4003 = vmatprep.subr.mxu0 0.0
    %4004 = vmatpush1.msra.mxu0 0.0
    %4005 = vmatprep.subr.mxu0 0.0
    %4006 = vmatpush1.msra.mxu0 0.0
    %4007 = vmatprep.subr.mxu0 0.0
    %4008 = vmatpush1.msra.mxu0 0.0
    %4009 = vmatprep.subr.mxu0 0.0
    %4010 = vmatpush1.msra.mxu0 0.0
    %4011 = vmatprep.subr.mxu0 0.0
    %4012 = vmatpush1.msra.mxu0 0.0
    %4013 = vmatprep.subr.mxu0 0.0
    %4014 = vmatpush1.msra.mxu0 0.0
    %4015 = vmatprep.subr.mxu0 0.0
    %4016 = vmatpush1.msra.mxu0 0.0
    %4017 = vmatprep.subr.mxu0 0.0
    %4018 = vmatpush1.msra.mxu0 0.0
    %4019 = vmatprep.subr.mxu0 0.0
    %4020 = vmatpush1.msra.mxu0 0.0
    %4021 = vmatprep.subr.mxu0 0.0
    %4022 = vmatpush1.msra.mxu0 0.0
    %4023 = vmatprep.subr.mxu0 0.0
    %4024 = vmatpush1.msra.mxu0 0.0
    %4025 = vmatprep.subr.mxu0 0.0
    %4026 = vmatpush1.msra.mxu0 0.0
    %4027 = vmatprep.subr.mxu0 0.0
    %4028 = vmatpush1.msra.mxu0 0.0
    %4029 = vmatprep.subr.mxu0 0.0
    %4030 = vmatpush1.msra.mxu0 0.0
    %4031 = vmatprep.subr.mxu0 0.0
    %4032 = vmatpush1.msra.mxu0 0.0
    %4033 = vmatprep.subr.mxu0 0.0
    %4034 = vmatpush1.msra.mxu0 0.0
    %4035 = vmatprep.subr.mxu0 0.0
    %4036 = vmatpush1.msra.mxu0 0.0
    %4037 = vmatprep.subr.mxu0 0.0
    %4038 = vmatpush1.msra.mxu0 0.0
    %4039 = vmatprep.subr.mxu0 0.0
    %4040 = vmatpush1.msra.mxu0 0.0
    %4041 = vmatprep.subr.mxu0 0.0
    %4042 = vmatpush1.msra.mxu0 0.0
    %4043 = vmatprep.subr.mxu0 0.0
    %4044 = vmatpush1.msra.mxu0 0.0
    %4045 = vmatprep.subr.mxu0 0.0
    %4046 = vmatpush1.msra.mxu0 0.0
    %4047 = vmatprep.subr.mxu0 0.0
    %4048 = vmatpush1.msra.mxu0 0.0
    %4049 = vmatprep.mubr.f32.mxu0 0.0
    %4050 = vmatmul.mubr.f32.gmra.mrb[0].mxu0 %v3983
    %v4051 = vpop.f32.mrb[0].mxu0
    %v4052 = vadd.f32 0.0, %v4051
    %v4053 = vpop.f32.mrb[0].mxu0
    %4054 = vdwg.mxu0
    %v4055 = vadd.f32 %v3981, %v4052
    %v4056 = vtanh.pop %v4055
    %v4057 = vsel %vm706, %v4056, %v3980
    %v4058 = vld [vmem:[#allocation2 + $0x18] sm:$0xff]
    %v4060 = vsel %vm76, %v4057, 0
    %4062 = vmatprep.subr.mxu0 0.0
    %4063 = vmatpush1.msra.mxu0 %v3403
    %4064 = vmatprep.subr.mxu0 0.0
    %4065 = vmatpush1.msra.mxu0 %v3404
    %4066 = vmatprep.subr.mxu0 0.0
    %4067 = vmatpush1.msra.mxu0 %v3405
    %4068 = vmatprep.subr.mxu0 0.0
    %4069 = vmatpush1.msra.mxu0 %v3406
    %4070 = vmatprep.subr.mxu0 0.0
    %4071 = vmatpush1.msra.mxu0 0.0
    %4072 = vmatprep.subr.mxu0 0.0
    %4073 = vmatpush1.msra.mxu0 0.0
    %4074 = vmatprep.subr.mxu0 0.0
    %4075 = vmatpush1.msra.mxu0 0.0
    %4076 = vmatprep.subr.mxu0 0.0
    %4077 = vmatpush1.msra.mxu0 0.0
    %4078 = vmatprep.subr.mxu0 0.0
    %4079 = vmatpush1.msra.mxu0 0.0
    %4080 = vmatprep.subr.mxu0 0.0
    %4081 = vmatpush1.msra.mxu0 0.0
    %4082 = vmatprep.subr.mxu0 0.0
    %4083 = vmatpush1.msra.mxu0 0.0
    %4084 = vmatprep.subr.mxu0 0.0
    %4085 = vmatpush1.msra.mxu0 0.0
    %4086 = vmatprep.subr.mxu0 0.0
    %4087 = vmatpush1.msra.mxu0 0.0
    %4088 = vmatprep.subr.mxu0 0.0
    %4089 = vmatpush1.msra.mxu0 0.0
    %4090 = vmatprep.subr.mxu0 0.0
    %4091 = vmatpush1.msra.mxu0 0.0
    %4092 = vmatprep.subr.mxu0 0.0
    %4093 = vmatpush1.msra.mxu0 0.0
    %4094 = vmatprep.subr.mxu0 0.0
    %4095 = vmatpush1.msra.mxu0 0.0
    %4096 = vmatprep.subr.mxu0 0.0
    %4097 = vmatpush1.msra.mxu0 0.0
    %4098 = vmatprep.subr.mxu0 0.0
    %4099 = vmatpush1.msra.mxu0 0.0
    %4100 = vmatprep.subr.mxu0 0.0
    %4101 = vmatpush1.msra.mxu0 0.0
    %4102 = vmatprep.subr.mxu0 0.0
    %4103 = vmatpush1.msra.mxu0 0.0
    %4104 = vmatprep.subr.mxu0 0.0
    %4105 = vmatpush1.msra.mxu0 0.0
    %4106 = vmatprep.subr.mxu0 0.0
    %4107 = vmatpush1.msra.mxu0 0.0
    %4108 = vmatprep.subr.mxu0 0.0
    %4109 = vmatpush1.msra.mxu0 0.0
    %4110 = vmatprep.subr.mxu0 0.0
    %4111 = vmatpush1.msra.mxu0 0.0
    %4112 = vmatprep.subr.mxu0 0.0
    %4113 = vmatpush1.msra.mxu0 0.0
    %4114 = vmatprep.subr.mxu0 0.0
    %4115 = vmatpush1.msra.mxu0 0.0
    %4116 = vmatprep.subr.mxu0 0.0
    %4117 = vmatpush1.msra.mxu0 0.0
    %4118 = vmatprep.subr.mxu0 0.0
    %4119 = vmatpush1.msra.mxu0 0.0
    %4120 = vmatprep.subr.mxu0 0.0
    %4121 = vmatpush1.msra.mxu0 0.0
    %4122 = vmatprep.subr.mxu0 0.0
    %4123 = vmatpush1.msra.mxu0 0.0
    %4124 = vmatprep.subr.mxu0 0.0
    %4125 = vmatpush1.msra.mxu0 0.0
    %4126 = vmatprep.mubr.f32.mxu0 0.0
    %4127 = vmatmul.mubr.f32.gmra.mrb[0].mxu0 %v4060
    %v4128 = vpop.f32.mrb[0].mxu0
    %v4129 = vadd.f32 0.0, %v4128
    %v4130 = vpop.f32.mrb[0].mxu0
    %4131 = vdwg.mxu0
    %v4132 = vadd.f32 %v4058, %v4129
    %v4133 = vtanh.pop %v4132
    %v4134 = vsel %vm790, %v4133, %v4057
    %v4135 = vld [vmem:[#allocation2 + $0x20] sm:$0xff]
    %v4137 = vsel %vm76, %v4134, 0
    %4139 = vmatprep.subr.mxu0 0.0
    %4140 = vmatpush1.msra.mxu0 %v3403
    %4141 = vmatprep.subr.mxu0 0.0
    %4142 = vmatpush1.msra.mxu0 %v3404
    %4143 = vmatprep.subr.mxu0 0.0
    %4144 = vmatpush1.msra.mxu0 %v3405
    %4145 = vmatprep.subr.mxu0 0.0
    %4146 = vmatpush1.msra.mxu0 %v3406
    %4147 = vmatprep.subr.mxu0 0.0
    %4148 = vmatpush1.msra.mxu0 0.0
    %4149 = vmatprep.subr.mxu0 0.0
    %4150 = vmatpush1.msra.mxu0 0.0
    %4151 = vmatprep.subr.mxu0 0.0
    %4152 = vmatpush1.msra.mxu0 0.0
    %4153 = vmatprep.subr.mxu0 0.0
    %4154 = vmatpush1.msra.mxu0 0.0
    %4155 = vmatprep.subr.mxu0 0.0
    %4156 = vmatpush1.msra.mxu0 0.0
    %4157 = vmatprep.subr.mxu0 0.0
    %4158 = vmatpush1.msra.mxu0 0.0
    %4159 = vmatprep.subr.mxu0 0.0
    %4160 = vmatpush1.msra.mxu0 0.0
    %4161 = vmatprep.subr.mxu0 0.0
    %4162 = vmatpush1.msra.mxu0 0.0
    %4163 = vmatprep.subr.mxu0 0.0
    %4164 = vmatpush1.msra.mxu0 0.0
    %4165 = vmatprep.subr.mxu0 0.0
    %4166 = vmatpush1.msra.mxu0 0.0
    %4167 = vmatprep.subr.mxu0 0.0
    %4168 = vmatpush1.msra.mxu0 0.0
    %4169 = vmatprep.subr.mxu0 0.0
    %4170 = vmatpush1.msra.mxu0 0.0
    %4171 = vmatprep.subr.mxu0 0.0
    %4172 = vmatpush1.msra.mxu0 0.0
    %4173 = vmatprep.subr.mxu0 0.0
    %4174 = vmatpush1.msra.mxu0 0.0
    %4175 = vmatprep.subr.mxu0 0.0
    %4176 = vmatpush1.msra.mxu0 0.0
    %4177 = vmatprep.subr.mxu0 0.0
    %4178 = vmatpush1.msra.mxu0 0.0
    %4179 = vmatprep.subr.mxu0 0.0
    %4180 = vmatpush1.msra.mxu0 0.0
    %4181 = vmatprep.subr.mxu0 0.0
    %4182 = vmatpush1.msra.mxu0 0.0
    %4183 = vmatprep.subr.mxu0 0.0
    %4184 = vmatpush1.msra.mxu0 0.0
    %4185 = vmatprep.subr.mxu0 0.0
    %4186 = vmatpush1.msra.mxu0 0.0
    %4187 = vmatprep.subr.mxu0 0.0
    %4188 = vmatpush1.msra.mxu0 0.0
    %4189 = vmatprep.subr.mxu0 0.0
    %4190 = vmatpush1.msra.mxu0 0.0
    %4191 = vmatprep.subr.mxu0 0.0
    %4192 = vmatpush1.msra.mxu0 0.0
    %4193 = vmatprep.subr.mxu0 0.0
    %4194 = vmatpush1.msra.mxu0 0.0
    %4195 = vmatprep.subr.mxu0 0.0
    %4196 = vmatpush1.msra.mxu0 0.0
    %4197 = vmatprep.subr.mxu0 0.0
    %4198 = vmatpush1.msra.mxu0 0.0
    %4199 = vmatprep.subr.mxu0 0.0
    %4200 = vmatpush1.msra.mxu0 0.0
    %4201 = vmatprep.subr.mxu0 0.0
    %4202 = vmatpush1.msra.mxu0 0.0
    %4203 = vmatprep.mubr.f32.mxu0 0.0
    %4204 = vmatmul.mubr.f32.gmra.mrb[0].mxu0 %v4137
    %v4205 = vpop.f32.mrb[0].mxu0
    %v4206 = vadd.f32 0.0, %v4205
    %v4207 = vpop.f32.mrb[0].mxu0
    %4208 = vdwg.mxu0
    %v4209 = vadd.f32 %v4135, %v4206
    %v4210 = vtanh.pop %v4209
    %v4211 = vsel %vm874, %v4210, %v4134
    %v4212 = vld [vmem:[#allocation2 + $0x28] sm:$0xff]
    %v4214 = vsel %vm76, %v4211, 0
    %4216 = vmatprep.subr.mxu0 0.0
    %4217 = vmatpush1.msra.mxu0 %v3403
    %4218 = vmatprep.subr.mxu0 0.0
    %4219 = vmatpush1.msra.mxu0 %v3404
    %4220 = vmatprep.subr.mxu0 0.0
    %4221 = vmatpush1.msra.mxu0 %v3405
    %4222 = vmatprep.subr.mxu0 0.0
    %4223 = vmatpush1.msra.mxu0 %v3406
    %4224 = vmatprep.subr.mxu0 0.0
    %4225 = vmatpush1.msra.mxu0 0.0
    %4226 = vmatprep.subr.mxu0 0.0
    %4227 = vmatpush1.msra.mxu0 0.0
    %4228 = vmatprep.subr.mxu0 0.0
    %4229 = vmatpush1.msra.mxu0 0.0
    %4230 = vmatprep.subr.mxu0 0.0
    %4231 = vmatpush1.msra.mxu0 0.0
    %4232 = vmatprep.subr.mxu0 0.0
    %4233 = vmatpush1.msra.mxu0 0.0
    %4234 = vmatprep.subr.mxu0 0.0
    %4235 = vmatpush1.msra.mxu0 0.0
    %4236 = vmatprep.subr.mxu0 0.0
    %4237 = vmatpush1.msra.mxu0 0.0
    %4238 = vmatprep.subr.mxu0 0.0
    %4239 = vmatpush1.msra.mxu0 0.0
    %4240 = vmatprep.subr.mxu0 0.0
    %4241 = vmatpush1.msra.mxu0 0.0
    %4242 = vmatprep.subr.mxu0 0.0
    %4243 = vmatpush1.msra.mxu0 0.0
    %4244 = vmatprep.subr.mxu0 0.0
    %4245 = vmatpush1.msra.mxu0 0.0
    %4246 = vmatprep.subr.mxu0 0.0
    %4247 = vmatpush1.msra.mxu0 0.0
    %4248 = vmatprep.subr.mxu0 0.0
    %4249 = vmatpush1.msra.mxu0 0.0
    %4250 = vmatprep.subr.mxu0 0.0
    %4251 = vmatpush1.msra.mxu0 0.0
    %4252 = vmatprep.subr.mxu0 0.0
    %4253 = vmatpush1.msra.mxu0 0.0
    %4254 = vmatprep.subr.mxu0 0.0
    %4255 = vmatpush1.msra.mxu0 0.0
    %4256 = vmatprep.subr.mxu0 0.0
    %4257 = vmatpush1.msra.mxu0 0.0
    %4258 = vmatprep.subr.mxu0 0.0
    %4259 = vmatpush1.msra.mxu0 0.0
    %4260 = vmatprep.subr.mxu0 0.0
    %4261 = vmatpush1.msra.mxu0 0.0
    %4262 = vmatprep.subr.mxu0 0.0
    %4263 = vmatpush1.msra.mxu0 0.0
    %4264 = vmatprep.subr.mxu0 0.0
    %4265 = vmatpush1.msra.mxu0 0.0
    %4266 = vmatprep.subr.mxu0 0.0
    %4267 = vmatpush1.msra.mxu0 0.0
    %4268 = vmatprep.subr.mxu0 0.0
    %4269 = vmatpush1.msra.mxu0 0.0
    %4270 = vmatprep.subr.mxu0 0.0
    %4271 = vmatpush1.msra.mxu0 0.0
    %4272 = vmatprep.subr.mxu0 0.0
    %4273 = vmatpush1.msra.mxu0 0.0
    %4274 = vmatprep.subr.mxu0 0.0
    %4275 = vmatpush1.msra.mxu0 0.0
    %4276 = vmatprep.subr.mxu0 0.0
    %4277 = vmatpush1.msra.mxu0 0.0
    %4278 = vmatprep.subr.mxu0 0.0
    %4279 = vmatpush1.msra.mxu0 0.0
    %4280 = vmatprep.mubr.f32.mxu0 0.0
    %4281 = vmatmul.mubr.f32.gmra.mrb[0].mxu0 %v4214
    %v4282 = vpop.f32.mrb[0].mxu0
    %v4283 = vadd.f32 0.0, %v4282
    %v4284 = vpop.f32.mrb[0].mxu0
    %4285 = vdwg.mxu0
    %v4286 = vadd.f32 %v4212, %v4283
    %v4287 = vtanh.pop %v4286
    %v4288 = vsel %vm958, %v4287, %v4211
    %v4289 = vld [vmem:[#allocation2 + $0x30] sm:$0xff]
    %v4291 = vsel %vm76, %v4288, 0
    %4293 = vmatprep.subr.mxu0 0.0
    %4294 = vmatpush1.msra.mxu0 %v3403
    %4295 = vmatprep.subr.mxu0 0.0
    %4296 = vmatpush1.msra.mxu0 %v3404
    %4297 = vmatprep.subr.mxu0 0.0
    %4298 = vmatpush1.msra.mxu0 %v3405
    %4299 = vmatprep.subr.mxu0 0.0
    %4300 = vmatpush1.msra.mxu0 %v3406
    %4301 = vmatprep.subr.mxu0 0.0
    %4302 = vmatpush1.msra.mxu0 0.0
    %4303 = vmatprep.subr.mxu0 0.0
    %4304 = vmatpush1.msra.mxu0 0.0
    %4305 = vmatprep.subr.mxu0 0.0
    %4306 = vmatpush1.msra.mxu0 0.0
    %4307 = vmatprep.subr.mxu0 0.0
    %4308 = vmatpush1.msra.mxu0 0.0
    %4309 = vmatprep.subr.mxu0 0.0
    %4310 = vmatpush1.msra.mxu0 0.0
    %4311 = vmatprep.subr.mxu0 0.0
    %4312 = vmatpush1.msra.mxu0 0.0
    %4313 = vmatprep.subr.mxu0 0.0
    %4314 = vmatpush1.msra.mxu0 0.0
    %4315 = vmatprep.subr.mxu0 0.0
    %4316 = vmatpush1.msra.mxu0 0.0
    %4317 = vmatprep.subr.mxu0 0.0
    %4318 = vmatpush1.msra.mxu0 0.0
    %4319 = vmatprep.subr.mxu0 0.0
    %4320 = vmatpush1.msra.mxu0 0.0
    %4321 = vmatprep.subr.mxu0 0.0
    %4322 = vmatpush1.msra.mxu0 0.0
    %4323 = vmatprep.subr.mxu0 0.0
    %4324 = vmatpush1.msra.mxu0 0.0
    %4325 = vmatprep.subr.mxu0 0.0
    %4326 = vmatpush1.msra.mxu0 0.0
    %4327 = vmatprep.subr.mxu0 0.0
    %4328 = vmatpush1.msra.mxu0 0.0
    %4329 = vmatprep.subr.mxu0 0.0
    %4330 = vmatpush1.msra.mxu0 0.0
    %4331 = vmatprep.subr.mxu0 0.0
    %4332 = vmatpush1.msra.mxu0 0.0
    %4333 = vmatprep.subr.mxu0 0.0
    %4334 = vmatpush1.msra.mxu0 0.0
    %4335 = vmatprep.subr.mxu0 0.0
    %4336 = vmatpush1.msra.mxu0 0.0
    %4337 = vmatprep.subr.mxu0 0.0
    %4338 = vmatpush1.msra.mxu0 0.0
    %4339 = vmatprep.subr.mxu0 0.0
    %4340 = vmatpush1.msra.mxu0 0.0
    %4341 = vmatprep.subr.mxu0 0.0
    %4342 = vmatpush1.msra.mxu0 0.0
    %4343 = vmatprep.subr.mxu0 0.0
    %4344 = vmatpush1.msra.mxu0 0.0
    %4345 = vmatprep.subr.mxu0 0.0
    %4346 = vmatpush1.msra.mxu0 0.0
    %4347 = vmatprep.subr.mxu0 0.0
    %4348 = vmatpush1.msra.mxu0 0.0
    %4349 = vmatprep.subr.mxu0 0.0
    %4350 = vmatpush1.msra.mxu0 0.0
    %4351 = vmatprep.subr.mxu0 0.0
    %4352 = vmatpush1.msra.mxu0 0.0
    %4353 = vmatprep.subr.mxu0 0.0
    %4354 = vmatpush1.msra.mxu0 0.0
    %4355 = vmatprep.subr.mxu0 0.0
    %4356 = vmatpush1.msra.mxu0 0.0
    %4357 = vmatprep.mubr.f32.mxu0 0.0
    %4358 = vmatmul.mubr.f32.gmra.mrb[0].mxu0 %v4291
    %v4359 = vpop.f32.mrb[0].mxu0
    %v4360 = vadd.f32 0.0, %v4359
    %v4361 = vpop.f32.mrb[0].mxu0
    %4362 = vdwg.mxu0
    %v4363 = vadd.f32 %v4289, %v4360
    %v4364 = vtanh.pop %v4363
    %v4365 = vsel %vm1042, %v4364, %v4288
    %v4366 = vld [vmem:[#allocation2 + $0x38] sm:$0xff]
    %v4368 = vsel %vm76, %v4365, 0
    %4370 = vmatprep.subr.mxu0 0.0
    %4371 = vmatpush1.msra.mxu0 %v3403
    %4372 = vmatprep.subr.mxu0 0.0
    %4373 = vmatpush1.msra.mxu0 %v3404
    %4374 = vmatprep.subr.mxu0 0.0
    %4375 = vmatpush1.msra.mxu0 %v3405
    %4376 = vmatprep.subr.mxu0 0.0
    %4377 = vmatpush1.msra.mxu0 %v3406
    %4378 = vmatprep.subr.mxu0 0.0
    %4379 = vmatpush1.msra.mxu0 0.0
    %4380 = vmatprep.subr.mxu0 0.0
    %4381 = vmatpush1.msra.mxu0 0.0
    %4382 = vmatprep.subr.mxu0 0.0
    %4383 = vmatpush1.msra.mxu0 0.0
    %4384 = vmatprep.subr.mxu0 0.0
    %4385 = vmatpush1.msra.mxu0 0.0
    %4386 = vmatprep.subr.mxu0 0.0
    %4387 = vmatpush1.msra.mxu0 0.0
    %4388 = vmatprep.subr.mxu0 0.0
    %4389 = vmatpush1.msra.mxu0 0.0
    %4390 = vmatprep.subr.mxu0 0.0
    %4391 = vmatpush1.msra.mxu0 0.0
    %4392 = vmatprep.subr.mxu0 0.0
    %4393 = vmatpush1.msra.mxu0 0.0
    %4394 = vmatprep.subr.mxu0 0.0
    %4395 = vmatpush1.msra.mxu0 0.0
    %4396 = vmatprep.subr.mxu0 0.0
    %4397 = vmatpush1.msra.mxu0 0.0
    %4398 = vmatprep.subr.mxu0 0.0
    %4399 = vmatpush1.msra.mxu0 0.0
    %4400 = vmatprep.subr.mxu0 0.0
    %4401 = vmatpush1.msra.mxu0 0.0
    %4402 = vmatprep.subr.mxu0 0.0
    %4403 = vmatpush1.msra.mxu0 0.0
    %4404 = vmatprep.subr.mxu0 0.0
    %4405 = vmatpush1.msra.mxu0 0.0
    %4406 = vmatprep.subr.mxu0 0.0
    %4407 = vmatpush1.msra.mxu0 0.0
    %4408 = vmatprep.subr.mxu0 0.0
    %4409 = vmatpush1.msra.mxu0 0.0
    %4410 = vmatprep.subr.mxu0 0.0
    %4411 = vmatpush1.msra.mxu0 0.0
    %4412 = vmatprep.subr.mxu0 0.0
    %4413 = vmatpush1.msra.mxu0 0.0
    %4414 = vmatprep.subr.mxu0 0.0
    %4415 = vmatpush1.msra.mxu0 0.0
    %4416 = vmatprep.subr.mxu0 0.0
    %4417 = vmatpush1.msra.mxu0 0.0
    %4418 = vmatprep.subr.mxu0 0.0
    %4419 = vmatpush1.msra.mxu0 0.0
    %4420 = vmatprep.subr.mxu0 0.0
    %4421 = vmatpush1.msra.mxu0 0.0
    %4422 = vmatprep.subr.mxu0 0.0
    %4423 = vmatpush1.msra.mxu0 0.0
    %4424 = vmatprep.subr.mxu0 0.0
    %4425 = vmatpush1.msra.mxu0 0.0
    %4426 = vmatprep.subr.mxu0 0.0
    %4427 = vmatpush1.msra.mxu0 0.0
    %4428 = vmatprep.subr.mxu0 0.0
    %4429 = vmatpush1.msra.mxu0 0.0
    %4430 = vmatprep.subr.mxu0 0.0
    %4431 = vmatpush1.msra.mxu0 0.0
    %4432 = vmatprep.subr.mxu0 0.0
    %4433 = vmatpush1.msra.mxu0 0.0
    %4434 = vmatprep.mubr.f32.mxu0 0.0
    %4435 = vmatmul.mubr.f32.gmra.mrb[0].mxu0 %v4368
    %v4436 = vpop.f32.mrb[0].mxu0
    %v4437 = vadd.f32 0.0, %v4436
    %v4438 = vpop.f32.mrb[0].mxu0
    %4439 = vdwg.mxu0
    %v4440 = vadd.f32 %v4366, %v4437
    %v4441 = vtanh.pop %v4440
    %v4442 = vsel %vm1126, %v4441, %v4365
    %v4443 = vld [vmem:[#allocation2 + $0x40] sm:$0xff]
    %v4445 = vsel %vm76, %v4442, 0
    %4447 = vmatprep.subr.mxu0 0.0
    %4448 = vmatpush1.msra.mxu0 %v3403
    %4449 = vmatprep.subr.mxu0 0.0
    %4450 = vmatpush1.msra.mxu0 %v3404
    %4451 = vmatprep.subr.mxu0 0.0
    %4452 = vmatpush1.msra.mxu0 %v3405
    %4453 = vmatprep.subr.mxu0 0.0
    %4454 = vmatpush1.msra.mxu0 %v3406
    %4455 = vmatprep.subr.mxu0 0.0
    %4456 = vmatpush1.msra.mxu0 0.0
    %4457 = vmatprep.subr.mxu0 0.0
    %4458 = vmatpush1.msra.mxu0 0.0
    %4459 = vmatprep.subr.mxu0 0.0
    %4460 = vmatpush1.msra.mxu0 0.0
    %4461 = vmatprep.subr.mxu0 0.0
    %4462 = vmatpush1.msra.mxu0 0.0
    %4463 = vmatprep.subr.mxu0 0.0
    %4464 = vmatpush1.msra.mxu0 0.0
    %4465 = vmatprep.subr.mxu0 0.0
    %4466 = vmatpush1.msra.mxu0 0.0
    %4467 = vmatprep.subr.mxu0 0.0
    %4468 = vmatpush1.msra.mxu0 0.0
    %4469 = vmatprep.subr.mxu0 0.0
    %4470 = vmatpush1.msra.mxu0 0.0
    %4471 = vmatprep.subr.mxu0 0.0
    %4472 = vmatpush1.msra.mxu0 0.0
    %4473 = vmatprep.subr.mxu0 0.0
    %4474 = vmatpush1.msra.mxu0 0.0
    %4475 = vmatprep.subr.mxu0 0.0
    %4476 = vmatpush1.msra.mxu0 0.0
    %4477 = vmatprep.subr.mxu0 0.0
    %4478 = vmatpush1.msra.mxu0 0.0
    %4479 = vmatprep.subr.mxu0 0.0
    %4480 = vmatpush1.msra.mxu0 0.0
    %4481 = vmatprep.subr.mxu0 0.0
    %4482 = vmatpush1.msra.mxu0 0.0
    %4483 = vmatprep.subr.mxu0 0.0
    %4484 = vmatpush1.msra.mxu0 0.0
    %4485 = vmatprep.subr.mxu0 0.0
    %4486 = vmatpush1.msra.mxu0 0.0
    %4487 = vmatprep.subr.mxu0 0.0
    %4488 = vmatpush1.msra.mxu0 0.0
    %4489 = vmatprep.subr.mxu0 0.0
    %4490 = vmatpush1.msra.mxu0 0.0
    %4491 = vmatprep.subr.mxu0 0.0
    %4492 = vmatpush1.msra.mxu0 0.0
    %4493 = vmatprep.subr.mxu0 0.0
    %4494 = vmatpush1.msra.mxu0 0.0
    %4495 = vmatprep.subr.mxu0 0.0
    %4496 = vmatpush1.msra.mxu0 0.0
    %4497 = vmatprep.subr.mxu0 0.0
    %4498 = vmatpush1.msra.mxu0 0.0
    %4499 = vmatprep.subr.mxu0 0.0
    %4500 = vmatpush1.msra.mxu0 0.0
    %4501 = vmatprep.subr.mxu0 0.0
    %4502 = vmatpush1.msra.mxu0 0.0
    %4503 = vmatprep.subr.mxu0 0.0
    %4504 = vmatpush1.msra.mxu0 0.0
    %4505 = vmatprep.subr.mxu0 0.0
    %4506 = vmatpush1.msra.mxu0 0.0
    %4507 = vmatprep.subr.mxu0 0.0
    %4508 = vmatpush1.msra.mxu0 0.0
    %4509 = vmatprep.subr.mxu0 0.0
    %4510 = vmatpush1.msra.mxu0 0.0
    %4511 = vmatprep.mubr.f32.mxu0 0.0
    %4512 = vmatmul.mubr.f32.gmra.mrb[0].mxu0 %v4445
    %v4513 = vpop.f32.mrb[0].mxu0
    %v4514 = vadd.f32 0.0, %v4513
    %v4515 = vpop.f32.mrb[0].mxu0
    %4516 = vdwg.mxu0
    %v4517 = vadd.f32 %v4443, %v4514
    %v4518 = vtanh.pop %v4517
    %v4519 = vsel %vm1210, %v4518, %v4442
    %v4520 = vld [vmem:[#allocation2 + $0x48] sm:$0xff]
    %v4522 = vsel %vm76, %v4519, 0
    %4524 = vmatprep.subr.mxu0 0.0
    %4525 = vmatpush1.msra.mxu0 %v3403
    %4526 = vmatprep.subr.mxu0 0.0
    %4527 = vmatpush1.msra.mxu0 %v3404
    %4528 = vmatprep.subr.mxu0 0.0
    %4529 = vmatpush1.msra.mxu0 %v3405
    %4530 = vmatprep.subr.mxu0 0.0
    %4531 = vmatpush1.msra.mxu0 %v3406
    %4532 = vmatprep.subr.mxu0 0.0
    %4533 = vmatpush1.msra.mxu0 0.0
    %4534 = vmatprep.subr.mxu0 0.0
    %4535 = vmatpush1.msra.mxu0 0.0
    %4536 = vmatprep.subr.mxu0 0.0
    %4537 = vmatpush1.msra.mxu0 0.0
    %4538 = vmatprep.subr.mxu0 0.0
    %4539 = vmatpush1.msra.mxu0 0.0
    %4540 = vmatprep.subr.mxu0 0.0
    %4541 = vmatpush1.msra.mxu0 0.0
    %4542 = vmatprep.subr.mxu0 0.0
    %4543 = vmatpush1.msra.mxu0 0.0
    %4544 = vmatprep.subr.mxu0 0.0
    %4545 = vmatpush1.msra.mxu0 0.0
    %4546 = vmatprep.subr.mxu0 0.0
    %4547 = vmatpush1.msra.mxu0 0.0
    %4548 = vmatprep.subr.mxu0 0.0
    %4549 = vmatpush1.msra.mxu0 0.0
    %4550 = vmatprep.subr.mxu0 0.0
    %4551 = vmatpush1.msra.mxu0 0.0
    %4552 = vmatprep.subr.mxu0 0.0
    %4553 = vmatpush1.msra.mxu0 0.0
    %4554 = vmatprep.subr.mxu0 0.0
    %4555 = vmatpush1.msra.mxu0 0.0
    %4556 = vmatprep.subr.mxu0 0.0
    %4557 = vmatpush1.msra.mxu0 0.0
    %4558 = vmatprep.subr.mxu0 0.0
    %4559 = vmatpush1.msra.mxu0 0.0
    %4560 = vmatprep.subr.mxu0 0.0
    %4561 = vmatpush1.msra.mxu0 0.0
    %4562 = vmatprep.subr.mxu0 0.0
    %4563 = vmatpush1.msra.mxu0 0.0
    %4564 = vmatprep.subr.mxu0 0.0
    %4565 = vmatpush1.msra.mxu0 0.0
    %4566 = vmatprep.subr.mxu0 0.0
    %4567 = vmatpush1.msra.mxu0 0.0
    %4568 = vmatprep.subr.mxu0 0.0
    %4569 = vmatpush1.msra.mxu0 0.0
    %4570 = vmatprep.subr.mxu0 0.0
    %4571 = vmatpush1.msra.mxu0 0.0
    %4572 = vmatprep.subr.mxu0 0.0
    %4573 = vmatpush1.msra.mxu0 0.0
    %4574 = vmatprep.subr.mxu0 0.0
    %4575 = vmatpush1.msra.mxu0 0.0
    %4576 = vmatprep.subr.mxu0 0.0
    %4577 = vmatpush1.msra.mxu0 0.0
    %4578 = vmatprep.subr.mxu0 0.0
    %4579 = vmatpush1.msra.mxu0 0.0
    %4580 = vmatprep.subr.mxu0 0.0
    %4581 = vmatpush1.msra.mxu0 0.0
    %4582 = vmatprep.subr.mxu0 0.0
    %4583 = vmatpush1.msra.mxu0 0.0
    %4584 = vmatprep.subr.mxu0 0.0
    %4585 = vmatpush1.msra.mxu0 0.0
    %4586 = vmatprep.subr.mxu0 0.0
    %4587 = vmatpush1.msra.mxu0 0.0
    %4588 = vmatprep.mubr.f32.mxu0 0.0
    %4589 = vmatmul.mubr.f32.gmra.mrb[0].mxu0 %v4522
    %v4590 = vpop.f32.mrb[0].mxu0
    %v4591 = vadd.f32 0.0, %v4590
    %v4592 = vpop.f32.mrb[0].mxu0
    %4593 = vdwg.mxu0
    %v4594 = vadd.f32 %v4520, %v4591
    %v4595 = vtanh.pop %v4594
    %v4596 = vsel %vm1294, %v4595, %v4519
    %v4597 = vld [vmem:[#allocation2 + $0x50] sm:$0xff]
    %v4599 = vsel %vm76, %v4596, 0
    %4601 = vmatprep.subr.mxu0 0.0
    %4602 = vmatpush1.msra.mxu0 %v3403
    %4603 = vmatprep.subr.mxu0 0.0
    %4604 = vmatpush1.msra.mxu0 %v3404
    %4605 = vmatprep.subr.mxu0 0.0
    %4606 = vmatpush1.msra.mxu0 %v3405
    %4607 = vmatprep.subr.mxu0 0.0
    %4608 = vmatpush1.msra.mxu0 %v3406
    %4609 = vmatprep.subr.mxu0 0.0
    %4610 = vmatpush1.msra.mxu0 0.0
    %4611 = vmatprep.subr.mxu0 0.0
    %4612 = vmatpush1.msra.mxu0 0.0
    %4613 = vmatprep.subr.mxu0 0.0
    %4614 = vmatpush1.msra.mxu0 0.0
    %4615 = vmatprep.subr.mxu0 0.0
    %4616 = vmatpush1.msra.mxu0 0.0
    %4617 = vmatprep.subr.mxu0 0.0
    %4618 = vmatpush1.msra.mxu0 0.0
    %4619 = vmatprep.subr.mxu0 0.0
    %4620 = vmatpush1.msra.mxu0 0.0
    %4621 = vmatprep.subr.mxu0 0.0
    %4622 = vmatpush1.msra.mxu0 0.0
    %4623 = vmatprep.subr.mxu0 0.0
    %4624 = vmatpush1.msra.mxu0 0.0
    %4625 = vmatprep.subr.mxu0 0.0
    %4626 = vmatpush1.msra.mxu0 0.0
    %4627 = vmatprep.subr.mxu0 0.0
    %4628 = vmatpush1.msra.mxu0 0.0
    %4629 = vmatprep.subr.mxu0 0.0
    %4630 = vmatpush1.msra.mxu0 0.0
    %4631 = vmatprep.subr.mxu0 0.0
    %4632 = vmatpush1.msra.mxu0 0.0
    %4633 = vmatprep.subr.mxu0 0.0
    %4634 = vmatpush1.msra.mxu0 0.0
    %4635 = vmatprep.subr.mxu0 0.0
    %4636 = vmatpush1.msra.mxu0 0.0
    %4637 = vmatprep.subr.mxu0 0.0
    %4638 = vmatpush1.msra.mxu0 0.0
    %4639 = vmatprep.subr.mxu0 0.0
    %4640 = vmatpush1.msra.mxu0 0.0
    %4641 = vmatprep.subr.mxu0 0.0
    %4642 = vmatpush1.msra.mxu0 0.0
    %4643 = vmatprep.subr.mxu0 0.0
    %4644 = vmatpush1.msra.mxu0 0.0
    %4645 = vmatprep.subr.mxu0 0.0
    %4646 = vmatpush1.msra.mxu0 0.0
    %4647 = vmatprep.subr.mxu0 0.0
    %4648 = vmatpush1.msra.mxu0 0.0
    %4649 = vmatprep.subr.mxu0 0.0
    %4650 = vmatpush1.msra.mxu0 0.0
    %4651 = vmatprep.subr.mxu0 0.0
    %4652 = vmatpush1.msra.mxu0 0.0
    %4653 = vmatprep.subr.mxu0 0.0
    %4654 = vmatpush1.msra.mxu0 0.0
    %4655 = vmatprep.subr.mxu0 0.0
    %4656 = vmatpush1.msra.mxu0 0.0
    %4657 = vmatprep.subr.mxu0 0.0
    %4658 = vmatpush1.msra.mxu0 0.0
    %4659 = vmatprep.subr.mxu0 0.0
    %4660 = vmatpush1.msra.mxu0 0.0
    %4661 = vmatprep.subr.mxu0 0.0
    %4662 = vmatpush1.msra.mxu0 0.0
    %4663 = vmatprep.subr.mxu0 0.0
    %4664 = vmatpush1.msra.mxu0 0.0
    %4665 = vmatprep.mubr.f32.mxu0 0.0
    %4666 = vmatmul.mubr.f32.gmra.mrb[0].mxu0 %v4599
    %v4667 = vpop.f32.mrb[0].mxu0
    %v4668 = vadd.f32 0.0, %v4667
    %v4669 = vpop.f32.mrb[0].mxu0
    %4670 = vdwg.mxu0
    %v4671 = vadd.f32 %v4597, %v4668
    %v4672 = vtanh.pop %v4671
    %v4673 = vsel %vm1378, %v4672, %v4596
    %v4674 = vld [vmem:[#allocation2 + $0x58] sm:$0xff]
    %v4676 = vsel %vm76, %v4673, 0
    %4678 = vmatprep.subr.mxu0 0.0
    %4679 = vmatpush1.msra.mxu0 %v3403
    %4680 = vmatprep.subr.mxu0 0.0
    %4681 = vmatpush1.msra.mxu0 %v3404
    %4682 = vmatprep.subr.mxu0 0.0
    %4683 = vmatpush1.msra.mxu0 %v3405
    %4684 = vmatprep.subr.mxu0 0.0
    %4685 = vmatpush1.msra.mxu0 %v3406
    %4686 = vmatprep.subr.mxu0 0.0
    %4687 = vmatpush1.msra.mxu0 0.0
    %4688 = vmatprep.subr.mxu0 0.0
    %4689 = vmatpush1.msra.mxu0 0.0
    %4690 = vmatprep.subr.mxu0 0.0
    %4691 = vmatpush1.msra.mxu0 0.0
    %4692 = vmatprep.subr.mxu0 0.0
    %4693 = vmatpush1.msra.mxu0 0.0
    %4694 = vmatprep.subr.mxu0 0.0
    %4695 = vmatpush1.msra.mxu0 0.0
    %4696 = vmatprep.subr.mxu0 0.0
    %4697 = vmatpush1.msra.mxu0 0.0
    %4698 = vmatprep.subr.mxu0 0.0
    %4699 = vmatpush1.msra.mxu0 0.0
    %4700 = vmatprep.subr.mxu0 0.0
    %4701 = vmatpush1.msra.mxu0 0.0
    %4702 = vmatprep.subr.mxu0 0.0
    %4703 = vmatpush1.msra.mxu0 0.0
    %4704 = vmatprep.subr.mxu0 0.0
    %4705 = vmatpush1.msra.mxu0 0.0
    %4706 = vmatprep.subr.mxu0 0.0
    %4707 = vmatpush1.msra.mxu0 0.0
    %4708 = vmatprep.subr.mxu0 0.0
    %4709 = vmatpush1.msra.mxu0 0.0
    %4710 = vmatprep.subr.mxu0 0.0
    %4711 = vmatpush1.msra.mxu0 0.0
    %4712 = vmatprep.subr.mxu0 0.0
    %4713 = vmatpush1.msra.mxu0 0.0
    %4714 = vmatprep.subr.mxu0 0.0
    %4715 = vmatpush1.msra.mxu0 0.0
    %4716 = vmatprep.subr.mxu0 0.0
    %4717 = vmatpush1.msra.mxu0 0.0
    %4718 = vmatprep.subr.mxu0 0.0
    %4719 = vmatpush1.msra.mxu0 0.0
    %4720 = vmatprep.subr.mxu0 0.0
    %4721 = vmatpush1.msra.mxu0 0.0
    %4722 = vmatprep.subr.mxu0 0.0
    %4723 = vmatpush1.msra.mxu0 0.0
    %4724 = vmatprep.subr.mxu0 0.0
    %4725 = vmatpush1.msra.mxu0 0.0
    %4726 = vmatprep.subr.mxu0 0.0
    %4727 = vmatpush1.msra.mxu0 0.0
    %4728 = vmatprep.subr.mxu0 0.0
    %4729 = vmatpush1.msra.mxu0 0.0
    %4730 = vmatprep.subr.mxu0 0.0
    %4731 = vmatpush1.msra.mxu0 0.0
    %4732 = vmatprep.subr.mxu0 0.0
    %4733 = vmatpush1.msra.mxu0 0.0
    %4734 = vmatprep.subr.mxu0 0.0
    %4735 = vmatpush1.msra.mxu0 0.0
    %4736 = vmatprep.subr.mxu0 0.0
    %4737 = vmatpush1.msra.mxu0 0.0
    %4738 = vmatprep.subr.mxu0 0.0
    %4739 = vmatpush1.msra.mxu0 0.0
    %4740 = vmatprep.subr.mxu0 0.0
    %4741 = vmatpush1.msra.mxu0 0.0
    %4742 = vmatprep.mubr.f32.mxu0 0.0
    %4743 = vmatmul.mubr.f32.gmra.mrb[0].mxu0 %v4676
    %v4744 = vpop.f32.mrb[0].mxu0
    %v4745 = vadd.f32 0.0, %v4744
    %v4746 = vpop.f32.mrb[0].mxu0
    %4747 = vdwg.mxu0
    %v4748 = vadd.f32 %v4674, %v4745
    %v4749 = vtanh.pop %v4748
    %v4750 = vsel %vm1462, %v4749, %v4673
    %v4751 = vld [vmem:[#allocation2 + $0x60] sm:$0xff]
    %v4753 = vsel %vm76, %v4750, 0
    %4755 = vmatprep.subr.mxu0 0.0
    %4756 = vmatpush1.msra.mxu0 %v3403
    %4757 = vmatprep.subr.mxu0 0.0
    %4758 = vmatpush1.msra.mxu0 %v3404
    %4759 = vmatprep.subr.mxu0 0.0
    %4760 = vmatpush1.msra.mxu0 %v3405
    %4761 = vmatprep.subr.mxu0 0.0
    %4762 = vmatpush1.msra.mxu0 %v3406
    %4763 = vmatprep.subr.mxu0 0.0
    %4764 = vmatpush1.msra.mxu0 0.0
    %4765 = vmatprep.subr.mxu0 0.0
    %4766 = vmatpush1.msra.mxu0 0.0
    %4767 = vmatprep.subr.mxu0 0.0
    %4768 = vmatpush1.msra.mxu0 0.0
    %4769 = vmatprep.subr.mxu0 0.0
    %4770 = vmatpush1.msra.mxu0 0.0
    %4771 = vmatprep.subr.mxu0 0.0
    %4772 = vmatpush1.msra.mxu0 0.0
    %4773 = vmatprep.subr.mxu0 0.0
    %4774 = vmatpush1.msra.mxu0 0.0
    %4775 = vmatprep.subr.mxu0 0.0
    %4776 = vmatpush1.msra.mxu0 0.0
    %4777 = vmatprep.subr.mxu0 0.0
    %4778 = vmatpush1.msra.mxu0 0.0
    %4779 = vmatprep.subr.mxu0 0.0
    %4780 = vmatpush1.msra.mxu0 0.0
    %4781 = vmatprep.subr.mxu0 0.0
    %4782 = vmatpush1.msra.mxu0 0.0
    %4783 = vmatprep.subr.mxu0 0.0
    %4784 = vmatpush1.msra.mxu0 0.0
    %4785 = vmatprep.subr.mxu0 0.0
    %4786 = vmatpush1.msra.mxu0 0.0
    %4787 = vmatprep.subr.mxu0 0.0
    %4788 = vmatpush1.msra.mxu0 0.0
    %4789 = vmatprep.subr.mxu0 0.0
    %4790 = vmatpush1.msra.mxu0 0.0
    %4791 = vmatprep.subr.mxu0 0.0
    %4792 = vmatpush1.msra.mxu0 0.0
    %4793 = vmatprep.subr.mxu0 0.0
    %4794 = vmatpush1.msra.mxu0 0.0
    %4795 = vmatprep.subr.mxu0 0.0
    %4796 = vmatpush1.msra.mxu0 0.0
    %4797 = vmatprep.subr.mxu0 0.0
    %4798 = vmatpush1.msra.mxu0 0.0
    %4799 = vmatprep.subr.mxu0 0.0
    %4800 = vmatpush1.msra.mxu0 0.0
    %4801 = vmatprep.subr.mxu0 0.0
    %4802 = vmatpush1.msra.mxu0 0.0
    %4803 = vmatprep.subr.mxu0 0.0
    %4804 = vmatpush1.msra.mxu0 0.0
    %4805 = vmatprep.subr.mxu0 0.0
    %4806 = vmatpush1.msra.mxu0 0.0
    %4807 = vmatprep.subr.mxu0 0.0
    %4808 = vmatpush1.msra.mxu0 0.0
    %4809 = vmatprep.subr.mxu0 0.0
    %4810 = vmatpush1.msra.mxu0 0.0
    %4811 = vmatprep.subr.mxu0 0.0
    %4812 = vmatpush1.msra.mxu0 0.0
    %4813 = vmatprep.subr.mxu0 0.0
    %4814 = vmatpush1.msra.mxu0 0.0
    %4815 = vmatprep.subr.mxu0 0.0
    %4816 = vmatpush1.msra.mxu0 0.0
    %4817 = vmatprep.subr.mxu0 0.0
    %4818 = vmatpush1.msra.mxu0 0.0
    %4819 = vmatprep.mubr.f32.mxu0 0.0
    %4820 = vmatmul.mubr.f32.gmra.mrb[0].mxu0 %v4753
    %v4821 = vpop.f32.mrb[0].mxu0
    %v4822 = vadd.f32 0.0, %v4821
    %v4823 = vpop.f32.mrb[0].mxu0
    %4824 = vdwg.mxu0
    %v4825 = vadd.f32 %v4751, %v4822
    %v4826 = vtanh.pop %v4825
    %v4827 = vsel %vm1546, %v4826, %v4750
    %v4828 = vld [vmem:[#allocation2 + $0x68] sm:$0xff]
    %v4830 = vsel %vm76, %v4827, 0
    %4832 = vmatprep.subr.mxu0 0.0
    %4833 = vmatpush1.msra.mxu0 %v3403
    %4834 = vmatprep.subr.mxu0 0.0
    %4835 = vmatpush1.msra.mxu0 %v3404
    %4836 = vmatprep.subr.mxu0 0.0
    %4837 = vmatpush1.msra.mxu0 %v3405
    %4838 = vmatprep.subr.mxu0 0.0
    %4839 = vmatpush1.msra.mxu0 %v3406
    %4840 = vmatprep.subr.mxu0 0.0
    %4841 = vmatpush1.msra.mxu0 0.0
    %4842 = vmatprep.subr.mxu0 0.0
    %4843 = vmatpush1.msra.mxu0 0.0
    %4844 = vmatprep.subr.mxu0 0.0
    %4845 = vmatpush1.msra.mxu0 0.0
    %4846 = vmatprep.subr.mxu0 0.0
    %4847 = vmatpush1.msra.mxu0 0.0
    %4848 = vmatprep.subr.mxu0 0.0
    %4849 = vmatpush1.msra.mxu0 0.0
    %4850 = vmatprep.subr.mxu0 0.0
    %4851 = vmatpush1.msra.mxu0 0.0
    %4852 = vmatprep.subr.mxu0 0.0
    %4853 = vmatpush1.msra.mxu0 0.0
    %4854 = vmatprep.subr.mxu0 0.0
    %4855 = vmatpush1.msra.mxu0 0.0
    %4856 = vmatprep.subr.mxu0 0.0
    %4857 = vmatpush1.msra.mxu0 0.0
    %4858 = vmatprep.subr.mxu0 0.0
    %4859 = vmatpush1.msra.mxu0 0.0
    %4860 = vmatprep.subr.mxu0 0.0
    %4861 = vmatpush1.msra.mxu0 0.0
    %4862 = vmatprep.subr.mxu0 0.0
    %4863 = vmatpush1.msra.mxu0 0.0
    %4864 = vmatprep.subr.mxu0 0.0
    %4865 = vmatpush1.msra.mxu0 0.0
    %4866 = vmatprep.subr.mxu0 0.0
    %4867 = vmatpush1.msra.mxu0 0.0
    %4868 = vmatprep.subr.mxu0 0.0
    %4869 = vmatpush1.msra.mxu0 0.0
    %4870 = vmatprep.subr.mxu0 0.0
    %4871 = vmatpush1.msra.mxu0 0.0
    %4872 = vmatprep.subr.mxu0 0.0
    %4873 = vmatpush1.msra.mxu0 0.0
    %4874 = vmatprep.subr.mxu0 0.0
    %4875 = vmatpush1.msra.mxu0 0.0
    %4876 = vmatprep.subr.mxu0 0.0
    %4877 = vmatpush1.msra.mxu0 0.0
    %4878 = vmatprep.subr.mxu0 0.0
    %4879 = vmatpush1.msra.mxu0 0.0
    %4880 = vmatprep.subr.mxu0 0.0
    %4881 = vmatpush1.msra.mxu0 0.0
    %4882 = vmatprep.subr.mxu0 0.0
    %4883 = vmatpush1.msra.mxu0 0.0
    %4884 = vmatprep.subr.mxu0 0.0
    %4885 = vmatpush1.msra.mxu0 0.0
    %4886 = vmatprep.subr.mxu0 0.0
    %4887 = vmatpush1.msra.mxu0 0.0
    %4888 = vmatprep.subr.mxu0 0.0
    %4889 = vmatpush1.msra.mxu0 0.0
    %4890 = vmatprep.subr.mxu0 0.0
    %4891 = vmatpush1.msra.mxu0 0.0
    %4892 = vmatprep.subr.mxu0 0.0
    %4893 = vmatpush1.msra.mxu0 0.0
    %4894 = vmatprep.subr.mxu0 0.0
    %4895 = vmatpush1.msra.mxu0 0.0
    %4896 = vmatprep.mubr.f32.mxu0 0.0
    %4897 = vmatmul.mubr.f32.gmra.mrb[0].mxu0 %v4830
    %v4898 = vpop.f32.mrb[0].mxu0
    %v4899 = vadd.f32 0.0, %v4898
    %v4900 = vpop.f32.mrb[0].mxu0
    %4901 = vdwg.mxu0
    %v4902 = vadd.f32 %v4828, %v4899
    %v4903 = vtanh.pop %v4902
    %v4904 = vsel %vm1630, %v4903, %v4827
    %v4905 = vld [vmem:[#allocation2 + $0x70] sm:$0xff]
    %v4907 = vsel %vm76, %v4904, 0
    %4909 = vmatprep.subr.mxu0 0.0
    %4910 = vmatpush1.msra.mxu0 %v3403
    %4911 = vmatprep.subr.mxu0 0.0
    %4912 = vmatpush1.msra.mxu0 %v3404
    %4913 = vmatprep.subr.mxu0 0.0
    %4914 = vmatpush1.msra.mxu0 %v3405
    %4915 = vmatprep.subr.mxu0 0.0
    %4916 = vmatpush1.msra.mxu0 %v3406
    %4917 = vmatprep.subr.mxu0 0.0
    %4918 = vmatpush1.msra.mxu0 0.0
    %4919 = vmatprep.subr.mxu0 0.0
    %4920 = vmatpush1.msra.mxu0 0.0
    %4921 = vmatprep.subr.mxu0 0.0
    %4922 = vmatpush1.msra.mxu0 0.0
    %4923 = vmatprep.subr.mxu0 0.0
    %4924 = vmatpush1.msra.mxu0 0.0
    %4925 = vmatprep.subr.mxu0 0.0
    %4926 = vmatpush1.msra.mxu0 0.0
    %4927 = vmatprep.subr.mxu0 0.0
    %4928 = vmatpush1.msra.mxu0 0.0
    %4929 = vmatprep.subr.mxu0 0.0
    %4930 = vmatpush1.msra.mxu0 0.0
    %4931 = vmatprep.subr.mxu0 0.0
    %4932 = vmatpush1.msra.mxu0 0.0
    %4933 = vmatprep.subr.mxu0 0.0
    %4934 = vmatpush1.msra.mxu0 0.0
    %4935 = vmatprep.subr.mxu0 0.0
    %4936 = vmatpush1.msra.mxu0 0.0
    %4937 = vmatprep.subr.mxu0 0.0
    %4938 = vmatpush1.msra.mxu0 0.0
    %4939 = vmatprep.subr.mxu0 0.0
    %4940 = vmatpush1.msra.mxu0 0.0
    %4941 = vmatprep.subr.mxu0 0.0
    %4942 = vmatpush1.msra.mxu0 0.0
    %4943 = vmatprep.subr.mxu0 0.0
    %4944 = vmatpush1.msra.mxu0 0.0
    %4945 = vmatprep.subr.mxu0 0.0
    %4946 = vmatpush1.msra.mxu0 0.0
    %4947 = vmatprep.subr.mxu0 0.0
    %4948 = vmatpush1.msra.mxu0 0.0
    %4949 = vmatprep.subr.mxu0 0.0
    %4950 = vmatpush1.msra.mxu0 0.0
    %4951 = vmatprep.subr.mxu0 0.0
    %4952 = vmatpush1.msra.mxu0 0.0
    %4953 = vmatprep.subr.mxu0 0.0
    %4954 = vmatpush1.msra.mxu0 0.0
    %4955 = vmatprep.subr.mxu0 0.0
    %4956 = vmatpush1.msra.mxu0 0.0
    %4957 = vmatprep.subr.mxu0 0.0
    %4958 = vmatpush1.msra.mxu0 0.0
    %4959 = vmatprep.subr.mxu0 0.0
    %4960 = vmatpush1.msra.mxu0 0.0
    %4961 = vmatprep.subr.mxu0 0.0
    %4962 = vmatpush1.msra.mxu0 0.0
    %4963 = vmatprep.subr.mxu0 0.0
    %4964 = vmatpush1.msra.mxu0 0.0
    %4965 = vmatprep.subr.mxu0 0.0
    %4966 = vmatpush1.msra.mxu0 0.0
    %4967 = vmatprep.subr.mxu0 0.0
    %4968 = vmatpush1.msra.mxu0 0.0
    %4969 = vmatprep.subr.mxu0 0.0
    %4970 = vmatpush1.msra.mxu0 0.0
    %4971 = vmatprep.subr.mxu0 0.0
    %4972 = vmatpush1.msra.mxu0 0.0
    %4973 = vmatprep.mubr.f32.mxu0 0.0
    %4974 = vmatmul.mubr.f32.gmra.mrb[0].mxu0 %v4907
    %v4975 = vpop.f32.mrb[0].mxu0
    %v4976 = vadd.f32 0.0, %v4975
    %v4977 = vpop.f32.mrb[0].mxu0
    %4978 = vdwg.mxu0
    %v4979 = vadd.f32 %v4905, %v4976
    %v4980 = vtanh.pop %v4979
    %v4981 = vsel %vm1714, %v4980, %v4904
    %v4982 = vld [vmem:[#allocation2 + $0x78] sm:$0xff]
    %v4984 = vsel %vm76, %v4981, 0
    %4986 = vmatprep.subr.mxu0 0.0
    %4987 = vmatpush1.msra.mxu0 %v3403
    %4988 = vmatprep.subr.mxu0 0.0
    %4989 = vmatpush1.msra.mxu0 %v3404
    %4990 = vmatprep.subr.mxu0 0.0
    %4991 = vmatpush1.msra.mxu0 %v3405
    %4992 = vmatprep.subr.mxu0 0.0
    %4993 = vmatpush1.msra.mxu0 %v3406
    %4994 = vmatprep.subr.mxu0 0.0
    %4995 = vmatpush1.msra.mxu0 0.0
    %4996 = vmatprep.subr.mxu0 0.0
    %4997 = vmatpush1.msra.mxu0 0.0
    %4998 = vmatprep.subr.mxu0 0.0
    %4999 = vmatpush1.msra.mxu0 0.0
    %5000 = vmatprep.subr.mxu0 0.0
    %5001 = vmatpush1.msra.mxu0 0.0
    %5002 = vmatprep.subr.mxu0 0.0
    %5003 = vmatpush1.msra.mxu0 0.0
    %5004 = vmatprep.subr.mxu0 0.0
    %5005 = vmatpush1.msra.mxu0 0.0
    %5006 = vmatprep.subr.mxu0 0.0
    %5007 = vmatpush1.msra.mxu0 0.0
    %5008 = vmatprep.subr.mxu0 0.0
    %5009 = vmatpush1.msra.mxu0 0.0
    %5010 = vmatprep.subr.mxu0 0.0
    %5011 = vmatpush1.msra.mxu0 0.0
    %5012 = vmatprep.subr.mxu0 0.0
    %5013 = vmatpush1.msra.mxu0 0.0
    %5014 = vmatprep.subr.mxu0 0.0
    %5015 = vmatpush1.msra.mxu0 0.0
    %5016 = vmatprep.subr.mxu0 0.0
    %5017 = vmatpush1.msra.mxu0 0.0
    %5018 = vmatprep.subr.mxu0 0.0
    %5019 = vmatpush1.msra.mxu0 0.0
    %5020 = vmatprep.subr.mxu0 0.0
    %5021 = vmatpush1.msra.mxu0 0.0
    %5022 = vmatprep.subr.mxu0 0.0
    %5023 = vmatpush1.msra.mxu0 0.0
    %5024 = vmatprep.subr.mxu0 0.0
    %5025 = vmatpush1.msra.mxu0 0.0
    %5026 = vmatprep.subr.mxu0 0.0
    %5027 = vmatpush1.msra.mxu0 0.0
    %5028 = vmatprep.subr.mxu0 0.0
    %5029 = vmatpush1.msra.mxu0 0.0
    %5030 = vmatprep.subr.mxu0 0.0
    %5031 = vmatpush1.msra.mxu0 0.0
    %5032 = vmatprep.subr.mxu0 0.0
    %5033 = vmatpush1.msra.mxu0 0.0
    %5034 = vmatprep.subr.mxu0 0.0
    %5035 = vmatpush1.msra.mxu0 0.0
    %5036 = vmatprep.subr.mxu0 0.0
    %5037 = vmatpush1.msra.mxu0 0.0
    %5038 = vmatprep.subr.mxu0 0.0
    %5039 = vmatpush1.msra.mxu0 0.0
    %5040 = vmatprep.subr.mxu0 0.0
    %5041 = vmatpush1.msra.mxu0 0.0
    %5042 = vmatprep.subr.mxu0 0.0
    %5043 = vmatpush1.msra.mxu0 0.0
    %5044 = vmatprep.subr.mxu0 0.0
    %5045 = vmatpush1.msra.mxu0 0.0
    %5046 = vmatprep.subr.mxu0 0.0
    %5047 = vmatpush1.msra.mxu0 0.0
    %5048 = vmatprep.subr.mxu0 0.0
    %5049 = vmatpush1.msra.mxu0 0.0
    %5050 = vmatprep.mubr.f32.mxu0 0.0
    %5051 = vmatmul.mubr.f32.gmra.mrb[0].mxu0 %v4984
    %v5052 = vpop.f32.mrb[0].mxu0
    %v5053 = vadd.f32 0.0, %v5052
    %v5054 = vpop.f32.mrb[0].mxu0
    %5055 = vdwg.mxu0
    %v5056 = vadd.f32 %v4982, %v5053
    %v5057 = vtanh.pop %v5056
    %v5058 = vsel %vm1798, %v5057, %v4981
    %v5059 = vld [vmem:[#allocation2 + $0x80] sm:$0xff]
    %v5061 = vsel %vm76, %v5058, 0
    %5063 = vmatprep.subr.mxu0 0.0
    %5064 = vmatpush1.msra.mxu0 %v3403
    %5065 = vmatprep.subr.mxu0 0.0
    %5066 = vmatpush1.msra.mxu0 %v3404
    %5067 = vmatprep.subr.mxu0 0.0
    %5068 = vmatpush1.msra.mxu0 %v3405
    %5069 = vmatprep.subr.mxu0 0.0
    %5070 = vmatpush1.msra.mxu0 %v3406
    %5071 = vmatprep.subr.mxu0 0.0
    %5072 = vmatpush1.msra.mxu0 0.0
    %5073 = vmatprep.subr.mxu0 0.0
    %5074 = vmatpush1.msra.mxu0 0.0
    %5075 = vmatprep.subr.mxu0 0.0
    %5076 = vmatpush1.msra.mxu0 0.0
    %5077 = vmatprep.subr.mxu0 0.0
    %5078 = vmatpush1.msra.mxu0 0.0
    %5079 = vmatprep.subr.mxu0 0.0
    %5080 = vmatpush1.msra.mxu0 0.0
    %5081 = vmatprep.subr.mxu0 0.0
    %5082 = vmatpush1.msra.mxu0 0.0
    %5083 = vmatprep.subr.mxu0 0.0
    %5084 = vmatpush1.msra.mxu0 0.0
    %5085 = vmatprep.subr.mxu0 0.0
    %5086 = vmatpush1.msra.mxu0 0.0
    %5087 = vmatprep.subr.mxu0 0.0
    %5088 = vmatpush1.msra.mxu0 0.0
    %5089 = vmatprep.subr.mxu0 0.0
    %5090 = vmatpush1.msra.mxu0 0.0
    %5091 = vmatprep.subr.mxu0 0.0
    %5092 = vmatpush1.msra.mxu0 0.0
    %5093 = vmatprep.subr.mxu0 0.0
    %5094 = vmatpush1.msra.mxu0 0.0
    %5095 = vmatprep.subr.mxu0 0.0
    %5096 = vmatpush1.msra.mxu0 0.0
    %5097 = vmatprep.subr.mxu0 0.0
    %5098 = vmatpush1.msra.mxu0 0.0
    %5099 = vmatprep.subr.mxu0 0.0
    %5100 = vmatpush1.msra.mxu0 0.0
    %5101 = vmatprep.subr.mxu0 0.0
    %5102 = vmatpush1.msra.mxu0 0.0
    %5103 = vmatprep.subr.mxu0 0.0
    %5104 = vmatpush1.msra.mxu0 0.0
    %5105 = vmatprep.subr.mxu0 0.0
    %5106 = vmatpush1.msra.mxu0 0.0
    %5107 = vmatprep.subr.mxu0 0.0
    %5108 = vmatpush1.msra.mxu0 0.0
    %5109 = vmatprep.subr.mxu0 0.0
    %5110 = vmatpush1.msra.mxu0 0.0
    %5111 = vmatprep.subr.mxu0 0.0
    %5112 = vmatpush1.msra.mxu0 0.0
    %5113 = vmatprep.subr.mxu0 0.0
    %5114 = vmatpush1.msra.mxu0 0.0
    %5115 = vmatprep.subr.mxu0 0.0
    %5116 = vmatpush1.msra.mxu0 0.0
    %5117 = vmatprep.subr.mxu0 0.0
    %5118 = vmatpush1.msra.mxu0 0.0
    %5119 = vmatprep.subr.mxu0 0.0
    %5120 = vmatpush1.msra.mxu0 0.0
    %5121 = vmatprep.subr.mxu0 0.0
    %5122 = vmatpush1.msra.mxu0 0.0
    %5123 = vmatprep.subr.mxu0 0.0
    %5124 = vmatpush1.msra.mxu0 0.0
    %5125 = vmatprep.subr.mxu0 0.0
    %5126 = vmatpush1.msra.mxu0 0.0
    %5127 = vmatprep.mubr.f32.mxu0 0.0
    %5128 = vmatmul.mubr.f32.gmra.mrb[0].mxu0 %v5061
    %v5129 = vpop.f32.mrb[0].mxu0
    %v5130 = vadd.f32 0.0, %v5129
    %v5131 = vpop.f32.mrb[0].mxu0
    %5132 = vdwg.mxu0
    %v5133 = vadd.f32 %v5059, %v5130
    %v5134 = vtanh.pop %v5133
    %v5135 = vsel %vm1882, %v5134, %v5058
    %v5136 = vld [vmem:[#allocation2 + $0x88] sm:$0xff]
    %v5138 = vsel %vm76, %v5135, 0
    %5140 = vmatprep.subr.mxu0 0.0
    %5141 = vmatpush1.msra.mxu0 %v3403
    %5142 = vmatprep.subr.mxu0 0.0
    %5143 = vmatpush1.msra.mxu0 %v3404
    %5144 = vmatprep.subr.mxu0 0.0
    %5145 = vmatpush1.msra.mxu0 %v3405
    %5146 = vmatprep.subr.mxu0 0.0
    %5147 = vmatpush1.msra.mxu0 %v3406
    %5148 = vmatprep.subr.mxu0 0.0
    %5149 = vmatpush1.msra.mxu0 0.0
    %5150 = vmatprep.subr.mxu0 0.0
    %5151 = vmatpush1.msra.mxu0 0.0
    %5152 = vmatprep.subr.mxu0 0.0
    %5153 = vmatpush1.msra.mxu0 0.0
    %5154 = vmatprep.subr.mxu0 0.0
    %5155 = vmatpush1.msra.mxu0 0.0
    %5156 = vmatprep.subr.mxu0 0.0
    %5157 = vmatpush1.msra.mxu0 0.0
    %5158 = vmatprep.subr.mxu0 0.0
    %5159 = vmatpush1.msra.mxu0 0.0
    %5160 = vmatprep.subr.mxu0 0.0
    %5161 = vmatpush1.msra.mxu0 0.0
    %5162 = vmatprep.subr.mxu0 0.0
    %5163 = vmatpush1.msra.mxu0 0.0
    %5164 = vmatprep.subr.mxu0 0.0
    %5165 = vmatpush1.msra.mxu0 0.0
    %5166 = vmatprep.subr.mxu0 0.0
    %5167 = vmatpush1.msra.mxu0 0.0
    %5168 = vmatprep.subr.mxu0 0.0
    %5169 = vmatpush1.msra.mxu0 0.0
    %5170 = vmatprep.subr.mxu0 0.0
    %5171 = vmatpush1.msra.mxu0 0.0
    %5172 = vmatprep.subr.mxu0 0.0
    %5173 = vmatpush1.msra.mxu0 0.0
    %5174 = vmatprep.subr.mxu0 0.0
    %5175 = vmatpush1.msra.mxu0 0.0
    %5176 = vmatprep.subr.mxu0 0.0
    %5177 = vmatpush1.msra.mxu0 0.0
    %5178 = vmatprep.subr.mxu0 0.0
    %5179 = vmatpush1.msra.mxu0 0.0
    %5180 = vmatprep.subr.mxu0 0.0
    %5181 = vmatpush1.msra.mxu0 0.0
    %5182 = vmatprep.subr.mxu0 0.0
    %5183 = vmatpush1.msra.mxu0 0.0
    %5184 = vmatprep.subr.mxu0 0.0
    %5185 = vmatpush1.msra.mxu0 0.0
    %5186 = vmatprep.subr.mxu0 0.0
    %5187 = vmatpush1.msra.mxu0 0.0
    %5188 = vmatprep.subr.mxu0 0.0
    %5189 = vmatpush1.msra.mxu0 0.0
    %5190 = vmatprep.subr.mxu0 0.0
    %5191 = vmatpush1.msra.mxu0 0.0
    %5192 = vmatprep.subr.mxu0 0.0
    %5193 = vmatpush1.msra.mxu0 0.0
    %5194 = vmatprep.subr.mxu0 0.0
    %5195 = vmatpush1.msra.mxu0 0.0
    %5196 = vmatprep.subr.mxu0 0.0
    %5197 = vmatpush1.msra.mxu0 0.0
    %5198 = vmatprep.subr.mxu0 0.0
    %5199 = vmatpush1.msra.mxu0 0.0
    %5200 = vmatprep.subr.mxu0 0.0
    %5201 = vmatpush1.msra.mxu0 0.0
    %5202 = vmatprep.subr.mxu0 0.0
    %5203 = vmatpush1.msra.mxu0 0.0
    %5204 = vmatprep.mubr.f32.mxu0 0.0
    %5205 = vmatmul.mubr.f32.gmra.mrb[0].mxu0 %v5138
    %v5206 = vpop.f32.mrb[0].mxu0
    %v5207 = vadd.f32 0.0, %v5206
    %v5208 = vpop.f32.mrb[0].mxu0
    %5209 = vdwg.mxu0
    %v5210 = vadd.f32 %v5136, %v5207
    %v5211 = vtanh.pop %v5210
    %v5212 = vsel %vm1966, %v5211, %v5135
    %v5213 = vld [vmem:[#allocation2 + $0x90] sm:$0xff]
    %v5215 = vsel %vm76, %v5212, 0
    %5217 = vmatprep.subr.mxu0 0.0
    %5218 = vmatpush1.msra.mxu0 %v3403
    %5219 = vmatprep.subr.mxu0 0.0
    %5220 = vmatpush1.msra.mxu0 %v3404
    %5221 = vmatprep.subr.mxu0 0.0
    %5222 = vmatpush1.msra.mxu0 %v3405
    %5223 = vmatprep.subr.mxu0 0.0
    %5224 = vmatpush1.msra.mxu0 %v3406
    %5225 = vmatprep.subr.mxu0 0.0
    %5226 = vmatpush1.msra.mxu0 0.0
    %5227 = vmatprep.subr.mxu0 0.0
    %5228 = vmatpush1.msra.mxu0 0.0
    %5229 = vmatprep.subr.mxu0 0.0
    %5230 = vmatpush1.msra.mxu0 0.0
    %5231 = vmatprep.subr.mxu0 0.0
    %5232 = vmatpush1.msra.mxu0 0.0
    %5233 = vmatprep.subr.mxu0 0.0
    %5234 = vmatpush1.msra.mxu0 0.0
    %5235 = vmatprep.subr.mxu0 0.0
    %5236 = vmatpush1.msra.mxu0 0.0
    %5237 = vmatprep.subr.mxu0 0.0
    %5238 = vmatpush1.msra.mxu0 0.0
    %5239 = vmatprep.subr.mxu0 0.0
    %5240 = vmatpush1.msra.mxu0 0.0
    %5241 = vmatprep.subr.mxu0 0.0
    %5242 = vmatpush1.msra.mxu0 0.0
    %5243 = vmatprep.subr.mxu0 0.0
    %5244 = vmatpush1.msra.mxu0 0.0
    %5245 = vmatprep.subr.mxu0 0.0
    %5246 = vmatpush1.msra.mxu0 0.0
    %5247 = vmatprep.subr.mxu0 0.0
    %5248 = vmatpush1.msra.mxu0 0.0
    %5249 = vmatprep.subr.mxu0 0.0
    %5250 = vmatpush1.msra.mxu0 0.0
    %5251 = vmatprep.subr.mxu0 0.0
    %5252 = vmatpush1.msra.mxu0 0.0
    %5253 = vmatprep.subr.mxu0 0.0
    %5254 = vmatpush1.msra.mxu0 0.0
    %5255 = vmatprep.subr.mxu0 0.0
    %5256 = vmatpush1.msra.mxu0 0.0
    %5257 = vmatprep.subr.mxu0 0.0
    %5258 = vmatpush1.msra.mxu0 0.0
    %5259 = vmatprep.subr.mxu0 0.0
    %5260 = vmatpush1.msra.mxu0 0.0
    %5261 = vmatprep.subr.mxu0 0.0
    %5262 = vmatpush1.msra.mxu0 0.0
    %5263 = vmatprep.subr.mxu0 0.0
    %5264 = vmatpush1.msra.mxu0 0.0
    %5265 = vmatprep.subr.mxu0 0.0
    %5266 = vmatpush1.msra.mxu0 0.0
    %5267 = vmatprep.subr.mxu0 0.0
    %5268 = vmatpush1.msra.mxu0 0.0
    %5269 = vmatprep.subr.mxu0 0.0
    %5270 = vmatpush1.msra.mxu0 0.0
    %5271 = vmatprep.subr.mxu0 0.0
    %5272 = vmatpush1.msra.mxu0 0.0
    %5273 = vmatprep.subr.mxu0 0.0
    %5274 = vmatpush1.msra.mxu0 0.0
    %5275 = vmatprep.subr.mxu0 0.0
    %5276 = vmatpush1.msra.mxu0 0.0
    %5277 = vmatprep.subr.mxu0 0.0
    %5278 = vmatpush1.msra.mxu0 0.0
    %5279 = vmatprep.subr.mxu0 0.0
    %5280 = vmatpush1.msra.mxu0 0.0
    %5281 = vmatprep.mubr.f32.mxu0 0.0
    %5282 = vmatmul.mubr.f32.gmra.mrb[0].mxu0 %v5215
    %v5283 = vpop.f32.mrb[0].mxu0
    %v5284 = vadd.f32 0.0, %v5283
    %v5285 = vpop.f32.mrb[0].mxu0
    %5286 = vdwg.mxu0
    %v5287 = vadd.f32 %v5213, %v5284
    %v5288 = vtanh.pop %v5287
    %v5289 = vsel %vm2050, %v5288, %v5212
    %v5290 = vld [vmem:[#allocation2 + $0x98] sm:$0xff]
    %v5292 = vsel %vm76, %v5289, 0
    %5294 = vmatprep.subr.mxu0 0.0
    %5295 = vmatpush1.msra.mxu0 %v3403
    %5296 = vmatprep.subr.mxu0 0.0
    %5297 = vmatpush1.msra.mxu0 %v3404
    %5298 = vmatprep.subr.mxu0 0.0
    %5299 = vmatpush1.msra.mxu0 %v3405
    %5300 = vmatprep.subr.mxu0 0.0
    %5301 = vmatpush1.msra.mxu0 %v3406
    %5302 = vmatprep.subr.mxu0 0.0
    %5303 = vmatpush1.msra.mxu0 0.0
    %5304 = vmatprep.subr.mxu0 0.0
    %5305 = vmatpush1.msra.mxu0 0.0
    %5306 = vmatprep.subr.mxu0 0.0
    %5307 = vmatpush1.msra.mxu0 0.0
    %5308 = vmatprep.subr.mxu0 0.0
    %5309 = vmatpush1.msra.mxu0 0.0
    %5310 = vmatprep.subr.mxu0 0.0
    %5311 = vmatpush1.msra.mxu0 0.0
    %5312 = vmatprep.subr.mxu0 0.0
    %5313 = vmatpush1.msra.mxu0 0.0
    %5314 = vmatprep.subr.mxu0 0.0
    %5315 = vmatpush1.msra.mxu0 0.0
    %5316 = vmatprep.subr.mxu0 0.0
    %5317 = vmatpush1.msra.mxu0 0.0
    %5318 = vmatprep.subr.mxu0 0.0
    %5319 = vmatpush1.msra.mxu0 0.0
    %5320 = vmatprep.subr.mxu0 0.0
    %5321 = vmatpush1.msra.mxu0 0.0
    %5322 = vmatprep.subr.mxu0 0.0
    %5323 = vmatpush1.msra.mxu0 0.0
    %5324 = vmatprep.subr.mxu0 0.0
    %5325 = vmatpush1.msra.mxu0 0.0
    %5326 = vmatprep.subr.mxu0 0.0
    %5327 = vmatpush1.msra.mxu0 0.0
    %5328 = vmatprep.subr.mxu0 0.0
    %5329 = vmatpush1.msra.mxu0 0.0
    %5330 = vmatprep.subr.mxu0 0.0
    %5331 = vmatpush1.msra.mxu0 0.0
    %5332 = vmatprep.subr.mxu0 0.0
    %5333 = vmatpush1.msra.mxu0 0.0
    %5334 = vmatprep.subr.mxu0 0.0
    %5335 = vmatpush1.msra.mxu0 0.0
    %5336 = vmatprep.subr.mxu0 0.0
    %5337 = vmatpush1.msra.mxu0 0.0
    %5338 = vmatprep.subr.mxu0 0.0
    %5339 = vmatpush1.msra.mxu0 0.0
    %5340 = vmatprep.subr.mxu0 0.0
    %5341 = vmatpush1.msra.mxu0 0.0
    %5342 = vmatprep.subr.mxu0 0.0
    %5343 = vmatpush1.msra.mxu0 0.0
    %5344 = vmatprep.subr.mxu0 0.0
    %5345 = vmatpush1.msra.mxu0 0.0
    %5346 = vmatprep.subr.mxu0 0.0
    %5347 = vmatpush1.msra.mxu0 0.0
    %5348 = vmatprep.subr.mxu0 0.0
    %5349 = vmatpush1.msra.mxu0 0.0
    %5350 = vmatprep.subr.mxu0 0.0
    %5351 = vmatpush1.msra.mxu0 0.0
    %5352 = vmatprep.subr.mxu0 0.0
    %5353 = vmatpush1.msra.mxu0 0.0
    %5354 = vmatprep.subr.mxu0 0.0
    %5355 = vmatpush1.msra.mxu0 0.0
    %5356 = vmatprep.subr.mxu0 0.0
    %5357 = vmatpush1.msra.mxu0 0.0
    %5358 = vmatprep.mubr.f32.mxu0 0.0
    %5359 = vmatmul.mubr.f32.gmra.mrb[0].mxu0 %v5292
    %v5360 = vpop.f32.mrb[0].mxu0
    %v5361 = vadd.f32 0.0, %v5360
    %v5362 = vpop.f32.mrb[0].mxu0
    %5363 = vdwg.mxu0
    %v5364 = vadd.f32 %v5290, %v5361
    %v5365 = vtanh.pop %v5364
    %v5366 = vsel %vm2134, %v5365, %v5289
    %v5367 = vld [vmem:[#allocation2 + $0xa0] sm:$0xff]
    %v5369 = vsel %vm76, %v5366, 0
    %5371 = vmatprep.subr.mxu0 0.0
    %5372 = vmatpush1.msra.mxu0 %v3403
    %5373 = vmatprep.subr.mxu0 0.0
    %5374 = vmatpush1.msra.mxu0 %v3404
    %5375 = vmatprep.subr.mxu0 0.0
    %5376 = vmatpush1.msra.mxu0 %v3405
    %5377 = vmatprep.subr.mxu0 0.0
    %5378 = vmatpush1.msra.mxu0 %v3406
    %5379 = vmatprep.subr.mxu0 0.0
    %5380 = vmatpush1.msra.mxu0 0.0
    %5381 = vmatprep.subr.mxu0 0.0
    %5382 = vmatpush1.msra.mxu0 0.0
    %5383 = vmatprep.subr.mxu0 0.0
    %5384 = vmatpush1.msra.mxu0 0.0
    %5385 = vmatprep.subr.mxu0 0.0
    %5386 = vmatpush1.msra.mxu0 0.0
    %5387 = vmatprep.subr.mxu0 0.0
    %5388 = vmatpush1.msra.mxu0 0.0
    %5389 = vmatprep.subr.mxu0 0.0
    %5390 = vmatpush1.msra.mxu0 0.0
    %5391 = vmatprep.subr.mxu0 0.0
    %5392 = vmatpush1.msra.mxu0 0.0
    %5393 = vmatprep.subr.mxu0 0.0
    %5394 = vmatpush1.msra.mxu0 0.0
    %5395 = vmatprep.subr.mxu0 0.0
    %5396 = vmatpush1.msra.mxu0 0.0
    %5397 = vmatprep.subr.mxu0 0.0
    %5398 = vmatpush1.msra.mxu0 0.0
    %5399 = vmatprep.subr.mxu0 0.0
    %5400 = vmatpush1.msra.mxu0 0.0
    %5401 = vmatprep.subr.mxu0 0.0
    %5402 = vmatpush1.msra.mxu0 0.0
    %5403 = vmatprep.subr.mxu0 0.0
    %5404 = vmatpush1.msra.mxu0 0.0
    %5405 = vmatprep.subr.mxu0 0.0
    %5406 = vmatpush1.msra.mxu0 0.0
    %5407 = vmatprep.subr.mxu0 0.0
    %5408 = vmatpush1.msra.mxu0 0.0
    %5409 = vmatprep.subr.mxu0 0.0
    %5410 = vmatpush1.msra.mxu0 0.0
    %5411 = vmatprep.subr.mxu0 0.0
    %5412 = vmatpush1.msra.mxu0 0.0
    %5413 = vmatprep.subr.mxu0 0.0
    %5414 = vmatpush1.msra.mxu0 0.0
    %5415 = vmatprep.subr.mxu0 0.0
    %5416 = vmatpush1.msra.mxu0 0.0
    %5417 = vmatprep.subr.mxu0 0.0
    %5418 = vmatpush1.msra.mxu0 0.0
    %5419 = vmatprep.subr.mxu0 0.0
    %5420 = vmatpush1.msra.mxu0 0.0
    %5421 = vmatprep.subr.mxu0 0.0
    %5422 = vmatpush1.msra.mxu0 0.0
    %5423 = vmatprep.subr.mxu0 0.0
    %5424 = vmatpush1.msra.mxu0 0.0
    %5425 = vmatprep.subr.mxu0 0.0
    %5426 = vmatpush1.msra.mxu0 0.0
    %5427 = vmatprep.subr.mxu0 0.0
    %5428 = vmatpush1.msra.mxu0 0.0
    %5429 = vmatprep.subr.mxu0 0.0
    %5430 = vmatpush1.msra.mxu0 0.0
    %5431 = vmatprep.subr.mxu0 0.0
    %5432 = vmatpush1.msra.mxu0 0.0
    %5433 = vmatprep.subr.mxu0 0.0
    %5434 = vmatpush1.msra.mxu0 0.0
    %5435 = vmatprep.mubr.f32.mxu0 0.0
    %5436 = vmatmul.mubr.f32.gmra.mrb[0].mxu0 %v5369
    %v5437 = vpop.f32.mrb[0].mxu0
    %v5438 = vadd.f32 0.0, %v5437
    %v5439 = vpop.f32.mrb[0].mxu0
    %5440 = vdwg.mxu0
    %v5441 = vadd.f32 %v5367, %v5438
    %v5442 = vtanh.pop %v5441
    %v5443 = vsel %vm2218, %v5442, %v5366
    %v5444 = vld [vmem:[#allocation2 + $0xa8] sm:$0xff]
    %v5446 = vsel %vm76, %v5443, 0
    %5448 = vmatprep.subr.mxu0 0.0
    %5449 = vmatpush1.msra.mxu0 %v3403
    %5450 = vmatprep.subr.mxu0 0.0
    %5451 = vmatpush1.msra.mxu0 %v3404
    %5452 = vmatprep.subr.mxu0 0.0
    %5453 = vmatpush1.msra.mxu0 %v3405
    %5454 = vmatprep.subr.mxu0 0.0
    %5455 = vmatpush1.msra.mxu0 %v3406
    %5456 = vmatprep.subr.mxu0 0.0
    %5457 = vmatpush1.msra.mxu0 0.0
    %5458 = vmatprep.subr.mxu0 0.0
    %5459 = vmatpush1.msra.mxu0 0.0
    %5460 = vmatprep.subr.mxu0 0.0
    %5461 = vmatpush1.msra.mxu0 0.0
    %5462 = vmatprep.subr.mxu0 0.0
    %5463 = vmatpush1.msra.mxu0 0.0
    %5464 = vmatprep.subr.mxu0 0.0
    %5465 = vmatpush1.msra.mxu0 0.0
    %5466 = vmatprep.subr.mxu0 0.0
    %5467 = vmatpush1.msra.mxu0 0.0
    %5468 = vmatprep.subr.mxu0 0.0
    %5469 = vmatpush1.msra.mxu0 0.0
    %5470 = vmatprep.subr.mxu0 0.0
    %5471 = vmatpush1.msra.mxu0 0.0
    %5472 = vmatprep.subr.mxu0 0.0
    %5473 = vmatpush1.msra.mxu0 0.0
    %5474 = vmatprep.subr.mxu0 0.0
    %5475 = vmatpush1.msra.mxu0 0.0
    %5476 = vmatprep.subr.mxu0 0.0
    %5477 = vmatpush1.msra.mxu0 0.0
    %5478 = vmatprep.subr.mxu0 0.0
    %5479 = vmatpush1.msra.mxu0 0.0
    %5480 = vmatprep.subr.mxu0 0.0
    %5481 = vmatpush1.msra.mxu0 0.0
    %5482 = vmatprep.subr.mxu0 0.0
    %5483 = vmatpush1.msra.mxu0 0.0
    %5484 = vmatprep.subr.mxu0 0.0
    %5485 = vmatpush1.msra.mxu0 0.0
    %5486 = vmatprep.subr.mxu0 0.0
    %5487 = vmatpush1.msra.mxu0 0.0
    %5488 = vmatprep.subr.mxu0 0.0
    %5489 = vmatpush1.msra.mxu0 0.0
    %5490 = vmatprep.subr.mxu0 0.0
    %5491 = vmatpush1.msra.mxu0 0.0
    %5492 = vmatprep.subr.mxu0 0.0
    %5493 = vmatpush1.msra.mxu0 0.0
    %5494 = vmatprep.subr.mxu0 0.0
    %5495 = vmatpush1.msra.mxu0 0.0
    %5496 = vmatprep.subr.mxu0 0.0
    %5497 = vmatpush1.msra.mxu0 0.0
    %5498 = vmatprep.subr.mxu0 0.0
    %5499 = vmatpush1.msra.mxu0 0.0
    %5500 = vmatprep.subr.mxu0 0.0
    %5501 = vmatpush1.msra.mxu0 0.0
    %5502 = vmatprep.subr.mxu0 0.0
    %5503 = vmatpush1.msra.mxu0 0.0
    %5504 = vmatprep.subr.mxu0 0.0
    %5505 = vmatpush1.msra.mxu0 0.0
    %5506 = vmatprep.subr.mxu0 0.0
    %5507 = vmatpush1.msra.mxu0 0.0
    %5508 = vmatprep.subr.mxu0 0.0
    %5509 = vmatpush1.msra.mxu0 0.0
    %5510 = vmatprep.subr.mxu0 0.0
    %5511 = vmatpush1.msra.mxu0 0.0
    %5512 = vmatprep.mubr.f32.mxu0 0.0
    %5513 = vmatmul.mubr.f32.gmra.mrb[0].mxu0 %v5446
    %v5514 = vpop.f32.mrb[0].mxu0
    %v5515 = vadd.f32 0.0, %v5514
    %v5516 = vpop.f32.mrb[0].mxu0
    %5517 = vdwg.mxu0
    %v5518 = vadd.f32 %v5444, %v5515
    %v5519 = vtanh.pop %v5518
    %v5520 = vsel %vm2302, %v5519, %v5443
    %v5521 = vld [vmem:[#allocation2 + $0xb0] sm:$0xff]
    %v5523 = vsel %vm76, %v5520, 0
    %5525 = vmatprep.subr.mxu0 0.0
    %5526 = vmatpush1.msra.mxu0 %v3403
    %5527 = vmatprep.subr.mxu0 0.0
    %5528 = vmatpush1.msra.mxu0 %v3404
    %5529 = vmatprep.subr.mxu0 0.0
    %5530 = vmatpush1.msra.mxu0 %v3405
    %5531 = vmatprep.subr.mxu0 0.0
    %5532 = vmatpush1.msra.mxu0 %v3406
    %5533 = vmatprep.subr.mxu0 0.0
    %5534 = vmatpush1.msra.mxu0 0.0
    %5535 = vmatprep.subr.mxu0 0.0
    %5536 = vmatpush1.msra.mxu0 0.0
    %5537 = vmatprep.subr.mxu0 0.0
    %5538 = vmatpush1.msra.mxu0 0.0
    %5539 = vmatprep.subr.mxu0 0.0
    %5540 = vmatpush1.msra.mxu0 0.0
    %5541 = vmatprep.subr.mxu0 0.0
    %5542 = vmatpush1.msra.mxu0 0.0
    %5543 = vmatprep.subr.mxu0 0.0
    %5544 = vmatpush1.msra.mxu0 0.0
    %5545 = vmatprep.subr.mxu0 0.0
    %5546 = vmatpush1.msra.mxu0 0.0
    %5547 = vmatprep.subr.mxu0 0.0
    %5548 = vmatpush1.msra.mxu0 0.0
    %5549 = vmatprep.subr.mxu0 0.0
    %5550 = vmatpush1.msra.mxu0 0.0
    %5551 = vmatprep.subr.mxu0 0.0
    %5552 = vmatpush1.msra.mxu0 0.0
    %5553 = vmatprep.subr.mxu0 0.0
    %5554 = vmatpush1.msra.mxu0 0.0
    %5555 = vmatprep.subr.mxu0 0.0
    %5556 = vmatpush1.msra.mxu0 0.0
    %5557 = vmatprep.subr.mxu0 0.0
    %5558 = vmatpush1.msra.mxu0 0.0
    %5559 = vmatprep.subr.mxu0 0.0
    %5560 = vmatpush1.msra.mxu0 0.0
    %5561 = vmatprep.subr.mxu0 0.0
    %5562 = vmatpush1.msra.mxu0 0.0
    %5563 = vmatprep.subr.mxu0 0.0
    %5564 = vmatpush1.msra.mxu0 0.0
    %5565 = vmatprep.subr.mxu0 0.0
    %5566 = vmatpush1.msra.mxu0 0.0
    %5567 = vmatprep.subr.mxu0 0.0
    %5568 = vmatpush1.msra.mxu0 0.0
    %5569 = vmatprep.subr.mxu0 0.0
    %5570 = vmatpush1.msra.mxu0 0.0
    %5571 = vmatprep.subr.mxu0 0.0
    %5572 = vmatpush1.msra.mxu0 0.0
    %5573 = vmatprep.subr.mxu0 0.0
    %5574 = vmatpush1.msra.mxu0 0.0
    %5575 = vmatprep.subr.mxu0 0.0
    %5576 = vmatpush1.msra.mxu0 0.0
    %5577 = vmatprep.subr.mxu0 0.0
    %5578 = vmatpush1.msra.mxu0 0.0
    %5579 = vmatprep.subr.mxu0 0.0
    %5580 = vmatpush1.msra.mxu0 0.0
    %5581 = vmatprep.subr.mxu0 0.0
    %5582 = vmatpush1.msra.mxu0 0.0
    %5583 = vmatprep.subr.mxu0 0.0
    %5584 = vmatpush1.msra.mxu0 0.0
    %5585 = vmatprep.subr.mxu0 0.0
    %5586 = vmatpush1.msra.mxu0 0.0
    %5587 = vmatprep.subr.mxu0 0.0
    %5588 = vmatpush1.msra.mxu0 0.0
    %5589 = vmatprep.mubr.f32.mxu0 0.0
    %5590 = vmatmul.mubr.f32.gmra.mrb[0].mxu0 %v5523
    %v5591 = vpop.f32.mrb[0].mxu0
    %v5592 = vadd.f32 0.0, %v5591
    %v5593 = vpop.f32.mrb[0].mxu0
    %5594 = vdwg.mxu0
    %v5595 = vadd.f32 %v5521, %v5592
    %v5596 = vtanh.pop %v5595
    %v5597 = vsel %vm2386, %v5596, %v5520
    %v5598 = vld [vmem:[#allocation2 + $0xb8] sm:$0xff]
    %v5600 = vsel %vm76, %v5597, 0
    %5602 = vmatprep.subr.mxu0 0.0
    %5603 = vmatpush1.msra.mxu0 %v3403
    %5604 = vmatprep.subr.mxu0 0.0
    %5605 = vmatpush1.msra.mxu0 %v3404
    %5606 = vmatprep.subr.mxu0 0.0
    %5607 = vmatpush1.msra.mxu0 %v3405
    %5608 = vmatprep.subr.mxu0 0.0
    %5609 = vmatpush1.msra.mxu0 %v3406
    %5610 = vmatprep.subr.mxu0 0.0
    %5611 = vmatpush1.msra.mxu0 0.0
    %5612 = vmatprep.subr.mxu0 0.0
    %5613 = vmatpush1.msra.mxu0 0.0
    %5614 = vmatprep.subr.mxu0 0.0
    %5615 = vmatpush1.msra.mxu0 0.0
    %5616 = vmatprep.subr.mxu0 0.0
    %5617 = vmatpush1.msra.mxu0 0.0
    %5618 = vmatprep.subr.mxu0 0.0
    %5619 = vmatpush1.msra.mxu0 0.0
    %5620 = vmatprep.subr.mxu0 0.0
    %5621 = vmatpush1.msra.mxu0 0.0
    %5622 = vmatprep.subr.mxu0 0.0
    %5623 = vmatpush1.msra.mxu0 0.0
    %5624 = vmatprep.subr.mxu0 0.0
    %5625 = vmatpush1.msra.mxu0 0.0
    %5626 = vmatprep.subr.mxu0 0.0
    %5627 = vmatpush1.msra.mxu0 0.0
    %5628 = vmatprep.subr.mxu0 0.0
    %5629 = vmatpush1.msra.mxu0 0.0
    %5630 = vmatprep.subr.mxu0 0.0
    %5631 = vmatpush1.msra.mxu0 0.0
    %5632 = vmatprep.subr.mxu0 0.0
    %5633 = vmatpush1.msra.mxu0 0.0
    %5634 = vmatprep.subr.mxu0 0.0
    %5635 = vmatpush1.msra.mxu0 0.0
    %5636 = vmatprep.subr.mxu0 0.0
    %5637 = vmatpush1.msra.mxu0 0.0
    %5638 = vmatprep.subr.mxu0 0.0
    %5639 = vmatpush1.msra.mxu0 0.0
    %5640 = vmatprep.subr.mxu0 0.0
    %5641 = vmatpush1.msra.mxu0 0.0
    %5642 = vmatprep.subr.mxu0 0.0
    %5643 = vmatpush1.msra.mxu0 0.0
    %5644 = vmatprep.subr.mxu0 0.0
    %5645 = vmatpush1.msra.mxu0 0.0
    %5646 = vmatprep.subr.mxu0 0.0
    %5647 = vmatpush1.msra.mxu0 0.0
    %5648 = vmatprep.subr.mxu0 0.0
    %5649 = vmatpush1.msra.mxu0 0.0
    %5650 = vmatprep.subr.mxu0 0.0
    %5651 = vmatpush1.msra.mxu0 0.0
    %5652 = vmatprep.subr.mxu0 0.0
    %5653 = vmatpush1.msra.mxu0 0.0
    %5654 = vmatprep.subr.mxu0 0.0
    %5655 = vmatpush1.msra.mxu0 0.0
    %5656 = vmatprep.subr.mxu0 0.0
    %5657 = vmatpush1.msra.mxu0 0.0
    %5658 = vmatprep.subr.mxu0 0.0
    %5659 = vmatpush1.msra.mxu0 0.0
    %5660 = vmatprep.subr.mxu0 0.0
    %5661 = vmatpush1.msra.mxu0 0.0
    %5662 = vmatprep.subr.mxu0 0.0
    %5663 = vmatpush1.msra.mxu0 0.0
    %5664 = vmatprep.subr.mxu0 0.0
    %5665 = vmatpush1.msra.mxu0 0.0
    %5666 = vmatprep.mubr.f32.mxu0 0.0
    %5667 = vmatmul.mubr.f32.gmra.mrb[0].mxu0 %v5600
    %v5668 = vpop.f32.mrb[0].mxu0
    %v5669 = vadd.f32 0.0, %v5668
    %v5670 = vpop.f32.mrb[0].mxu0
    %5671 = vdwg.mxu0
    %v5672 = vadd.f32 %v5598, %v5669
    %v5673 = vtanh.pop %v5672
    %v5674 = vsel %vm2470, %v5673, %v5597
    %v5675 = vld [vmem:[#allocation2 + $0xc0] sm:$0xff]
    %v5677 = vsel %vm76, %v5674, 0
    %5679 = vmatprep.subr.mxu0 0.0
    %5680 = vmatpush1.msra.mxu0 %v3403
    %5681 = vmatprep.subr.mxu0 0.0
    %5682 = vmatpush1.msra.mxu0 %v3404
    %5683 = vmatprep.subr.mxu0 0.0
    %5684 = vmatpush1.msra.mxu0 %v3405
    %5685 = vmatprep.subr.mxu0 0.0
    %5686 = vmatpush1.msra.mxu0 %v3406
    %5687 = vmatprep.subr.mxu0 0.0
    %5688 = vmatpush1.msra.mxu0 0.0
    %5689 = vmatprep.subr.mxu0 0.0
    %5690 = vmatpush1.msra.mxu0 0.0
    %5691 = vmatprep.subr.mxu0 0.0
    %5692 = vmatpush1.msra.mxu0 0.0
    %5693 = vmatprep.subr.mxu0 0.0
    %5694 = vmatpush1.msra.mxu0 0.0
    %5695 = vmatprep.subr.mxu0 0.0
    %5696 = vmatpush1.msra.mxu0 0.0
    %5697 = vmatprep.subr.mxu0 0.0
    %5698 = vmatpush1.msra.mxu0 0.0
    %5699 = vmatprep.subr.mxu0 0.0
    %5700 = vmatpush1.msra.mxu0 0.0
    %5701 = vmatprep.subr.mxu0 0.0
    %5702 = vmatpush1.msra.mxu0 0.0
    %5703 = vmatprep.subr.mxu0 0.0
    %5704 = vmatpush1.msra.mxu0 0.0
    %5705 = vmatprep.subr.mxu0 0.0
    %5706 = vmatpush1.msra.mxu0 0.0
    %5707 = vmatprep.subr.mxu0 0.0
    %5708 = vmatpush1.msra.mxu0 0.0
    %5709 = vmatprep.subr.mxu0 0.0
    %5710 = vmatpush1.msra.mxu0 0.0
    %5711 = vmatprep.subr.mxu0 0.0
    %5712 = vmatpush1.msra.mxu0 0.0
    %5713 = vmatprep.subr.mxu0 0.0
    %5714 = vmatpush1.msra.mxu0 0.0
    %5715 = vmatprep.subr.mxu0 0.0
    %5716 = vmatpush1.msra.mxu0 0.0
    %5717 = vmatprep.subr.mxu0 0.0
    %5718 = vmatpush1.msra.mxu0 0.0
    %5719 = vmatprep.subr.mxu0 0.0
    %5720 = vmatpush1.msra.mxu0 0.0
    %5721 = vmatprep.subr.mxu0 0.0
    %5722 = vmatpush1.msra.mxu0 0.0
    %5723 = vmatprep.subr.mxu0 0.0
    %5724 = vmatpush1.msra.mxu0 0.0
    %5725 = vmatprep.subr.mxu0 0.0
    %5726 = vmatpush1.msra.mxu0 0.0
    %5727 = vmatprep.subr.mxu0 0.0
    %5728 = vmatpush1.msra.mxu0 0.0
    %5729 = vmatprep.subr.mxu0 0.0
    %5730 = vmatpush1.msra.mxu0 0.0
    %5731 = vmatprep.subr.mxu0 0.0
    %5732 = vmatpush1.msra.mxu0 0.0
    %5733 = vmatprep.subr.mxu0 0.0
    %5734 = vmatpush1.msra.mxu0 0.0
    %5735 = vmatprep.subr.mxu0 0.0
    %5736 = vmatpush1.msra.mxu0 0.0
    %5737 = vmatprep.subr.mxu0 0.0
    %5738 = vmatpush1.msra.mxu0 0.0
    %5739 = vmatprep.subr.mxu0 0.0
    %5740 = vmatpush1.msra.mxu0 0.0
    %5741 = vmatprep.subr.mxu0 0.0
    %5742 = vmatpush1.msra.mxu0 0.0
    %5743 = vmatprep.mubr.f32.mxu0 0.0
    %5744 = vmatmul.mubr.f32.gmra.mrb[0].mxu0 %v5677
    %v5745 = vpop.f32.mrb[0].mxu0
    %v5746 = vadd.f32 0.0, %v5745
    %v5747 = vpop.f32.mrb[0].mxu0
    %5748 = vdwg.mxu0
    %v5749 = vadd.f32 %v5675, %v5746
    %v5750 = vtanh.pop %v5749
    %v5751 = vsel %vm2554, %v5750, %v5674
    %v5752 = vld [vmem:[#allocation2 + $0xc8] sm:$0xff]
    %v5754 = vsel %vm76, %v5751, 0
    %5756 = vmatprep.subr.mxu0 0.0
    %5757 = vmatpush1.msra.mxu0 %v3403
    %5758 = vmatprep.subr.mxu0 0.0
    %5759 = vmatpush1.msra.mxu0 %v3404
    %5760 = vmatprep.subr.mxu0 0.0
    %5761 = vmatpush1.msra.mxu0 %v3405
    %5762 = vmatprep.subr.mxu0 0.0
    %5763 = vmatpush1.msra.mxu0 %v3406
    %5764 = vmatprep.subr.mxu0 0.0
    %5765 = vmatpush1.msra.mxu0 0.0
    %5766 = vmatprep.subr.mxu0 0.0
    %5767 = vmatpush1.msra.mxu0 0.0
    %5768 = vmatprep.subr.mxu0 0.0
    %5769 = vmatpush1.msra.mxu0 0.0
    %5770 = vmatprep.subr.mxu0 0.0
    %5771 = vmatpush1.msra.mxu0 0.0
    %5772 = vmatprep.subr.mxu0 0.0
    %5773 = vmatpush1.msra.mxu0 0.0
    %5774 = vmatprep.subr.mxu0 0.0
    %5775 = vmatpush1.msra.mxu0 0.0
    %5776 = vmatprep.subr.mxu0 0.0
    %5777 = vmatpush1.msra.mxu0 0.0
    %5778 = vmatprep.subr.mxu0 0.0
    %5779 = vmatpush1.msra.mxu0 0.0
    %5780 = vmatprep.subr.mxu0 0.0
    %5781 = vmatpush1.msra.mxu0 0.0
    %5782 = vmatprep.subr.mxu0 0.0
    %5783 = vmatpush1.msra.mxu0 0.0
    %5784 = vmatprep.subr.mxu0 0.0
    %5785 = vmatpush1.msra.mxu0 0.0
    %5786 = vmatprep.subr.mxu0 0.0
    %5787 = vmatpush1.msra.mxu0 0.0
    %5788 = vmatprep.subr.mxu0 0.0
    %5789 = vmatpush1.msra.mxu0 0.0
    %5790 = vmatprep.subr.mxu0 0.0
    %5791 = vmatpush1.msra.mxu0 0.0
    %5792 = vmatprep.subr.mxu0 0.0
    %5793 = vmatpush1.msra.mxu0 0.0
    %5794 = vmatprep.subr.mxu0 0.0
    %5795 = vmatpush1.msra.mxu0 0.0
    %5796 = vmatprep.subr.mxu0 0.0
    %5797 = vmatpush1.msra.mxu0 0.0
    %5798 = vmatprep.subr.mxu0 0.0
    %5799 = vmatpush1.msra.mxu0 0.0
    %5800 = vmatprep.subr.mxu0 0.0
    %5801 = vmatpush1.msra.mxu0 0.0
    %5802 = vmatprep.subr.mxu0 0.0
    %5803 = vmatpush1.msra.mxu0 0.0
    %5804 = vmatprep.subr.mxu0 0.0
    %5805 = vmatpush1.msra.mxu0 0.0
    %5806 = vmatprep.subr.mxu0 0.0
    %5807 = vmatpush1.msra.mxu0 0.0
    %5808 = vmatprep.subr.mxu0 0.0
    %5809 = vmatpush1.msra.mxu0 0.0
    %5810 = vmatprep.subr.mxu0 0.0
    %5811 = vmatpush1.msra.mxu0 0.0
    %5812 = vmatprep.subr.mxu0 0.0
    %5813 = vmatpush1.msra.mxu0 0.0
    %5814 = vmatprep.subr.mxu0 0.0
    %5815 = vmatpush1.msra.mxu0 0.0
    %5816 = vmatprep.subr.mxu0 0.0
    %5817 = vmatpush1.msra.mxu0 0.0
    %5818 = vmatprep.subr.mxu0 0.0
    %5819 = vmatpush1.msra.mxu0 0.0
    %5820 = vmatprep.mubr.f32.mxu0 0.0
    %5821 = vmatmul.mubr.f32.gmra.mrb[0].mxu0 %v5754
    %v5822 = vpop.f32.mrb[0].mxu0
    %v5823 = vadd.f32 0.0, %v5822
    %v5824 = vpop.f32.mrb[0].mxu0
    %5825 = vdwg.mxu0
    %v5826 = vadd.f32 %v5752, %v5823
    %v5827 = vtanh.pop %v5826
    %v5828 = vsel %vm2638, %v5827, %v5751
    %v5829 = vld [vmem:[#allocation2 + $0xd0] sm:$0xff]
    %v5831 = vsel %vm76, %v5828, 0
    %5833 = vmatprep.subr.mxu0 0.0
    %5834 = vmatpush1.msra.mxu0 %v3403
    %5835 = vmatprep.subr.mxu0 0.0
    %5836 = vmatpush1.msra.mxu0 %v3404
    %5837 = vmatprep.subr.mxu0 0.0
    %5838 = vmatpush1.msra.mxu0 %v3405
    %5839 = vmatprep.subr.mxu0 0.0
    %5840 = vmatpush1.msra.mxu0 %v3406
    %5841 = vmatprep.subr.mxu0 0.0
    %5842 = vmatpush1.msra.mxu0 0.0
    %5843 = vmatprep.subr.mxu0 0.0
    %5844 = vmatpush1.msra.mxu0 0.0
    %5845 = vmatprep.subr.mxu0 0.0
    %5846 = vmatpush1.msra.mxu0 0.0
    %5847 = vmatprep.subr.mxu0 0.0
    %5848 = vmatpush1.msra.mxu0 0.0
    %5849 = vmatprep.subr.mxu0 0.0
    %5850 = vmatpush1.msra.mxu0 0.0
    %5851 = vmatprep.subr.mxu0 0.0
    %5852 = vmatpush1.msra.mxu0 0.0
    %5853 = vmatprep.subr.mxu0 0.0
    %5854 = vmatpush1.msra.mxu0 0.0
    %5855 = vmatprep.subr.mxu0 0.0
    %5856 = vmatpush1.msra.mxu0 0.0
    %5857 = vmatprep.subr.mxu0 0.0
    %5858 = vmatpush1.msra.mxu0 0.0
    %5859 = vmatprep.subr.mxu0 0.0
    %5860 = vmatpush1.msra.mxu0 0.0
    %5861 = vmatprep.subr.mxu0 0.0
    %5862 = vmatpush1.msra.mxu0 0.0
    %5863 = vmatprep.subr.mxu0 0.0
    %5864 = vmatpush1.msra.mxu0 0.0
    %5865 = vmatprep.subr.mxu0 0.0
    %5866 = vmatpush1.msra.mxu0 0.0
    %5867 = vmatprep.subr.mxu0 0.0
    %5868 = vmatpush1.msra.mxu0 0.0
    %5869 = vmatprep.subr.mxu0 0.0
    %5870 = vmatpush1.msra.mxu0 0.0
    %5871 = vmatprep.subr.mxu0 0.0
    %5872 = vmatpush1.msra.mxu0 0.0
    %5873 = vmatprep.subr.mxu0 0.0
    %5874 = vmatpush1.msra.mxu0 0.0
    %5875 = vmatprep.subr.mxu0 0.0
    %5876 = vmatpush1.msra.mxu0 0.0
    %5877 = vmatprep.subr.mxu0 0.0
    %5878 = vmatpush1.msra.mxu0 0.0
    %5879 = vmatprep.subr.mxu0 0.0
    %5880 = vmatpush1.msra.mxu0 0.0
    %5881 = vmatprep.subr.mxu0 0.0
    %5882 = vmatpush1.msra.mxu0 0.0
    %5883 = vmatprep.subr.mxu0 0.0
    %5884 = vmatpush1.msra.mxu0 0.0
    %5885 = vmatprep.subr.mxu0 0.0
    %5886 = vmatpush1.msra.mxu0 0.0
    %5887 = vmatprep.subr.mxu0 0.0
    %5888 = vmatpush1.msra.mxu0 0.0
    %5889 = vmatprep.subr.mxu0 0.0
    %5890 = vmatpush1.msra.mxu0 0.0
    %5891 = vmatprep.subr.mxu0 0.0
    %5892 = vmatpush1.msra.mxu0 0.0
    %5893 = vmatprep.subr.mxu0 0.0
    %5894 = vmatpush1.msra.mxu0 0.0
    %5895 = vmatprep.subr.mxu0 0.0
    %5896 = vmatpush1.msra.mxu0 0.0
    %5897 = vmatprep.mubr.f32.mxu0 0.0
    %5898 = vmatmul.mubr.f32.gmra.mrb[0].mxu0 %v5831
    %v5899 = vpop.f32.mrb[0].mxu0
    %v5900 = vadd.f32 0.0, %v5899
    %v5901 = vpop.f32.mrb[0].mxu0
    %5902 = vdwg.mxu0
    %v5903 = vadd.f32 %v5829, %v5900
    %v5904 = vtanh.pop %v5903
    %v5905 = vsel %vm2722, %v5904, %v5828
    %v5906 = vld [vmem:[#allocation2 + $0xd8] sm:$0xff]
    %v5908 = vsel %vm76, %v5905, 0
    %5910 = vmatprep.subr.mxu0 0.0
    %5911 = vmatpush1.msra.mxu0 %v3403
    %5912 = vmatprep.subr.mxu0 0.0
    %5913 = vmatpush1.msra.mxu0 %v3404
    %5914 = vmatprep.subr.mxu0 0.0
    %5915 = vmatpush1.msra.mxu0 %v3405
    %5916 = vmatprep.subr.mxu0 0.0
    %5917 = vmatpush1.msra.mxu0 %v3406
    %5918 = vmatprep.subr.mxu0 0.0
    %5919 = vmatpush1.msra.mxu0 0.0
    %5920 = vmatprep.subr.mxu0 0.0
    %5921 = vmatpush1.msra.mxu0 0.0
    %5922 = vmatprep.subr.mxu0 0.0
    %5923 = vmatpush1.msra.mxu0 0.0
    %5924 = vmatprep.subr.mxu0 0.0
    %5925 = vmatpush1.msra.mxu0 0.0
    %5926 = vmatprep.subr.mxu0 0.0
    %5927 = vmatpush1.msra.mxu0 0.0
    %5928 = vmatprep.subr.mxu0 0.0
    %5929 = vmatpush1.msra.mxu0 0.0
    %5930 = vmatprep.subr.mxu0 0.0
    %5931 = vmatpush1.msra.mxu0 0.0
    %5932 = vmatprep.subr.mxu0 0.0
    %5933 = vmatpush1.msra.mxu0 0.0
    %5934 = vmatprep.subr.mxu0 0.0
    %5935 = vmatpush1.msra.mxu0 0.0
    %5936 = vmatprep.subr.mxu0 0.0
    %5937 = vmatpush1.msra.mxu0 0.0
    %5938 = vmatprep.subr.mxu0 0.0
    %5939 = vmatpush1.msra.mxu0 0.0
    %5940 = vmatprep.subr.mxu0 0.0
    %5941 = vmatpush1.msra.mxu0 0.0
    %5942 = vmatprep.subr.mxu0 0.0
    %5943 = vmatpush1.msra.mxu0 0.0
    %5944 = vmatprep.subr.mxu0 0.0
    %5945 = vmatpush1.msra.mxu0 0.0
    %5946 = vmatprep.subr.mxu0 0.0
    %5947 = vmatpush1.msra.mxu0 0.0
    %5948 = vmatprep.subr.mxu0 0.0
    %5949 = vmatpush1.msra.mxu0 0.0
    %5950 = vmatprep.subr.mxu0 0.0
    %5951 = vmatpush1.msra.mxu0 0.0
    %5952 = vmatprep.subr.mxu0 0.0
    %5953 = vmatpush1.msra.mxu0 0.0
    %5954 = vmatprep.subr.mxu0 0.0
    %5955 = vmatpush1.msra.mxu0 0.0
    %5956 = vmatprep.subr.mxu0 0.0
    %5957 = vmatpush1.msra.mxu0 0.0
    %5958 = vmatprep.subr.mxu0 0.0
    %5959 = vmatpush1.msra.mxu0 0.0
    %5960 = vmatprep.subr.mxu0 0.0
    %5961 = vmatpush1.msra.mxu0 0.0
    %5962 = vmatprep.subr.mxu0 0.0
    %5963 = vmatpush1.msra.mxu0 0.0
    %5964 = vmatprep.subr.mxu0 0.0
    %5965 = vmatpush1.msra.mxu0 0.0
    %5966 = vmatprep.subr.mxu0 0.0
    %5967 = vmatpush1.msra.mxu0 0.0
    %5968 = vmatprep.subr.mxu0 0.0
    %5969 = vmatpush1.msra.mxu0 0.0
    %5970 = vmatprep.subr.mxu0 0.0
    %5971 = vmatpush1.msra.mxu0 0.0
    %5972 = vmatprep.subr.mxu0 0.0
    %5973 = vmatpush1.msra.mxu0 0.0
    %5974 = vmatprep.mubr.f32.mxu0 0.0
    %5975 = vmatmul.mubr.f32.gmra.mrb[0].mxu0 %v5908
    %v5976 = vpop.f32.mrb[0].mxu0
    %v5977 = vadd.f32 0.0, %v5976
    %v5978 = vpop.f32.mrb[0].mxu0
    %5979 = vdwg.mxu0
    %v5980 = vadd.f32 %v5906, %v5977
    %v5981 = vtanh.pop %v5980
    %v5982 = vsel %vm2806, %v5981, %v5905
    %v5983 = vld [vmem:[#allocation2 + $0xe0] sm:$0xff]
    %v5985 = vsel %vm76, %v5982, 0
    %5987 = vmatprep.subr.mxu0 0.0
    %5988 = vmatpush1.msra.mxu0 %v3403
    %5989 = vmatprep.subr.mxu0 0.0
    %5990 = vmatpush1.msra.mxu0 %v3404
    %5991 = vmatprep.subr.mxu0 0.0
    %5992 = vmatpush1.msra.mxu0 %v3405
    %5993 = vmatprep.subr.mxu0 0.0
    %5994 = vmatpush1.msra.mxu0 %v3406
    %5995 = vmatprep.subr.mxu0 0.0
    %5996 = vmatpush1.msra.mxu0 0.0
    %5997 = vmatprep.subr.mxu0 0.0
    %5998 = vmatpush1.msra.mxu0 0.0
    %5999 = vmatprep.subr.mxu0 0.0
    %6000 = vmatpush1.msra.mxu0 0.0
    %6001 = vmatprep.subr.mxu0 0.0
    %6002 = vmatpush1.msra.mxu0 0.0
    %6003 = vmatprep.subr.mxu0 0.0
    %6004 = vmatpush1.msra.mxu0 0.0
    %6005 = vmatprep.subr.mxu0 0.0
    %6006 = vmatpush1.msra.mxu0 0.0
    %6007 = vmatprep.subr.mxu0 0.0
    %6008 = vmatpush1.msra.mxu0 0.0
    %6009 = vmatprep.subr.mxu0 0.0
    %6010 = vmatpush1.msra.mxu0 0.0
    %6011 = vmatprep.subr.mxu0 0.0
    %6012 = vmatpush1.msra.mxu0 0.0
    %6013 = vmatprep.subr.mxu0 0.0
    %6014 = vmatpush1.msra.mxu0 0.0
    %6015 = vmatprep.subr.mxu0 0.0
    %6016 = vmatpush1.msra.mxu0 0.0
    %6017 = vmatprep.subr.mxu0 0.0
    %6018 = vmatpush1.msra.mxu0 0.0
    %6019 = vmatprep.subr.mxu0 0.0
    %6020 = vmatpush1.msra.mxu0 0.0
    %6021 = vmatprep.subr.mxu0 0.0
    %6022 = vmatpush1.msra.mxu0 0.0
    %6023 = vmatprep.subr.mxu0 0.0
    %6024 = vmatpush1.msra.mxu0 0.0
    %6025 = vmatprep.subr.mxu0 0.0
    %6026 = vmatpush1.msra.mxu0 0.0
    %6027 = vmatprep.subr.mxu0 0.0
    %6028 = vmatpush1.msra.mxu0 0.0
    %6029 = vmatprep.subr.mxu0 0.0
    %6030 = vmatpush1.msra.mxu0 0.0
    %6031 = vmatprep.subr.mxu0 0.0
    %6032 = vmatpush1.msra.mxu0 0.0
    %6033 = vmatprep.subr.mxu0 0.0
    %6034 = vmatpush1.msra.mxu0 0.0
    %6035 = vmatprep.subr.mxu0 0.0
    %6036 = vmatpush1.msra.mxu0 0.0
    %6037 = vmatprep.subr.mxu0 0.0
    %6038 = vmatpush1.msra.mxu0 0.0
    %6039 = vmatprep.subr.mxu0 0.0
    %6040 = vmatpush1.msra.mxu0 0.0
    %6041 = vmatprep.subr.mxu0 0.0
    %6042 = vmatpush1.msra.mxu0 0.0
    %6043 = vmatprep.subr.mxu0 0.0
    %6044 = vmatpush1.msra.mxu0 0.0
    %6045 = vmatprep.subr.mxu0 0.0
    %6046 = vmatpush1.msra.mxu0 0.0
    %6047 = vmatprep.subr.mxu0 0.0
    %6048 = vmatpush1.msra.mxu0 0.0
    %6049 = vmatprep.subr.mxu0 0.0
    %6050 = vmatpush1.msra.mxu0 0.0
    %6051 = vmatprep.mubr.f32.mxu0 0.0
    %6052 = vmatmul.mubr.f32.gmra.mrb[0].mxu0 %v5985
    %v6053 = vpop.f32.mrb[0].mxu0
    %v6054 = vadd.f32 0.0, %v6053
    %v6055 = vpop.f32.mrb[0].mxu0
    %6056 = vdwg.mxu0
    %v6057 = vadd.f32 %v5983, %v6054
    %v6058 = vtanh.pop %v6057
    %v6059 = vsel %vm2890, %v6058, %v5982
    %v6060 = vld [vmem:[#allocation2 + $0xe8] sm:$0xff]
    %v6062 = vsel %vm76, %v6059, 0
    %6064 = vmatprep.subr.mxu0 0.0
    %6065 = vmatpush1.msra.mxu0 %v3403
    %6066 = vmatprep.subr.mxu0 0.0
    %6067 = vmatpush1.msra.mxu0 %v3404
    %6068 = vmatprep.subr.mxu0 0.0
    %6069 = vmatpush1.msra.mxu0 %v3405
    %6070 = vmatprep.subr.mxu0 0.0
    %6071 = vmatpush1.msra.mxu0 %v3406
    %6072 = vmatprep.subr.mxu0 0.0
    %6073 = vmatpush1.msra.mxu0 0.0
    %6074 = vmatprep.subr.mxu0 0.0
    %6075 = vmatpush1.msra.mxu0 0.0
    %6076 = vmatprep.subr.mxu0 0.0
    %6077 = vmatpush1.msra.mxu0 0.0
    %6078 = vmatprep.subr.mxu0 0.0
    %6079 = vmatpush1.msra.mxu0 0.0
    %6080 = vmatprep.subr.mxu0 0.0
    %6081 = vmatpush1.msra.mxu0 0.0
    %6082 = vmatprep.subr.mxu0 0.0
    %6083 = vmatpush1.msra.mxu0 0.0
    %6084 = vmatprep.subr.mxu0 0.0
    %6085 = vmatpush1.msra.mxu0 0.0
    %6086 = vmatprep.subr.mxu0 0.0
    %6087 = vmatpush1.msra.mxu0 0.0
    %6088 = vmatprep.subr.mxu0 0.0
    %6089 = vmatpush1.msra.mxu0 0.0
    %6090 = vmatprep.subr.mxu0 0.0
    %6091 = vmatpush1.msra.mxu0 0.0
    %6092 = vmatprep.subr.mxu0 0.0
    %6093 = vmatpush1.msra.mxu0 0.0
    %6094 = vmatprep.subr.mxu0 0.0
    %6095 = vmatpush1.msra.mxu0 0.0
    %6096 = vmatprep.subr.mxu0 0.0
    %6097 = vmatpush1.msra.mxu0 0.0
    %6098 = vmatprep.subr.mxu0 0.0
    %6099 = vmatpush1.msra.mxu0 0.0
    %6100 = vmatprep.subr.mxu0 0.0
    %6101 = vmatpush1.msra.mxu0 0.0
    %6102 = vmatprep.subr.mxu0 0.0
    %6103 = vmatpush1.msra.mxu0 0.0
    %6104 = vmatprep.subr.mxu0 0.0
    %6105 = vmatpush1.msra.mxu0 0.0
    %6106 = vmatprep.subr.mxu0 0.0
    %6107 = vmatpush1.msra.mxu0 0.0
    %6108 = vmatprep.subr.mxu0 0.0
    %6109 = vmatpush1.msra.mxu0 0.0
    %6110 = vmatprep.subr.mxu0 0.0
    %6111 = vmatpush1.msra.mxu0 0.0
    %6112 = vmatprep.subr.mxu0 0.0
    %6113 = vmatpush1.msra.mxu0 0.0
    %6114 = vmatprep.subr.mxu0 0.0
    %6115 = vmatpush1.msra.mxu0 0.0
    %6116 = vmatprep.subr.mxu0 0.0
    %6117 = vmatpush1.msra.mxu0 0.0
    %6118 = vmatprep.subr.mxu0 0.0
    %6119 = vmatpush1.msra.mxu0 0.0
    %6120 = vmatprep.subr.mxu0 0.0
    %6121 = vmatpush1.msra.mxu0 0.0
    %6122 = vmatprep.subr.mxu0 0.0
    %6123 = vmatpush1.msra.mxu0 0.0
    %6124 = vmatprep.subr.mxu0 0.0
    %6125 = vmatpush1.msra.mxu0 0.0
    %6126 = vmatprep.subr.mxu0 0.0
    %6127 = vmatpush1.msra.mxu0 0.0
    %6128 = vmatprep.mubr.f32.mxu0 0.0
    %6129 = vmatmul.mubr.f32.gmra.mrb[0].mxu0 %v6062
    %v6130 = vpop.f32.mrb[0].mxu0
    %v6131 = vadd.f32 0.0, %v6130
    %v6132 = vpop.f32.mrb[0].mxu0
    %6133 = vdwg.mxu0
    %v6134 = vadd.f32 %v6060, %v6131
    %v6135 = vtanh.pop %v6134
    %v6136 = vsel %vm2974, %v6135, %v6059
    %v6137 = vld [vmem:[#allocation2 + $0xf0] sm:$0xff]
    %v6139 = vsel %vm76, %v6136, 0
    %6141 = vmatprep.subr.mxu0 0.0
    %6142 = vmatpush1.msra.mxu0 %v3403
    %6143 = vmatprep.subr.mxu0 0.0
    %6144 = vmatpush1.msra.mxu0 %v3404
    %6145 = vmatprep.subr.mxu0 0.0
    %6146 = vmatpush1.msra.mxu0 %v3405
    %6147 = vmatprep.subr.mxu0 0.0
    %6148 = vmatpush1.msra.mxu0 %v3406
    %6149 = vmatprep.subr.mxu0 0.0
    %6150 = vmatpush1.msra.mxu0 0.0
    %6151 = vmatprep.subr.mxu0 0.0
    %6152 = vmatpush1.msra.mxu0 0.0
    %6153 = vmatprep.subr.mxu0 0.0
    %6154 = vmatpush1.msra.mxu0 0.0
    %6155 = vmatprep.subr.mxu0 0.0
    %6156 = vmatpush1.msra.mxu0 0.0
    %6157 = vmatprep.subr.mxu0 0.0
    %6158 = vmatpush1.msra.mxu0 0.0
    %6159 = vmatprep.subr.mxu0 0.0
    %6160 = vmatpush1.msra.mxu0 0.0
    %6161 = vmatprep.subr.mxu0 0.0
    %6162 = vmatpush1.msra.mxu0 0.0
    %6163 = vmatprep.subr.mxu0 0.0
    %6164 = vmatpush1.msra.mxu0 0.0
    %6165 = vmatprep.subr.mxu0 0.0
    %6166 = vmatpush1.msra.mxu0 0.0
    %6167 = vmatprep.subr.mxu0 0.0
    %6168 = vmatpush1.msra.mxu0 0.0
    %6169 = vmatprep.subr.mxu0 0.0
    %6170 = vmatpush1.msra.mxu0 0.0
    %6171 = vmatprep.subr.mxu0 0.0
    %6172 = vmatpush1.msra.mxu0 0.0
    %6173 = vmatprep.subr.mxu0 0.0
    %6174 = vmatpush1.msra.mxu0 0.0
    %6175 = vmatprep.subr.mxu0 0.0
    %6176 = vmatpush1.msra.mxu0 0.0
    %6177 = vmatprep.subr.mxu0 0.0
    %6178 = vmatpush1.msra.mxu0 0.0
    %6179 = vmatprep.subr.mxu0 0.0
    %6180 = vmatpush1.msra.mxu0 0.0
    %6181 = vmatprep.subr.mxu0 0.0
    %6182 = vmatpush1.msra.mxu0 0.0
    %6183 = vmatprep.subr.mxu0 0.0
    %6184 = vmatpush1.msra.mxu0 0.0
    %6185 = vmatprep.subr.mxu0 0.0
    %6186 = vmatpush1.msra.mxu0 0.0
    %6187 = vmatprep.subr.mxu0 0.0
    %6188 = vmatpush1.msra.mxu0 0.0
    %6189 = vmatprep.subr.mxu0 0.0
    %6190 = vmatpush1.msra.mxu0 0.0
    %6191 = vmatprep.subr.mxu0 0.0
    %6192 = vmatpush1.msra.mxu0 0.0
    %6193 = vmatprep.subr.mxu0 0.0
    %6194 = vmatpush1.msra.mxu0 0.0
    %6195 = vmatprep.subr.mxu0 0.0
    %6196 = vmatpush1.msra.mxu0 0.0
    %6197 = vmatprep.subr.mxu0 0.0
    %6198 = vmatpush1.msra.mxu0 0.0
    %6199 = vmatprep.subr.mxu0 0.0
    %6200 = vmatpush1.msra.mxu0 0.0
    %6201 = vmatprep.subr.mxu0 0.0
    %6202 = vmatpush1.msra.mxu0 0.0
    %6203 = vmatprep.subr.mxu0 0.0
    %6204 = vmatpush1.msra.mxu0 0.0
    %6205 = vmatprep.mubr.f32.mxu0 0.0
    %6206 = vmatmul.mubr.f32.gmra.mrb[0].mxu0 %v6139
    %v6207 = vpop.f32.mrb[0].mxu0
    %v6208 = vadd.f32 0.0, %v6207
    %v6209 = vpop.f32.mrb[0].mxu0
    %6210 = vdwg.mxu0
    %v6211 = vadd.f32 %v6137, %v6208
    %v6212 = vtanh.pop %v6211
    %v6213 = vsel %vm3058, %v6212, %v6136
    %v6214 = vld [vmem:[#allocation2 + $0xf8] sm:$0xff]
    %v6216 = vsel %vm76, %v6213, 0
    %6218 = vmatprep.subr.mxu0 0.0
    %6219 = vmatpush1.msra.mxu0 %v3403
    %6220 = vmatprep.subr.mxu0 0.0
    %6221 = vmatpush1.msra.mxu0 %v3404
    %6222 = vmatprep.subr.mxu0 0.0
    %6223 = vmatpush1.msra.mxu0 %v3405
    %6224 = vmatprep.subr.mxu0 0.0
    %6225 = vmatpush1.msra.mxu0 %v3406
    %6226 = vmatprep.subr.mxu0 0.0
    %6227 = vmatpush1.msra.mxu0 0.0
    %6228 = vmatprep.subr.mxu0 0.0
    %6229 = vmatpush1.msra.mxu0 0.0
    %6230 = vmatprep.subr.mxu0 0.0
    %6231 = vmatpush1.msra.mxu0 0.0
    %6232 = vmatprep.subr.mxu0 0.0
    %6233 = vmatpush1.msra.mxu0 0.0
    %6234 = vmatprep.subr.mxu0 0.0
    %6235 = vmatpush1.msra.mxu0 0.0
    %6236 = vmatprep.subr.mxu0 0.0
    %6237 = vmatpush1.msra.mxu0 0.0
    %6238 = vmatprep.subr.mxu0 0.0
    %6239 = vmatpush1.msra.mxu0 0.0
    %6240 = vmatprep.subr.mxu0 0.0
    %6241 = vmatpush1.msra.mxu0 0.0
    %6242 = vmatprep.subr.mxu0 0.0
    %6243 = vmatpush1.msra.mxu0 0.0
    %6244 = vmatprep.subr.mxu0 0.0
    %6245 = vmatpush1.msra.mxu0 0.0
    %6246 = vmatprep.subr.mxu0 0.0
    %6247 = vmatpush1.msra.mxu0 0.0
    %6248 = vmatprep.subr.mxu0 0.0
    %6249 = vmatpush1.msra.mxu0 0.0
    %6250 = vmatprep.subr.mxu0 0.0
    %6251 = vmatpush1.msra.mxu0 0.0
    %6252 = vmatprep.subr.mxu0 0.0
    %6253 = vmatpush1.msra.mxu0 0.0
    %6254 = vmatprep.subr.mxu0 0.0
    %6255 = vmatpush1.msra.mxu0 0.0
    %6256 = vmatprep.subr.mxu0 0.0
    %6257 = vmatpush1.msra.mxu0 0.0
    %6258 = vmatprep.subr.mxu0 0.0
    %6259 = vmatpush1.msra.mxu0 0.0
    %6260 = vmatprep.subr.mxu0 0.0
    %6261 = vmatpush1.msra.mxu0 0.0
    %6262 = vmatprep.subr.mxu0 0.0
    %6263 = vmatpush1.msra.mxu0 0.0
    %6264 = vmatprep.subr.mxu0 0.0
    %6265 = vmatpush1.msra.mxu0 0.0
    %6266 = vmatprep.subr.mxu0 0.0
    %6267 = vmatpush1.msra.mxu0 0.0
    %6268 = vmatprep.subr.mxu0 0.0
    %6269 = vmatpush1.msra.mxu0 0.0
    %6270 = vmatprep.subr.mxu0 0.0
    %6271 = vmatpush1.msra.mxu0 0.0
    %6272 = vmatprep.subr.mxu0 0.0
    %6273 = vmatpush1.msra.mxu0 0.0
    %6274 = vmatprep.subr.mxu0 0.0
    %6275 = vmatpush1.msra.mxu0 0.0
    %6276 = vmatprep.subr.mxu0 0.0
    %6277 = vmatpush1.msra.mxu0 0.0
    %6278 = vmatprep.subr.mxu0 0.0
    %6279 = vmatpush1.msra.mxu0 0.0
    %6280 = vmatprep.subr.mxu0 0.0
    %6281 = vmatpush1.msra.mxu0 0.0
    %6282 = vmatprep.mubr.f32.mxu0 0.0
    %6283 = vmatmul.mubr.f32.gmra.mrb[0].mxu0 %v6216
    %v6284 = vpop.f32.mrb[0].mxu0
    %v6285 = vadd.f32 0.0, %v6284
    %v6286 = vpop.f32.mrb[0].mxu0
    %6287 = vdwg.mxu0
    %v6288 = vadd.f32 %v6214, %v6285
    %v6289 = vtanh.pop %v6288
    %v6290 = vsel %vm3142, %v6289, %v6213
    %v6291 = vld [vmem:[#allocation2 + $0x100] sm:$0xff]
    %v6293 = vsel %vm76, %v6290, 0
    %6295 = vmatprep.subr.mxu0 0.0
    %6296 = vmatpush1.msra.mxu0 %v3403
    %6297 = vmatprep.subr.mxu0 0.0
    %6298 = vmatpush1.msra.mxu0 %v3404
    %6299 = vmatprep.subr.mxu0 0.0
    %6300 = vmatpush1.msra.mxu0 %v3405
    %6301 = vmatprep.subr.mxu0 0.0
    %6302 = vmatpush1.msra.mxu0 %v3406
    %6303 = vmatprep.subr.mxu0 0.0
    %6304 = vmatpush1.msra.mxu0 0.0
    %6305 = vmatprep.subr.mxu0 0.0
    %6306 = vmatpush1.msra.mxu0 0.0
    %6307 = vmatprep.subr.mxu0 0.0
    %6308 = vmatpush1.msra.mxu0 0.0
    %6309 = vmatprep.subr.mxu0 0.0
    %6310 = vmatpush1.msra.mxu0 0.0
    %6311 = vmatprep.subr.mxu0 0.0
    %6312 = vmatpush1.msra.mxu0 0.0
    %6313 = vmatprep.subr.mxu0 0.0
    %6314 = vmatpush1.msra.mxu0 0.0
    %6315 = vmatprep.subr.mxu0 0.0
    %6316 = vmatpush1.msra.mxu0 0.0
    %6317 = vmatprep.subr.mxu0 0.0
    %6318 = vmatpush1.msra.mxu0 0.0
    %6319 = vmatprep.subr.mxu0 0.0
    %6320 = vmatpush1.msra.mxu0 0.0
    %6321 = vmatprep.subr.mxu0 0.0
    %6322 = vmatpush1.msra.mxu0 0.0
    %6323 = vmatprep.subr.mxu0 0.0
    %6324 = vmatpush1.msra.mxu0 0.0
    %6325 = vmatprep.subr.mxu0 0.0
    %6326 = vmatpush1.msra.mxu0 0.0
    %6327 = vmatprep.subr.mxu0 0.0
    %6328 = vmatpush1.msra.mxu0 0.0
    %6329 = vmatprep.subr.mxu0 0.0
    %6330 = vmatpush1.msra.mxu0 0.0
    %6331 = vmatprep.subr.mxu0 0.0
    %6332 = vmatpush1.msra.mxu0 0.0
    %6333 = vmatprep.subr.mxu0 0.0
    %6334 = vmatpush1.msra.mxu0 0.0
    %6335 = vmatprep.subr.mxu0 0.0
    %6336 = vmatpush1.msra.mxu0 0.0
    %6337 = vmatprep.subr.mxu0 0.0
    %6338 = vmatpush1.msra.mxu0 0.0
    %6339 = vmatprep.subr.mxu0 0.0
    %6340 = vmatpush1.msra.mxu0 0.0
    %6341 = vmatprep.subr.mxu0 0.0
    %6342 = vmatpush1.msra.mxu0 0.0
    %6343 = vmatprep.subr.mxu0 0.0
    %6344 = vmatpush1.msra.mxu0 0.0
    %6345 = vmatprep.subr.mxu0 0.0
    %6346 = vmatpush1.msra.mxu0 0.0
    %6347 = vmatprep.subr.mxu0 0.0
    %6348 = vmatpush1.msra.mxu0 0.0
    %6349 = vmatprep.subr.mxu0 0.0
    %6350 = vmatpush1.msra.mxu0 0.0
    %6351 = vmatprep.subr.mxu0 0.0
    %6352 = vmatpush1.msra.mxu0 0.0
    %6353 = vmatprep.subr.mxu0 0.0
    %6354 = vmatpush1.msra.mxu0 0.0
    %6355 = vmatprep.subr.mxu0 0.0
    %6356 = vmatpush1.msra.mxu0 0.0
    %6357 = vmatprep.subr.mxu0 0.0
    %6358 = vmatpush1.msra.mxu0 0.0
    %6359 = vmatprep.mubr.f32.mxu0 0.0
    %6360 = vmatmul.mubr.f32.gmra.mrb[0].mxu0 %v6293
    %v6361 = vpop.f32.mrb[0].mxu0
    %v6362 = vadd.f32 0.0, %v6361
    %v6363 = vpop.f32.mrb[0].mxu0
    %6364 = vdwg.mxu0
    %v6365 = vadd.f32 %v6291, %v6362
    %v6366 = vtanh.pop %v6365
    %v6367 = vsel %vm3226, %v6366, %v6290
    %v6368 = vld [vmem:[#allocation2 + $0x108] sm:$0xff]
    %v6370 = vsel %vm76, %v6367, 0
    %6372 = vmatprep.subr.mxu0 0.0
    %6373 = vmatpush1.msra.mxu0 %v3403
    %6374 = vmatprep.subr.mxu0 0.0
    %6375 = vmatpush1.msra.mxu0 %v3404
    %6376 = vmatprep.subr.mxu0 0.0
    %6377 = vmatpush1.msra.mxu0 %v3405
    %6378 = vmatprep.subr.mxu0 0.0
    %6379 = vmatpush1.msra.mxu0 %v3406
    %6380 = vmatprep.subr.mxu0 0.0
    %6381 = vmatpush1.msra.mxu0 0.0
    %6382 = vmatprep.subr.mxu0 0.0
    %6383 = vmatpush1.msra.mxu0 0.0
    %6384 = vmatprep.subr.mxu0 0.0
    %6385 = vmatpush1.msra.mxu0 0.0
    %6386 = vmatprep.subr.mxu0 0.0
    %6387 = vmatpush1.msra.mxu0 0.0
    %6388 = vmatprep.subr.mxu0 0.0
    %6389 = vmatpush1.msra.mxu0 0.0
    %6390 = vmatprep.subr.mxu0 0.0
    %6391 = vmatpush1.msra.mxu0 0.0
    %6392 = vmatprep.subr.mxu0 0.0
    %6393 = vmatpush1.msra.mxu0 0.0
    %6394 = vmatprep.subr.mxu0 0.0
    %6395 = vmatpush1.msra.mxu0 0.0
    %6396 = vmatprep.subr.mxu0 0.0
    %6397 = vmatpush1.msra.mxu0 0.0
    %6398 = vmatprep.subr.mxu0 0.0
    %6399 = vmatpush1.msra.mxu0 0.0
    %6400 = vmatprep.subr.mxu0 0.0
    %6401 = vmatpush1.msra.mxu0 0.0
    %6402 = vmatprep.subr.mxu0 0.0
    %6403 = vmatpush1.msra.mxu0 0.0
    %6404 = vmatprep.subr.mxu0 0.0
    %6405 = vmatpush1.msra.mxu0 0.0
    %6406 = vmatprep.subr.mxu0 0.0
    %6407 = vmatpush1.msra.mxu0 0.0
    %6408 = vmatprep.subr.mxu0 0.0
    %6409 = vmatpush1.msra.mxu0 0.0
    %6410 = vmatprep.subr.mxu0 0.0
    %6411 = vmatpush1.msra.mxu0 0.0
    %6412 = vmatprep.subr.mxu0 0.0
    %6413 = vmatpush1.msra.mxu0 0.0
    %6414 = vmatprep.subr.mxu0 0.0
    %6415 = vmatpush1.msra.mxu0 0.0
    %6416 = vmatprep.subr.mxu0 0.0
    %6417 = vmatpush1.msra.mxu0 0.0
    %6418 = vmatprep.subr.mxu0 0.0
    %6419 = vmatpush1.msra.mxu0 0.0
    %6420 = vmatprep.subr.mxu0 0.0
    %6421 = vmatpush1.msra.mxu0 0.0
    %6422 = vmatprep.subr.mxu0 0.0
    %6423 = vmatpush1.msra.mxu0 0.0
    %6424 = vmatprep.subr.mxu0 0.0
    %6425 = vmatpush1.msra.mxu0 0.0
    %6426 = vmatprep.subr.mxu0 0.0
    %6427 = vmatpush1.msra.mxu0 0.0
    %6428 = vmatprep.subr.mxu0 0.0
    %6429 = vmatpush1.msra.mxu0 0.0
    %6430 = vmatprep.subr.mxu0 0.0
    %6431 = vmatpush1.msra.mxu0 0.0
    %6432 = vmatprep.subr.mxu0 0.0
    %6433 = vmatpush1.msra.mxu0 0.0
    %6434 = vmatprep.subr.mxu0 0.0
    %6435 = vmatpush1.msra.mxu0 0.0
    %6436 = vmatprep.mubr.f32.mxu0 0.0
    %6437 = vmatmul.mubr.f32.gmra.mrb[0].mxu0 %v6370
    %v6438 = vpop.f32.mrb[0].mxu0
    %v6439 = vadd.f32 0.0, %v6438
    %v6440 = vpop.f32.mrb[0].mxu0
    %6441 = vdwg.mxu0
    %v6442 = vadd.f32 %v6368, %v6439
    %v6443 = vtanh.pop %v6442
    %v6444 = vsel %vm3310, %v6443, %v6367
    %v6445 = vld [vmem:[#allocation2 + $0x110] sm:$0xff]
    %v6447 = vsel %vm76, %v6444, 0
    %6449 = vmatprep.subr.mxu0 0.0
    %6450 = vmatpush1.msra.mxu0 %v3403
    %6451 = vmatprep.subr.mxu0 0.0
    %6452 = vmatpush1.msra.mxu0 %v3404
    %6453 = vmatprep.subr.mxu0 0.0
    %6454 = vmatpush1.msra.mxu0 %v3405
    %6455 = vmatprep.subr.mxu0 0.0
    %6456 = vmatpush1.msra.mxu0 %v3406
    %6457 = vmatprep.subr.mxu0 0.0
    %6458 = vmatpush1.msra.mxu0 0.0
    %6459 = vmatprep.subr.mxu0 0.0
    %6460 = vmatpush1.msra.mxu0 0.0
    %6461 = vmatprep.subr.mxu0 0.0
    %6462 = vmatpush1.msra.mxu0 0.0
    %6463 = vmatprep.subr.mxu0 0.0
    %6464 = vmatpush1.msra.mxu0 0.0
    %6465 = vmatprep.subr.mxu0 0.0
    %6466 = vmatpush1.msra.mxu0 0.0
    %6467 = vmatprep.subr.mxu0 0.0
    %6468 = vmatpush1.msra.mxu0 0.0
    %6469 = vmatprep.subr.mxu0 0.0
    %6470 = vmatpush1.msra.mxu0 0.0
    %6471 = vmatprep.subr.mxu0 0.0
    %6472 = vmatpush1.msra.mxu0 0.0
    %6473 = vmatprep.subr.mxu0 0.0
    %6474 = vmatpush1.msra.mxu0 0.0
    %6475 = vmatprep.subr.mxu0 0.0
    %6476 = vmatpush1.msra.mxu0 0.0
    %6477 = vmatprep.subr.mxu0 0.0
    %6478 = vmatpush1.msra.mxu0 0.0
    %6479 = vmatprep.subr.mxu0 0.0
    %6480 = vmatpush1.msra.mxu0 0.0
    %6481 = vmatprep.subr.mxu0 0.0
    %6482 = vmatpush1.msra.mxu0 0.0
    %6483 = vmatprep.subr.mxu0 0.0
    %6484 = vmatpush1.msra.mxu0 0.0
    %6485 = vmatprep.subr.mxu0 0.0
    %6486 = vmatpush1.msra.mxu0 0.0
    %6487 = vmatprep.subr.mxu0 0.0
    %6488 = vmatpush1.msra.mxu0 0.0
    %6489 = vmatprep.subr.mxu0 0.0
    %6490 = vmatpush1.msra.mxu0 0.0
    %6491 = vmatprep.subr.mxu0 0.0
    %6492 = vmatpush1.msra.mxu0 0.0
    %6493 = vmatprep.subr.mxu0 0.0
    %6494 = vmatpush1.msra.mxu0 0.0
    %6495 = vmatprep.subr.mxu0 0.0
    %6496 = vmatpush1.msra.mxu0 0.0
    %6497 = vmatprep.subr.mxu0 0.0
    %6498 = vmatpush1.msra.mxu0 0.0
    %6499 = vmatprep.subr.mxu0 0.0
    %6500 = vmatpush1.msra.mxu0 0.0
    %6501 = vmatprep.subr.mxu0 0.0
    %6502 = vmatpush1.msra.mxu0 0.0
    %6503 = vmatprep.subr.mxu0 0.0
    %6504 = vmatpush1.msra.mxu0 0.0
    %6505 = vmatprep.subr.mxu0 0.0
    %6506 = vmatpush1.msra.mxu0 0.0
    %6507 = vmatprep.subr.mxu0 0.0
    %6508 = vmatpush1.msra.mxu0 0.0
    %6509 = vmatprep.subr.mxu0 0.0
    %6510 = vmatpush1.msra.mxu0 0.0
    %6511 = vmatprep.subr.mxu0 0.0
    %6512 = vmatpush1.msra.mxu0 0.0
    %6513 = vmatprep.mubr.f32.mxu0 0.0
    %6514 = vmatmul.mubr.f32.gmra.mrb[0].mxu0 %v6447
    %v6515 = vpop.f32.mrb[0].mxu0
    %v6516 = vadd.f32 0.0, %v6515
    %v6517 = vpop.f32.mrb[0].mxu0
    %6518 = vdwg.mxu0
    %v6519 = vadd.f32 %v6445, %v6516
    %v6520 = vtanh.pop %v6519
    %v6521 = vsel %vm3394, %v6520, %v6444
    %v6522 = vld [vmem:[%s4] sm:$0xff]
    %v6523 = vld [vmem:[%s4 + $0x8] sm:$0xff]
    %v6524 = vld [vmem:[%s4 + $0x10] sm:$0xff]
    %v6525 = vld [vmem:[%s4 + $0x18] sm:$0xff]
    %v6526 = vld [vmem:[%s5] sm:$0x1]
    %v6528 = vlaneseq
    %v6529 = vshrl.u32 %v6528, 7
    %v6530 = vsub.s32 0, %v6529
    %v6531 = vrot.slane %v6526, %v6530
    %v6534 = vsel %vm76, %v6521, 0
    %6536 = vmatprep.subr.mxu0 0.0
    %6537 = vmatpush1.msra.mxu0 %v6522
    %6538 = vmatprep.subr.mxu0 0.0
    %6539 = vmatpush1.msra.mxu0 %v6523
    %6540 = vmatprep.subr.mxu0 0.0
    %6541 = vmatpush1.msra.mxu0 %v6524
    %6542 = vmatprep.subr.mxu0 0.0
    %6543 = vmatpush1.msra.mxu0 %v6525
    %6544 = vmatprep.subr.mxu0 0.0
    %6545 = vmatpush1.msra.mxu0 0.0
    %6546 = vmatprep.subr.mxu0 0.0
    %6547 = vmatpush1.msra.mxu0 0.0
    %6548 = vmatprep.subr.mxu0 0.0
    %6549 = vmatpush1.msra.mxu0 0.0
    %6550 = vmatprep.subr.mxu0 0.0
    %6551 = vmatpush1.msra.mxu0 0.0
    %6552 = vmatprep.subr.mxu0 0.0
    %6553 = vmatpush1.msra.mxu0 0.0
    %6554 = vmatprep.subr.mxu0 0.0
    %6555 = vmatpush1.msra.mxu0 0.0
    %6556 = vmatprep.subr.mxu0 0.0
    %6557 = vmatpush1.msra.mxu0 0.0
    %6558 = vmatprep.subr.mxu0 0.0
    %6559 = vmatpush1.msra.mxu0 0.0
    %6560 = vmatprep.subr.mxu0 0.0
    %6561 = vmatpush1.msra.mxu0 0.0
    %6562 = vmatprep.subr.mxu0 0.0
    %6563 = vmatpush1.msra.mxu0 0.0
    %6564 = vmatprep.subr.mxu0 0.0
    %6565 = vmatpush1.msra.mxu0 0.0
    %6566 = vmatprep.subr.mxu0 0.0
    %6567 = vmatpush1.msra.mxu0 0.0
    %6568 = vmatprep.subr.mxu0 0.0
    %6569 = vmatpush1.msra.mxu0 0.0
    %6570 = vmatprep.subr.mxu0 0.0
    %6571 = vmatpush1.msra.mxu0 0.0
    %6572 = vmatprep.subr.mxu0 0.0
    %6573 = vmatpush1.msra.mxu0 0.0
    %6574 = vmatprep.subr.mxu0 0.0
    %6575 = vmatpush1.msra.mxu0 0.0
    %6576 = vmatprep.subr.mxu0 0.0
    %6577 = vmatpush1.msra.mxu0 0.0
    %6578 = vmatprep.subr.mxu0 0.0
    %6579 = vmatpush1.msra.mxu0 0.0
    %6580 = vmatprep.subr.mxu0 0.0
    %6581 = vmatpush1.msra.mxu0 0.0
    %6582 = vmatprep.subr.mxu0 0.0
    %6583 = vmatpush1.msra.mxu0 0.0
    %6584 = vmatprep.subr.mxu0 0.0
    %6585 = vmatpush1.msra.mxu0 0.0
    %6586 = vmatprep.subr.mxu0 0.0
    %6587 = vmatpush1.msra.mxu0 0.0
    %6588 = vmatprep.subr.mxu0 0.0
    %6589 = vmatpush1.msra.mxu0 0.0
    %6590 = vmatprep.subr.mxu0 0.0
    %6591 = vmatpush1.msra.mxu0 0.0
    %6592 = vmatprep.subr.mxu0 0.0
    %6593 = vmatpush1.msra.mxu0 0.0
    %6594 = vmatprep.subr.mxu0 0.0
    %6595 = vmatpush1.msra.mxu0 0.0
    %6596 = vmatprep.subr.mxu0 0.0
    %6597 = vmatpush1.msra.mxu0 0.0
    %6598 = vmatprep.subr.mxu0 0.0
    %6599 = vmatpush1.msra.mxu0 0.0
    %6600 = vmatprep.mubr.f32.mxu0 0.0
    %6601 = vmatmul.mubr.f32.gmra.mrb[0].mxu0 %v6534
    %v6602 = vpop.f32.mrb[0].mxu0
    %v6603 = vadd.f32 %v6531, %v6602
    %v6604 = vpop.f32.mrb[0].mxu0
    %6605 = vdwg.mxu0
    %6606 = vst [vmem:[#allocation3] sm:$0xff] %v6603
    // Predicated region
    $region26: #{tpu_custom_call.1} parent=1 // pred_check
      _
    $region27: #{tpu_custom_call.1} parent=1 // pred_check_branch
      %6608 = sbr.rel (0) target = $region29
    $region28: #{tpu_custom_call.1} parent=1 // pred_region
      %s6610 = ssub.s32 128, 128
      %6611 = vsyncadd [#allocation4], %s6610
      %s6613 = sshll.u32 [#allocation3], 4
      %s6614 = int_to_ptr.vmem [resolvable:$true] %s6613
      %6616 = dma.vmem_to_hbm [thread:$0]  %s6614, 128, %s6, [#allocation4]
    $region29: #{tpu_custom_call.1} parent=1 // pred_fallthru
      _
    // Predicated region
    $region30: #{tpu_custom_call.1} parent=1 // pred_check
      _
    $region31: #{tpu_custom_call.1} parent=1 // pred_check_branch
      %6618 = sbr.rel (0) target = $region33
    $region32: #{tpu_custom_call.1} parent=1 // pred_region
      %6619 = dma.done [#allocation4], 128
    $region33: #{tpu_custom_call.1} parent=1 // pred_fallthru
      _
    %6620 = vsyncpa [#allocation4], 1

</llo_original>
